<compile_context>
chip_gen: v6e
topology: v6e:2x2x1
jax: 0.10.0
libtpu: 0.0.40
codegen_flags: <defaults>
</compile_context>

<pallas_src>
import functools

import jax
import jax.numpy as jnp
from jax.experimental import pallas as pl
from jax.experimental.pallas import tpu as pltpu


# ---------------------------------------------------------------------------
# Fused kernel: 4-layer bidirectional LSTM + Linear + LogSoftmax.
# Gate order (kernel layout): i, f, o, g   (permuted from PyTorch i, f, g, o).
# Weight layouts (pre-transposed, bf16):
#   w_ih : (D, 8H)  = [W_ih_fwd | W_ih_bwd]
#   w_hh : (H, 8H)  = [W_hh_fwd | W_hh_bwd]
#   b    : (1, 8H)  = [b_ih_f + b_hh_f | b_ih_b + b_hh_b]   (f32)
# ---------------------------------------------------------------------------
def fused_rnn_kernel(x_ref, wih0_ref, wih_rest_ref, whh_ref, b_ref,
                     wgen_ref, bgen_ref, out_ref, act_sc, gp_sc,
                     *, seq_len, batch, hidden, slab):
    T, B, H, S = seq_len, batch, hidden, slab
    L = whh_ref.shape[0]
    f32, bf16 = jnp.float32, jnp.bfloat16

    # Zero activation scratch once so padded sublane rows are well defined.
    act_sc[...] = jnp.zeros_like(act_sc)

    for l in range(L):                                   # static layer unroll
        # ---- hoisted input projection: all timesteps, both directions -----
        # (bf16 operands, f32 accumulation; bias added off the critical path)
        if l == 0:
            xin = x_ref[...]                             # (T*S, E) bf16
            wih = wih0_ref[...]                          # (E, 8H)  bf16
        else:
            xin = act_sc[...].astype(bf16)               # (T*S, 2H) prev layer
            wih = wih_rest_ref[l - 1]                    # (2H, 8H) bf16
        gp_sc[...] = (jnp.dot(xin, wih, preferred_element_type=f32)
                      + b_ref[l])                        # (T*S, 8H) f32

        # Per-direction recurrent weights, hoisted (loop-invariant bf16).
        whh = whh_ref[l]                                 # (H, 8H) bf16
        whh_f = whh[:, 0:4 * H]
        whh_b = whh[:, 4 * H:8 * H]

        # ---- recurrence: fwd and bwd as independent chains ----------------
        h_f = jnp.zeros((B, H), f32); c_f = jnp.zeros((B, H), f32)
        h_b = jnp.zeros((B, H), f32); c_b = jnp.zeros((B, H), f32)
        # T is small & static -> full unroll (static, tile-aligned slices).
        # For long sequences switch to lax.fori_loop with pl.ds(t*S, B) and a
        # small unroll factor to bound vreg live ranges.
        for s in range(T):
            tf = s                                       # fwd time index
            tb = T - 1 - s                               # bwd time index

            # forward direction
            g_f = (gp_sc[tf * S:tf * S + B, 0:4 * H]
                   + jnp.dot(h_f.astype(bf16), whh_f,
                             preferred_element_type=f32))        # (B, 4H)
            sg = jax.nn.sigmoid(g_f[:, 0:3 * H])                 # i | f | o
            gg = jnp.tanh(g_f[:, 3 * H:4 * H])                   # g
            c_f = sg[:, H:2 * H] * c_f + sg[:, 0:H] * gg
            h_f = sg[:, 2 * H:3 * H] * jnp.tanh(c_f)
            act_sc[tf * S:tf * S + B, 0:H] = h_f

            # backward direction
            g_b = (gp_sc[tb * S:tb * S + B, 4 * H:8 * H]
                   + jnp.dot(h_b.astype(bf16), whh_b,
                             preferred_element_type=f32))        # (B, 4H)
            sgb = jax.nn.sigmoid(g_b[:, 0:3 * H])
            ggb = jnp.tanh(g_b[:, 3 * H:4 * H])
            c_b = sgb[:, H:2 * H] * c_b + sgb[:, 0:H] * ggb
            h_b = sgb[:, 2 * H:3 * H] * jnp.tanh(c_b)
            act_sc[tb * S:tb * S + B, H:2 * H] = h_b
        # TODO(synk): inter-layer dropout (p=0.3) omitted — eval-mode semantics.

    # ---- classifier + log-softmax on output[:, -1] of the bidir stack -----
    last = act_sc[(T - 1) * S:(T - 1) * S + B, :].astype(bf16)   # (B, 2H)
    logits = (jnp.dot(last, wgen_ref[...], preferred_element_type=f32)
              + bgen_ref[...])
    m = jnp.max(logits, axis=-1, keepdims=True)
    z = logits - m
    lse = jnp.log(jnp.sum(jnp.exp(z), axis=-1, keepdims=True))
    out_ref[...] = (z - lse).astype(out_ref.dtype)


# ---------------------------------------------------------------------------
# Wrapper: embedding gather + layout plumbing in plain JAX, then one kernel.
# ---------------------------------------------------------------------------
@functools.partial(jax.jit, static_argnames=("hidden_size",))
def rnn_classifier_forward(tokens, kparams, hidden_size):
    B, T = tokens.shape
    H = hidden_size
    E = kparams["emb"].shape[1]
    C = kparams["w_gen"].shape[1]
    S = ((B + 7) // 8) * 8                           # sublane-aligned timestep slab

    x = jnp.take(kparams["emb"], tokens, axis=0)     # (B, T, E) embedding lookup
    x = jnp.transpose(x, (1, 0, 2))                  # (T, B, E) time-major
    x = jnp.pad(x, ((0, 0), (0, S - B), (0, 0)))     # (T, S, E) pad batch to 8
    x = x.reshape(T * S, E).astype(jnp.bfloat16)     # 2-D, tile-aligned, bf16

    kernel = functools.partial(fused_rnn_kernel, seq_len=T, batch=B,
                               hidden=H, slab=S)
    vmem = lambda: pl.BlockSpec(memory_space=pltpu.MemorySpace.VMEM)
    return pl.pallas_call(
        kernel,
        out_shape=jax.ShapeDtypeStruct((B, C), jnp.float32),
        in_specs=[vmem() for _ in range(7)],
        out_specs=vmem(),
        scratch_shapes=[
            pltpu.VMEM((T * S, 2 * H), jnp.float32),     # layer activations
            pltpu.VMEM((T * S, 8 * H), jnp.float32),     # hoisted input gates
        ],
        compiler_params=pltpu.CompilerParams(
            vmem_limit_bytes=32 * 1024 * 1024),
    )(x, kparams["w_ih0"], kparams["w_ih_rest"], kparams["w_hh"], kparams["b"],
      kparams["w_gen"], kparams["b_gen"])


# ---------------------------------------------------------------------------
# PyTorch-layout parameter init (uniform(-1/sqrt(H), 1/sqrt(H)), gate order
# i, f, g, o, shapes as nn.LSTM / nn.Linear), and conversion to the fused
# kernel layout ([fwd | bwd] concat, gate permutation to [i, f, o, g], bf16).
# ---------------------------------------------------------------------------
def init_torch_params(key, vocab, emb_dim, hidden, n_classes, n_layers):
    H = hidden
    keys = iter(jax.random.split(key, 1 + 8 * n_layers + 2))

    def uni(k, shape, bound):
        return jax.random.uniform(k, shape, jnp.float32, -bound, bound)

    p = {"emb": jax.random.normal(next(keys), (vocab, emb_dim), jnp.float32)}
    bound = 1.0 / float(H) ** 0.5
    layers = []
    for l in range(n_layers):
        in_dim = emb_dim if l == 0 else 2 * H
        dirs = []
        for _ in range(2):                               # fwd, bwd
            dirs.append({
                "w_ih": uni(next(keys), (4 * H, in_dim), bound),
                "w_hh": uni(next(keys), (4 * H, H), bound),
                "b_ih": uni(next(keys), (4 * H,), bound),
                "b_hh": uni(next(keys), (4 * H,), bound),
            })
        layers.append(dirs)
    p["lstm"] = layers
    gb = 1.0 / float(2 * H) ** 0.5
    p["w_gen"] = uni(next(keys), (n_classes, 2 * H), gb)
    p["b_gen"] = uni(next(keys), (n_classes,), gb)
    return p


def to_kernel_params(tp, hidden):
    H = hidden
    bf16 = jnp.bfloat16
    # Gate permutation: PyTorch (i,f,g,o) -> kernel (i,f,o,g): contiguous
    # sigmoid block (3H) followed by the tanh block (H).
    perm = jnp.concatenate([jnp.arange(0, 2 * H), jnp.arange(3 * H, 4 * H),
                            jnp.arange(2 * H, 3 * H)])

    def fuse(layer):
        wih = jnp.concatenate([d["w_ih"].T[:, perm] for d in layer], axis=1)
        whh = jnp.concatenate([d["w_hh"].T[:, perm] for d in layer], axis=1)
        b = jnp.concatenate([(d["b_ih"] + d["b_hh"])[perm] for d in layer])
        return wih, whh, b[None, :]

    fused = [fuse(layer) for layer in tp["lstm"]]
    n_layers = len(fused)
    kp = {"emb": tp["emb"]}
    kp["w_ih0"] = fused[0][0].astype(bf16)                       # (E, 8H)
    if n_layers > 1:
        kp["w_ih_rest"] = jnp.stack([f[0] for f in fused[1:]]).astype(bf16)
    else:
        kp["w_ih_rest"] = jnp.zeros((1, 2 * H, 8 * H), bf16)     # unused
    kp["w_hh"] = jnp.stack([f[1] for f in fused]).astype(bf16)   # (L, H, 8H)
    kp["b"] = jnp.stack([f[2] for f in fused])                   # (L, 1, 8H) f32
    kp["w_gen"] = tp["w_gen"].T.astype(bf16)                     # (2H, C)
    kp["b_gen"] = tp["b_gen"][None, :]                           # (1, C) f32
    return kp


# ---------------------------------------------------------------------------
# Pure-JAX reference (same semantics as the PyTorch module, eval mode).
# matmul_dtype="bfloat16" mirrors the kernel's MXU precision for tight parity;
# "float32" + Precision.HIGHEST is the full-precision module reference.
# ---------------------------------------------------------------------------
@functools.partial(jax.jit, static_argnames=("hidden_size", "matmul_dtype"))
def reference_forward(tokens, tp, hidden_size, matmul_dtype="float32"):
    H = hidden_size
    md = jnp.dtype(matmul_dtype)
    hp = jax.lax.Precision.HIGHEST

    def mm(a, b):
        return jnp.dot(a.astype(md), b.astype(md), precision=hp,
                       preferred_element_type=jnp.float32)

    x = jnp.take(tp["emb"], tokens, axis=0)
    x = jnp.transpose(x, (1, 0, 2))                      # (T, B, E)
    T, B, _ = x.shape

    def run_dir(xs, d):
        w_ih, w_hh = d["w_ih"].T, d["w_hh"].T
        bias = d["b_ih"] + d["b_hh"]
        h = jnp.zeros((B, H), jnp.float32)
        c = jnp.zeros((B, H), jnp.float32)
        outs = []
        for t in range(T):
            g = mm(xs[t], w_ih) + mm(h, w_hh) + bias
            i = jax.nn.sigmoid(g[:, 0:H])
            f = jax.nn.sigmoid(g[:, H:2 * H])
            gg = jnp.tanh(g[:, 2 * H:3 * H])
            o = jax.nn.sigmoid(g[:, 3 * H:4 * H])
            c = f * c + i * gg
            h = o * jnp.tanh(c)
            outs.append(h)
        return jnp.stack(outs, axis=0)

    for layer in tp["lstm"]:
        fwd = run_dir(x, layer[0])
        bwd = run_dir(x[::-1], layer[1])[::-1]
        x = jnp.concatenate([fwd, bwd], axis=-1)
    last = x[-1]                                         # == output[:, -1]
    logits = mm(last, tp["w_gen"].T) + tp["b_gen"][None, :]
    return jax.nn.log_softmax(logits, axis=-1)


if __name__ == "__main__":
    VOCAB, EMB, HID, NCLS, NLAYERS = 100, 32, 32, 4, 4
    B, T = 2, 8

    key = jax.random.PRNGKey(0)
    k_tok, k_par = jax.random.split(key)
    tokens = jax.random.randint(k_tok, (B, T), 0, VOCAB, dtype=jnp.int32)
    tparams = init_torch_params(k_par, VOCAB, EMB, HID, NCLS, NLAYERS)
    kparams = to_kernel_params(tparams, HID)

    out = jax.block_until_ready(
        rnn_classifier_forward(tokens, kparams, hidden_size=HID))

    assert out.shape == (B, NCLS)
    # log-softmax rows sum (in prob space) to ~1
    assert jnp.allclose(jnp.sum(jnp.exp(out), axis=-1), 1.0, atol=1e-4)

    # Tight parity vs. a reference that mirrors the kernel's bf16 MXU precision.
    ref_bf = jax.block_until_ready(
        reference_forward(tokens, tparams, hidden_size=HID,
                          matmul_dtype="bfloat16"))
    assert jnp.allclose(out, ref_bf, atol=3e-3), (out, ref_bf)

    # Loose parity vs. the full-f32 (Precision.HIGHEST) module semantics.
    ref_f32 = jax.block_until_ready(
        reference_forward(tokens, tparams, hidden_size=HID,
                          matmul_dtype="float32"))
    assert jnp.allclose(out, ref_f32, atol=1e-1), (out, ref_f32)

    print("KERNEL_OK")
</pallas_src>

<mosaic_0001>
module attributes {stable_mosaic.version = 11 : i64} {
  func.func @fused_rnn_kernel(%arg0: memref<64x32xbf16, #tpu.memory_space<vmem>>, %arg1: memref<32x256xbf16, #tpu.memory_space<vmem>>, %arg2: memref<3x64x256xbf16, #tpu.memory_space<vmem>>, %arg3: memref<4x32x256xbf16, #tpu.memory_space<vmem>>, %arg4: memref<4x1x256xf32, #tpu.memory_space<vmem>>, %arg5: memref<64x4xbf16, #tpu.memory_space<vmem>>, %arg6: memref<1x4xf32, #tpu.memory_space<vmem>>, %arg7: memref<2x4xf32, #tpu.memory_space<vmem>>, %arg8: memref<64x64xf32, #tpu.memory_space<vmem>>, %arg9: memref<64x256xf32, #tpu.memory_space<vmem>>) attributes {dimension_semantics = [], scalar_prefetch = 0 : i64, scratch_operands = 2 : i64, tpu.core_type = #tpu.core_type<tc>} {
    %cst = arith.constant 0.000000e+00 : f32
    %0 = vector.broadcast %cst : f32 to vector<64x64xf32>
    %c0 = arith.constant 0 : index
    %c0_0 = arith.constant 0 : index
    %1 = vector.load %arg8[%c0, %c0_0] : memref<64x64xf32, #tpu.memory_space<vmem>>, vector<64x64xf32>
    tpu.vector_store %arg8[%c0, %c0_0], %0 {strides = array<i32>} : memref<64x64xf32, #tpu.memory_space<vmem>>, vector<64x64xf32>,
    %c0_1 = arith.constant 0 : index
    %c0_2 = arith.constant 0 : index
    %2 = vector.load %arg0[%c0_1, %c0_2] : memref<64x32xbf16, #tpu.memory_space<vmem>>, vector<64x32xbf16>
    %c0_3 = arith.constant 0 : index
    %c0_4 = arith.constant 0 : index
    %3 = vector.load %arg1[%c0_3, %c0_4] : memref<32x256xbf16, #tpu.memory_space<vmem>>, vector<32x256xbf16>
    %cst_5 = arith.constant dense<0.000000e+00> : vector<64x256xf32>
    %4 = tpu.matmul %2, %3, %cst_5 {dimension_numbers = #tpu.dot_dimension_numbers<[1], [0], [0], [1], [0, 0, 1, 1], [], []>} : vector<64x32xbf16>, vector<32x256xbf16>, vector<64x256xf32> -> vector<64x256xf32>
    %c0_6 = arith.constant 0 : index
    %c0_7 = arith.constant 0 : index
    %c0_8 = arith.constant 0 : index
    %5 = vector.load %arg4[%c0_6, %c0_7, %c0_8] : memref<4x1x256xf32, #tpu.memory_space<vmem>>, vector<1x1x256xf32>
    %6 = vector.shape_cast %5 : vector<1x1x256xf32> to vector<1x256xf32>
    %7 = vector.broadcast %6 : vector<1x256xf32> to vector<64x256xf32>
    %8 = arith.addf %4, %7 : vector<64x256xf32>
    %c0_9 = arith.constant 0 : index
    %c0_10 = arith.constant 0 : index
    %9 = vector.load %arg9[%c0_9, %c0_10] : memref<64x256xf32, #tpu.memory_space<vmem>>, vector<64x256xf32>
    tpu.vector_store %arg9[%c0_9, %c0_10], %8 {strides = array<i32>} : memref<64x256xf32, #tpu.memory_space<vmem>>, vector<64x256xf32>,
    %c0_11 = arith.constant 0 : index
    %c0_12 = arith.constant 0 : index
    %c0_13 = arith.constant 0 : index
    %10 = vector.load %arg3[%c0_11, %c0_12, %c0_13] : memref<4x32x256xbf16, #tpu.memory_space<vmem>>, vector<1x32x256xbf16>
    %11 = vector.shape_cast %10 : vector<1x32x256xbf16> to vector<32x256xbf16>
    %12 = vector.extract_strided_slice %11 {offsets = [0, 0], sizes = [32, 128], strides = [1, 1]} : vector<32x256xbf16> to vector<32x128xbf16>
    %13 = vector.extract_strided_slice %11 {offsets = [0, 128], sizes = [32, 128], strides = [1, 1]} : vector<32x256xbf16> to vector<32x128xbf16>
    %cst_14 = arith.constant 0.000000e+00 : f32
    %14 = vector.broadcast %cst_14 : f32 to vector<2x32xf32>
    %cst_15 = arith.constant 0.000000e+00 : f32
    %15 = vector.broadcast %cst_15 : f32 to vector<2x32xf32>
    %cst_16 = arith.constant 0.000000e+00 : f32
    %16 = vector.broadcast %cst_16 : f32 to vector<2x32xf32>
    %cst_17 = arith.constant 0.000000e+00 : f32
    %17 = vector.broadcast %cst_17 : f32 to vector<2x32xf32>
    %c0_18 = arith.constant 0 : index
    %c0_19 = arith.constant 0 : index
    %18 = vector.load %arg9[%c0_18, %c0_19] : memref<64x256xf32, #tpu.memory_space<vmem>>, vector<2x128xf32>
    %19 = arith.truncf %14 : vector<2x32xf32> to vector<2x32xbf16>
    %cst_20 = arith.constant dense<0.000000e+00> : vector<2x128xf32>
    %20 = tpu.matmul %19, %12, %cst_20 {dimension_numbers = #tpu.dot_dimension_numbers<[1], [0], [0], [1], [0, 0, 1, 1], [], []>} : vector<2x32xbf16>, vector<32x128xbf16>, vector<2x128xf32> -> vector<2x128xf32>
    %21 = arith.addf %18, %20 : vector<2x128xf32>
    %22 = vector.extract_strided_slice %21 {offsets = [0, 0], sizes = [2, 96], strides = [1, 1]} : vector<2x128xf32> to vector<2x96xf32>
    %23 = arith.negf %22 : vector<2x96xf32>
    %24 = math.exp %23 : vector<2x96xf32>
    %cst_21 = arith.constant 1.000000e+00 : f32
    %25 = vector.broadcast %cst_21 : f32 to vector<2x96xf32>
    %26 = arith.addf %25, %24 : vector<2x96xf32>
    %27 = arith.divf %25, %26 : vector<2x96xf32>
    %28 = vector.extract_strided_slice %21 {offsets = [0, 96], sizes = [2, 32], strides = [1, 1]} : vector<2x128xf32> to vector<2x32xf32>
    %29 = math.tanh %28 : vector<2x32xf32>
    %30 = vector.extract_strided_slice %27 {offsets = [0, 32], sizes = [2, 32], strides = [1, 1]} : vector<2x96xf32> to vector<2x32xf32>
    %31 = arith.mulf %30, %15 : vector<2x32xf32>
    %32 = vector.extract_strided_slice %27 {offsets = [0, 0], sizes = [2, 32], strides = [1, 1]} : vector<2x96xf32> to vector<2x32xf32>
    %33 = arith.mulf %32, %29 : vector<2x32xf32>
    %34 = arith.addf %31, %33 : vector<2x32xf32>
    %35 = vector.extract_strided_slice %27 {offsets = [0, 64], sizes = [2, 32], strides = [1, 1]} : vector<2x96xf32> to vector<2x32xf32>
    %36 = math.tanh %34 : vector<2x32xf32>
    %37 = arith.mulf %35, %36 : vector<2x32xf32>
    %c0_22 = arith.constant 0 : index
    %c0_23 = arith.constant 0 : index
    %38 = vector.load %arg8[%c0_22, %c0_23] : memref<64x64xf32, #tpu.memory_space<vmem>>, vector<2x32xf32>
    tpu.vector_store %arg8[%c0_22, %c0_23], %37 {strides = array<i32>} : memref<64x64xf32, #tpu.memory_space<vmem>>, vector<2x32xf32>,
    %c56 = arith.constant 56 : index
    %c128 = arith.constant 128 : index
    %39 = vector.load %arg9[%c56, %c128] : memref<64x256xf32, #tpu.memory_space<vmem>>, vector<2x128xf32>
    %40 = arith.truncf %16 : vector<2x32xf32> to vector<2x32xbf16>
    %cst_24 = arith.constant dense<0.000000e+00> : vector<2x128xf32>
    %41 = tpu.matmul %40, %13, %cst_24 {dimension_numbers = #tpu.dot_dimension_numbers<[1], [0], [0], [1], [0, 0, 1, 1], [], []>} : vector<2x32xbf16>, vector<32x128xbf16>, vector<2x128xf32> -> vector<2x128xf32>
    %42 = arith.addf %39, %41 : vector<2x128xf32>
    %43 = vector.extract_strided_slice %42 {offsets = [0, 0], sizes = [2, 96], strides = [1, 1]} : vector<2x128xf32> to vector<2x96xf32>
    %44 = arith.negf %43 : vector<2x96xf32>
    %45 = math.exp %44 : vector<2x96xf32>
    %cst_25 = arith.constant 1.000000e+00 : f32
    %46 = vector.broadcast %cst_25 : f32 to vector<2x96xf32>
    %47 = arith.addf %46, %45 : vector<2x96xf32>
    %48 = arith.divf %46, %47 : vector<2x96xf32>
    %49 = vector.extract_strided_slice %42 {offsets = [0, 96], sizes = [2, 32], strides = [1, 1]} : vector<2x128xf32> to vector<2x32xf32>
    %50 = math.tanh %49 : vector<2x32xf32>
    %51 = vector.extract_strided_slice %48 {offsets = [0, 32], sizes = [2, 32], strides = [1, 1]} : vector<2x96xf32> to vector<2x32xf32>
    %52 = arith.mulf %51, %17 : vector<2x32xf32>
    %53 = vector.extract_strided_slice %48 {offsets = [0, 0], sizes = [2, 32], strides = [1, 1]} : vector<2x96xf32> to vector<2x32xf32>
    %54 = arith.mulf %53, %50 : vector<2x32xf32>
    %55 = arith.addf %52, %54 : vector<2x32xf32>
    %56 = vector.extract_strided_slice %48 {offsets = [0, 64], sizes = [2, 32], strides = [1, 1]} : vector<2x96xf32> to vector<2x32xf32>
    %57 = math.tanh %55 : vector<2x32xf32>
    %58 = arith.mulf %56, %57 : vector<2x32xf32>
    %c56_26 = arith.constant 56 : index
    %c32 = arith.constant 32 : index
    %59 = vector.load %arg8[%c56_26, %c32] : memref<64x64xf32, #tpu.memory_space<vmem>>, vector<2x32xf32>
    tpu.vector_store %arg8[%c56_26, %c32], %58 {strides = array<i32>} : memref<64x64xf32, #tpu.memory_space<vmem>>, vector<2x32xf32>,
    %c8 = arith.constant 8 : index
    %c0_27 = arith.constant 0 : index
    %60 = vector.load %arg9[%c8, %c0_27] : memref<64x256xf32, #tpu.memory_space<vmem>>, vector<2x128xf32>
    %61 = arith.truncf %37 : vector<2x32xf32> to vector<2x32xbf16>
    %cst_28 = arith.constant dense<0.000000e+00> : vector<2x128xf32>
    %62 = tpu.matmul %61, %12, %cst_28 {dimension_numbers = #tpu.dot_dimension_numbers<[1], [0], [0], [1], [0, 0, 1, 1], [], []>} : vector<2x32xbf16>, vector<32x128xbf16>, vector<2x128xf32> -> vector<2x128xf32>
    %63 = arith.addf %60, %62 : vector<2x128xf32>
    %64 = vector.extract_strided_slice %63 {offsets = [0, 0], sizes = [2, 96], strides = [1, 1]} : vector<2x128xf32> to vector<2x96xf32>
    %65 = arith.negf %64 : vector<2x96xf32>
    %66 = math.exp %65 : vector<2x96xf32>
    %cst_29 = arith.constant 1.000000e+00 : f32
    %67 = vector.broadcast %cst_29 : f32 to vector<2x96xf32>
    %68 = arith.addf %67, %66 : vector<2x96xf32>
    %69 = arith.divf %67, %68 : vector<2x96xf32>
    %70 = vector.extract_strided_slice %63 {offsets = [0, 96], sizes = [2, 32], strides = [1, 1]} : vector<2x128xf32> to vector<2x32xf32>
    %71 = math.tanh %70 : vector<2x32xf32>
    %72 = vector.extract_strided_slice %69 {offsets = [0, 32], sizes = [2, 32], strides = [1, 1]} : vector<2x96xf32> to vector<2x32xf32>
    %73 = arith.mulf %72, %34 : vector<2x32xf32>
    %74 = vector.extract_strided_slice %69 {offsets = [0, 0], sizes = [2, 32], strides = [1, 1]} : vector<2x96xf32> to vector<2x32xf32>
    %75 = arith.mulf %74, %71 : vector<2x32xf32>
    %76 = arith.addf %73, %75 : vector<2x32xf32>
    %77 = vector.extract_strided_slice %69 {offsets = [0, 64], sizes = [2, 32], strides = [1, 1]} : vector<2x96xf32> to vector<2x32xf32>
    %78 = math.tanh %76 : vector<2x32xf32>
    %79 = arith.mulf %77, %78 : vector<2x32xf32>
    %c8_30 = arith.constant 8 : index
    %c0_31 = arith.constant 0 : index
    %80 = vector.load %arg8[%c8_30, %c0_31] : memref<64x64xf32, #tpu.memory_space<vmem>>, vector<2x32xf32>
    tpu.vector_store %arg8[%c8_30, %c0_31], %79 {strides = array<i32>} : memref<64x64xf32, #tpu.memory_space<vmem>>, vector<2x32xf32>,
    %c48 = arith.constant 48 : index
    %c128_32 = arith.constant 128 : index
    %81 = vector.load %arg9[%c48, %c128_32] : memref<64x256xf32, #tpu.memory_space<vmem>>, vector<2x128xf32>
    %82 = arith.truncf %58 : vector<2x32xf32> to vector<2x32xbf16>
    %cst_33 = arith.constant dense<0.000000e+00> : vector<2x128xf32>
    %83 = tpu.matmul %82, %13, %cst_33 {dimension_numbers = #tpu.dot_dimension_numbers<[1], [0], [0], [1], [0, 0, 1, 1], [], []>} : vector<2x32xbf16>, vector<32x128xbf16>, vector<2x128xf32> -> vector<2x128xf32>
    %84 = arith.addf %81, %83 : vector<2x128xf32>
    %85 = vector.extract_strided_slice %84 {offsets = [0, 0], sizes = [2, 96], strides = [1, 1]} : vector<2x128xf32> to vector<2x96xf32>
    %86 = arith.negf %85 : vector<2x96xf32>
    %87 = math.exp %86 : vector<2x96xf32>
    %cst_34 = arith.constant 1.000000e+00 : f32
    %88 = vector.broadcast %cst_34 : f32 to vector<2x96xf32>
    %89 = arith.addf %88, %87 : vector<2x96xf32>
    %90 = arith.divf %88, %89 : vector<2x96xf32>
    %91 = vector.extract_strided_slice %84 {offsets = [0, 96], sizes = [2, 32], strides = [1, 1]} : vector<2x128xf32> to vector<2x32xf32>
    %92 = math.tanh %91 : vector<2x32xf32>
    %93 = vector.extract_strided_slice %90 {offsets = [0, 32], sizes = [2, 32], strides = [1, 1]} : vector<2x96xf32> to vector<2x32xf32>
    %94 = arith.mulf %93, %55 : vector<2x32xf32>
    %95 = vector.extract_strided_slice %90 {offsets = [0, 0], sizes = [2, 32], strides = [1, 1]} : vector<2x96xf32> to vector<2x32xf32>
    %96 = arith.mulf %95, %92 : vector<2x32xf32>
    %97 = arith.addf %94, %96 : vector<2x32xf32>
    %98 = vector.extract_strided_slice %90 {offsets = [0, 64], sizes = [2, 32], strides = [1, 1]} : vector<2x96xf32> to vector<2x32xf32>
    %99 = math.tanh %97 : vector<2x32xf32>
    %100 = arith.mulf %98, %99 : vector<2x32xf32>
    %c48_35 = arith.constant 48 : index
    %c32_36 = arith.constant 32 : index
    %101 = vector.load %arg8[%c48_35, %c32_36] : memref<64x64xf32, #tpu.memory_space<vmem>>, vector<2x32xf32>
    tpu.vector_store %arg8[%c48_35, %c32_36], %100 {strides = array<i32>} : memref<64x64xf32, #tpu.memory_space<vmem>>, vector<2x32xf32>,
    %c16 = arith.constant 16 : index
    %c0_37 = arith.constant 0 : index
    %102 = vector.load %arg9[%c16, %c0_37] : memref<64x256xf32, #tpu.memory_space<vmem>>, vector<2x128xf32>
    %103 = arith.truncf %79 : vector<2x32xf32> to vector<2x32xbf16>
    %cst_38 = arith.constant dense<0.000000e+00> : vector<2x128xf32>
    %104 = tpu.matmul %103, %12, %cst_38 {dimension_numbers = #tpu.dot_dimension_numbers<[1], [0], [0], [1], [0, 0, 1, 1], [], []>} : vector<2x32xbf16>, vector<32x128xbf16>, vector<2x128xf32> -> vector<2x128xf32>
    %105 = arith.addf %102, %104 : vector<2x128xf32>
    %106 = vector.extract_strided_slice %105 {offsets = [0, 0], sizes = [2, 96], strides = [1, 1]} : vector<2x128xf32> to vector<2x96xf32>
    %107 = arith.negf %106 : vector<2x96xf32>
    %108 = math.exp %107 : vector<2x96xf32>
    %cst_39 = arith.constant 1.000000e+00 : f32
    %109 = vector.broadcast %cst_39 : f32 to vector<2x96xf32>
    %110 = arith.addf %109, %108 : vector<2x96xf32>
    %111 = arith.divf %109, %110 : vector<2x96xf32>
    %112 = vector.extract_strided_slice %105 {offsets = [0, 96], sizes = [2, 32], strides = [1, 1]} : vector<2x128xf32> to vector<2x32xf32>
    %113 = math.tanh %112 : vector<2x32xf32>
    %114 = vector.extract_strided_slice %111 {offsets = [0, 32], sizes = [2, 32], strides = [1, 1]} : vector<2x96xf32> to vector<2x32xf32>
    %115 = arith.mulf %114, %76 : vector<2x32xf32>
    %116 = vector.extract_strided_slice %111 {offsets = [0, 0], sizes = [2, 32], strides = [1, 1]} : vector<2x96xf32> to vector<2x32xf32>
    %117 = arith.mulf %116, %113 : vector<2x32xf32>
    %118 = arith.addf %115, %117 : vector<2x32xf32>
    %119 = vector.extract_strided_slice %111 {offsets = [0, 64], sizes = [2, 32], strides = [1, 1]} : vector<2x96xf32> to vector<2x32xf32>
    %120 = math.tanh %118 : vector<2x32xf32>
    %121 = arith.mulf %119, %120 : vector<2x32xf32>
    %c16_40 = arith.constant 16 : index
    %c0_41 = arith.constant 0 : index
    %122 = vector.load %arg8[%c16_40, %c0_41] : memref<64x64xf32, #tpu.memory_space<vmem>>, vector<2x32xf32>
    tpu.vector_store %arg8[%c16_40, %c0_41], %121 {strides = array<i32>} : memref<64x64xf32, #tpu.memory_space<vmem>>, vector<2x32xf32>,
    %c40 = arith.constant 40 : index
    %c128_42 = arith.constant 128 : index
    %123 = vector.load %arg9[%c40, %c128_42] : memref<64x256xf32, #tpu.memory_space<vmem>>, vector<2x128xf32>
    %124 = arith.truncf %100 : vector<2x32xf32> to vector<2x32xbf16>
    %cst_43 = arith.constant dense<0.000000e+00> : vector<2x128xf32>
    %125 = tpu.matmul %124, %13, %cst_43 {dimension_numbers = #tpu.dot_dimension_numbers<[1], [0], [0], [1], [0, 0, 1, 1], [], []>} : vector<2x32xbf16>, vector<32x128xbf16>, vector<2x128xf32> -> vector<2x128xf32>
    %126 = arith.addf %123, %125 : vector<2x128xf32>
    %127 = vector.extract_strided_slice %126 {offsets = [0, 0], sizes = [2, 96], strides = [1, 1]} : vector<2x128xf32> to vector<2x96xf32>
    %128 = arith.negf %127 : vector<2x96xf32>
    %129 = math.exp %128 : vector<2x96xf32>
    %cst_44 = arith.constant 1.000000e+00 : f32
    %130 = vector.broadcast %cst_44 : f32 to vector<2x96xf32>
    %131 = arith.addf %130, %129 : vector<2x96xf32>
    %132 = arith.divf %130, %131 : vector<2x96xf32>
    %133 = vector.extract_strided_slice %126 {offsets = [0, 96], sizes = [2, 32], strides = [1, 1]} : vector<2x128xf32> to vector<2x32xf32>
    %134 = math.tanh %133 : vector<2x32xf32>
    %135 = vector.extract_strided_slice %132 {offsets = [0, 32], sizes = [2, 32], strides = [1, 1]} : vector<2x96xf32> to vector<2x32xf32>
    %136 = arith.mulf %135, %97 : vector<2x32xf32>
    %137 = vector.extract_strided_slice %132 {offsets = [0, 0], sizes = [2, 32], strides = [1, 1]} : vector<2x96xf32> to vector<2x32xf32>
    %138 = arith.mulf %137, %134 : vector<2x32xf32>
    %139 = arith.addf %136, %138 : vector<2x32xf32>
    %140 = vector.extract_strided_slice %132 {offsets = [0, 64], sizes = [2, 32], strides = [1, 1]} : vector<2x96xf32> to vector<2x32xf32>
    %141 = math.tanh %139 : vector<2x32xf32>
    %142 = arith.mulf %140, %141 : vector<2x32xf32>
    %c40_45 = arith.constant 40 : index
    %c32_46 = arith.constant 32 : index
    %143 = vector.load %arg8[%c40_45, %c32_46] : memref<64x64xf32, #tpu.memory_space<vmem>>, vector<2x32xf32>
    tpu.vector_store %arg8[%c40_45, %c32_46], %142 {strides = array<i32>} : memref<64x64xf32, #tpu.memory_space<vmem>>, vector<2x32xf32>,
    %c24 = arith.constant 24 : index
    %c0_47 = arith.constant 0 : index
    %144 = vector.load %arg9[%c24, %c0_47] : memref<64x256xf32, #tpu.memory_space<vmem>>, vector<2x128xf32>
    %145 = arith.truncf %121 : vector<2x32xf32> to vector<2x32xbf16>
    %cst_48 = arith.constant dense<0.000000e+00> : vector<2x128xf32>
    %146 = tpu.matmul %145, %12, %cst_48 {dimension_numbers = #tpu.dot_dimension_numbers<[1], [0], [0], [1], [0, 0, 1, 1], [], []>} : vector<2x32xbf16>, vector<32x128xbf16>, vector<2x128xf32> -> vector<2x128xf32>
    %147 = arith.addf %144, %146 : vector<2x128xf32>
    %148 = vector.extract_strided_slice %147 {offsets = [0, 0], sizes = [2, 96], strides = [1, 1]} : vector<2x128xf32> to vector<2x96xf32>
    %149 = arith.negf %148 : vector<2x96xf32>
    %150 = math.exp %149 : vector<2x96xf32>
    %cst_49 = arith.constant 1.000000e+00 : f32
    %151 = vector.broadcast %cst_49 : f32 to vector<2x96xf32>
    %152 = arith.addf %151, %150 : vector<2x96xf32>
    %153 = arith.divf %151, %152 : vector<2x96xf32>
    %154 = vector.extract_strided_slice %147 {offsets = [0, 96], sizes = [2, 32], strides = [1, 1]} : vector<2x128xf32> to vector<2x32xf32>
    %155 = math.tanh %154 : vector<2x32xf32>
    %156 = vector.extract_strided_slice %153 {offsets = [0, 32], sizes = [2, 32], strides = [1, 1]} : vector<2x96xf32> to vector<2x32xf32>
    %157 = arith.mulf %156, %118 : vector<2x32xf32>
    %158 = vector.extract_strided_slice %153 {offsets = [0, 0], sizes = [2, 32], strides = [1, 1]} : vector<2x96xf32> to vector<2x32xf32>
    %159 = arith.mulf %158, %155 : vector<2x32xf32>
    %160 = arith.addf %157, %159 : vector<2x32xf32>
    %161 = vector.extract_strided_slice %153 {offsets = [0, 64], sizes = [2, 32], strides = [1, 1]} : vector<2x96xf32> to vector<2x32xf32>
    %162 = math.tanh %160 : vector<2x32xf32>
    %163 = arith.mulf %161, %162 : vector<2x32xf32>
    %c24_50 = arith.constant 24 : index
    %c0_51 = arith.constant 0 : index
    %164 = vector.load %arg8[%c24_50, %c0_51] : memref<64x64xf32, #tpu.memory_space<vmem>>, vector<2x32xf32>
    tpu.vector_store %arg8[%c24_50, %c0_51], %163 {strides = array<i32>} : memref<64x64xf32, #tpu.memory_space<vmem>>, vector<2x32xf32>,
    %c32_52 = arith.constant 32 : index
    %c128_53 = arith.constant 128 : index
    %165 = vector.load %arg9[%c32_52, %c128_53] : memref<64x256xf32, #tpu.memory_space<vmem>>, vector<2x128xf32>
    %166 = arith.truncf %142 : vector<2x32xf32> to vector<2x32xbf16>
    %cst_54 = arith.constant dense<0.000000e+00> : vector<2x128xf32>
    %167 = tpu.matmul %166, %13, %cst_54 {dimension_numbers = #tpu.dot_dimension_numbers<[1], [0], [0], [1], [0, 0, 1, 1], [], []>} : vector<2x32xbf16>, vector<32x128xbf16>, vector<2x128xf32> -> vector<2x128xf32>
    %168 = arith.addf %165, %167 : vector<2x128xf32>
    %169 = vector.extract_strided_slice %168 {offsets = [0, 0], sizes = [2, 96], strides = [1, 1]} : vector<2x128xf32> to vector<2x96xf32>
    %170 = arith.negf %169 : vector<2x96xf32>
    %171 = math.exp %170 : vector<2x96xf32>
    %cst_55 = arith.constant 1.000000e+00 : f32
    %172 = vector.broadcast %cst_55 : f32 to vector<2x96xf32>
    %173 = arith.addf %172, %171 : vector<2x96xf32>
    %174 = arith.divf %172, %173 : vector<2x96xf32>
    %175 = vector.extract_strided_slice %168 {offsets = [0, 96], sizes = [2, 32], strides = [1, 1]} : vector<2x128xf32> to vector<2x32xf32>
    %176 = math.tanh %175 : vector<2x32xf32>
    %177 = vector.extract_strided_slice %174 {offsets = [0, 32], sizes = [2, 32], strides = [1, 1]} : vector<2x96xf32> to vector<2x32xf32>
    %178 = arith.mulf %177, %139 : vector<2x32xf32>
    %179 = vector.extract_strided_slice %174 {offsets = [0, 0], sizes = [2, 32], strides = [1, 1]} : vector<2x96xf32> to vector<2x32xf32>
    %180 = arith.mulf %179, %176 : vector<2x32xf32>
    %181 = arith.addf %178, %180 : vector<2x32xf32>
    %182 = vector.extract_strided_slice %174 {offsets = [0, 64], sizes = [2, 32], strides = [1, 1]} : vector<2x96xf32> to vector<2x32xf32>
    %183 = math.tanh %181 : vector<2x32xf32>
    %184 = arith.mulf %182, %183 : vector<2x32xf32>
    %c32_56 = arith.constant 32 : index
    %c32_57 = arith.constant 32 : index
    %185 = vector.load %arg8[%c32_56, %c32_57] : memref<64x64xf32, #tpu.memory_space<vmem>>, vector<2x32xf32>
    tpu.vector_store %arg8[%c32_56, %c32_57], %184 {strides = array<i32>} : memref<64x64xf32, #tpu.memory_space<vmem>>, vector<2x32xf32>,
    %c32_58 = arith.constant 32 : index
    %c0_59 = arith.constant 0 : index
    %186 = vector.load %arg9[%c32_58, %c0_59] : memref<64x256xf32, #tpu.memory_space<vmem>>, vector<2x128xf32>
    %187 = arith.truncf %163 : vector<2x32xf32> to vector<2x32xbf16>
    %cst_60 = arith.constant dense<0.000000e+00> : vector<2x128xf32>
    %188 = tpu.matmul %187, %12, %cst_60 {dimension_numbers = #tpu.dot_dimension_numbers<[1], [0], [0], [1], [0, 0, 1, 1], [], []>} : vector<2x32xbf16>, vector<32x128xbf16>, vector<2x128xf32> -> vector<2x128xf32>
    %189 = arith.addf %186, %188 : vector<2x128xf32>
    %190 = vector.extract_strided_slice %189 {offsets = [0, 0], sizes = [2, 96], strides = [1, 1]} : vector<2x128xf32> to vector<2x96xf32>
    %191 = arith.negf %190 : vector<2x96xf32>
    %192 = math.exp %191 : vector<2x96xf32>
    %cst_61 = arith.constant 1.000000e+00 : f32
    %193 = vector.broadcast %cst_61 : f32 to vector<2x96xf32>
    %194 = arith.addf %193, %192 : vector<2x96xf32>
    %195 = arith.divf %193, %194 : vector<2x96xf32>
    %196 = vector.extract_strided_slice %189 {offsets = [0, 96], sizes = [2, 32], strides = [1, 1]} : vector<2x128xf32> to vector<2x32xf32>
    %197 = math.tanh %196 : vector<2x32xf32>
    %198 = vector.extract_strided_slice %195 {offsets = [0, 32], sizes = [2, 32], strides = [1, 1]} : vector<2x96xf32> to vector<2x32xf32>
    %199 = arith.mulf %198, %160 : vector<2x32xf32>
    %200 = vector.extract_strided_slice %195 {offsets = [0, 0], sizes = [2, 32], strides = [1, 1]} : vector<2x96xf32> to vector<2x32xf32>
    %201 = arith.mulf %200, %197 : vector<2x32xf32>
    %202 = arith.addf %199, %201 : vector<2x32xf32>
    %203 = vector.extract_strided_slice %195 {offsets = [0, 64], sizes = [2, 32], strides = [1, 1]} : vector<2x96xf32> to vector<2x32xf32>
    %204 = math.tanh %202 : vector<2x32xf32>
    %205 = arith.mulf %203, %204 : vector<2x32xf32>
    %c32_62 = arith.constant 32 : index
    %c0_63 = arith.constant 0 : index
    %206 = vector.load %arg8[%c32_62, %c0_63] : memref<64x64xf32, #tpu.memory_space<vmem>>, vector<2x32xf32>
    tpu.vector_store %arg8[%c32_62, %c0_63], %205 {strides = array<i32>} : memref<64x64xf32, #tpu.memory_space<vmem>>, vector<2x32xf32>,
    %c24_64 = arith.constant 24 : index
    %c128_65 = arith.constant 128 : index
    %207 = vector.load %arg9[%c24_64, %c128_65] : memref<64x256xf32, #tpu.memory_space<vmem>>, vector<2x128xf32>
    %208 = arith.truncf %184 : vector<2x32xf32> to vector<2x32xbf16>
    %cst_66 = arith.constant dense<0.000000e+00> : vector<2x128xf32>
    %209 = tpu.matmul %208, %13, %cst_66 {dimension_numbers = #tpu.dot_dimension_numbers<[1], [0], [0], [1], [0, 0, 1, 1], [], []>} : vector<2x32xbf16>, vector<32x128xbf16>, vector<2x128xf32> -> vector<2x128xf32>
    %210 = arith.addf %207, %209 : vector<2x128xf32>
    %211 = vector.extract_strided_slice %210 {offsets = [0, 0], sizes = [2, 96], strides = [1, 1]} : vector<2x128xf32> to vector<2x96xf32>
    %212 = arith.negf %211 : vector<2x96xf32>
    %213 = math.exp %212 : vector<2x96xf32>
    %cst_67 = arith.constant 1.000000e+00 : f32
    %214 = vector.broadcast %cst_67 : f32 to vector<2x96xf32>
    %215 = arith.addf %214, %213 : vector<2x96xf32>
    %216 = arith.divf %214, %215 : vector<2x96xf32>
    %217 = vector.extract_strided_slice %210 {offsets = [0, 96], sizes = [2, 32], strides = [1, 1]} : vector<2x128xf32> to vector<2x32xf32>
    %218 = math.tanh %217 : vector<2x32xf32>
    %219 = vector.extract_strided_slice %216 {offsets = [0, 32], sizes = [2, 32], strides = [1, 1]} : vector<2x96xf32> to vector<2x32xf32>
    %220 = arith.mulf %219, %181 : vector<2x32xf32>
    %221 = vector.extract_strided_slice %216 {offsets = [0, 0], sizes = [2, 32], strides = [1, 1]} : vector<2x96xf32> to vector<2x32xf32>
    %222 = arith.mulf %221, %218 : vector<2x32xf32>
    %223 = arith.addf %220, %222 : vector<2x32xf32>
    %224 = vector.extract_strided_slice %216 {offsets = [0, 64], sizes = [2, 32], strides = [1, 1]} : vector<2x96xf32> to vector<2x32xf32>
    %225 = math.tanh %223 : vector<2x32xf32>
    %226 = arith.mulf %224, %225 : vector<2x32xf32>
    %c24_68 = arith.constant 24 : index
    %c32_69 = arith.constant 32 : index
    %227 = vector.load %arg8[%c24_68, %c32_69] : memref<64x64xf32, #tpu.memory_space<vmem>>, vector<2x32xf32>
    tpu.vector_store %arg8[%c24_68, %c32_69], %226 {strides = array<i32>} : memref<64x64xf32, #tpu.memory_space<vmem>>, vector<2x32xf32>,
    %c40_70 = arith.constant 40 : index
    %c0_71 = arith.constant 0 : index
    %228 = vector.load %arg9[%c40_70, %c0_71] : memref<64x256xf32, #tpu.memory_space<vmem>>, vector<2x128xf32>
    %229 = arith.truncf %205 : vector<2x32xf32> to vector<2x32xbf16>
    %cst_72 = arith.constant dense<0.000000e+00> : vector<2x128xf32>
    %230 = tpu.matmul %229, %12, %cst_72 {dimension_numbers = #tpu.dot_dimension_numbers<[1], [0], [0], [1], [0, 0, 1, 1], [], []>} : vector<2x32xbf16>, vector<32x128xbf16>, vector<2x128xf32> -> vector<2x128xf32>
    %231 = arith.addf %228, %230 : vector<2x128xf32>
    %232 = vector.extract_strided_slice %231 {offsets = [0, 0], sizes = [2, 96], strides = [1, 1]} : vector<2x128xf32> to vector<2x96xf32>
    %233 = arith.negf %232 : vector<2x96xf32>
    %234 = math.exp %233 : vector<2x96xf32>
    %cst_73 = arith.constant 1.000000e+00 : f32
    %235 = vector.broadcast %cst_73 : f32 to vector<2x96xf32>
    %236 = arith.addf %235, %234 : vector<2x96xf32>
    %237 = arith.divf %235, %236 : vector<2x96xf32>
    %238 = vector.extract_strided_slice %231 {offsets = [0, 96], sizes = [2, 32], strides = [1, 1]} : vector<2x128xf32> to vector<2x32xf32>
    %239 = math.tanh %238 : vector<2x32xf32>
    %240 = vector.extract_strided_slice %237 {offsets = [0, 32], sizes = [2, 32], strides = [1, 1]} : vector<2x96xf32> to vector<2x32xf32>
    %241 = arith.mulf %240, %202 : vector<2x32xf32>
    %242 = vector.extract_strided_slice %237 {offsets = [0, 0], sizes = [2, 32], strides = [1, 1]} : vector<2x96xf32> to vector<2x32xf32>
    %243 = arith.mulf %242, %239 : vector<2x32xf32>
    %244 = arith.addf %241, %243 : vector<2x32xf32>
    %245 = vector.extract_strided_slice %237 {offsets = [0, 64], sizes = [2, 32], strides = [1, 1]} : vector<2x96xf32> to vector<2x32xf32>
    %246 = math.tanh %244 : vector<2x32xf32>
    %247 = arith.mulf %245, %246 : vector<2x32xf32>
    %c40_74 = arith.constant 40 : index
    %c0_75 = arith.constant 0 : index
    %248 = vector.load %arg8[%c40_74, %c0_75] : memref<64x64xf32, #tpu.memory_space<vmem>>, vector<2x32xf32>
    tpu.vector_store %arg8[%c40_74, %c0_75], %247 {strides = array<i32>} : memref<64x64xf32, #tpu.memory_space<vmem>>, vector<2x32xf32>,
    %c16_76 = arith.constant 16 : index
    %c128_77 = arith.constant 128 : index
    %249 = vector.load %arg9[%c16_76, %c128_77] : memref<64x256xf32, #tpu.memory_space<vmem>>, vector<2x128xf32>
    %250 = arith.truncf %226 : vector<2x32xf32> to vector<2x32xbf16>
    %cst_78 = arith.constant dense<0.000000e+00> : vector<2x128xf32>
    %251 = tpu.matmul %250, %13, %cst_78 {dimension_numbers = #tpu.dot_dimension_numbers<[1], [0], [0], [1], [0, 0, 1, 1], [], []>} : vector<2x32xbf16>, vector<32x128xbf16>, vector<2x128xf32> -> vector<2x128xf32>
    %252 = arith.addf %249, %251 : vector<2x128xf32>
    %253 = vector.extract_strided_slice %252 {offsets = [0, 0], sizes = [2, 96], strides = [1, 1]} : vector<2x128xf32> to vector<2x96xf32>
    %254 = arith.negf %253 : vector<2x96xf32>
    %255 = math.exp %254 : vector<2x96xf32>
    %cst_79 = arith.constant 1.000000e+00 : f32
    %256 = vector.broadcast %cst_79 : f32 to vector<2x96xf32>
    %257 = arith.addf %256, %255 : vector<2x96xf32>
    %258 = arith.divf %256, %257 : vector<2x96xf32>
    %259 = vector.extract_strided_slice %252 {offsets = [0, 96], sizes = [2, 32], strides = [1, 1]} : vector<2x128xf32> to vector<2x32xf32>
    %260 = math.tanh %259 : vector<2x32xf32>
    %261 = vector.extract_strided_slice %258 {offsets = [0, 32], sizes = [2, 32], strides = [1, 1]} : vector<2x96xf32> to vector<2x32xf32>
    %262 = arith.mulf %261, %223 : vector<2x32xf32>
    %263 = vector.extract_strided_slice %258 {offsets = [0, 0], sizes = [2, 32], strides = [1, 1]} : vector<2x96xf32> to vector<2x32xf32>
    %264 = arith.mulf %263, %260 : vector<2x32xf32>
    %265 = arith.addf %262, %264 : vector<2x32xf32>
    %266 = vector.extract_strided_slice %258 {offsets = [0, 64], sizes = [2, 32], strides = [1, 1]} : vector<2x96xf32> to vector<2x32xf32>
    %267 = math.tanh %265 : vector<2x32xf32>
    %268 = arith.mulf %266, %267 : vector<2x32xf32>
    %c16_80 = arith.constant 16 : index
    %c32_81 = arith.constant 32 : index
    %269 = vector.load %arg8[%c16_80, %c32_81] : memref<64x64xf32, #tpu.memory_space<vmem>>, vector<2x32xf32>
    tpu.vector_store %arg8[%c16_80, %c32_81], %268 {strides = array<i32>} : memref<64x64xf32, #tpu.memory_space<vmem>>, vector<2x32xf32>,
    %c48_82 = arith.constant 48 : index
    %c0_83 = arith.constant 0 : index
    %270 = vector.load %arg9[%c48_82, %c0_83] : memref<64x256xf32, #tpu.memory_space<vmem>>, vector<2x128xf32>
    %271 = arith.truncf %247 : vector<2x32xf32> to vector<2x32xbf16>
    %cst_84 = arith.constant dense<0.000000e+00> : vector<2x128xf32>
    %272 = tpu.matmul %271, %12, %cst_84 {dimension_numbers = #tpu.dot_dimension_numbers<[1], [0], [0], [1], [0, 0, 1, 1], [], []>} : vector<2x32xbf16>, vector<32x128xbf16>, vector<2x128xf32> -> vector<2x128xf32>
    %273 = arith.addf %270, %272 : vector<2x128xf32>
    %274 = vector.extract_strided_slice %273 {offsets = [0, 0], sizes = [2, 96], strides = [1, 1]} : vector<2x128xf32> to vector<2x96xf32>
    %275 = arith.negf %274 : vector<2x96xf32>
    %276 = math.exp %275 : vector<2x96xf32>
    %cst_85 = arith.constant 1.000000e+00 : f32
    %277 = vector.broadcast %cst_85 : f32 to vector<2x96xf32>
    %278 = arith.addf %277, %276 : vector<2x96xf32>
    %279 = arith.divf %277, %278 : vector<2x96xf32>
    %280 = vector.extract_strided_slice %273 {offsets = [0, 96], sizes = [2, 32], strides = [1, 1]} : vector<2x128xf32> to vector<2x32xf32>
    %281 = math.tanh %280 : vector<2x32xf32>
    %282 = vector.extract_strided_slice %279 {offsets = [0, 32], sizes = [2, 32], strides = [1, 1]} : vector<2x96xf32> to vector<2x32xf32>
    %283 = arith.mulf %282, %244 : vector<2x32xf32>
    %284 = vector.extract_strided_slice %279 {offsets = [0, 0], sizes = [2, 32], strides = [1, 1]} : vector<2x96xf32> to vector<2x32xf32>
    %285 = arith.mulf %284, %281 : vector<2x32xf32>
    %286 = arith.addf %283, %285 : vector<2x32xf32>
    %287 = vector.extract_strided_slice %279 {offsets = [0, 64], sizes = [2, 32], strides = [1, 1]} : vector<2x96xf32> to vector<2x32xf32>
    %288 = math.tanh %286 : vector<2x32xf32>
    %289 = arith.mulf %287, %288 : vector<2x32xf32>
    %c48_86 = arith.constant 48 : index
    %c0_87 = arith.constant 0 : index
    %290 = vector.load %arg8[%c48_86, %c0_87] : memref<64x64xf32, #tpu.memory_space<vmem>>, vector<2x32xf32>
    tpu.vector_store %arg8[%c48_86, %c0_87], %289 {strides = array<i32>} : memref<64x64xf32, #tpu.memory_space<vmem>>, vector<2x32xf32>,
    %c8_88 = arith.constant 8 : index
    %c128_89 = arith.constant 128 : index
    %291 = vector.load %arg9[%c8_88, %c128_89] : memref<64x256xf32, #tpu.memory_space<vmem>>, vector<2x128xf32>
    %292 = arith.truncf %268 : vector<2x32xf32> to vector<2x32xbf16>
    %cst_90 = arith.constant dense<0.000000e+00> : vector<2x128xf32>
    %293 = tpu.matmul %292, %13, %cst_90 {dimension_numbers = #tpu.dot_dimension_numbers<[1], [0], [0], [1], [0, 0, 1, 1], [], []>} : vector<2x32xbf16>, vector<32x128xbf16>, vector<2x128xf32> -> vector<2x128xf32>
    %294 = arith.addf %291, %293 : vector<2x128xf32>
    %295 = vector.extract_strided_slice %294 {offsets = [0, 0], sizes = [2, 96], strides = [1, 1]} : vector<2x128xf32> to vector<2x96xf32>
    %296 = arith.negf %295 : vector<2x96xf32>
    %297 = math.exp %296 : vector<2x96xf32>
    %cst_91 = arith.constant 1.000000e+00 : f32
    %298 = vector.broadcast %cst_91 : f32 to vector<2x96xf32>
    %299 = arith.addf %298, %297 : vector<2x96xf32>
    %300 = arith.divf %298, %299 : vector<2x96xf32>
    %301 = vector.extract_strided_slice %294 {offsets = [0, 96], sizes = [2, 32], strides = [1, 1]} : vector<2x128xf32> to vector<2x32xf32>
    %302 = math.tanh %301 : vector<2x32xf32>
    %303 = vector.extract_strided_slice %300 {offsets = [0, 32], sizes = [2, 32], strides = [1, 1]} : vector<2x96xf32> to vector<2x32xf32>
    %304 = arith.mulf %303, %265 : vector<2x32xf32>
    %305 = vector.extract_strided_slice %300 {offsets = [0, 0], sizes = [2, 32], strides = [1, 1]} : vector<2x96xf32> to vector<2x32xf32>
    %306 = arith.mulf %305, %302 : vector<2x32xf32>
    %307 = arith.addf %304, %306 : vector<2x32xf32>
    %308 = vector.extract_strided_slice %300 {offsets = [0, 64], sizes = [2, 32], strides = [1, 1]} : vector<2x96xf32> to vector<2x32xf32>
    %309 = math.tanh %307 : vector<2x32xf32>
    %310 = arith.mulf %308, %309 : vector<2x32xf32>
    %c8_92 = arith.constant 8 : index
    %c32_93 = arith.constant 32 : index
    %311 = vector.load %arg8[%c8_92, %c32_93] : memref<64x64xf32, #tpu.memory_space<vmem>>, vector<2x32xf32>
    tpu.vector_store %arg8[%c8_92, %c32_93], %310 {strides = array<i32>} : memref<64x64xf32, #tpu.memory_space<vmem>>, vector<2x32xf32>,
    %c56_94 = arith.constant 56 : index
    %c0_95 = arith.constant 0 : index
    %312 = vector.load %arg9[%c56_94, %c0_95] : memref<64x256xf32, #tpu.memory_space<vmem>>, vector<2x128xf32>
    %313 = arith.truncf %289 : vector<2x32xf32> to vector<2x32xbf16>
    %cst_96 = arith.constant dense<0.000000e+00> : vector<2x128xf32>
    %314 = tpu.matmul %313, %12, %cst_96 {dimension_numbers = #tpu.dot_dimension_numbers<[1], [0], [0], [1], [0, 0, 1, 1], [], []>} : vector<2x32xbf16>, vector<32x128xbf16>, vector<2x128xf32> -> vector<2x128xf32>
    %315 = arith.addf %312, %314 : vector<2x128xf32>
    %316 = vector.extract_strided_slice %315 {offsets = [0, 0], sizes = [2, 96], strides = [1, 1]} : vector<2x128xf32> to vector<2x96xf32>
    %317 = arith.negf %316 : vector<2x96xf32>
    %318 = math.exp %317 : vector<2x96xf32>
    %cst_97 = arith.constant 1.000000e+00 : f32
    %319 = vector.broadcast %cst_97 : f32 to vector<2x96xf32>
    %320 = arith.addf %319, %318 : vector<2x96xf32>
    %321 = arith.divf %319, %320 : vector<2x96xf32>
    %322 = vector.extract_strided_slice %315 {offsets = [0, 96], sizes = [2, 32], strides = [1, 1]} : vector<2x128xf32> to vector<2x32xf32>
    %323 = math.tanh %322 : vector<2x32xf32>
    %324 = vector.extract_strided_slice %321 {offsets = [0, 32], sizes = [2, 32], strides = [1, 1]} : vector<2x96xf32> to vector<2x32xf32>
    %325 = arith.mulf %324, %286 : vector<2x32xf32>
    %326 = vector.extract_strided_slice %321 {offsets = [0, 0], sizes = [2, 32], strides = [1, 1]} : vector<2x96xf32> to vector<2x32xf32>
    %327 = arith.mulf %326, %323 : vector<2x32xf32>
    %328 = arith.addf %325, %327 : vector<2x32xf32>
    %329 = vector.extract_strided_slice %321 {offsets = [0, 64], sizes = [2, 32], strides = [1, 1]} : vector<2x96xf32> to vector<2x32xf32>
    %330 = math.tanh %328 : vector<2x32xf32>
    %331 = arith.mulf %329, %330 : vector<2x32xf32>
    %c56_98 = arith.constant 56 : index
    %c0_99 = arith.constant 0 : index
    %332 = vector.load %arg8[%c56_98, %c0_99] : memref<64x64xf32, #tpu.memory_space<vmem>>, vector<2x32xf32>
    tpu.vector_store %arg8[%c56_98, %c0_99], %331 {strides = array<i32>} : memref<64x64xf32, #tpu.memory_space<vmem>>, vector<2x32xf32>,
    %c0_100 = arith.constant 0 : index
    %c128_101 = arith.constant 128 : index
    %333 = vector.load %arg9[%c0_100, %c128_101] : memref<64x256xf32, #tpu.memory_space<vmem>>, vector<2x128xf32>
    %334 = arith.truncf %310 : vector<2x32xf32> to vector<2x32xbf16>
    %cst_102 = arith.constant dense<0.000000e+00> : vector<2x128xf32>
    %335 = tpu.matmul %334, %13, %cst_102 {dimension_numbers = #tpu.dot_dimension_numbers<[1], [0], [0], [1], [0, 0, 1, 1], [], []>} : vector<2x32xbf16>, vector<32x128xbf16>, vector<2x128xf32> -> vector<2x128xf32>
    %336 = arith.addf %333, %335 : vector<2x128xf32>
    %337 = vector.extract_strided_slice %336 {offsets = [0, 0], sizes = [2, 96], strides = [1, 1]} : vector<2x128xf32> to vector<2x96xf32>
    %338 = arith.negf %337 : vector<2x96xf32>
    %339 = math.exp %338 : vector<2x96xf32>
    %cst_103 = arith.constant 1.000000e+00 : f32
    %340 = vector.broadcast %cst_103 : f32 to vector<2x96xf32>
    %341 = arith.addf %340, %339 : vector<2x96xf32>
    %342 = arith.divf %340, %341 : vector<2x96xf32>
    %343 = vector.extract_strided_slice %336 {offsets = [0, 96], sizes = [2, 32], strides = [1, 1]} : vector<2x128xf32> to vector<2x32xf32>
    %344 = math.tanh %343 : vector<2x32xf32>
    %345 = vector.extract_strided_slice %342 {offsets = [0, 32], sizes = [2, 32], strides = [1, 1]} : vector<2x96xf32> to vector<2x32xf32>
    %346 = arith.mulf %345, %307 : vector<2x32xf32>
    %347 = vector.extract_strided_slice %342 {offsets = [0, 0], sizes = [2, 32], strides = [1, 1]} : vector<2x96xf32> to vector<2x32xf32>
    %348 = arith.mulf %347, %344 : vector<2x32xf32>
    %349 = arith.addf %346, %348 : vector<2x32xf32>
    %350 = vector.extract_strided_slice %342 {offsets = [0, 64], sizes = [2, 32], strides = [1, 1]} : vector<2x96xf32> to vector<2x32xf32>
    %351 = math.tanh %349 : vector<2x32xf32>
    %352 = arith.mulf %350, %351 : vector<2x32xf32>
    %c0_104 = arith.constant 0 : index
    %c32_105 = arith.constant 32 : index
    %353 = vector.load %arg8[%c0_104, %c32_105] : memref<64x64xf32, #tpu.memory_space<vmem>>, vector<2x32xf32>
    tpu.vector_store %arg8[%c0_104, %c32_105], %352 {strides = array<i32>} : memref<64x64xf32, #tpu.memory_space<vmem>>, vector<2x32xf32>,
    %c0_106 = arith.constant 0 : index
    %c0_107 = arith.constant 0 : index
    %354 = vector.load %arg8[%c0_106, %c0_107] : memref<64x64xf32, #tpu.memory_space<vmem>>, vector<64x64xf32>
    %355 = arith.truncf %354 : vector<64x64xf32> to vector<64x64xbf16>
    %c0_108 = arith.constant 0 : index
    %c0_109 = arith.constant 0 : index
    %c0_110 = arith.constant 0 : index
    %356 = vector.load %arg2[%c0_108, %c0_109, %c0_110] : memref<3x64x256xbf16, #tpu.memory_space<vmem>>, vector<1x64x256xbf16>
    %357 = vector.shape_cast %356 : vector<1x64x256xbf16> to vector<64x256xbf16>
    %cst_111 = arith.constant dense<0.000000e+00> : vector<64x256xf32>
    %358 = tpu.matmul %355, %357, %cst_111 {dimension_numbers = #tpu.dot_dimension_numbers<[1], [0], [0], [1], [0, 0, 1, 1], [], []>} : vector<64x64xbf16>, vector<64x256xbf16>, vector<64x256xf32> -> vector<64x256xf32>
    %c1 = arith.constant 1 : index
    %c0_112 = arith.constant 0 : index
    %c0_113 = arith.constant 0 : index
    %359 = vector.load %arg4[%c1, %c0_112, %c0_113] : memref<4x1x256xf32, #tpu.memory_space<vmem>>, vector<1x1x256xf32>
    %360 = vector.shape_cast %359 : vector<1x1x256xf32> to vector<1x256xf32>
    %361 = vector.broadcast %360 : vector<1x256xf32> to vector<64x256xf32>
    %362 = arith.addf %358, %361 : vector<64x256xf32>
    %c0_114 = arith.constant 0 : index
    %c0_115 = arith.constant 0 : index
    %363 = vector.load %arg9[%c0_114, %c0_115] : memref<64x256xf32, #tpu.memory_space<vmem>>, vector<64x256xf32>
    tpu.vector_store %arg9[%c0_114, %c0_115], %362 {strides = array<i32>} : memref<64x256xf32, #tpu.memory_space<vmem>>, vector<64x256xf32>,
    %c1_116 = arith.constant 1 : index
    %c0_117 = arith.constant 0 : index
    %c0_118 = arith.constant 0 : index
    %364 = vector.load %arg3[%c1_116, %c0_117, %c0_118] : memref<4x32x256xbf16, #tpu.memory_space<vmem>>, vector<1x32x256xbf16>
    %365 = vector.shape_cast %364 : vector<1x32x256xbf16> to vector<32x256xbf16>
    %366 = vector.extract_strided_slice %365 {offsets = [0, 0], sizes = [32, 128], strides = [1, 1]} : vector<32x256xbf16> to vector<32x128xbf16>
    %367 = vector.extract_strided_slice %365 {offsets = [0, 128], sizes = [32, 128], strides = [1, 1]} : vector<32x256xbf16> to vector<32x128xbf16>
    %cst_119 = arith.constant 0.000000e+00 : f32
    %368 = vector.broadcast %cst_119 : f32 to vector<2x32xf32>
    %cst_120 = arith.constant 0.000000e+00 : f32
    %369 = vector.broadcast %cst_120 : f32 to vector<2x32xf32>
    %cst_121 = arith.constant 0.000000e+00 : f32
    %370 = vector.broadcast %cst_121 : f32 to vector<2x32xf32>
    %cst_122 = arith.constant 0.000000e+00 : f32
    %371 = vector.broadcast %cst_122 : f32 to vector<2x32xf32>
    %c0_123 = arith.constant 0 : index
    %c0_124 = arith.constant 0 : index
    %372 = vector.load %arg9[%c0_123, %c0_124] : memref<64x256xf32, #tpu.memory_space<vmem>>, vector<2x128xf32>
    %373 = arith.truncf %368 : vector<2x32xf32> to vector<2x32xbf16>
    %cst_125 = arith.constant dense<0.000000e+00> : vector<2x128xf32>
    %374 = tpu.matmul %373, %366, %cst_125 {dimension_numbers = #tpu.dot_dimension_numbers<[1], [0], [0], [1], [0, 0, 1, 1], [], []>} : vector<2x32xbf16>, vector<32x128xbf16>, vector<2x128xf32> -> vector<2x128xf32>
    %375 = arith.addf %372, %374 : vector<2x128xf32>
    %376 = vector.extract_strided_slice %375 {offsets = [0, 0], sizes = [2, 96], strides = [1, 1]} : vector<2x128xf32> to vector<2x96xf32>
    %377 = arith.negf %376 : vector<2x96xf32>
    %378 = math.exp %377 : vector<2x96xf32>
    %cst_126 = arith.constant 1.000000e+00 : f32
    %379 = vector.broadcast %cst_126 : f32 to vector<2x96xf32>
    %380 = arith.addf %379, %378 : vector<2x96xf32>
    %381 = arith.divf %379, %380 : vector<2x96xf32>
    %382 = vector.extract_strided_slice %375 {offsets = [0, 96], sizes = [2, 32], strides = [1, 1]} : vector<2x128xf32> to vector<2x32xf32>
    %383 = math.tanh %382 : vector<2x32xf32>
    %384 = vector.extract_strided_slice %381 {offsets = [0, 32], sizes = [2, 32], strides = [1, 1]} : vector<2x96xf32> to vector<2x32xf32>
    %385 = arith.mulf %384, %369 : vector<2x32xf32>
    %386 = vector.extract_strided_slice %381 {offsets = [0, 0], sizes = [2, 32], strides = [1, 1]} : vector<2x96xf32> to vector<2x32xf32>
    %387 = arith.mulf %386, %383 : vector<2x32xf32>
    %388 = arith.addf %385, %387 : vector<2x32xf32>
    %389 = vector.extract_strided_slice %381 {offsets = [0, 64], sizes = [2, 32], strides = [1, 1]} : vector<2x96xf32> to vector<2x32xf32>
    %390 = math.tanh %388 : vector<2x32xf32>
    %391 = arith.mulf %389, %390 : vector<2x32xf32>
    %c0_127 = arith.constant 0 : index
    %c0_128 = arith.constant 0 : index
    %392 = vector.load %arg8[%c0_127, %c0_128] : memref<64x64xf32, #tpu.memory_space<vmem>>, vector<2x32xf32>
    tpu.vector_store %arg8[%c0_127, %c0_128], %391 {strides = array<i32>} : memref<64x64xf32, #tpu.memory_space<vmem>>, vector<2x32xf32>,
    %c56_129 = arith.constant 56 : index
    %c128_130 = arith.constant 128 : index
    %393 = vector.load %arg9[%c56_129, %c128_130] : memref<64x256xf32, #tpu.memory_space<vmem>>, vector<2x128xf32>
    %394 = arith.truncf %370 : vector<2x32xf32> to vector<2x32xbf16>
    %cst_131 = arith.constant dense<0.000000e+00> : vector<2x128xf32>
    %395 = tpu.matmul %394, %367, %cst_131 {dimension_numbers = #tpu.dot_dimension_numbers<[1], [0], [0], [1], [0, 0, 1, 1], [], []>} : vector<2x32xbf16>, vector<32x128xbf16>, vector<2x128xf32> -> vector<2x128xf32>
    %396 = arith.addf %393, %395 : vector<2x128xf32>
    %397 = vector.extract_strided_slice %396 {offsets = [0, 0], sizes = [2, 96], strides = [1, 1]} : vector<2x128xf32> to vector<2x96xf32>
    %398 = arith.negf %397 : vector<2x96xf32>
    %399 = math.exp %398 : vector<2x96xf32>
    %cst_132 = arith.constant 1.000000e+00 : f32
    %400 = vector.broadcast %cst_132 : f32 to vector<2x96xf32>
    %401 = arith.addf %400, %399 : vector<2x96xf32>
    %402 = arith.divf %400, %401 : vector<2x96xf32>
    %403 = vector.extract_strided_slice %396 {offsets = [0, 96], sizes = [2, 32], strides = [1, 1]} : vector<2x128xf32> to vector<2x32xf32>
    %404 = math.tanh %403 : vector<2x32xf32>
    %405 = vector.extract_strided_slice %402 {offsets = [0, 32], sizes = [2, 32], strides = [1, 1]} : vector<2x96xf32> to vector<2x32xf32>
    %406 = arith.mulf %405, %371 : vector<2x32xf32>
    %407 = vector.extract_strided_slice %402 {offsets = [0, 0], sizes = [2, 32], strides = [1, 1]} : vector<2x96xf32> to vector<2x32xf32>
    %408 = arith.mulf %407, %404 : vector<2x32xf32>
    %409 = arith.addf %406, %408 : vector<2x32xf32>
    %410 = vector.extract_strided_slice %402 {offsets = [0, 64], sizes = [2, 32], strides = [1, 1]} : vector<2x96xf32> to vector<2x32xf32>
    %411 = math.tanh %409 : vector<2x32xf32>
    %412 = arith.mulf %410, %411 : vector<2x32xf32>
    %c56_133 = arith.constant 56 : index
    %c32_134 = arith.constant 32 : index
    %413 = vector.load %arg8[%c56_133, %c32_134] : memref<64x64xf32, #tpu.memory_space<vmem>>, vector<2x32xf32>
    tpu.vector_store %arg8[%c56_133, %c32_134], %412 {strides = array<i32>} : memref<64x64xf32, #tpu.memory_space<vmem>>, vector<2x32xf32>,
    %c8_135 = arith.constant 8 : index
    %c0_136 = arith.constant 0 : index
    %414 = vector.load %arg9[%c8_135, %c0_136] : memref<64x256xf32, #tpu.memory_space<vmem>>, vector<2x128xf32>
    %415 = arith.truncf %391 : vector<2x32xf32> to vector<2x32xbf16>
    %cst_137 = arith.constant dense<0.000000e+00> : vector<2x128xf32>
    %416 = tpu.matmul %415, %366, %cst_137 {dimension_numbers = #tpu.dot_dimension_numbers<[1], [0], [0], [1], [0, 0, 1, 1], [], []>} : vector<2x32xbf16>, vector<32x128xbf16>, vector<2x128xf32> -> vector<2x128xf32>
    %417 = arith.addf %414, %416 : vector<2x128xf32>
    %418 = vector.extract_strided_slice %417 {offsets = [0, 0], sizes = [2, 96], strides = [1, 1]} : vector<2x128xf32> to vector<2x96xf32>
    %419 = arith.negf %418 : vector<2x96xf32>
    %420 = math.exp %419 : vector<2x96xf32>
    %cst_138 = arith.constant 1.000000e+00 : f32
    %421 = vector.broadcast %cst_138 : f32 to vector<2x96xf32>
    %422 = arith.addf %421, %420 : vector<2x96xf32>
    %423 = arith.divf %421, %422 : vector<2x96xf32>
    %424 = vector.extract_strided_slice %417 {offsets = [0, 96], sizes = [2, 32], strides = [1, 1]} : vector<2x128xf32> to vector<2x32xf32>
    %425 = math.tanh %424 : vector<2x32xf32>
    %426 = vector.extract_strided_slice %423 {offsets = [0, 32], sizes = [2, 32], strides = [1, 1]} : vector<2x96xf32> to vector<2x32xf32>
    %427 = arith.mulf %426, %388 : vector<2x32xf32>
    %428 = vector.extract_strided_slice %423 {offsets = [0, 0], sizes = [2, 32], strides = [1, 1]} : vector<2x96xf32> to vector<2x32xf32>
    %429 = arith.mulf %428, %425 : vector<2x32xf32>
    %430 = arith.addf %427, %429 : vector<2x32xf32>
    %431 = vector.extract_strided_slice %423 {offsets = [0, 64], sizes = [2, 32], strides = [1, 1]} : vector<2x96xf32> to vector<2x32xf32>
    %432 = math.tanh %430 : vector<2x32xf32>
    %433 = arith.mulf %431, %432 : vector<2x32xf32>
    %c8_139 = arith.constant 8 : index
    %c0_140 = arith.constant 0 : index
    %434 = vector.load %arg8[%c8_139, %c0_140] : memref<64x64xf32, #tpu.memory_space<vmem>>, vector<2x32xf32>
    tpu.vector_store %arg8[%c8_139, %c0_140], %433 {strides = array<i32>} : memref<64x64xf32, #tpu.memory_space<vmem>>, vector<2x32xf32>,
    %c48_141 = arith.constant 48 : index
    %c128_142 = arith.constant 128 : index
    %435 = vector.load %arg9[%c48_141, %c128_142] : memref<64x256xf32, #tpu.memory_space<vmem>>, vector<2x128xf32>
    %436 = arith.truncf %412 : vector<2x32xf32> to vector<2x32xbf16>
    %cst_143 = arith.constant dense<0.000000e+00> : vector<2x128xf32>
    %437 = tpu.matmul %436, %367, %cst_143 {dimension_numbers = #tpu.dot_dimension_numbers<[1], [0], [0], [1], [0, 0, 1, 1], [], []>} : vector<2x32xbf16>, vector<32x128xbf16>, vector<2x128xf32> -> vector<2x128xf32>
    %438 = arith.addf %435, %437 : vector<2x128xf32>
    %439 = vector.extract_strided_slice %438 {offsets = [0, 0], sizes = [2, 96], strides = [1, 1]} : vector<2x128xf32> to vector<2x96xf32>
    %440 = arith.negf %439 : vector<2x96xf32>
    %441 = math.exp %440 : vector<2x96xf32>
    %cst_144 = arith.constant 1.000000e+00 : f32
    %442 = vector.broadcast %cst_144 : f32 to vector<2x96xf32>
    %443 = arith.addf %442, %441 : vector<2x96xf32>
    %444 = arith.divf %442, %443 : vector<2x96xf32>
    %445 = vector.extract_strided_slice %438 {offsets = [0, 96], sizes = [2, 32], strides = [1, 1]} : vector<2x128xf32> to vector<2x32xf32>
    %446 = math.tanh %445 : vector<2x32xf32>
    %447 = vector.extract_strided_slice %444 {offsets = [0, 32], sizes = [2, 32], strides = [1, 1]} : vector<2x96xf32> to vector<2x32xf32>
    %448 = arith.mulf %447, %409 : vector<2x32xf32>
    %449 = vector.extract_strided_slice %444 {offsets = [0, 0], sizes = [2, 32], strides = [1, 1]} : vector<2x96xf32> to vector<2x32xf32>
    %450 = arith.mulf %449, %446 : vector<2x32xf32>
    %451 = arith.addf %448, %450 : vector<2x32xf32>
    %452 = vector.extract_strided_slice %444 {offsets = [0, 64], sizes = [2, 32], strides = [1, 1]} : vector<2x96xf32> to vector<2x32xf32>
    %453 = math.tanh %451 : vector<2x32xf32>
    %454 = arith.mulf %452, %453 : vector<2x32xf32>
    %c48_145 = arith.constant 48 : index
    %c32_146 = arith.constant 32 : index
    %455 = vector.load %arg8[%c48_145, %c32_146] : memref<64x64xf32, #tpu.memory_space<vmem>>, vector<2x32xf32>
    tpu.vector_store %arg8[%c48_145, %c32_146], %454 {strides = array<i32>} : memref<64x64xf32, #tpu.memory_space<vmem>>, vector<2x32xf32>,
    %c16_147 = arith.constant 16 : index
    %c0_148 = arith.constant 0 : index
    %456 = vector.load %arg9[%c16_147, %c0_148] : memref<64x256xf32, #tpu.memory_space<vmem>>, vector<2x128xf32>
    %457 = arith.truncf %433 : vector<2x32xf32> to vector<2x32xbf16>
    %cst_149 = arith.constant dense<0.000000e+00> : vector<2x128xf32>
    %458 = tpu.matmul %457, %366, %cst_149 {dimension_numbers = #tpu.dot_dimension_numbers<[1], [0], [0], [1], [0, 0, 1, 1], [], []>} : vector<2x32xbf16>, vector<32x128xbf16>, vector<2x128xf32> -> vector<2x128xf32>
    %459 = arith.addf %456, %458 : vector<2x128xf32>
    %460 = vector.extract_strided_slice %459 {offsets = [0, 0], sizes = [2, 96], strides = [1, 1]} : vector<2x128xf32> to vector<2x96xf32>
    %461 = arith.negf %460 : vector<2x96xf32>
    %462 = math.exp %461 : vector<2x96xf32>
    %cst_150 = arith.constant 1.000000e+00 : f32
    %463 = vector.broadcast %cst_150 : f32 to vector<2x96xf32>
    %464 = arith.addf %463, %462 : vector<2x96xf32>
    %465 = arith.divf %463, %464 : vector<2x96xf32>
    %466 = vector.extract_strided_slice %459 {offsets = [0, 96], sizes = [2, 32], strides = [1, 1]} : vector<2x128xf32> to vector<2x32xf32>
    %467 = math.tanh %466 : vector<2x32xf32>
    %468 = vector.extract_strided_slice %465 {offsets = [0, 32], sizes = [2, 32], strides = [1, 1]} : vector<2x96xf32> to vector<2x32xf32>
    %469 = arith.mulf %468, %430 : vector<2x32xf32>
    %470 = vector.extract_strided_slice %465 {offsets = [0, 0], sizes = [2, 32], strides = [1, 1]} : vector<2x96xf32> to vector<2x32xf32>
    %471 = arith.mulf %470, %467 : vector<2x32xf32>
    %472 = arith.addf %469, %471 : vector<2x32xf32>
    %473 = vector.extract_strided_slice %465 {offsets = [0, 64], sizes = [2, 32], strides = [1, 1]} : vector<2x96xf32> to vector<2x32xf32>
    %474 = math.tanh %472 : vector<2x32xf32>
    %475 = arith.mulf %473, %474 : vector<2x32xf32>
    %c16_151 = arith.constant 16 : index
    %c0_152 = arith.constant 0 : index
    %476 = vector.load %arg8[%c16_151, %c0_152] : memref<64x64xf32, #tpu.memory_space<vmem>>, vector<2x32xf32>
    tpu.vector_store %arg8[%c16_151, %c0_152], %475 {strides = array<i32>} : memref<64x64xf32, #tpu.memory_space<vmem>>, vector<2x32xf32>,
    %c40_153 = arith.constant 40 : index
    %c128_154 = arith.constant 128 : index
    %477 = vector.load %arg9[%c40_153, %c128_154] : memref<64x256xf32, #tpu.memory_space<vmem>>, vector<2x128xf32>
    %478 = arith.truncf %454 : vector<2x32xf32> to vector<2x32xbf16>
    %cst_155 = arith.constant dense<0.000000e+00> : vector<2x128xf32>
    %479 = tpu.matmul %478, %367, %cst_155 {dimension_numbers = #tpu.dot_dimension_numbers<[1], [0], [0], [1], [0, 0, 1, 1], [], []>} : vector<2x32xbf16>, vector<32x128xbf16>, vector<2x128xf32> -> vector<2x128xf32>
    %480 = arith.addf %477, %479 : vector<2x128xf32>
    %481 = vector.extract_strided_slice %480 {offsets = [0, 0], sizes = [2, 96], strides = [1, 1]} : vector<2x128xf32> to vector<2x96xf32>
    %482 = arith.negf %481 : vector<2x96xf32>
    %483 = math.exp %482 : vector<2x96xf32>
    %cst_156 = arith.constant 1.000000e+00 : f32
    %484 = vector.broadcast %cst_156 : f32 to vector<2x96xf32>
    %485 = arith.addf %484, %483 : vector<2x96xf32>
    %486 = arith.divf %484, %485 : vector<2x96xf32>
    %487 = vector.extract_strided_slice %480 {offsets = [0, 96], sizes = [2, 32], strides = [1, 1]} : vector<2x128xf32> to vector<2x32xf32>
    %488 = math.tanh %487 : vector<2x32xf32>
    %489 = vector.extract_strided_slice %486 {offsets = [0, 32], sizes = [2, 32], strides = [1, 1]} : vector<2x96xf32> to vector<2x32xf32>
    %490 = arith.mulf %489, %451 : vector<2x32xf32>
    %491 = vector.extract_strided_slice %486 {offsets = [0, 0], sizes = [2, 32], strides = [1, 1]} : vector<2x96xf32> to vector<2x32xf32>
    %492 = arith.mulf %491, %488 : vector<2x32xf32>
    %493 = arith.addf %490, %492 : vector<2x32xf32>
    %494 = vector.extract_strided_slice %486 {offsets = [0, 64], sizes = [2, 32], strides = [1, 1]} : vector<2x96xf32> to vector<2x32xf32>
    %495 = math.tanh %493 : vector<2x32xf32>
    %496 = arith.mulf %494, %495 : vector<2x32xf32>
    %c40_157 = arith.constant 40 : index
    %c32_158 = arith.constant 32 : index
    %497 = vector.load %arg8[%c40_157, %c32_158] : memref<64x64xf32, #tpu.memory_space<vmem>>, vector<2x32xf32>
    tpu.vector_store %arg8[%c40_157, %c32_158], %496 {strides = array<i32>} : memref<64x64xf32, #tpu.memory_space<vmem>>, vector<2x32xf32>,
    %c24_159 = arith.constant 24 : index
    %c0_160 = arith.constant 0 : index
    %498 = vector.load %arg9[%c24_159, %c0_160] : memref<64x256xf32, #tpu.memory_space<vmem>>, vector<2x128xf32>
    %499 = arith.truncf %475 : vector<2x32xf32> to vector<2x32xbf16>
    %cst_161 = arith.constant dense<0.000000e+00> : vector<2x128xf32>
    %500 = tpu.matmul %499, %366, %cst_161 {dimension_numbers = #tpu.dot_dimension_numbers<[1], [0], [0], [1], [0, 0, 1, 1], [], []>} : vector<2x32xbf16>, vector<32x128xbf16>, vector<2x128xf32> -> vector<2x128xf32>
    %501 = arith.addf %498, %500 : vector<2x128xf32>
    %502 = vector.extract_strided_slice %501 {offsets = [0, 0], sizes = [2, 96], strides = [1, 1]} : vector<2x128xf32> to vector<2x96xf32>
    %503 = arith.negf %502 : vector<2x96xf32>
    %504 = math.exp %503 : vector<2x96xf32>
    %cst_162 = arith.constant 1.000000e+00 : f32
    %505 = vector.broadcast %cst_162 : f32 to vector<2x96xf32>
    %506 = arith.addf %505, %504 : vector<2x96xf32>
    %507 = arith.divf %505, %506 : vector<2x96xf32>
    %508 = vector.extract_strided_slice %501 {offsets = [0, 96], sizes = [2, 32], strides = [1, 1]} : vector<2x128xf32> to vector<2x32xf32>
    %509 = math.tanh %508 : vector<2x32xf32>
    %510 = vector.extract_strided_slice %507 {offsets = [0, 32], sizes = [2, 32], strides = [1, 1]} : vector<2x96xf32> to vector<2x32xf32>
    %511 = arith.mulf %510, %472 : vector<2x32xf32>
    %512 = vector.extract_strided_slice %507 {offsets = [0, 0], sizes = [2, 32], strides = [1, 1]} : vector<2x96xf32> to vector<2x32xf32>
    %513 = arith.mulf %512, %509 : vector<2x32xf32>
    %514 = arith.addf %511, %513 : vector<2x32xf32>
    %515 = vector.extract_strided_slice %507 {offsets = [0, 64], sizes = [2, 32], strides = [1, 1]} : vector<2x96xf32> to vector<2x32xf32>
    %516 = math.tanh %514 : vector<2x32xf32>
    %517 = arith.mulf %515, %516 : vector<2x32xf32>
    %c24_163 = arith.constant 24 : index
    %c0_164 = arith.constant 0 : index
    %518 = vector.load %arg8[%c24_163, %c0_164] : memref<64x64xf32, #tpu.memory_space<vmem>>, vector<2x32xf32>
    tpu.vector_store %arg8[%c24_163, %c0_164], %517 {strides = array<i32>} : memref<64x64xf32, #tpu.memory_space<vmem>>, vector<2x32xf32>,
    %c32_165 = arith.constant 32 : index
    %c128_166 = arith.constant 128 : index
    %519 = vector.load %arg9[%c32_165, %c128_166] : memref<64x256xf32, #tpu.memory_space<vmem>>, vector<2x128xf32>
    %520 = arith.truncf %496 : vector<2x32xf32> to vector<2x32xbf16>
    %cst_167 = arith.constant dense<0.000000e+00> : vector<2x128xf32>
    %521 = tpu.matmul %520, %367, %cst_167 {dimension_numbers = #tpu.dot_dimension_numbers<[1], [0], [0], [1], [0, 0, 1, 1], [], []>} : vector<2x32xbf16>, vector<32x128xbf16>, vector<2x128xf32> -> vector<2x128xf32>
    %522 = arith.addf %519, %521 : vector<2x128xf32>
    %523 = vector.extract_strided_slice %522 {offsets = [0, 0], sizes = [2, 96], strides = [1, 1]} : vector<2x128xf32> to vector<2x96xf32>
    %524 = arith.negf %523 : vector<2x96xf32>
    %525 = math.exp %524 : vector<2x96xf32>
    %cst_168 = arith.constant 1.000000e+00 : f32
    %526 = vector.broadcast %cst_168 : f32 to vector<2x96xf32>
    %527 = arith.addf %526, %525 : vector<2x96xf32>
    %528 = arith.divf %526, %527 : vector<2x96xf32>
    %529 = vector.extract_strided_slice %522 {offsets = [0, 96], sizes = [2, 32], strides = [1, 1]} : vector<2x128xf32> to vector<2x32xf32>
    %530 = math.tanh %529 : vector<2x32xf32>
    %531 = vector.extract_strided_slice %528 {offsets = [0, 32], sizes = [2, 32], strides = [1, 1]} : vector<2x96xf32> to vector<2x32xf32>
    %532 = arith.mulf %531, %493 : vector<2x32xf32>
    %533 = vector.extract_strided_slice %528 {offsets = [0, 0], sizes = [2, 32], strides = [1, 1]} : vector<2x96xf32> to vector<2x32xf32>
    %534 = arith.mulf %533, %530 : vector<2x32xf32>
    %535 = arith.addf %532, %534 : vector<2x32xf32>
    %536 = vector.extract_strided_slice %528 {offsets = [0, 64], sizes = [2, 32], strides = [1, 1]} : vector<2x96xf32> to vector<2x32xf32>
    %537 = math.tanh %535 : vector<2x32xf32>
    %538 = arith.mulf %536, %537 : vector<2x32xf32>
    %c32_169 = arith.constant 32 : index
    %c32_170 = arith.constant 32 : index
    %539 = vector.load %arg8[%c32_169, %c32_170] : memref<64x64xf32, #tpu.memory_space<vmem>>, vector<2x32xf32>
    tpu.vector_store %arg8[%c32_169, %c32_170], %538 {strides = array<i32>} : memref<64x64xf32, #tpu.memory_space<vmem>>, vector<2x32xf32>,
    %c32_171 = arith.constant 32 : index
    %c0_172 = arith.constant 0 : index
    %540 = vector.load %arg9[%c32_171, %c0_172] : memref<64x256xf32, #tpu.memory_space<vmem>>, vector<2x128xf32>
    %541 = arith.truncf %517 : vector<2x32xf32> to vector<2x32xbf16>
    %cst_173 = arith.constant dense<0.000000e+00> : vector<2x128xf32>
    %542 = tpu.matmul %541, %366, %cst_173 {dimension_numbers = #tpu.dot_dimension_numbers<[1], [0], [0], [1], [0, 0, 1, 1], [], []>} : vector<2x32xbf16>, vector<32x128xbf16>, vector<2x128xf32> -> vector<2x128xf32>
    %543 = arith.addf %540, %542 : vector<2x128xf32>
    %544 = vector.extract_strided_slice %543 {offsets = [0, 0], sizes = [2, 96], strides = [1, 1]} : vector<2x128xf32> to vector<2x96xf32>
    %545 = arith.negf %544 : vector<2x96xf32>
    %546 = math.exp %545 : vector<2x96xf32>
    %cst_174 = arith.constant 1.000000e+00 : f32
    %547 = vector.broadcast %cst_174 : f32 to vector<2x96xf32>
    %548 = arith.addf %547, %546 : vector<2x96xf32>
    %549 = arith.divf %547, %548 : vector<2x96xf32>
    %550 = vector.extract_strided_slice %543 {offsets = [0, 96], sizes = [2, 32], strides = [1, 1]} : vector<2x128xf32> to vector<2x32xf32>
    %551 = math.tanh %550 : vector<2x32xf32>
    %552 = vector.extract_strided_slice %549 {offsets = [0, 32], sizes = [2, 32], strides = [1, 1]} : vector<2x96xf32> to vector<2x32xf32>
    %553 = arith.mulf %552, %514 : vector<2x32xf32>
    %554 = vector.extract_strided_slice %549 {offsets = [0, 0], sizes = [2, 32], strides = [1, 1]} : vector<2x96xf32> to vector<2x32xf32>
    %555 = arith.mulf %554, %551 : vector<2x32xf32>
    %556 = arith.addf %553, %555 : vector<2x32xf32>
    %557 = vector.extract_strided_slice %549 {offsets = [0, 64], sizes = [2, 32], strides = [1, 1]} : vector<2x96xf32> to vector<2x32xf32>
    %558 = math.tanh %556 : vector<2x32xf32>
    %559 = arith.mulf %557, %558 : vector<2x32xf32>
    %c32_175 = arith.constant 32 : index
    %c0_176 = arith.constant 0 : index
    %560 = vector.load %arg8[%c32_175, %c0_176] : memref<64x64xf32, #tpu.memory_space<vmem>>, vector<2x32xf32>
    tpu.vector_store %arg8[%c32_175, %c0_176], %559 {strides = array<i32>} : memref<64x64xf32, #tpu.memory_space<vmem>>, vector<2x32xf32>,
    %c24_177 = arith.constant 24 : index
    %c128_178 = arith.constant 128 : index
    %561 = vector.load %arg9[%c24_177, %c128_178] : memref<64x256xf32, #tpu.memory_space<vmem>>, vector<2x128xf32>
    %562 = arith.truncf %538 : vector<2x32xf32> to vector<2x32xbf16>
    %cst_179 = arith.constant dense<0.000000e+00> : vector<2x128xf32>
    %563 = tpu.matmul %562, %367, %cst_179 {dimension_numbers = #tpu.dot_dimension_numbers<[1], [0], [0], [1], [0, 0, 1, 1], [], []>} : vector<2x32xbf16>, vector<32x128xbf16>, vector<2x128xf32> -> vector<2x128xf32>
    %564 = arith.addf %561, %563 : vector<2x128xf32>
    %565 = vector.extract_strided_slice %564 {offsets = [0, 0], sizes = [2, 96], strides = [1, 1]} : vector<2x128xf32> to vector<2x96xf32>
    %566 = arith.negf %565 : vector<2x96xf32>
    %567 = math.exp %566 : vector<2x96xf32>
    %cst_180 = arith.constant 1.000000e+00 : f32
    %568 = vector.broadcast %cst_180 : f32 to vector<2x96xf32>
    %569 = arith.addf %568, %567 : vector<2x96xf32>
    %570 = arith.divf %568, %569 : vector<2x96xf32>
    %571 = vector.extract_strided_slice %564 {offsets = [0, 96], sizes = [2, 32], strides = [1, 1]} : vector<2x128xf32> to vector<2x32xf32>
    %572 = math.tanh %571 : vector<2x32xf32>
    %573 = vector.extract_strided_slice %570 {offsets = [0, 32], sizes = [2, 32], strides = [1, 1]} : vector<2x96xf32> to vector<2x32xf32>
    %574 = arith.mulf %573, %535 : vector<2x32xf32>
    %575 = vector.extract_strided_slice %570 {offsets = [0, 0], sizes = [2, 32], strides = [1, 1]} : vector<2x96xf32> to vector<2x32xf32>
    %576 = arith.mulf %575, %572 : vector<2x32xf32>
    %577 = arith.addf %574, %576 : vector<2x32xf32>
    %578 = vector.extract_strided_slice %570 {offsets = [0, 64], sizes = [2, 32], strides = [1, 1]} : vector<2x96xf32> to vector<2x32xf32>
    %579 = math.tanh %577 : vector<2x32xf32>
    %580 = arith.mulf %578, %579 : vector<2x32xf32>
    %c24_181 = arith.constant 24 : index
    %c32_182 = arith.constant 32 : index
    %581 = vector.load %arg8[%c24_181, %c32_182] : memref<64x64xf32, #tpu.memory_space<vmem>>, vector<2x32xf32>
    tpu.vector_store %arg8[%c24_181, %c32_182], %580 {strides = array<i32>} : memref<64x64xf32, #tpu.memory_space<vmem>>, vector<2x32xf32>,
    %c40_183 = arith.constant 40 : index
    %c0_184 = arith.constant 0 : index
    %582 = vector.load %arg9[%c40_183, %c0_184] : memref<64x256xf32, #tpu.memory_space<vmem>>, vector<2x128xf32>
    %583 = arith.truncf %559 : vector<2x32xf32> to vector<2x32xbf16>
    %cst_185 = arith.constant dense<0.000000e+00> : vector<2x128xf32>
    %584 = tpu.matmul %583, %366, %cst_185 {dimension_numbers = #tpu.dot_dimension_numbers<[1], [0], [0], [1], [0, 0, 1, 1], [], []>} : vector<2x32xbf16>, vector<32x128xbf16>, vector<2x128xf32> -> vector<2x128xf32>
    %585 = arith.addf %582, %584 : vector<2x128xf32>
    %586 = vector.extract_strided_slice %585 {offsets = [0, 0], sizes = [2, 96], strides = [1, 1]} : vector<2x128xf32> to vector<2x96xf32>
    %587 = arith.negf %586 : vector<2x96xf32>
    %588 = math.exp %587 : vector<2x96xf32>
    %cst_186 = arith.constant 1.000000e+00 : f32
    %589 = vector.broadcast %cst_186 : f32 to vector<2x96xf32>
    %590 = arith.addf %589, %588 : vector<2x96xf32>
    %591 = arith.divf %589, %590 : vector<2x96xf32>
    %592 = vector.extract_strided_slice %585 {offsets = [0, 96], sizes = [2, 32], strides = [1, 1]} : vector<2x128xf32> to vector<2x32xf32>
    %593 = math.tanh %592 : vector<2x32xf32>
    %594 = vector.extract_strided_slice %591 {offsets = [0, 32], sizes = [2, 32], strides = [1, 1]} : vector<2x96xf32> to vector<2x32xf32>
    %595 = arith.mulf %594, %556 : vector<2x32xf32>
    %596 = vector.extract_strided_slice %591 {offsets = [0, 0], sizes = [2, 32], strides = [1, 1]} : vector<2x96xf32> to vector<2x32xf32>
    %597 = arith.mulf %596, %593 : vector<2x32xf32>
    %598 = arith.addf %595, %597 : vector<2x32xf32>
    %599 = vector.extract_strided_slice %591 {offsets = [0, 64], sizes = [2, 32], strides = [1, 1]} : vector<2x96xf32> to vector<2x32xf32>
    %600 = math.tanh %598 : vector<2x32xf32>
    %601 = arith.mulf %599, %600 : vector<2x32xf32>
    %c40_187 = arith.constant 40 : index
    %c0_188 = arith.constant 0 : index
    %602 = vector.load %arg8[%c40_187, %c0_188] : memref<64x64xf32, #tpu.memory_space<vmem>>, vector<2x32xf32>
    tpu.vector_store %arg8[%c40_187, %c0_188], %601 {strides = array<i32>} : memref<64x64xf32, #tpu.memory_space<vmem>>, vector<2x32xf32>,
    %c16_189 = arith.constant 16 : index
    %c128_190 = arith.constant 128 : index
    %603 = vector.load %arg9[%c16_189, %c128_190] : memref<64x256xf32, #tpu.memory_space<vmem>>, vector<2x128xf32>
    %604 = arith.truncf %580 : vector<2x32xf32> to vector<2x32xbf16>
    %cst_191 = arith.constant dense<0.000000e+00> : vector<2x128xf32>
    %605 = tpu.matmul %604, %367, %cst_191 {dimension_numbers = #tpu.dot_dimension_numbers<[1], [0], [0], [1], [0, 0, 1, 1], [], []>} : vector<2x32xbf16>, vector<32x128xbf16>, vector<2x128xf32> -> vector<2x128xf32>
    %606 = arith.addf %603, %605 : vector<2x128xf32>
    %607 = vector.extract_strided_slice %606 {offsets = [0, 0], sizes = [2, 96], strides = [1, 1]} : vector<2x128xf32> to vector<2x96xf32>
    %608 = arith.negf %607 : vector<2x96xf32>
    %609 = math.exp %608 : vector<2x96xf32>
    %cst_192 = arith.constant 1.000000e+00 : f32
    %610 = vector.broadcast %cst_192 : f32 to vector<2x96xf32>
    %611 = arith.addf %610, %609 : vector<2x96xf32>
    %612 = arith.divf %610, %611 : vector<2x96xf32>
    %613 = vector.extract_strided_slice %606 {offsets = [0, 96], sizes = [2, 32], strides = [1, 1]} : vector<2x128xf32> to vector<2x32xf32>
    %614 = math.tanh %613 : vector<2x32xf32>
    %615 = vector.extract_strided_slice %612 {offsets = [0, 32], sizes = [2, 32], strides = [1, 1]} : vector<2x96xf32> to vector<2x32xf32>
    %616 = arith.mulf %615, %577 : vector<2x32xf32>
    %617 = vector.extract_strided_slice %612 {offsets = [0, 0], sizes = [2, 32], strides = [1, 1]} : vector<2x96xf32> to vector<2x32xf32>
    %618 = arith.mulf %617, %614 : vector<2x32xf32>
    %619 = arith.addf %616, %618 : vector<2x32xf32>
    %620 = vector.extract_strided_slice %612 {offsets = [0, 64], sizes = [2, 32], strides = [1, 1]} : vector<2x96xf32> to vector<2x32xf32>
    %621 = math.tanh %619 : vector<2x32xf32>
    %622 = arith.mulf %620, %621 : vector<2x32xf32>
    %c16_193 = arith.constant 16 : index
    %c32_194 = arith.constant 32 : index
    %623 = vector.load %arg8[%c16_193, %c32_194] : memref<64x64xf32, #tpu.memory_space<vmem>>, vector<2x32xf32>
    tpu.vector_store %arg8[%c16_193, %c32_194], %622 {strides = array<i32>} : memref<64x64xf32, #tpu.memory_space<vmem>>, vector<2x32xf32>,
    %c48_195 = arith.constant 48 : index
    %c0_196 = arith.constant 0 : index
    %624 = vector.load %arg9[%c48_195, %c0_196] : memref<64x256xf32, #tpu.memory_space<vmem>>, vector<2x128xf32>
    %625 = arith.truncf %601 : vector<2x32xf32> to vector<2x32xbf16>
    %cst_197 = arith.constant dense<0.000000e+00> : vector<2x128xf32>
    %626 = tpu.matmul %625, %366, %cst_197 {dimension_numbers = #tpu.dot_dimension_numbers<[1], [0], [0], [1], [0, 0, 1, 1], [], []>} : vector<2x32xbf16>, vector<32x128xbf16>, vector<2x128xf32> -> vector<2x128xf32>
    %627 = arith.addf %624, %626 : vector<2x128xf32>
    %628 = vector.extract_strided_slice %627 {offsets = [0, 0], sizes = [2, 96], strides = [1, 1]} : vector<2x128xf32> to vector<2x96xf32>
    %629 = arith.negf %628 : vector<2x96xf32>
    %630 = math.exp %629 : vector<2x96xf32>
    %cst_198 = arith.constant 1.000000e+00 : f32
    %631 = vector.broadcast %cst_198 : f32 to vector<2x96xf32>
    %632 = arith.addf %631, %630 : vector<2x96xf32>
    %633 = arith.divf %631, %632 : vector<2x96xf32>
    %634 = vector.extract_strided_slice %627 {offsets = [0, 96], sizes = [2, 32], strides = [1, 1]} : vector<2x128xf32> to vector<2x32xf32>
    %635 = math.tanh %634 : vector<2x32xf32>
    %636 = vector.extract_strided_slice %633 {offsets = [0, 32], sizes = [2, 32], strides = [1, 1]} : vector<2x96xf32> to vector<2x32xf32>
    %637 = arith.mulf %636, %598 : vector<2x32xf32>
    %638 = vector.extract_strided_slice %633 {offsets = [0, 0], sizes = [2, 32], strides = [1, 1]} : vector<2x96xf32> to vector<2x32xf32>
    %639 = arith.mulf %638, %635 : vector<2x32xf32>
    %640 = arith.addf %637, %639 : vector<2x32xf32>
    %641 = vector.extract_strided_slice %633 {offsets = [0, 64], sizes = [2, 32], strides = [1, 1]} : vector<2x96xf32> to vector<2x32xf32>
    %642 = math.tanh %640 : vector<2x32xf32>
    %643 = arith.mulf %641, %642 : vector<2x32xf32>
    %c48_199 = arith.constant 48 : index
    %c0_200 = arith.constant 0 : index
    %644 = vector.load %arg8[%c48_199, %c0_200] : memref<64x64xf32, #tpu.memory_space<vmem>>, vector<2x32xf32>
    tpu.vector_store %arg8[%c48_199, %c0_200], %643 {strides = array<i32>} : memref<64x64xf32, #tpu.memory_space<vmem>>, vector<2x32xf32>,
    %c8_201 = arith.constant 8 : index
    %c128_202 = arith.constant 128 : index
    %645 = vector.load %arg9[%c8_201, %c128_202] : memref<64x256xf32, #tpu.memory_space<vmem>>, vector<2x128xf32>
    %646 = arith.truncf %622 : vector<2x32xf32> to vector<2x32xbf16>
    %cst_203 = arith.constant dense<0.000000e+00> : vector<2x128xf32>
    %647 = tpu.matmul %646, %367, %cst_203 {dimension_numbers = #tpu.dot_dimension_numbers<[1], [0], [0], [1], [0, 0, 1, 1], [], []>} : vector<2x32xbf16>, vector<32x128xbf16>, vector<2x128xf32> -> vector<2x128xf32>
    %648 = arith.addf %645, %647 : vector<2x128xf32>
    %649 = vector.extract_strided_slice %648 {offsets = [0, 0], sizes = [2, 96], strides = [1, 1]} : vector<2x128xf32> to vector<2x96xf32>
    %650 = arith.negf %649 : vector<2x96xf32>
    %651 = math.exp %650 : vector<2x96xf32>
    %cst_204 = arith.constant 1.000000e+00 : f32
    %652 = vector.broadcast %cst_204 : f32 to vector<2x96xf32>
    %653 = arith.addf %652, %651 : vector<2x96xf32>
    %654 = arith.divf %652, %653 : vector<2x96xf32>
    %655 = vector.extract_strided_slice %648 {offsets = [0, 96], sizes = [2, 32], strides = [1, 1]} : vector<2x128xf32> to vector<2x32xf32>
    %656 = math.tanh %655 : vector<2x32xf32>
    %657 = vector.extract_strided_slice %654 {offsets = [0, 32], sizes = [2, 32], strides = [1, 1]} : vector<2x96xf32> to vector<2x32xf32>
    %658 = arith.mulf %657, %619 : vector<2x32xf32>
    %659 = vector.extract_strided_slice %654 {offsets = [0, 0], sizes = [2, 32], strides = [1, 1]} : vector<2x96xf32> to vector<2x32xf32>
    %660 = arith.mulf %659, %656 : vector<2x32xf32>
    %661 = arith.addf %658, %660 : vector<2x32xf32>
    %662 = vector.extract_strided_slice %654 {offsets = [0, 64], sizes = [2, 32], strides = [1, 1]} : vector<2x96xf32> to vector<2x32xf32>
    %663 = math.tanh %661 : vector<2x32xf32>
    %664 = arith.mulf %662, %663 : vector<2x32xf32>
    %c8_205 = arith.constant 8 : index
    %c32_206 = arith.constant 32 : index
    %665 = vector.load %arg8[%c8_205, %c32_206] : memref<64x64xf32, #tpu.memory_space<vmem>>, vector<2x32xf32>
    tpu.vector_store %arg8[%c8_205, %c32_206], %664 {strides = array<i32>} : memref<64x64xf32, #tpu.memory_space<vmem>>, vector<2x32xf32>,
    %c56_207 = arith.constant 56 : index
    %c0_208 = arith.constant 0 : index
    %666 = vector.load %arg9[%c56_207, %c0_208] : memref<64x256xf32, #tpu.memory_space<vmem>>, vector<2x128xf32>
    %667 = arith.truncf %643 : vector<2x32xf32> to vector<2x32xbf16>
    %cst_209 = arith.constant dense<0.000000e+00> : vector<2x128xf32>
    %668 = tpu.matmul %667, %366, %cst_209 {dimension_numbers = #tpu.dot_dimension_numbers<[1], [0], [0], [1], [0, 0, 1, 1], [], []>} : vector<2x32xbf16>, vector<32x128xbf16>, vector<2x128xf32> -> vector<2x128xf32>
    %669 = arith.addf %666, %668 : vector<2x128xf32>
    %670 = vector.extract_strided_slice %669 {offsets = [0, 0], sizes = [2, 96], strides = [1, 1]} : vector<2x128xf32> to vector<2x96xf32>
    %671 = arith.negf %670 : vector<2x96xf32>
    %672 = math.exp %671 : vector<2x96xf32>
    %cst_210 = arith.constant 1.000000e+00 : f32
    %673 = vector.broadcast %cst_210 : f32 to vector<2x96xf32>
    %674 = arith.addf %673, %672 : vector<2x96xf32>
    %675 = arith.divf %673, %674 : vector<2x96xf32>
    %676 = vector.extract_strided_slice %669 {offsets = [0, 96], sizes = [2, 32], strides = [1, 1]} : vector<2x128xf32> to vector<2x32xf32>
    %677 = math.tanh %676 : vector<2x32xf32>
    %678 = vector.extract_strided_slice %675 {offsets = [0, 32], sizes = [2, 32], strides = [1, 1]} : vector<2x96xf32> to vector<2x32xf32>
    %679 = arith.mulf %678, %640 : vector<2x32xf32>
    %680 = vector.extract_strided_slice %675 {offsets = [0, 0], sizes = [2, 32], strides = [1, 1]} : vector<2x96xf32> to vector<2x32xf32>
    %681 = arith.mulf %680, %677 : vector<2x32xf32>
    %682 = arith.addf %679, %681 : vector<2x32xf32>
    %683 = vector.extract_strided_slice %675 {offsets = [0, 64], sizes = [2, 32], strides = [1, 1]} : vector<2x96xf32> to vector<2x32xf32>
    %684 = math.tanh %682 : vector<2x32xf32>
    %685 = arith.mulf %683, %684 : vector<2x32xf32>
    %c56_211 = arith.constant 56 : index
    %c0_212 = arith.constant 0 : index
    %686 = vector.load %arg8[%c56_211, %c0_212] : memref<64x64xf32, #tpu.memory_space<vmem>>, vector<2x32xf32>
    tpu.vector_store %arg8[%c56_211, %c0_212], %685 {strides = array<i32>} : memref<64x64xf32, #tpu.memory_space<vmem>>, vector<2x32xf32>,
    %c0_213 = arith.constant 0 : index
    %c128_214 = arith.constant 128 : index
    %687 = vector.load %arg9[%c0_213, %c128_214] : memref<64x256xf32, #tpu.memory_space<vmem>>, vector<2x128xf32>
    %688 = arith.truncf %664 : vector<2x32xf32> to vector<2x32xbf16>
    %cst_215 = arith.constant dense<0.000000e+00> : vector<2x128xf32>
    %689 = tpu.matmul %688, %367, %cst_215 {dimension_numbers = #tpu.dot_dimension_numbers<[1], [0], [0], [1], [0, 0, 1, 1], [], []>} : vector<2x32xbf16>, vector<32x128xbf16>, vector<2x128xf32> -> vector<2x128xf32>
    %690 = arith.addf %687, %689 : vector<2x128xf32>
    %691 = vector.extract_strided_slice %690 {offsets = [0, 0], sizes = [2, 96], strides = [1, 1]} : vector<2x128xf32> to vector<2x96xf32>
    %692 = arith.negf %691 : vector<2x96xf32>
    %693 = math.exp %692 : vector<2x96xf32>
    %cst_216 = arith.constant 1.000000e+00 : f32
    %694 = vector.broadcast %cst_216 : f32 to vector<2x96xf32>
    %695 = arith.addf %694, %693 : vector<2x96xf32>
    %696 = arith.divf %694, %695 : vector<2x96xf32>
    %697 = vector.extract_strided_slice %690 {offsets = [0, 96], sizes = [2, 32], strides = [1, 1]} : vector<2x128xf32> to vector<2x32xf32>
    %698 = math.tanh %697 : vector<2x32xf32>
    %699 = vector.extract_strided_slice %696 {offsets = [0, 32], sizes = [2, 32], strides = [1, 1]} : vector<2x96xf32> to vector<2x32xf32>
    %700 = arith.mulf %699, %661 : vector<2x32xf32>
    %701 = vector.extract_strided_slice %696 {offsets = [0, 0], sizes = [2, 32], strides = [1, 1]} : vector<2x96xf32> to vector<2x32xf32>
    %702 = arith.mulf %701, %698 : vector<2x32xf32>
    %703 = arith.addf %700, %702 : vector<2x32xf32>
    %704 = vector.extract_strided_slice %696 {offsets = [0, 64], sizes = [2, 32], strides = [1, 1]} : vector<2x96xf32> to vector<2x32xf32>
    %705 = math.tanh %703 : vector<2x32xf32>
    %706 = arith.mulf %704, %705 : vector<2x32xf32>
    %c0_217 = arith.constant 0 : index
    %c32_218 = arith.constant 32 : index
    %707 = vector.load %arg8[%c0_217, %c32_218] : memref<64x64xf32, #tpu.memory_space<vmem>>, vector<2x32xf32>
    tpu.vector_store %arg8[%c0_217, %c32_218], %706 {strides = array<i32>} : memref<64x64xf32, #tpu.memory_space<vmem>>, vector<2x32xf32>,
    %c0_219 = arith.constant 0 : index
    %c0_220 = arith.constant 0 : index
    %708 = vector.load %arg8[%c0_219, %c0_220] : memref<64x64xf32, #tpu.memory_space<vmem>>, vector<64x64xf32>
    %709 = arith.truncf %708 : vector<64x64xf32> to vector<64x64xbf16>
    %c1_221 = arith.constant 1 : index
    %c0_222 = arith.constant 0 : index
    %c0_223 = arith.constant 0 : index
    %710 = vector.load %arg2[%c1_221, %c0_222, %c0_223] : memref<3x64x256xbf16, #tpu.memory_space<vmem>>, vector<1x64x256xbf16>
    %711 = vector.shape_cast %710 : vector<1x64x256xbf16> to vector<64x256xbf16>
    %cst_224 = arith.constant dense<0.000000e+00> : vector<64x256xf32>
    %712 = tpu.matmul %709, %711, %cst_224 {dimension_numbers = #tpu.dot_dimension_numbers<[1], [0], [0], [1], [0, 0, 1, 1], [], []>} : vector<64x64xbf16>, vector<64x256xbf16>, vector<64x256xf32> -> vector<64x256xf32>
    %c2 = arith.constant 2 : index
    %c0_225 = arith.constant 0 : index
    %c0_226 = arith.constant 0 : index
    %713 = vector.load %arg4[%c2, %c0_225, %c0_226] : memref<4x1x256xf32, #tpu.memory_space<vmem>>, vector<1x1x256xf32>
    %714 = vector.shape_cast %713 : vector<1x1x256xf32> to vector<1x256xf32>
    %715 = vector.broadcast %714 : vector<1x256xf32> to vector<64x256xf32>
    %716 = arith.addf %712, %715 : vector<64x256xf32>
    %c0_227 = arith.constant 0 : index
    %c0_228 = arith.constant 0 : index
    %717 = vector.load %arg9[%c0_227, %c0_228] : memref<64x256xf32, #tpu.memory_space<vmem>>, vector<64x256xf32>
    tpu.vector_store %arg9[%c0_227, %c0_228], %716 {strides = array<i32>} : memref<64x256xf32, #tpu.memory_space<vmem>>, vector<64x256xf32>,
    %c2_229 = arith.constant 2 : index
    %c0_230 = arith.constant 0 : index
    %c0_231 = arith.constant 0 : index
    %718 = vector.load %arg3[%c2_229, %c0_230, %c0_231] : memref<4x32x256xbf16, #tpu.memory_space<vmem>>, vector<1x32x256xbf16>
    %719 = vector.shape_cast %718 : vector<1x32x256xbf16> to vector<32x256xbf16>
    %720 = vector.extract_strided_slice %719 {offsets = [0, 0], sizes = [32, 128], strides = [1, 1]} : vector<32x256xbf16> to vector<32x128xbf16>
    %721 = vector.extract_strided_slice %719 {offsets = [0, 128], sizes = [32, 128], strides = [1, 1]} : vector<32x256xbf16> to vector<32x128xbf16>
    %cst_232 = arith.constant 0.000000e+00 : f32
    %722 = vector.broadcast %cst_232 : f32 to vector<2x32xf32>
    %cst_233 = arith.constant 0.000000e+00 : f32
    %723 = vector.broadcast %cst_233 : f32 to vector<2x32xf32>
    %cst_234 = arith.constant 0.000000e+00 : f32
    %724 = vector.broadcast %cst_234 : f32 to vector<2x32xf32>
    %cst_235 = arith.constant 0.000000e+00 : f32
    %725 = vector.broadcast %cst_235 : f32 to vector<2x32xf32>
    %c0_236 = arith.constant 0 : index
    %c0_237 = arith.constant 0 : index
    %726 = vector.load %arg9[%c0_236, %c0_237] : memref<64x256xf32, #tpu.memory_space<vmem>>, vector<2x128xf32>
    %727 = arith.truncf %722 : vector<2x32xf32> to vector<2x32xbf16>
    %cst_238 = arith.constant dense<0.000000e+00> : vector<2x128xf32>
    %728 = tpu.matmul %727, %720, %cst_238 {dimension_numbers = #tpu.dot_dimension_numbers<[1], [0], [0], [1], [0, 0, 1, 1], [], []>} : vector<2x32xbf16>, vector<32x128xbf16>, vector<2x128xf32> -> vector<2x128xf32>
    %729 = arith.addf %726, %728 : vector<2x128xf32>
    %730 = vector.extract_strided_slice %729 {offsets = [0, 0], sizes = [2, 96], strides = [1, 1]} : vector<2x128xf32> to vector<2x96xf32>
    %731 = arith.negf %730 : vector<2x96xf32>
    %732 = math.exp %731 : vector<2x96xf32>
    %cst_239 = arith.constant 1.000000e+00 : f32
    %733 = vector.broadcast %cst_239 : f32 to vector<2x96xf32>
    %734 = arith.addf %733, %732 : vector<2x96xf32>
    %735 = arith.divf %733, %734 : vector<2x96xf32>
    %736 = vector.extract_strided_slice %729 {offsets = [0, 96], sizes = [2, 32], strides = [1, 1]} : vector<2x128xf32> to vector<2x32xf32>
    %737 = math.tanh %736 : vector<2x32xf32>
    %738 = vector.extract_strided_slice %735 {offsets = [0, 32], sizes = [2, 32], strides = [1, 1]} : vector<2x96xf32> to vector<2x32xf32>
    %739 = arith.mulf %738, %723 : vector<2x32xf32>
    %740 = vector.extract_strided_slice %735 {offsets = [0, 0], sizes = [2, 32], strides = [1, 1]} : vector<2x96xf32> to vector<2x32xf32>
    %741 = arith.mulf %740, %737 : vector<2x32xf32>
    %742 = arith.addf %739, %741 : vector<2x32xf32>
    %743 = vector.extract_strided_slice %735 {offsets = [0, 64], sizes = [2, 32], strides = [1, 1]} : vector<2x96xf32> to vector<2x32xf32>
    %744 = math.tanh %742 : vector<2x32xf32>
    %745 = arith.mulf %743, %744 : vector<2x32xf32>
    %c0_240 = arith.constant 0 : index
    %c0_241 = arith.constant 0 : index
    %746 = vector.load %arg8[%c0_240, %c0_241] : memref<64x64xf32, #tpu.memory_space<vmem>>, vector<2x32xf32>
    tpu.vector_store %arg8[%c0_240, %c0_241], %745 {strides = array<i32>} : memref<64x64xf32, #tpu.memory_space<vmem>>, vector<2x32xf32>,
    %c56_242 = arith.constant 56 : index
    %c128_243 = arith.constant 128 : index
    %747 = vector.load %arg9[%c56_242, %c128_243] : memref<64x256xf32, #tpu.memory_space<vmem>>, vector<2x128xf32>
    %748 = arith.truncf %724 : vector<2x32xf32> to vector<2x32xbf16>
    %cst_244 = arith.constant dense<0.000000e+00> : vector<2x128xf32>
    %749 = tpu.matmul %748, %721, %cst_244 {dimension_numbers = #tpu.dot_dimension_numbers<[1], [0], [0], [1], [0, 0, 1, 1], [], []>} : vector<2x32xbf16>, vector<32x128xbf16>, vector<2x128xf32> -> vector<2x128xf32>
    %750 = arith.addf %747, %749 : vector<2x128xf32>
    %751 = vector.extract_strided_slice %750 {offsets = [0, 0], sizes = [2, 96], strides = [1, 1]} : vector<2x128xf32> to vector<2x96xf32>
    %752 = arith.negf %751 : vector<2x96xf32>
    %753 = math.exp %752 : vector<2x96xf32>
    %cst_245 = arith.constant 1.000000e+00 : f32
    %754 = vector.broadcast %cst_245 : f32 to vector<2x96xf32>
    %755 = arith.addf %754, %753 : vector<2x96xf32>
    %756 = arith.divf %754, %755 : vector<2x96xf32>
    %757 = vector.extract_strided_slice %750 {offsets = [0, 96], sizes = [2, 32], strides = [1, 1]} : vector<2x128xf32> to vector<2x32xf32>
    %758 = math.tanh %757 : vector<2x32xf32>
    %759 = vector.extract_strided_slice %756 {offsets = [0, 32], sizes = [2, 32], strides = [1, 1]} : vector<2x96xf32> to vector<2x32xf32>
    %760 = arith.mulf %759, %725 : vector<2x32xf32>
    %761 = vector.extract_strided_slice %756 {offsets = [0, 0], sizes = [2, 32], strides = [1, 1]} : vector<2x96xf32> to vector<2x32xf32>
    %762 = arith.mulf %761, %758 : vector<2x32xf32>
    %763 = arith.addf %760, %762 : vector<2x32xf32>
    %764 = vector.extract_strided_slice %756 {offsets = [0, 64], sizes = [2, 32], strides = [1, 1]} : vector<2x96xf32> to vector<2x32xf32>
    %765 = math.tanh %763 : vector<2x32xf32>
    %766 = arith.mulf %764, %765 : vector<2x32xf32>
    %c56_246 = arith.constant 56 : index
    %c32_247 = arith.constant 32 : index
    %767 = vector.load %arg8[%c56_246, %c32_247] : memref<64x64xf32, #tpu.memory_space<vmem>>, vector<2x32xf32>
    tpu.vector_store %arg8[%c56_246, %c32_247], %766 {strides = array<i32>} : memref<64x64xf32, #tpu.memory_space<vmem>>, vector<2x32xf32>,
    %c8_248 = arith.constant 8 : index
    %c0_249 = arith.constant 0 : index
    %768 = vector.load %arg9[%c8_248, %c0_249] : memref<64x256xf32, #tpu.memory_space<vmem>>, vector<2x128xf32>
    %769 = arith.truncf %745 : vector<2x32xf32> to vector<2x32xbf16>
    %cst_250 = arith.constant dense<0.000000e+00> : vector<2x128xf32>
    %770 = tpu.matmul %769, %720, %cst_250 {dimension_numbers = #tpu.dot_dimension_numbers<[1], [0], [0], [1], [0, 0, 1, 1], [], []>} : vector<2x32xbf16>, vector<32x128xbf16>, vector<2x128xf32> -> vector<2x128xf32>
    %771 = arith.addf %768, %770 : vector<2x128xf32>
    %772 = vector.extract_strided_slice %771 {offsets = [0, 0], sizes = [2, 96], strides = [1, 1]} : vector<2x128xf32> to vector<2x96xf32>
    %773 = arith.negf %772 : vector<2x96xf32>
    %774 = math.exp %773 : vector<2x96xf32>
    %cst_251 = arith.constant 1.000000e+00 : f32
    %775 = vector.broadcast %cst_251 : f32 to vector<2x96xf32>
    %776 = arith.addf %775, %774 : vector<2x96xf32>
    %777 = arith.divf %775, %776 : vector<2x96xf32>
    %778 = vector.extract_strided_slice %771 {offsets = [0, 96], sizes = [2, 32], strides = [1, 1]} : vector<2x128xf32> to vector<2x32xf32>
    %779 = math.tanh %778 : vector<2x32xf32>
    %780 = vector.extract_strided_slice %777 {offsets = [0, 32], sizes = [2, 32], strides = [1, 1]} : vector<2x96xf32> to vector<2x32xf32>
    %781 = arith.mulf %780, %742 : vector<2x32xf32>
    %782 = vector.extract_strided_slice %777 {offsets = [0, 0], sizes = [2, 32], strides = [1, 1]} : vector<2x96xf32> to vector<2x32xf32>
    %783 = arith.mulf %782, %779 : vector<2x32xf32>
    %784 = arith.addf %781, %783 : vector<2x32xf32>
    %785 = vector.extract_strided_slice %777 {offsets = [0, 64], sizes = [2, 32], strides = [1, 1]} : vector<2x96xf32> to vector<2x32xf32>
    %786 = math.tanh %784 : vector<2x32xf32>
    %787 = arith.mulf %785, %786 : vector<2x32xf32>
    %c8_252 = arith.constant 8 : index
    %c0_253 = arith.constant 0 : index
    %788 = vector.load %arg8[%c8_252, %c0_253] : memref<64x64xf32, #tpu.memory_space<vmem>>, vector<2x32xf32>
    tpu.vector_store %arg8[%c8_252, %c0_253], %787 {strides = array<i32>} : memref<64x64xf32, #tpu.memory_space<vmem>>, vector<2x32xf32>,
    %c48_254 = arith.constant 48 : index
    %c128_255 = arith.constant 128 : index
    %789 = vector.load %arg9[%c48_254, %c128_255] : memref<64x256xf32, #tpu.memory_space<vmem>>, vector<2x128xf32>
    %790 = arith.truncf %766 : vector<2x32xf32> to vector<2x32xbf16>
    %cst_256 = arith.constant dense<0.000000e+00> : vector<2x128xf32>
    %791 = tpu.matmul %790, %721, %cst_256 {dimension_numbers = #tpu.dot_dimension_numbers<[1], [0], [0], [1], [0, 0, 1, 1], [], []>} : vector<2x32xbf16>, vector<32x128xbf16>, vector<2x128xf32> -> vector<2x128xf32>
    %792 = arith.addf %789, %791 : vector<2x128xf32>
    %793 = vector.extract_strided_slice %792 {offsets = [0, 0], sizes = [2, 96], strides = [1, 1]} : vector<2x128xf32> to vector<2x96xf32>
    %794 = arith.negf %793 : vector<2x96xf32>
    %795 = math.exp %794 : vector<2x96xf32>
    %cst_257 = arith.constant 1.000000e+00 : f32
    %796 = vector.broadcast %cst_257 : f32 to vector<2x96xf32>
    %797 = arith.addf %796, %795 : vector<2x96xf32>
    %798 = arith.divf %796, %797 : vector<2x96xf32>
    %799 = vector.extract_strided_slice %792 {offsets = [0, 96], sizes = [2, 32], strides = [1, 1]} : vector<2x128xf32> to vector<2x32xf32>
    %800 = math.tanh %799 : vector<2x32xf32>
    %801 = vector.extract_strided_slice %798 {offsets = [0, 32], sizes = [2, 32], strides = [1, 1]} : vector<2x96xf32> to vector<2x32xf32>
    %802 = arith.mulf %801, %763 : vector<2x32xf32>
    %803 = vector.extract_strided_slice %798 {offsets = [0, 0], sizes = [2, 32], strides = [1, 1]} : vector<2x96xf32> to vector<2x32xf32>
    %804 = arith.mulf %803, %800 : vector<2x32xf32>
    %805 = arith.addf %802, %804 : vector<2x32xf32>
    %806 = vector.extract_strided_slice %798 {offsets = [0, 64], sizes = [2, 32], strides = [1, 1]} : vector<2x96xf32> to vector<2x32xf32>
    %807 = math.tanh %805 : vector<2x32xf32>
    %808 = arith.mulf %806, %807 : vector<2x32xf32>
    %c48_258 = arith.constant 48 : index
    %c32_259 = arith.constant 32 : index
    %809 = vector.load %arg8[%c48_258, %c32_259] : memref<64x64xf32, #tpu.memory_space<vmem>>, vector<2x32xf32>
    tpu.vector_store %arg8[%c48_258, %c32_259], %808 {strides = array<i32>} : memref<64x64xf32, #tpu.memory_space<vmem>>, vector<2x32xf32>,
    %c16_260 = arith.constant 16 : index
    %c0_261 = arith.constant 0 : index
    %810 = vector.load %arg9[%c16_260, %c0_261] : memref<64x256xf32, #tpu.memory_space<vmem>>, vector<2x128xf32>
    %811 = arith.truncf %787 : vector<2x32xf32> to vector<2x32xbf16>
    %cst_262 = arith.constant dense<0.000000e+00> : vector<2x128xf32>
    %812 = tpu.matmul %811, %720, %cst_262 {dimension_numbers = #tpu.dot_dimension_numbers<[1], [0], [0], [1], [0, 0, 1, 1], [], []>} : vector<2x32xbf16>, vector<32x128xbf16>, vector<2x128xf32> -> vector<2x128xf32>
    %813 = arith.addf %810, %812 : vector<2x128xf32>
    %814 = vector.extract_strided_slice %813 {offsets = [0, 0], sizes = [2, 96], strides = [1, 1]} : vector<2x128xf32> to vector<2x96xf32>
    %815 = arith.negf %814 : vector<2x96xf32>
    %816 = math.exp %815 : vector<2x96xf32>
    %cst_263 = arith.constant 1.000000e+00 : f32
    %817 = vector.broadcast %cst_263 : f32 to vector<2x96xf32>
    %818 = arith.addf %817, %816 : vector<2x96xf32>
    %819 = arith.divf %817, %818 : vector<2x96xf32>
    %820 = vector.extract_strided_slice %813 {offsets = [0, 96], sizes = [2, 32], strides = [1, 1]} : vector<2x128xf32> to vector<2x32xf32>
    %821 = math.tanh %820 : vector<2x32xf32>
    %822 = vector.extract_strided_slice %819 {offsets = [0, 32], sizes = [2, 32], strides = [1, 1]} : vector<2x96xf32> to vector<2x32xf32>
    %823 = arith.mulf %822, %784 : vector<2x32xf32>
    %824 = vector.extract_strided_slice %819 {offsets = [0, 0], sizes = [2, 32], strides = [1, 1]} : vector<2x96xf32> to vector<2x32xf32>
    %825 = arith.mulf %824, %821 : vector<2x32xf32>
    %826 = arith.addf %823, %825 : vector<2x32xf32>
    %827 = vector.extract_strided_slice %819 {offsets = [0, 64], sizes = [2, 32], strides = [1, 1]} : vector<2x96xf32> to vector<2x32xf32>
    %828 = math.tanh %826 : vector<2x32xf32>
    %829 = arith.mulf %827, %828 : vector<2x32xf32>
    %c16_264 = arith.constant 16 : index
    %c0_265 = arith.constant 0 : index
    %830 = vector.load %arg8[%c16_264, %c0_265] : memref<64x64xf32, #tpu.memory_space<vmem>>, vector<2x32xf32>
    tpu.vector_store %arg8[%c16_264, %c0_265], %829 {strides = array<i32>} : memref<64x64xf32, #tpu.memory_space<vmem>>, vector<2x32xf32>,
    %c40_266 = arith.constant 40 : index
    %c128_267 = arith.constant 128 : index
    %831 = vector.load %arg9[%c40_266, %c128_267] : memref<64x256xf32, #tpu.memory_space<vmem>>, vector<2x128xf32>
    %832 = arith.truncf %808 : vector<2x32xf32> to vector<2x32xbf16>
    %cst_268 = arith.constant dense<0.000000e+00> : vector<2x128xf32>
    %833 = tpu.matmul %832, %721, %cst_268 {dimension_numbers = #tpu.dot_dimension_numbers<[1], [0], [0], [1], [0, 0, 1, 1], [], []>} : vector<2x32xbf16>, vector<32x128xbf16>, vector<2x128xf32> -> vector<2x128xf32>
    %834 = arith.addf %831, %833 : vector<2x128xf32>
    %835 = vector.extract_strided_slice %834 {offsets = [0, 0], sizes = [2, 96], strides = [1, 1]} : vector<2x128xf32> to vector<2x96xf32>
    %836 = arith.negf %835 : vector<2x96xf32>
    %837 = math.exp %836 : vector<2x96xf32>
    %cst_269 = arith.constant 1.000000e+00 : f32
    %838 = vector.broadcast %cst_269 : f32 to vector<2x96xf32>
    %839 = arith.addf %838, %837 : vector<2x96xf32>
    %840 = arith.divf %838, %839 : vector<2x96xf32>
    %841 = vector.extract_strided_slice %834 {offsets = [0, 96], sizes = [2, 32], strides = [1, 1]} : vector<2x128xf32> to vector<2x32xf32>
    %842 = math.tanh %841 : vector<2x32xf32>
    %843 = vector.extract_strided_slice %840 {offsets = [0, 32], sizes = [2, 32], strides = [1, 1]} : vector<2x96xf32> to vector<2x32xf32>
    %844 = arith.mulf %843, %805 : vector<2x32xf32>
    %845 = vector.extract_strided_slice %840 {offsets = [0, 0], sizes = [2, 32], strides = [1, 1]} : vector<2x96xf32> to vector<2x32xf32>
    %846 = arith.mulf %845, %842 : vector<2x32xf32>
    %847 = arith.addf %844, %846 : vector<2x32xf32>
    %848 = vector.extract_strided_slice %840 {offsets = [0, 64], sizes = [2, 32], strides = [1, 1]} : vector<2x96xf32> to vector<2x32xf32>
    %849 = math.tanh %847 : vector<2x32xf32>
    %850 = arith.mulf %848, %849 : vector<2x32xf32>
    %c40_270 = arith.constant 40 : index
    %c32_271 = arith.constant 32 : index
    %851 = vector.load %arg8[%c40_270, %c32_271] : memref<64x64xf32, #tpu.memory_space<vmem>>, vector<2x32xf32>
    tpu.vector_store %arg8[%c40_270, %c32_271], %850 {strides = array<i32>} : memref<64x64xf32, #tpu.memory_space<vmem>>, vector<2x32xf32>,
    %c24_272 = arith.constant 24 : index
    %c0_273 = arith.constant 0 : index
    %852 = vector.load %arg9[%c24_272, %c0_273] : memref<64x256xf32, #tpu.memory_space<vmem>>, vector<2x128xf32>
    %853 = arith.truncf %829 : vector<2x32xf32> to vector<2x32xbf16>
    %cst_274 = arith.constant dense<0.000000e+00> : vector<2x128xf32>
    %854 = tpu.matmul %853, %720, %cst_274 {dimension_numbers = #tpu.dot_dimension_numbers<[1], [0], [0], [1], [0, 0, 1, 1], [], []>} : vector<2x32xbf16>, vector<32x128xbf16>, vector<2x128xf32> -> vector<2x128xf32>
    %855 = arith.addf %852, %854 : vector<2x128xf32>
    %856 = vector.extract_strided_slice %855 {offsets = [0, 0], sizes = [2, 96], strides = [1, 1]} : vector<2x128xf32> to vector<2x96xf32>
    %857 = arith.negf %856 : vector<2x96xf32>
    %858 = math.exp %857 : vector<2x96xf32>
    %cst_275 = arith.constant 1.000000e+00 : f32
    %859 = vector.broadcast %cst_275 : f32 to vector<2x96xf32>
    %860 = arith.addf %859, %858 : vector<2x96xf32>
    %861 = arith.divf %859, %860 : vector<2x96xf32>
    %862 = vector.extract_strided_slice %855 {offsets = [0, 96], sizes = [2, 32], strides = [1, 1]} : vector<2x128xf32> to vector<2x32xf32>
    %863 = math.tanh %862 : vector<2x32xf32>
    %864 = vector.extract_strided_slice %861 {offsets = [0, 32], sizes = [2, 32], strides = [1, 1]} : vector<2x96xf32> to vector<2x32xf32>
    %865 = arith.mulf %864, %826 : vector<2x32xf32>
    %866 = vector.extract_strided_slice %861 {offsets = [0, 0], sizes = [2, 32], strides = [1, 1]} : vector<2x96xf32> to vector<2x32xf32>
    %867 = arith.mulf %866, %863 : vector<2x32xf32>
    %868 = arith.addf %865, %867 : vector<2x32xf32>
    %869 = vector.extract_strided_slice %861 {offsets = [0, 64], sizes = [2, 32], strides = [1, 1]} : vector<2x96xf32> to vector<2x32xf32>
    %870 = math.tanh %868 : vector<2x32xf32>
    %871 = arith.mulf %869, %870 : vector<2x32xf32>
    %c24_276 = arith.constant 24 : index
    %c0_277 = arith.constant 0 : index
    %872 = vector.load %arg8[%c24_276, %c0_277] : memref<64x64xf32, #tpu.memory_space<vmem>>, vector<2x32xf32>
    tpu.vector_store %arg8[%c24_276, %c0_277], %871 {strides = array<i32>} : memref<64x64xf32, #tpu.memory_space<vmem>>, vector<2x32xf32>,
    %c32_278 = arith.constant 32 : index
    %c128_279 = arith.constant 128 : index
    %873 = vector.load %arg9[%c32_278, %c128_279] : memref<64x256xf32, #tpu.memory_space<vmem>>, vector<2x128xf32>
    %874 = arith.truncf %850 : vector<2x32xf32> to vector<2x32xbf16>
    %cst_280 = arith.constant dense<0.000000e+00> : vector<2x128xf32>
    %875 = tpu.matmul %874, %721, %cst_280 {dimension_numbers = #tpu.dot_dimension_numbers<[1], [0], [0], [1], [0, 0, 1, 1], [], []>} : vector<2x32xbf16>, vector<32x128xbf16>, vector<2x128xf32> -> vector<2x128xf32>
    %876 = arith.addf %873, %875 : vector<2x128xf32>
    %877 = vector.extract_strided_slice %876 {offsets = [0, 0], sizes = [2, 96], strides = [1, 1]} : vector<2x128xf32> to vector<2x96xf32>
    %878 = arith.negf %877 : vector<2x96xf32>
    %879 = math.exp %878 : vector<2x96xf32>
    %cst_281 = arith.constant 1.000000e+00 : f32
    %880 = vector.broadcast %cst_281 : f32 to vector<2x96xf32>
    %881 = arith.addf %880, %879 : vector<2x96xf32>
    %882 = arith.divf %880, %881 : vector<2x96xf32>
    %883 = vector.extract_strided_slice %876 {offsets = [0, 96], sizes = [2, 32], strides = [1, 1]} : vector<2x128xf32> to vector<2x32xf32>
    %884 = math.tanh %883 : vector<2x32xf32>
    %885 = vector.extract_strided_slice %882 {offsets = [0, 32], sizes = [2, 32], strides = [1, 1]} : vector<2x96xf32> to vector<2x32xf32>
    %886 = arith.mulf %885, %847 : vector<2x32xf32>
    %887 = vector.extract_strided_slice %882 {offsets = [0, 0], sizes = [2, 32], strides = [1, 1]} : vector<2x96xf32> to vector<2x32xf32>
    %888 = arith.mulf %887, %884 : vector<2x32xf32>
    %889 = arith.addf %886, %888 : vector<2x32xf32>
    %890 = vector.extract_strided_slice %882 {offsets = [0, 64], sizes = [2, 32], strides = [1, 1]} : vector<2x96xf32> to vector<2x32xf32>
    %891 = math.tanh %889 : vector<2x32xf32>
    %892 = arith.mulf %890, %891 : vector<2x32xf32>
    %c32_282 = arith.constant 32 : index
    %c32_283 = arith.constant 32 : index
    %893 = vector.load %arg8[%c32_282, %c32_283] : memref<64x64xf32, #tpu.memory_space<vmem>>, vector<2x32xf32>
    tpu.vector_store %arg8[%c32_282, %c32_283], %892 {strides = array<i32>} : memref<64x64xf32, #tpu.memory_space<vmem>>, vector<2x32xf32>,
    %c32_284 = arith.constant 32 : index
    %c0_285 = arith.constant 0 : index
    %894 = vector.load %arg9[%c32_284, %c0_285] : memref<64x256xf32, #tpu.memory_space<vmem>>, vector<2x128xf32>
    %895 = arith.truncf %871 : vector<2x32xf32> to vector<2x32xbf16>
    %cst_286 = arith.constant dense<0.000000e+00> : vector<2x128xf32>
    %896 = tpu.matmul %895, %720, %cst_286 {dimension_numbers = #tpu.dot_dimension_numbers<[1], [0], [0], [1], [0, 0, 1, 1], [], []>} : vector<2x32xbf16>, vector<32x128xbf16>, vector<2x128xf32> -> vector<2x128xf32>
    %897 = arith.addf %894, %896 : vector<2x128xf32>
    %898 = vector.extract_strided_slice %897 {offsets = [0, 0], sizes = [2, 96], strides = [1, 1]} : vector<2x128xf32> to vector<2x96xf32>
    %899 = arith.negf %898 : vector<2x96xf32>
    %900 = math.exp %899 : vector<2x96xf32>
    %cst_287 = arith.constant 1.000000e+00 : f32
    %901 = vector.broadcast %cst_287 : f32 to vector<2x96xf32>
    %902 = arith.addf %901, %900 : vector<2x96xf32>
    %903 = arith.divf %901, %902 : vector<2x96xf32>
    %904 = vector.extract_strided_slice %897 {offsets = [0, 96], sizes = [2, 32], strides = [1, 1]} : vector<2x128xf32> to vector<2x32xf32>
    %905 = math.tanh %904 : vector<2x32xf32>
    %906 = vector.extract_strided_slice %903 {offsets = [0, 32], sizes = [2, 32], strides = [1, 1]} : vector<2x96xf32> to vector<2x32xf32>
    %907 = arith.mulf %906, %868 : vector<2x32xf32>
    %908 = vector.extract_strided_slice %903 {offsets = [0, 0], sizes = [2, 32], strides = [1, 1]} : vector<2x96xf32> to vector<2x32xf32>
    %909 = arith.mulf %908, %905 : vector<2x32xf32>
    %910 = arith.addf %907, %909 : vector<2x32xf32>
    %911 = vector.extract_strided_slice %903 {offsets = [0, 64], sizes = [2, 32], strides = [1, 1]} : vector<2x96xf32> to vector<2x32xf32>
    %912 = math.tanh %910 : vector<2x32xf32>
    %913 = arith.mulf %911, %912 : vector<2x32xf32>
    %c32_288 = arith.constant 32 : index
    %c0_289 = arith.constant 0 : index
    %914 = vector.load %arg8[%c32_288, %c0_289] : memref<64x64xf32, #tpu.memory_space<vmem>>, vector<2x32xf32>
    tpu.vector_store %arg8[%c32_288, %c0_289], %913 {strides = array<i32>} : memref<64x64xf32, #tpu.memory_space<vmem>>, vector<2x32xf32>,
    %c24_290 = arith.constant 24 : index
    %c128_291 = arith.constant 128 : index
    %915 = vector.load %arg9[%c24_290, %c128_291] : memref<64x256xf32, #tpu.memory_space<vmem>>, vector<2x128xf32>
    %916 = arith.truncf %892 : vector<2x32xf32> to vector<2x32xbf16>
    %cst_292 = arith.constant dense<0.000000e+00> : vector<2x128xf32>
    %917 = tpu.matmul %916, %721, %cst_292 {dimension_numbers = #tpu.dot_dimension_numbers<[1], [0], [0], [1], [0, 0, 1, 1], [], []>} : vector<2x32xbf16>, vector<32x128xbf16>, vector<2x128xf32> -> vector<2x128xf32>
    %918 = arith.addf %915, %917 : vector<2x128xf32>
    %919 = vector.extract_strided_slice %918 {offsets = [0, 0], sizes = [2, 96], strides = [1, 1]} : vector<2x128xf32> to vector<2x96xf32>
    %920 = arith.negf %919 : vector<2x96xf32>
    %921 = math.exp %920 : vector<2x96xf32>
    %cst_293 = arith.constant 1.000000e+00 : f32
    %922 = vector.broadcast %cst_293 : f32 to vector<2x96xf32>
    %923 = arith.addf %922, %921 : vector<2x96xf32>
    %924 = arith.divf %922, %923 : vector<2x96xf32>
    %925 = vector.extract_strided_slice %918 {offsets = [0, 96], sizes = [2, 32], strides = [1, 1]} : vector<2x128xf32> to vector<2x32xf32>
    %926 = math.tanh %925 : vector<2x32xf32>
    %927 = vector.extract_strided_slice %924 {offsets = [0, 32], sizes = [2, 32], strides = [1, 1]} : vector<2x96xf32> to vector<2x32xf32>
    %928 = arith.mulf %927, %889 : vector<2x32xf32>
    %929 = vector.extract_strided_slice %924 {offsets = [0, 0], sizes = [2, 32], strides = [1, 1]} : vector<2x96xf32> to vector<2x32xf32>
    %930 = arith.mulf %929, %926 : vector<2x32xf32>
    %931 = arith.addf %928, %930 : vector<2x32xf32>
    %932 = vector.extract_strided_slice %924 {offsets = [0, 64], sizes = [2, 32], strides = [1, 1]} : vector<2x96xf32> to vector<2x32xf32>
    %933 = math.tanh %931 : vector<2x32xf32>
    %934 = arith.mulf %932, %933 : vector<2x32xf32>
    %c24_294 = arith.constant 24 : index
    %c32_295 = arith.constant 32 : index
    %935 = vector.load %arg8[%c24_294, %c32_295] : memref<64x64xf32, #tpu.memory_space<vmem>>, vector<2x32xf32>
    tpu.vector_store %arg8[%c24_294, %c32_295], %934 {strides = array<i32>} : memref<64x64xf32, #tpu.memory_space<vmem>>, vector<2x32xf32>,
    %c40_296 = arith.constant 40 : index
    %c0_297 = arith.constant 0 : index
    %936 = vector.load %arg9[%c40_296, %c0_297] : memref<64x256xf32, #tpu.memory_space<vmem>>, vector<2x128xf32>
    %937 = arith.truncf %913 : vector<2x32xf32> to vector<2x32xbf16>
    %cst_298 = arith.constant dense<0.000000e+00> : vector<2x128xf32>
    %938 = tpu.matmul %937, %720, %cst_298 {dimension_numbers = #tpu.dot_dimension_numbers<[1], [0], [0], [1], [0, 0, 1, 1], [], []>} : vector<2x32xbf16>, vector<32x128xbf16>, vector<2x128xf32> -> vector<2x128xf32>
    %939 = arith.addf %936, %938 : vector<2x128xf32>
    %940 = vector.extract_strided_slice %939 {offsets = [0, 0], sizes = [2, 96], strides = [1, 1]} : vector<2x128xf32> to vector<2x96xf32>
    %941 = arith.negf %940 : vector<2x96xf32>
    %942 = math.exp %941 : vector<2x96xf32>
    %cst_299 = arith.constant 1.000000e+00 : f32
    %943 = vector.broadcast %cst_299 : f32 to vector<2x96xf32>
    %944 = arith.addf %943, %942 : vector<2x96xf32>
    %945 = arith.divf %943, %944 : vector<2x96xf32>
    %946 = vector.extract_strided_slice %939 {offsets = [0, 96], sizes = [2, 32], strides = [1, 1]} : vector<2x128xf32> to vector<2x32xf32>
    %947 = math.tanh %946 : vector<2x32xf32>
    %948 = vector.extract_strided_slice %945 {offsets = [0, 32], sizes = [2, 32], strides = [1, 1]} : vector<2x96xf32> to vector<2x32xf32>
    %949 = arith.mulf %948, %910 : vector<2x32xf32>
    %950 = vector.extract_strided_slice %945 {offsets = [0, 0], sizes = [2, 32], strides = [1, 1]} : vector<2x96xf32> to vector<2x32xf32>
    %951 = arith.mulf %950, %947 : vector<2x32xf32>
    %952 = arith.addf %949, %951 : vector<2x32xf32>
    %953 = vector.extract_strided_slice %945 {offsets = [0, 64], sizes = [2, 32], strides = [1, 1]} : vector<2x96xf32> to vector<2x32xf32>
    %954 = math.tanh %952 : vector<2x32xf32>
    %955 = arith.mulf %953, %954 : vector<2x32xf32>
    %c40_300 = arith.constant 40 : index
    %c0_301 = arith.constant 0 : index
    %956 = vector.load %arg8[%c40_300, %c0_301] : memref<64x64xf32, #tpu.memory_space<vmem>>, vector<2x32xf32>
    tpu.vector_store %arg8[%c40_300, %c0_301], %955 {strides = array<i32>} : memref<64x64xf32, #tpu.memory_space<vmem>>, vector<2x32xf32>,
    %c16_302 = arith.constant 16 : index
    %c128_303 = arith.constant 128 : index
    %957 = vector.load %arg9[%c16_302, %c128_303] : memref<64x256xf32, #tpu.memory_space<vmem>>, vector<2x128xf32>
    %958 = arith.truncf %934 : vector<2x32xf32> to vector<2x32xbf16>
    %cst_304 = arith.constant dense<0.000000e+00> : vector<2x128xf32>
    %959 = tpu.matmul %958, %721, %cst_304 {dimension_numbers = #tpu.dot_dimension_numbers<[1], [0], [0], [1], [0, 0, 1, 1], [], []>} : vector<2x32xbf16>, vector<32x128xbf16>, vector<2x128xf32> -> vector<2x128xf32>
    %960 = arith.addf %957, %959 : vector<2x128xf32>
    %961 = vector.extract_strided_slice %960 {offsets = [0, 0], sizes = [2, 96], strides = [1, 1]} : vector<2x128xf32> to vector<2x96xf32>
    %962 = arith.negf %961 : vector<2x96xf32>
    %963 = math.exp %962 : vector<2x96xf32>
    %cst_305 = arith.constant 1.000000e+00 : f32
    %964 = vector.broadcast %cst_305 : f32 to vector<2x96xf32>
    %965 = arith.addf %964, %963 : vector<2x96xf32>
    %966 = arith.divf %964, %965 : vector<2x96xf32>
    %967 = vector.extract_strided_slice %960 {offsets = [0, 96], sizes = [2, 32], strides = [1, 1]} : vector<2x128xf32> to vector<2x32xf32>
    %968 = math.tanh %967 : vector<2x32xf32>
    %969 = vector.extract_strided_slice %966 {offsets = [0, 32], sizes = [2, 32], strides = [1, 1]} : vector<2x96xf32> to vector<2x32xf32>
    %970 = arith.mulf %969, %931 : vector<2x32xf32>
    %971 = vector.extract_strided_slice %966 {offsets = [0, 0], sizes = [2, 32], strides = [1, 1]} : vector<2x96xf32> to vector<2x32xf32>
    %972 = arith.mulf %971, %968 : vector<2x32xf32>
    %973 = arith.addf %970, %972 : vector<2x32xf32>
    %974 = vector.extract_strided_slice %966 {offsets = [0, 64], sizes = [2, 32], strides = [1, 1]} : vector<2x96xf32> to vector<2x32xf32>
    %975 = math.tanh %973 : vector<2x32xf32>
    %976 = arith.mulf %974, %975 : vector<2x32xf32>
    %c16_306 = arith.constant 16 : index
    %c32_307 = arith.constant 32 : index
    %977 = vector.load %arg8[%c16_306, %c32_307] : memref<64x64xf32, #tpu.memory_space<vmem>>, vector<2x32xf32>
    tpu.vector_store %arg8[%c16_306, %c32_307], %976 {strides = array<i32>} : memref<64x64xf32, #tpu.memory_space<vmem>>, vector<2x32xf32>,
    %c48_308 = arith.constant 48 : index
    %c0_309 = arith.constant 0 : index
    %978 = vector.load %arg9[%c48_308, %c0_309] : memref<64x256xf32, #tpu.memory_space<vmem>>, vector<2x128xf32>
    %979 = arith.truncf %955 : vector<2x32xf32> to vector<2x32xbf16>
    %cst_310 = arith.constant dense<0.000000e+00> : vector<2x128xf32>
    %980 = tpu.matmul %979, %720, %cst_310 {dimension_numbers = #tpu.dot_dimension_numbers<[1], [0], [0], [1], [0, 0, 1, 1], [], []>} : vector<2x32xbf16>, vector<32x128xbf16>, vector<2x128xf32> -> vector<2x128xf32>
    %981 = arith.addf %978, %980 : vector<2x128xf32>
    %982 = vector.extract_strided_slice %981 {offsets = [0, 0], sizes = [2, 96], strides = [1, 1]} : vector<2x128xf32> to vector<2x96xf32>
    %983 = arith.negf %982 : vector<2x96xf32>
    %984 = math.exp %983 : vector<2x96xf32>
    %cst_311 = arith.constant 1.000000e+00 : f32
    %985 = vector.broadcast %cst_311 : f32 to vector<2x96xf32>
    %986 = arith.addf %985, %984 : vector<2x96xf32>
    %987 = arith.divf %985, %986 : vector<2x96xf32>
    %988 = vector.extract_strided_slice %981 {offsets = [0, 96], sizes = [2, 32], strides = [1, 1]} : vector<2x128xf32> to vector<2x32xf32>
    %989 = math.tanh %988 : vector<2x32xf32>
    %990 = vector.extract_strided_slice %987 {offsets = [0, 32], sizes = [2, 32], strides = [1, 1]} : vector<2x96xf32> to vector<2x32xf32>
    %991 = arith.mulf %990, %952 : vector<2x32xf32>
    %992 = vector.extract_strided_slice %987 {offsets = [0, 0], sizes = [2, 32], strides = [1, 1]} : vector<2x96xf32> to vector<2x32xf32>
    %993 = arith.mulf %992, %989 : vector<2x32xf32>
    %994 = arith.addf %991, %993 : vector<2x32xf32>
    %995 = vector.extract_strided_slice %987 {offsets = [0, 64], sizes = [2, 32], strides = [1, 1]} : vector<2x96xf32> to vector<2x32xf32>
    %996 = math.tanh %994 : vector<2x32xf32>
    %997 = arith.mulf %995, %996 : vector<2x32xf32>
    %c48_312 = arith.constant 48 : index
    %c0_313 = arith.constant 0 : index
    %998 = vector.load %arg8[%c48_312, %c0_313] : memref<64x64xf32, #tpu.memory_space<vmem>>, vector<2x32xf32>
    tpu.vector_store %arg8[%c48_312, %c0_313], %997 {strides = array<i32>} : memref<64x64xf32, #tpu.memory_space<vmem>>, vector<2x32xf32>,
    %c8_314 = arith.constant 8 : index
    %c128_315 = arith.constant 128 : index
    %999 = vector.load %arg9[%c8_314, %c128_315] : memref<64x256xf32, #tpu.memory_space<vmem>>, vector<2x128xf32>
    %1000 = arith.truncf %976 : vector<2x32xf32> to vector<2x32xbf16>
    %cst_316 = arith.constant dense<0.000000e+00> : vector<2x128xf32>
    %1001 = tpu.matmul %1000, %721, %cst_316 {dimension_numbers = #tpu.dot_dimension_numbers<[1], [0], [0], [1], [0, 0, 1, 1], [], []>} : vector<2x32xbf16>, vector<32x128xbf16>, vector<2x128xf32> -> vector<2x128xf32>
    %1002 = arith.addf %999, %1001 : vector<2x128xf32>
    %1003 = vector.extract_strided_slice %1002 {offsets = [0, 0], sizes = [2, 96], strides = [1, 1]} : vector<2x128xf32> to vector<2x96xf32>
    %1004 = arith.negf %1003 : vector<2x96xf32>
    %1005 = math.exp %1004 : vector<2x96xf32>
    %cst_317 = arith.constant 1.000000e+00 : f32
    %1006 = vector.broadcast %cst_317 : f32 to vector<2x96xf32>
    %1007 = arith.addf %1006, %1005 : vector<2x96xf32>
    %1008 = arith.divf %1006, %1007 : vector<2x96xf32>
    %1009 = vector.extract_strided_slice %1002 {offsets = [0, 96], sizes = [2, 32], strides = [1, 1]} : vector<2x128xf32> to vector<2x32xf32>
    %1010 = math.tanh %1009 : vector<2x32xf32>
    %1011 = vector.extract_strided_slice %1008 {offsets = [0, 32], sizes = [2, 32], strides = [1, 1]} : vector<2x96xf32> to vector<2x32xf32>
    %1012 = arith.mulf %1011, %973 : vector<2x32xf32>
    %1013 = vector.extract_strided_slice %1008 {offsets = [0, 0], sizes = [2, 32], strides = [1, 1]} : vector<2x96xf32> to vector<2x32xf32>
    %1014 = arith.mulf %1013, %1010 : vector<2x32xf32>
    %1015 = arith.addf %1012, %1014 : vector<2x32xf32>
    %1016 = vector.extract_strided_slice %1008 {offsets = [0, 64], sizes = [2, 32], strides = [1, 1]} : vector<2x96xf32> to vector<2x32xf32>
    %1017 = math.tanh %1015 : vector<2x32xf32>
    %1018 = arith.mulf %1016, %1017 : vector<2x32xf32>
    %c8_318 = arith.constant 8 : index
    %c32_319 = arith.constant 32 : index
    %1019 = vector.load %arg8[%c8_318, %c32_319] : memref<64x64xf32, #tpu.memory_space<vmem>>, vector<2x32xf32>
    tpu.vector_store %arg8[%c8_318, %c32_319], %1018 {strides = array<i32>} : memref<64x64xf32, #tpu.memory_space<vmem>>, vector<2x32xf32>,
    %c56_320 = arith.constant 56 : index
    %c0_321 = arith.constant 0 : index
    %1020 = vector.load %arg9[%c56_320, %c0_321] : memref<64x256xf32, #tpu.memory_space<vmem>>, vector<2x128xf32>
    %1021 = arith.truncf %997 : vector<2x32xf32> to vector<2x32xbf16>
    %cst_322 = arith.constant dense<0.000000e+00> : vector<2x128xf32>
    %1022 = tpu.matmul %1021, %720, %cst_322 {dimension_numbers = #tpu.dot_dimension_numbers<[1], [0], [0], [1], [0, 0, 1, 1], [], []>} : vector<2x32xbf16>, vector<32x128xbf16>, vector<2x128xf32> -> vector<2x128xf32>
    %1023 = arith.addf %1020, %1022 : vector<2x128xf32>
    %1024 = vector.extract_strided_slice %1023 {offsets = [0, 0], sizes = [2, 96], strides = [1, 1]} : vector<2x128xf32> to vector<2x96xf32>
    %1025 = arith.negf %1024 : vector<2x96xf32>
    %1026 = math.exp %1025 : vector<2x96xf32>
    %cst_323 = arith.constant 1.000000e+00 : f32
    %1027 = vector.broadcast %cst_323 : f32 to vector<2x96xf32>
    %1028 = arith.addf %1027, %1026 : vector<2x96xf32>
    %1029 = arith.divf %1027, %1028 : vector<2x96xf32>
    %1030 = vector.extract_strided_slice %1023 {offsets = [0, 96], sizes = [2, 32], strides = [1, 1]} : vector<2x128xf32> to vector<2x32xf32>
    %1031 = math.tanh %1030 : vector<2x32xf32>
    %1032 = vector.extract_strided_slice %1029 {offsets = [0, 32], sizes = [2, 32], strides = [1, 1]} : vector<2x96xf32> to vector<2x32xf32>
    %1033 = arith.mulf %1032, %994 : vector<2x32xf32>
    %1034 = vector.extract_strided_slice %1029 {offsets = [0, 0], sizes = [2, 32], strides = [1, 1]} : vector<2x96xf32> to vector<2x32xf32>
    %1035 = arith.mulf %1034, %1031 : vector<2x32xf32>
    %1036 = arith.addf %1033, %1035 : vector<2x32xf32>
    %1037 = vector.extract_strided_slice %1029 {offsets = [0, 64], sizes = [2, 32], strides = [1, 1]} : vector<2x96xf32> to vector<2x32xf32>
    %1038 = math.tanh %1036 : vector<2x32xf32>
    %1039 = arith.mulf %1037, %1038 : vector<2x32xf32>
    %c56_324 = arith.constant 56 : index
    %c0_325 = arith.constant 0 : index
    %1040 = vector.load %arg8[%c56_324, %c0_325] : memref<64x64xf32, #tpu.memory_space<vmem>>, vector<2x32xf32>
    tpu.vector_store %arg8[%c56_324, %c0_325], %1039 {strides = array<i32>} : memref<64x64xf32, #tpu.memory_space<vmem>>, vector<2x32xf32>,
    %c0_326 = arith.constant 0 : index
    %c128_327 = arith.constant 128 : index
    %1041 = vector.load %arg9[%c0_326, %c128_327] : memref<64x256xf32, #tpu.memory_space<vmem>>, vector<2x128xf32>
    %1042 = arith.truncf %1018 : vector<2x32xf32> to vector<2x32xbf16>
    %cst_328 = arith.constant dense<0.000000e+00> : vector<2x128xf32>
    %1043 = tpu.matmul %1042, %721, %cst_328 {dimension_numbers = #tpu.dot_dimension_numbers<[1], [0], [0], [1], [0, 0, 1, 1], [], []>} : vector<2x32xbf16>, vector<32x128xbf16>, vector<2x128xf32> -> vector<2x128xf32>
    %1044 = arith.addf %1041, %1043 : vector<2x128xf32>
    %1045 = vector.extract_strided_slice %1044 {offsets = [0, 0], sizes = [2, 96], strides = [1, 1]} : vector<2x128xf32> to vector<2x96xf32>
    %1046 = arith.negf %1045 : vector<2x96xf32>
    %1047 = math.exp %1046 : vector<2x96xf32>
    %cst_329 = arith.constant 1.000000e+00 : f32
    %1048 = vector.broadcast %cst_329 : f32 to vector<2x96xf32>
    %1049 = arith.addf %1048, %1047 : vector<2x96xf32>
    %1050 = arith.divf %1048, %1049 : vector<2x96xf32>
    %1051 = vector.extract_strided_slice %1044 {offsets = [0, 96], sizes = [2, 32], strides = [1, 1]} : vector<2x128xf32> to vector<2x32xf32>
    %1052 = math.tanh %1051 : vector<2x32xf32>
    %1053 = vector.extract_strided_slice %1050 {offsets = [0, 32], sizes = [2, 32], strides = [1, 1]} : vector<2x96xf32> to vector<2x32xf32>
    %1054 = arith.mulf %1053, %1015 : vector<2x32xf32>
    %1055 = vector.extract_strided_slice %1050 {offsets = [0, 0], sizes = [2, 32], strides = [1, 1]} : vector<2x96xf32> to vector<2x32xf32>
    %1056 = arith.mulf %1055, %1052 : vector<2x32xf32>
    %1057 = arith.addf %1054, %1056 : vector<2x32xf32>
    %1058 = vector.extract_strided_slice %1050 {offsets = [0, 64], sizes = [2, 32], strides = [1, 1]} : vector<2x96xf32> to vector<2x32xf32>
    %1059 = math.tanh %1057 : vector<2x32xf32>
    %1060 = arith.mulf %1058, %1059 : vector<2x32xf32>
    %c0_330 = arith.constant 0 : index
    %c32_331 = arith.constant 32 : index
    %1061 = vector.load %arg8[%c0_330, %c32_331] : memref<64x64xf32, #tpu.memory_space<vmem>>, vector<2x32xf32>
    tpu.vector_store %arg8[%c0_330, %c32_331], %1060 {strides = array<i32>} : memref<64x64xf32, #tpu.memory_space<vmem>>, vector<2x32xf32>,
    %c0_332 = arith.constant 0 : index
    %c0_333 = arith.constant 0 : index
    %1062 = vector.load %arg8[%c0_332, %c0_333] : memref<64x64xf32, #tpu.memory_space<vmem>>, vector<64x64xf32>
    %1063 = arith.truncf %1062 : vector<64x64xf32> to vector<64x64xbf16>
    %c2_334 = arith.constant 2 : index
    %c0_335 = arith.constant 0 : index
    %c0_336 = arith.constant 0 : index
    %1064 = vector.load %arg2[%c2_334, %c0_335, %c0_336] : memref<3x64x256xbf16, #tpu.memory_space<vmem>>, vector<1x64x256xbf16>
    %1065 = vector.shape_cast %1064 : vector<1x64x256xbf16> to vector<64x256xbf16>
    %cst_337 = arith.constant dense<0.000000e+00> : vector<64x256xf32>
    %1066 = tpu.matmul %1063, %1065, %cst_337 {dimension_numbers = #tpu.dot_dimension_numbers<[1], [0], [0], [1], [0, 0, 1, 1], [], []>} : vector<64x64xbf16>, vector<64x256xbf16>, vector<64x256xf32> -> vector<64x256xf32>
    %c3 = arith.constant 3 : index
    %c0_338 = arith.constant 0 : index
    %c0_339 = arith.constant 0 : index
    %1067 = vector.load %arg4[%c3, %c0_338, %c0_339] : memref<4x1x256xf32, #tpu.memory_space<vmem>>, vector<1x1x256xf32>
    %1068 = vector.shape_cast %1067 : vector<1x1x256xf32> to vector<1x256xf32>
    %1069 = vector.broadcast %1068 : vector<1x256xf32> to vector<64x256xf32>
    %1070 = arith.addf %1066, %1069 : vector<64x256xf32>
    %c0_340 = arith.constant 0 : index
    %c0_341 = arith.constant 0 : index
    %1071 = vector.load %arg9[%c0_340, %c0_341] : memref<64x256xf32, #tpu.memory_space<vmem>>, vector<64x256xf32>
    tpu.vector_store %arg9[%c0_340, %c0_341], %1070 {strides = array<i32>} : memref<64x256xf32, #tpu.memory_space<vmem>>, vector<64x256xf32>,
    %c3_342 = arith.constant 3 : index
    %c0_343 = arith.constant 0 : index
    %c0_344 = arith.constant 0 : index
    %1072 = vector.load %arg3[%c3_342, %c0_343, %c0_344] : memref<4x32x256xbf16, #tpu.memory_space<vmem>>, vector<1x32x256xbf16>
    %1073 = vector.shape_cast %1072 : vector<1x32x256xbf16> to vector<32x256xbf16>
    %1074 = vector.extract_strided_slice %1073 {offsets = [0, 0], sizes = [32, 128], strides = [1, 1]} : vector<32x256xbf16> to vector<32x128xbf16>
    %1075 = vector.extract_strided_slice %1073 {offsets = [0, 128], sizes = [32, 128], strides = [1, 1]} : vector<32x256xbf16> to vector<32x128xbf16>
    %cst_345 = arith.constant 0.000000e+00 : f32
    %1076 = vector.broadcast %cst_345 : f32 to vector<2x32xf32>
    %cst_346 = arith.constant 0.000000e+00 : f32
    %1077 = vector.broadcast %cst_346 : f32 to vector<2x32xf32>
    %cst_347 = arith.constant 0.000000e+00 : f32
    %1078 = vector.broadcast %cst_347 : f32 to vector<2x32xf32>
    %cst_348 = arith.constant 0.000000e+00 : f32
    %1079 = vector.broadcast %cst_348 : f32 to vector<2x32xf32>
    %c0_349 = arith.constant 0 : index
    %c0_350 = arith.constant 0 : index
    %1080 = vector.load %arg9[%c0_349, %c0_350] : memref<64x256xf32, #tpu.memory_space<vmem>>, vector<2x128xf32>
    %1081 = arith.truncf %1076 : vector<2x32xf32> to vector<2x32xbf16>
    %cst_351 = arith.constant dense<0.000000e+00> : vector<2x128xf32>
    %1082 = tpu.matmul %1081, %1074, %cst_351 {dimension_numbers = #tpu.dot_dimension_numbers<[1], [0], [0], [1], [0, 0, 1, 1], [], []>} : vector<2x32xbf16>, vector<32x128xbf16>, vector<2x128xf32> -> vector<2x128xf32>
    %1083 = arith.addf %1080, %1082 : vector<2x128xf32>
    %1084 = vector.extract_strided_slice %1083 {offsets = [0, 0], sizes = [2, 96], strides = [1, 1]} : vector<2x128xf32> to vector<2x96xf32>
    %1085 = arith.negf %1084 : vector<2x96xf32>
    %1086 = math.exp %1085 : vector<2x96xf32>
    %cst_352 = arith.constant 1.000000e+00 : f32
    %1087 = vector.broadcast %cst_352 : f32 to vector<2x96xf32>
    %1088 = arith.addf %1087, %1086 : vector<2x96xf32>
    %1089 = arith.divf %1087, %1088 : vector<2x96xf32>
    %1090 = vector.extract_strided_slice %1083 {offsets = [0, 96], sizes = [2, 32], strides = [1, 1]} : vector<2x128xf32> to vector<2x32xf32>
    %1091 = math.tanh %1090 : vector<2x32xf32>
    %1092 = vector.extract_strided_slice %1089 {offsets = [0, 32], sizes = [2, 32], strides = [1, 1]} : vector<2x96xf32> to vector<2x32xf32>
    %1093 = arith.mulf %1092, %1077 : vector<2x32xf32>
    %1094 = vector.extract_strided_slice %1089 {offsets = [0, 0], sizes = [2, 32], strides = [1, 1]} : vector<2x96xf32> to vector<2x32xf32>
    %1095 = arith.mulf %1094, %1091 : vector<2x32xf32>
    %1096 = arith.addf %1093, %1095 : vector<2x32xf32>
    %1097 = vector.extract_strided_slice %1089 {offsets = [0, 64], sizes = [2, 32], strides = [1, 1]} : vector<2x96xf32> to vector<2x32xf32>
    %1098 = math.tanh %1096 : vector<2x32xf32>
    %1099 = arith.mulf %1097, %1098 : vector<2x32xf32>
    %c0_353 = arith.constant 0 : index
    %c0_354 = arith.constant 0 : index
    %1100 = vector.load %arg8[%c0_353, %c0_354] : memref<64x64xf32, #tpu.memory_space<vmem>>, vector<2x32xf32>
    tpu.vector_store %arg8[%c0_353, %c0_354], %1099 {strides = array<i32>} : memref<64x64xf32, #tpu.memory_space<vmem>>, vector<2x32xf32>,
    %c56_355 = arith.constant 56 : index
    %c128_356 = arith.constant 128 : index
    %1101 = vector.load %arg9[%c56_355, %c128_356] : memref<64x256xf32, #tpu.memory_space<vmem>>, vector<2x128xf32>
    %1102 = arith.truncf %1078 : vector<2x32xf32> to vector<2x32xbf16>
    %cst_357 = arith.constant dense<0.000000e+00> : vector<2x128xf32>
    %1103 = tpu.matmul %1102, %1075, %cst_357 {dimension_numbers = #tpu.dot_dimension_numbers<[1], [0], [0], [1], [0, 0, 1, 1], [], []>} : vector<2x32xbf16>, vector<32x128xbf16>, vector<2x128xf32> -> vector<2x128xf32>
    %1104 = arith.addf %1101, %1103 : vector<2x128xf32>
    %1105 = vector.extract_strided_slice %1104 {offsets = [0, 0], sizes = [2, 96], strides = [1, 1]} : vector<2x128xf32> to vector<2x96xf32>
    %1106 = arith.negf %1105 : vector<2x96xf32>
    %1107 = math.exp %1106 : vector<2x96xf32>
    %cst_358 = arith.constant 1.000000e+00 : f32
    %1108 = vector.broadcast %cst_358 : f32 to vector<2x96xf32>
    %1109 = arith.addf %1108, %1107 : vector<2x96xf32>
    %1110 = arith.divf %1108, %1109 : vector<2x96xf32>
    %1111 = vector.extract_strided_slice %1104 {offsets = [0, 96], sizes = [2, 32], strides = [1, 1]} : vector<2x128xf32> to vector<2x32xf32>
    %1112 = math.tanh %1111 : vector<2x32xf32>
    %1113 = vector.extract_strided_slice %1110 {offsets = [0, 32], sizes = [2, 32], strides = [1, 1]} : vector<2x96xf32> to vector<2x32xf32>
    %1114 = arith.mulf %1113, %1079 : vector<2x32xf32>
    %1115 = vector.extract_strided_slice %1110 {offsets = [0, 0], sizes = [2, 32], strides = [1, 1]} : vector<2x96xf32> to vector<2x32xf32>
    %1116 = arith.mulf %1115, %1112 : vector<2x32xf32>
    %1117 = arith.addf %1114, %1116 : vector<2x32xf32>
    %1118 = vector.extract_strided_slice %1110 {offsets = [0, 64], sizes = [2, 32], strides = [1, 1]} : vector<2x96xf32> to vector<2x32xf32>
    %1119 = math.tanh %1117 : vector<2x32xf32>
    %1120 = arith.mulf %1118, %1119 : vector<2x32xf32>
    %c56_359 = arith.constant 56 : index
    %c32_360 = arith.constant 32 : index
    %1121 = vector.load %arg8[%c56_359, %c32_360] : memref<64x64xf32, #tpu.memory_space<vmem>>, vector<2x32xf32>
    tpu.vector_store %arg8[%c56_359, %c32_360], %1120 {strides = array<i32>} : memref<64x64xf32, #tpu.memory_space<vmem>>, vector<2x32xf32>,
    %c8_361 = arith.constant 8 : index
    %c0_362 = arith.constant 0 : index
    %1122 = vector.load %arg9[%c8_361, %c0_362] : memref<64x256xf32, #tpu.memory_space<vmem>>, vector<2x128xf32>
    %1123 = arith.truncf %1099 : vector<2x32xf32> to vector<2x32xbf16>
    %cst_363 = arith.constant dense<0.000000e+00> : vector<2x128xf32>
    %1124 = tpu.matmul %1123, %1074, %cst_363 {dimension_numbers = #tpu.dot_dimension_numbers<[1], [0], [0], [1], [0, 0, 1, 1], [], []>} : vector<2x32xbf16>, vector<32x128xbf16>, vector<2x128xf32> -> vector<2x128xf32>
    %1125 = arith.addf %1122, %1124 : vector<2x128xf32>
    %1126 = vector.extract_strided_slice %1125 {offsets = [0, 0], sizes = [2, 96], strides = [1, 1]} : vector<2x128xf32> to vector<2x96xf32>
    %1127 = arith.negf %1126 : vector<2x96xf32>
    %1128 = math.exp %1127 : vector<2x96xf32>
    %cst_364 = arith.constant 1.000000e+00 : f32
    %1129 = vector.broadcast %cst_364 : f32 to vector<2x96xf32>
    %1130 = arith.addf %1129, %1128 : vector<2x96xf32>
    %1131 = arith.divf %1129, %1130 : vector<2x96xf32>
    %1132 = vector.extract_strided_slice %1125 {offsets = [0, 96], sizes = [2, 32], strides = [1, 1]} : vector<2x128xf32> to vector<2x32xf32>
    %1133 = math.tanh %1132 : vector<2x32xf32>
    %1134 = vector.extract_strided_slice %1131 {offsets = [0, 32], sizes = [2, 32], strides = [1, 1]} : vector<2x96xf32> to vector<2x32xf32>
    %1135 = arith.mulf %1134, %1096 : vector<2x32xf32>
    %1136 = vector.extract_strided_slice %1131 {offsets = [0, 0], sizes = [2, 32], strides = [1, 1]} : vector<2x96xf32> to vector<2x32xf32>
    %1137 = arith.mulf %1136, %1133 : vector<2x32xf32>
    %1138 = arith.addf %1135, %1137 : vector<2x32xf32>
    %1139 = vector.extract_strided_slice %1131 {offsets = [0, 64], sizes = [2, 32], strides = [1, 1]} : vector<2x96xf32> to vector<2x32xf32>
    %1140 = math.tanh %1138 : vector<2x32xf32>
    %1141 = arith.mulf %1139, %1140 : vector<2x32xf32>
    %c8_365 = arith.constant 8 : index
    %c0_366 = arith.constant 0 : index
    %1142 = vector.load %arg8[%c8_365, %c0_366] : memref<64x64xf32, #tpu.memory_space<vmem>>, vector<2x32xf32>
    tpu.vector_store %arg8[%c8_365, %c0_366], %1141 {strides = array<i32>} : memref<64x64xf32, #tpu.memory_space<vmem>>, vector<2x32xf32>,
    %c48_367 = arith.constant 48 : index
    %c128_368 = arith.constant 128 : index
    %1143 = vector.load %arg9[%c48_367, %c128_368] : memref<64x256xf32, #tpu.memory_space<vmem>>, vector<2x128xf32>
    %1144 = arith.truncf %1120 : vector<2x32xf32> to vector<2x32xbf16>
    %cst_369 = arith.constant dense<0.000000e+00> : vector<2x128xf32>
    %1145 = tpu.matmul %1144, %1075, %cst_369 {dimension_numbers = #tpu.dot_dimension_numbers<[1], [0], [0], [1], [0, 0, 1, 1], [], []>} : vector<2x32xbf16>, vector<32x128xbf16>, vector<2x128xf32> -> vector<2x128xf32>
    %1146 = arith.addf %1143, %1145 : vector<2x128xf32>
    %1147 = vector.extract_strided_slice %1146 {offsets = [0, 0], sizes = [2, 96], strides = [1, 1]} : vector<2x128xf32> to vector<2x96xf32>
    %1148 = arith.negf %1147 : vector<2x96xf32>
    %1149 = math.exp %1148 : vector<2x96xf32>
    %cst_370 = arith.constant 1.000000e+00 : f32
    %1150 = vector.broadcast %cst_370 : f32 to vector<2x96xf32>
    %1151 = arith.addf %1150, %1149 : vector<2x96xf32>
    %1152 = arith.divf %1150, %1151 : vector<2x96xf32>
    %1153 = vector.extract_strided_slice %1146 {offsets = [0, 96], sizes = [2, 32], strides = [1, 1]} : vector<2x128xf32> to vector<2x32xf32>
    %1154 = math.tanh %1153 : vector<2x32xf32>
    %1155 = vector.extract_strided_slice %1152 {offsets = [0, 32], sizes = [2, 32], strides = [1, 1]} : vector<2x96xf32> to vector<2x32xf32>
    %1156 = arith.mulf %1155, %1117 : vector<2x32xf32>
    %1157 = vector.extract_strided_slice %1152 {offsets = [0, 0], sizes = [2, 32], strides = [1, 1]} : vector<2x96xf32> to vector<2x32xf32>
    %1158 = arith.mulf %1157, %1154 : vector<2x32xf32>
    %1159 = arith.addf %1156, %1158 : vector<2x32xf32>
    %1160 = vector.extract_strided_slice %1152 {offsets = [0, 64], sizes = [2, 32], strides = [1, 1]} : vector<2x96xf32> to vector<2x32xf32>
    %1161 = math.tanh %1159 : vector<2x32xf32>
    %1162 = arith.mulf %1160, %1161 : vector<2x32xf32>
    %c48_371 = arith.constant 48 : index
    %c32_372 = arith.constant 32 : index
    %1163 = vector.load %arg8[%c48_371, %c32_372] : memref<64x64xf32, #tpu.memory_space<vmem>>, vector<2x32xf32>
    tpu.vector_store %arg8[%c48_371, %c32_372], %1162 {strides = array<i32>} : memref<64x64xf32, #tpu.memory_space<vmem>>, vector<2x32xf32>,
    %c16_373 = arith.constant 16 : index
    %c0_374 = arith.constant 0 : index
    %1164 = vector.load %arg9[%c16_373, %c0_374] : memref<64x256xf32, #tpu.memory_space<vmem>>, vector<2x128xf32>
    %1165 = arith.truncf %1141 : vector<2x32xf32> to vector<2x32xbf16>
    %cst_375 = arith.constant dense<0.000000e+00> : vector<2x128xf32>
    %1166 = tpu.matmul %1165, %1074, %cst_375 {dimension_numbers = #tpu.dot_dimension_numbers<[1], [0], [0], [1], [0, 0, 1, 1], [], []>} : vector<2x32xbf16>, vector<32x128xbf16>, vector<2x128xf32> -> vector<2x128xf32>
    %1167 = arith.addf %1164, %1166 : vector<2x128xf32>
    %1168 = vector.extract_strided_slice %1167 {offsets = [0, 0], sizes = [2, 96], strides = [1, 1]} : vector<2x128xf32> to vector<2x96xf32>
    %1169 = arith.negf %1168 : vector<2x96xf32>
    %1170 = math.exp %1169 : vector<2x96xf32>
    %cst_376 = arith.constant 1.000000e+00 : f32
    %1171 = vector.broadcast %cst_376 : f32 to vector<2x96xf32>
    %1172 = arith.addf %1171, %1170 : vector<2x96xf32>
    %1173 = arith.divf %1171, %1172 : vector<2x96xf32>
    %1174 = vector.extract_strided_slice %1167 {offsets = [0, 96], sizes = [2, 32], strides = [1, 1]} : vector<2x128xf32> to vector<2x32xf32>
    %1175 = math.tanh %1174 : vector<2x32xf32>
    %1176 = vector.extract_strided_slice %1173 {offsets = [0, 32], sizes = [2, 32], strides = [1, 1]} : vector<2x96xf32> to vector<2x32xf32>
    %1177 = arith.mulf %1176, %1138 : vector<2x32xf32>
    %1178 = vector.extract_strided_slice %1173 {offsets = [0, 0], sizes = [2, 32], strides = [1, 1]} : vector<2x96xf32> to vector<2x32xf32>
    %1179 = arith.mulf %1178, %1175 : vector<2x32xf32>
    %1180 = arith.addf %1177, %1179 : vector<2x32xf32>
    %1181 = vector.extract_strided_slice %1173 {offsets = [0, 64], sizes = [2, 32], strides = [1, 1]} : vector<2x96xf32> to vector<2x32xf32>
    %1182 = math.tanh %1180 : vector<2x32xf32>
    %1183 = arith.mulf %1181, %1182 : vector<2x32xf32>
    %c16_377 = arith.constant 16 : index
    %c0_378 = arith.constant 0 : index
    %1184 = vector.load %arg8[%c16_377, %c0_378] : memref<64x64xf32, #tpu.memory_space<vmem>>, vector<2x32xf32>
    tpu.vector_store %arg8[%c16_377, %c0_378], %1183 {strides = array<i32>} : memref<64x64xf32, #tpu.memory_space<vmem>>, vector<2x32xf32>,
    %c40_379 = arith.constant 40 : index
    %c128_380 = arith.constant 128 : index
    %1185 = vector.load %arg9[%c40_379, %c128_380] : memref<64x256xf32, #tpu.memory_space<vmem>>, vector<2x128xf32>
    %1186 = arith.truncf %1162 : vector<2x32xf32> to vector<2x32xbf16>
    %cst_381 = arith.constant dense<0.000000e+00> : vector<2x128xf32>
    %1187 = tpu.matmul %1186, %1075, %cst_381 {dimension_numbers = #tpu.dot_dimension_numbers<[1], [0], [0], [1], [0, 0, 1, 1], [], []>} : vector<2x32xbf16>, vector<32x128xbf16>, vector<2x128xf32> -> vector<2x128xf32>
    %1188 = arith.addf %1185, %1187 : vector<2x128xf32>
    %1189 = vector.extract_strided_slice %1188 {offsets = [0, 0], sizes = [2, 96], strides = [1, 1]} : vector<2x128xf32> to vector<2x96xf32>
    %1190 = arith.negf %1189 : vector<2x96xf32>
    %1191 = math.exp %1190 : vector<2x96xf32>
    %cst_382 = arith.constant 1.000000e+00 : f32
    %1192 = vector.broadcast %cst_382 : f32 to vector<2x96xf32>
    %1193 = arith.addf %1192, %1191 : vector<2x96xf32>
    %1194 = arith.divf %1192, %1193 : vector<2x96xf32>
    %1195 = vector.extract_strided_slice %1188 {offsets = [0, 96], sizes = [2, 32], strides = [1, 1]} : vector<2x128xf32> to vector<2x32xf32>
    %1196 = math.tanh %1195 : vector<2x32xf32>
    %1197 = vector.extract_strided_slice %1194 {offsets = [0, 32], sizes = [2, 32], strides = [1, 1]} : vector<2x96xf32> to vector<2x32xf32>
    %1198 = arith.mulf %1197, %1159 : vector<2x32xf32>
    %1199 = vector.extract_strided_slice %1194 {offsets = [0, 0], sizes = [2, 32], strides = [1, 1]} : vector<2x96xf32> to vector<2x32xf32>
    %1200 = arith.mulf %1199, %1196 : vector<2x32xf32>
    %1201 = arith.addf %1198, %1200 : vector<2x32xf32>
    %1202 = vector.extract_strided_slice %1194 {offsets = [0, 64], sizes = [2, 32], strides = [1, 1]} : vector<2x96xf32> to vector<2x32xf32>
    %1203 = math.tanh %1201 : vector<2x32xf32>
    %1204 = arith.mulf %1202, %1203 : vector<2x32xf32>
    %c40_383 = arith.constant 40 : index
    %c32_384 = arith.constant 32 : index
    %1205 = vector.load %arg8[%c40_383, %c32_384] : memref<64x64xf32, #tpu.memory_space<vmem>>, vector<2x32xf32>
    tpu.vector_store %arg8[%c40_383, %c32_384], %1204 {strides = array<i32>} : memref<64x64xf32, #tpu.memory_space<vmem>>, vector<2x32xf32>,
    %c24_385 = arith.constant 24 : index
    %c0_386 = arith.constant 0 : index
    %1206 = vector.load %arg9[%c24_385, %c0_386] : memref<64x256xf32, #tpu.memory_space<vmem>>, vector<2x128xf32>
    %1207 = arith.truncf %1183 : vector<2x32xf32> to vector<2x32xbf16>
    %cst_387 = arith.constant dense<0.000000e+00> : vector<2x128xf32>
    %1208 = tpu.matmul %1207, %1074, %cst_387 {dimension_numbers = #tpu.dot_dimension_numbers<[1], [0], [0], [1], [0, 0, 1, 1], [], []>} : vector<2x32xbf16>, vector<32x128xbf16>, vector<2x128xf32> -> vector<2x128xf32>
    %1209 = arith.addf %1206, %1208 : vector<2x128xf32>
    %1210 = vector.extract_strided_slice %1209 {offsets = [0, 0], sizes = [2, 96], strides = [1, 1]} : vector<2x128xf32> to vector<2x96xf32>
    %1211 = arith.negf %1210 : vector<2x96xf32>
    %1212 = math.exp %1211 : vector<2x96xf32>
    %cst_388 = arith.constant 1.000000e+00 : f32
    %1213 = vector.broadcast %cst_388 : f32 to vector<2x96xf32>
    %1214 = arith.addf %1213, %1212 : vector<2x96xf32>
    %1215 = arith.divf %1213, %1214 : vector<2x96xf32>
    %1216 = vector.extract_strided_slice %1209 {offsets = [0, 96], sizes = [2, 32], strides = [1, 1]} : vector<2x128xf32> to vector<2x32xf32>
    %1217 = math.tanh %1216 : vector<2x32xf32>
    %1218 = vector.extract_strided_slice %1215 {offsets = [0, 32], sizes = [2, 32], strides = [1, 1]} : vector<2x96xf32> to vector<2x32xf32>
    %1219 = arith.mulf %1218, %1180 : vector<2x32xf32>
    %1220 = vector.extract_strided_slice %1215 {offsets = [0, 0], sizes = [2, 32], strides = [1, 1]} : vector<2x96xf32> to vector<2x32xf32>
    %1221 = arith.mulf %1220, %1217 : vector<2x32xf32>
    %1222 = arith.addf %1219, %1221 : vector<2x32xf32>
    %1223 = vector.extract_strided_slice %1215 {offsets = [0, 64], sizes = [2, 32], strides = [1, 1]} : vector<2x96xf32> to vector<2x32xf32>
    %1224 = math.tanh %1222 : vector<2x32xf32>
    %1225 = arith.mulf %1223, %1224 : vector<2x32xf32>
    %c24_389 = arith.constant 24 : index
    %c0_390 = arith.constant 0 : index
    %1226 = vector.load %arg8[%c24_389, %c0_390] : memref<64x64xf32, #tpu.memory_space<vmem>>, vector<2x32xf32>
    tpu.vector_store %arg8[%c24_389, %c0_390], %1225 {strides = array<i32>} : memref<64x64xf32, #tpu.memory_space<vmem>>, vector<2x32xf32>,
    %c32_391 = arith.constant 32 : index
    %c128_392 = arith.constant 128 : index
    %1227 = vector.load %arg9[%c32_391, %c128_392] : memref<64x256xf32, #tpu.memory_space<vmem>>, vector<2x128xf32>
    %1228 = arith.truncf %1204 : vector<2x32xf32> to vector<2x32xbf16>
    %cst_393 = arith.constant dense<0.000000e+00> : vector<2x128xf32>
    %1229 = tpu.matmul %1228, %1075, %cst_393 {dimension_numbers = #tpu.dot_dimension_numbers<[1], [0], [0], [1], [0, 0, 1, 1], [], []>} : vector<2x32xbf16>, vector<32x128xbf16>, vector<2x128xf32> -> vector<2x128xf32>
    %1230 = arith.addf %1227, %1229 : vector<2x128xf32>
    %1231 = vector.extract_strided_slice %1230 {offsets = [0, 0], sizes = [2, 96], strides = [1, 1]} : vector<2x128xf32> to vector<2x96xf32>
    %1232 = arith.negf %1231 : vector<2x96xf32>
    %1233 = math.exp %1232 : vector<2x96xf32>
    %cst_394 = arith.constant 1.000000e+00 : f32
    %1234 = vector.broadcast %cst_394 : f32 to vector<2x96xf32>
    %1235 = arith.addf %1234, %1233 : vector<2x96xf32>
    %1236 = arith.divf %1234, %1235 : vector<2x96xf32>
    %1237 = vector.extract_strided_slice %1230 {offsets = [0, 96], sizes = [2, 32], strides = [1, 1]} : vector<2x128xf32> to vector<2x32xf32>
    %1238 = math.tanh %1237 : vector<2x32xf32>
    %1239 = vector.extract_strided_slice %1236 {offsets = [0, 32], sizes = [2, 32], strides = [1, 1]} : vector<2x96xf32> to vector<2x32xf32>
    %1240 = arith.mulf %1239, %1201 : vector<2x32xf32>
    %1241 = vector.extract_strided_slice %1236 {offsets = [0, 0], sizes = [2, 32], strides = [1, 1]} : vector<2x96xf32> to vector<2x32xf32>
    %1242 = arith.mulf %1241, %1238 : vector<2x32xf32>
    %1243 = arith.addf %1240, %1242 : vector<2x32xf32>
    %1244 = vector.extract_strided_slice %1236 {offsets = [0, 64], sizes = [2, 32], strides = [1, 1]} : vector<2x96xf32> to vector<2x32xf32>
    %1245 = math.tanh %1243 : vector<2x32xf32>
    %1246 = arith.mulf %1244, %1245 : vector<2x32xf32>
    %c32_395 = arith.constant 32 : index
    %c32_396 = arith.constant 32 : index
    %1247 = vector.load %arg8[%c32_395, %c32_396] : memref<64x64xf32, #tpu.memory_space<vmem>>, vector<2x32xf32>
    tpu.vector_store %arg8[%c32_395, %c32_396], %1246 {strides = array<i32>} : memref<64x64xf32, #tpu.memory_space<vmem>>, vector<2x32xf32>,
    %c32_397 = arith.constant 32 : index
    %c0_398 = arith.constant 0 : index
    %1248 = vector.load %arg9[%c32_397, %c0_398] : memref<64x256xf32, #tpu.memory_space<vmem>>, vector<2x128xf32>
    %1249 = arith.truncf %1225 : vector<2x32xf32> to vector<2x32xbf16>
    %cst_399 = arith.constant dense<0.000000e+00> : vector<2x128xf32>
    %1250 = tpu.matmul %1249, %1074, %cst_399 {dimension_numbers = #tpu.dot_dimension_numbers<[1], [0], [0], [1], [0, 0, 1, 1], [], []>} : vector<2x32xbf16>, vector<32x128xbf16>, vector<2x128xf32> -> vector<2x128xf32>
    %1251 = arith.addf %1248, %1250 : vector<2x128xf32>
    %1252 = vector.extract_strided_slice %1251 {offsets = [0, 0], sizes = [2, 96], strides = [1, 1]} : vector<2x128xf32> to vector<2x96xf32>
    %1253 = arith.negf %1252 : vector<2x96xf32>
    %1254 = math.exp %1253 : vector<2x96xf32>
    %cst_400 = arith.constant 1.000000e+00 : f32
    %1255 = vector.broadcast %cst_400 : f32 to vector<2x96xf32>
    %1256 = arith.addf %1255, %1254 : vector<2x96xf32>
    %1257 = arith.divf %1255, %1256 : vector<2x96xf32>
    %1258 = vector.extract_strided_slice %1251 {offsets = [0, 96], sizes = [2, 32], strides = [1, 1]} : vector<2x128xf32> to vector<2x32xf32>
    %1259 = math.tanh %1258 : vector<2x32xf32>
    %1260 = vector.extract_strided_slice %1257 {offsets = [0, 32], sizes = [2, 32], strides = [1, 1]} : vector<2x96xf32> to vector<2x32xf32>
    %1261 = arith.mulf %1260, %1222 : vector<2x32xf32>
    %1262 = vector.extract_strided_slice %1257 {offsets = [0, 0], sizes = [2, 32], strides = [1, 1]} : vector<2x96xf32> to vector<2x32xf32>
    %1263 = arith.mulf %1262, %1259 : vector<2x32xf32>
    %1264 = arith.addf %1261, %1263 : vector<2x32xf32>
    %1265 = vector.extract_strided_slice %1257 {offsets = [0, 64], sizes = [2, 32], strides = [1, 1]} : vector<2x96xf32> to vector<2x32xf32>
    %1266 = math.tanh %1264 : vector<2x32xf32>
    %1267 = arith.mulf %1265, %1266 : vector<2x32xf32>
    %c32_401 = arith.constant 32 : index
    %c0_402 = arith.constant 0 : index
    %1268 = vector.load %arg8[%c32_401, %c0_402] : memref<64x64xf32, #tpu.memory_space<vmem>>, vector<2x32xf32>
    tpu.vector_store %arg8[%c32_401, %c0_402], %1267 {strides = array<i32>} : memref<64x64xf32, #tpu.memory_space<vmem>>, vector<2x32xf32>,
    %c24_403 = arith.constant 24 : index
    %c128_404 = arith.constant 128 : index
    %1269 = vector.load %arg9[%c24_403, %c128_404] : memref<64x256xf32, #tpu.memory_space<vmem>>, vector<2x128xf32>
    %1270 = arith.truncf %1246 : vector<2x32xf32> to vector<2x32xbf16>
    %cst_405 = arith.constant dense<0.000000e+00> : vector<2x128xf32>
    %1271 = tpu.matmul %1270, %1075, %cst_405 {dimension_numbers = #tpu.dot_dimension_numbers<[1], [0], [0], [1], [0, 0, 1, 1], [], []>} : vector<2x32xbf16>, vector<32x128xbf16>, vector<2x128xf32> -> vector<2x128xf32>
    %1272 = arith.addf %1269, %1271 : vector<2x128xf32>
    %1273 = vector.extract_strided_slice %1272 {offsets = [0, 0], sizes = [2, 96], strides = [1, 1]} : vector<2x128xf32> to vector<2x96xf32>
    %1274 = arith.negf %1273 : vector<2x96xf32>
    %1275 = math.exp %1274 : vector<2x96xf32>
    %cst_406 = arith.constant 1.000000e+00 : f32
    %1276 = vector.broadcast %cst_406 : f32 to vector<2x96xf32>
    %1277 = arith.addf %1276, %1275 : vector<2x96xf32>
    %1278 = arith.divf %1276, %1277 : vector<2x96xf32>
    %1279 = vector.extract_strided_slice %1272 {offsets = [0, 96], sizes = [2, 32], strides = [1, 1]} : vector<2x128xf32> to vector<2x32xf32>
    %1280 = math.tanh %1279 : vector<2x32xf32>
    %1281 = vector.extract_strided_slice %1278 {offsets = [0, 32], sizes = [2, 32], strides = [1, 1]} : vector<2x96xf32> to vector<2x32xf32>
    %1282 = arith.mulf %1281, %1243 : vector<2x32xf32>
    %1283 = vector.extract_strided_slice %1278 {offsets = [0, 0], sizes = [2, 32], strides = [1, 1]} : vector<2x96xf32> to vector<2x32xf32>
    %1284 = arith.mulf %1283, %1280 : vector<2x32xf32>
    %1285 = arith.addf %1282, %1284 : vector<2x32xf32>
    %1286 = vector.extract_strided_slice %1278 {offsets = [0, 64], sizes = [2, 32], strides = [1, 1]} : vector<2x96xf32> to vector<2x32xf32>
    %1287 = math.tanh %1285 : vector<2x32xf32>
    %1288 = arith.mulf %1286, %1287 : vector<2x32xf32>
    %c24_407 = arith.constant 24 : index
    %c32_408 = arith.constant 32 : index
    %1289 = vector.load %arg8[%c24_407, %c32_408] : memref<64x64xf32, #tpu.memory_space<vmem>>, vector<2x32xf32>
    tpu.vector_store %arg8[%c24_407, %c32_408], %1288 {strides = array<i32>} : memref<64x64xf32, #tpu.memory_space<vmem>>, vector<2x32xf32>,
    %c40_409 = arith.constant 40 : index
    %c0_410 = arith.constant 0 : index
    %1290 = vector.load %arg9[%c40_409, %c0_410] : memref<64x256xf32, #tpu.memory_space<vmem>>, vector<2x128xf32>
    %1291 = arith.truncf %1267 : vector<2x32xf32> to vector<2x32xbf16>
    %cst_411 = arith.constant dense<0.000000e+00> : vector<2x128xf32>
    %1292 = tpu.matmul %1291, %1074, %cst_411 {dimension_numbers = #tpu.dot_dimension_numbers<[1], [0], [0], [1], [0, 0, 1, 1], [], []>} : vector<2x32xbf16>, vector<32x128xbf16>, vector<2x128xf32> -> vector<2x128xf32>
    %1293 = arith.addf %1290, %1292 : vector<2x128xf32>
    %1294 = vector.extract_strided_slice %1293 {offsets = [0, 0], sizes = [2, 96], strides = [1, 1]} : vector<2x128xf32> to vector<2x96xf32>
    %1295 = arith.negf %1294 : vector<2x96xf32>
    %1296 = math.exp %1295 : vector<2x96xf32>
    %cst_412 = arith.constant 1.000000e+00 : f32
    %1297 = vector.broadcast %cst_412 : f32 to vector<2x96xf32>
    %1298 = arith.addf %1297, %1296 : vector<2x96xf32>
    %1299 = arith.divf %1297, %1298 : vector<2x96xf32>
    %1300 = vector.extract_strided_slice %1293 {offsets = [0, 96], sizes = [2, 32], strides = [1, 1]} : vector<2x128xf32> to vector<2x32xf32>
    %1301 = math.tanh %1300 : vector<2x32xf32>
    %1302 = vector.extract_strided_slice %1299 {offsets = [0, 32], sizes = [2, 32], strides = [1, 1]} : vector<2x96xf32> to vector<2x32xf32>
    %1303 = arith.mulf %1302, %1264 : vector<2x32xf32>
    %1304 = vector.extract_strided_slice %1299 {offsets = [0, 0], sizes = [2, 32], strides = [1, 1]} : vector<2x96xf32> to vector<2x32xf32>
    %1305 = arith.mulf %1304, %1301 : vector<2x32xf32>
    %1306 = arith.addf %1303, %1305 : vector<2x32xf32>
    %1307 = vector.extract_strided_slice %1299 {offsets = [0, 64], sizes = [2, 32], strides = [1, 1]} : vector<2x96xf32> to vector<2x32xf32>
    %1308 = math.tanh %1306 : vector<2x32xf32>
    %1309 = arith.mulf %1307, %1308 : vector<2x32xf32>
    %c40_413 = arith.constant 40 : index
    %c0_414 = arith.constant 0 : index
    %1310 = vector.load %arg8[%c40_413, %c0_414] : memref<64x64xf32, #tpu.memory_space<vmem>>, vector<2x32xf32>
    tpu.vector_store %arg8[%c40_413, %c0_414], %1309 {strides = array<i32>} : memref<64x64xf32, #tpu.memory_space<vmem>>, vector<2x32xf32>,
    %c16_415 = arith.constant 16 : index
    %c128_416 = arith.constant 128 : index
    %1311 = vector.load %arg9[%c16_415, %c128_416] : memref<64x256xf32, #tpu.memory_space<vmem>>, vector<2x128xf32>
    %1312 = arith.truncf %1288 : vector<2x32xf32> to vector<2x32xbf16>
    %cst_417 = arith.constant dense<0.000000e+00> : vector<2x128xf32>
    %1313 = tpu.matmul %1312, %1075, %cst_417 {dimension_numbers = #tpu.dot_dimension_numbers<[1], [0], [0], [1], [0, 0, 1, 1], [], []>} : vector<2x32xbf16>, vector<32x128xbf16>, vector<2x128xf32> -> vector<2x128xf32>
    %1314 = arith.addf %1311, %1313 : vector<2x128xf32>
    %1315 = vector.extract_strided_slice %1314 {offsets = [0, 0], sizes = [2, 96], strides = [1, 1]} : vector<2x128xf32> to vector<2x96xf32>
    %1316 = arith.negf %1315 : vector<2x96xf32>
    %1317 = math.exp %1316 : vector<2x96xf32>
    %cst_418 = arith.constant 1.000000e+00 : f32
    %1318 = vector.broadcast %cst_418 : f32 to vector<2x96xf32>
    %1319 = arith.addf %1318, %1317 : vector<2x96xf32>
    %1320 = arith.divf %1318, %1319 : vector<2x96xf32>
    %1321 = vector.extract_strided_slice %1314 {offsets = [0, 96], sizes = [2, 32], strides = [1, 1]} : vector<2x128xf32> to vector<2x32xf32>
    %1322 = math.tanh %1321 : vector<2x32xf32>
    %1323 = vector.extract_strided_slice %1320 {offsets = [0, 32], sizes = [2, 32], strides = [1, 1]} : vector<2x96xf32> to vector<2x32xf32>
    %1324 = arith.mulf %1323, %1285 : vector<2x32xf32>
    %1325 = vector.extract_strided_slice %1320 {offsets = [0, 0], sizes = [2, 32], strides = [1, 1]} : vector<2x96xf32> to vector<2x32xf32>
    %1326 = arith.mulf %1325, %1322 : vector<2x32xf32>
    %1327 = arith.addf %1324, %1326 : vector<2x32xf32>
    %1328 = vector.extract_strided_slice %1320 {offsets = [0, 64], sizes = [2, 32], strides = [1, 1]} : vector<2x96xf32> to vector<2x32xf32>
    %1329 = math.tanh %1327 : vector<2x32xf32>
    %1330 = arith.mulf %1328, %1329 : vector<2x32xf32>
    %c16_419 = arith.constant 16 : index
    %c32_420 = arith.constant 32 : index
    %1331 = vector.load %arg8[%c16_419, %c32_420] : memref<64x64xf32, #tpu.memory_space<vmem>>, vector<2x32xf32>
    tpu.vector_store %arg8[%c16_419, %c32_420], %1330 {strides = array<i32>} : memref<64x64xf32, #tpu.memory_space<vmem>>, vector<2x32xf32>,
    %c48_421 = arith.constant 48 : index
    %c0_422 = arith.constant 0 : index
    %1332 = vector.load %arg9[%c48_421, %c0_422] : memref<64x256xf32, #tpu.memory_space<vmem>>, vector<2x128xf32>
    %1333 = arith.truncf %1309 : vector<2x32xf32> to vector<2x32xbf16>
    %cst_423 = arith.constant dense<0.000000e+00> : vector<2x128xf32>
    %1334 = tpu.matmul %1333, %1074, %cst_423 {dimension_numbers = #tpu.dot_dimension_numbers<[1], [0], [0], [1], [0, 0, 1, 1], [], []>} : vector<2x32xbf16>, vector<32x128xbf16>, vector<2x128xf32> -> vector<2x128xf32>
    %1335 = arith.addf %1332, %1334 : vector<2x128xf32>
    %1336 = vector.extract_strided_slice %1335 {offsets = [0, 0], sizes = [2, 96], strides = [1, 1]} : vector<2x128xf32> to vector<2x96xf32>
    %1337 = arith.negf %1336 : vector<2x96xf32>
    %1338 = math.exp %1337 : vector<2x96xf32>
    %cst_424 = arith.constant 1.000000e+00 : f32
    %1339 = vector.broadcast %cst_424 : f32 to vector<2x96xf32>
    %1340 = arith.addf %1339, %1338 : vector<2x96xf32>
    %1341 = arith.divf %1339, %1340 : vector<2x96xf32>
    %1342 = vector.extract_strided_slice %1335 {offsets = [0, 96], sizes = [2, 32], strides = [1, 1]} : vector<2x128xf32> to vector<2x32xf32>
    %1343 = math.tanh %1342 : vector<2x32xf32>
    %1344 = vector.extract_strided_slice %1341 {offsets = [0, 32], sizes = [2, 32], strides = [1, 1]} : vector<2x96xf32> to vector<2x32xf32>
    %1345 = arith.mulf %1344, %1306 : vector<2x32xf32>
    %1346 = vector.extract_strided_slice %1341 {offsets = [0, 0], sizes = [2, 32], strides = [1, 1]} : vector<2x96xf32> to vector<2x32xf32>
    %1347 = arith.mulf %1346, %1343 : vector<2x32xf32>
    %1348 = arith.addf %1345, %1347 : vector<2x32xf32>
    %1349 = vector.extract_strided_slice %1341 {offsets = [0, 64], sizes = [2, 32], strides = [1, 1]} : vector<2x96xf32> to vector<2x32xf32>
    %1350 = math.tanh %1348 : vector<2x32xf32>
    %1351 = arith.mulf %1349, %1350 : vector<2x32xf32>
    %c48_425 = arith.constant 48 : index
    %c0_426 = arith.constant 0 : index
    %1352 = vector.load %arg8[%c48_425, %c0_426] : memref<64x64xf32, #tpu.memory_space<vmem>>, vector<2x32xf32>
    tpu.vector_store %arg8[%c48_425, %c0_426], %1351 {strides = array<i32>} : memref<64x64xf32, #tpu.memory_space<vmem>>, vector<2x32xf32>,
    %c8_427 = arith.constant 8 : index
    %c128_428 = arith.constant 128 : index
    %1353 = vector.load %arg9[%c8_427, %c128_428] : memref<64x256xf32, #tpu.memory_space<vmem>>, vector<2x128xf32>
    %1354 = arith.truncf %1330 : vector<2x32xf32> to vector<2x32xbf16>
    %cst_429 = arith.constant dense<0.000000e+00> : vector<2x128xf32>
    %1355 = tpu.matmul %1354, %1075, %cst_429 {dimension_numbers = #tpu.dot_dimension_numbers<[1], [0], [0], [1], [0, 0, 1, 1], [], []>} : vector<2x32xbf16>, vector<32x128xbf16>, vector<2x128xf32> -> vector<2x128xf32>
    %1356 = arith.addf %1353, %1355 : vector<2x128xf32>
    %1357 = vector.extract_strided_slice %1356 {offsets = [0, 0], sizes = [2, 96], strides = [1, 1]} : vector<2x128xf32> to vector<2x96xf32>
    %1358 = arith.negf %1357 : vector<2x96xf32>
    %1359 = math.exp %1358 : vector<2x96xf32>
    %cst_430 = arith.constant 1.000000e+00 : f32
    %1360 = vector.broadcast %cst_430 : f32 to vector<2x96xf32>
    %1361 = arith.addf %1360, %1359 : vector<2x96xf32>
    %1362 = arith.divf %1360, %1361 : vector<2x96xf32>
    %1363 = vector.extract_strided_slice %1356 {offsets = [0, 96], sizes = [2, 32], strides = [1, 1]} : vector<2x128xf32> to vector<2x32xf32>
    %1364 = math.tanh %1363 : vector<2x32xf32>
    %1365 = vector.extract_strided_slice %1362 {offsets = [0, 32], sizes = [2, 32], strides = [1, 1]} : vector<2x96xf32> to vector<2x32xf32>
    %1366 = arith.mulf %1365, %1327 : vector<2x32xf32>
    %1367 = vector.extract_strided_slice %1362 {offsets = [0, 0], sizes = [2, 32], strides = [1, 1]} : vector<2x96xf32> to vector<2x32xf32>
    %1368 = arith.mulf %1367, %1364 : vector<2x32xf32>
    %1369 = arith.addf %1366, %1368 : vector<2x32xf32>
    %1370 = vector.extract_strided_slice %1362 {offsets = [0, 64], sizes = [2, 32], strides = [1, 1]} : vector<2x96xf32> to vector<2x32xf32>
    %1371 = math.tanh %1369 : vector<2x32xf32>
    %1372 = arith.mulf %1370, %1371 : vector<2x32xf32>
    %c8_431 = arith.constant 8 : index
    %c32_432 = arith.constant 32 : index
    %1373 = vector.load %arg8[%c8_431, %c32_432] : memref<64x64xf32, #tpu.memory_space<vmem>>, vector<2x32xf32>
    tpu.vector_store %arg8[%c8_431, %c32_432], %1372 {strides = array<i32>} : memref<64x64xf32, #tpu.memory_space<vmem>>, vector<2x32xf32>,
    %c56_433 = arith.constant 56 : index
    %c0_434 = arith.constant 0 : index
    %1374 = vector.load %arg9[%c56_433, %c0_434] : memref<64x256xf32, #tpu.memory_space<vmem>>, vector<2x128xf32>
    %1375 = arith.truncf %1351 : vector<2x32xf32> to vector<2x32xbf16>
    %cst_435 = arith.constant dense<0.000000e+00> : vector<2x128xf32>
    %1376 = tpu.matmul %1375, %1074, %cst_435 {dimension_numbers = #tpu.dot_dimension_numbers<[1], [0], [0], [1], [0, 0, 1, 1], [], []>} : vector<2x32xbf16>, vector<32x128xbf16>, vector<2x128xf32> -> vector<2x128xf32>
    %1377 = arith.addf %1374, %1376 : vector<2x128xf32>
    %1378 = vector.extract_strided_slice %1377 {offsets = [0, 0], sizes = [2, 96], strides = [1, 1]} : vector<2x128xf32> to vector<2x96xf32>
    %1379 = arith.negf %1378 : vector<2x96xf32>
    %1380 = math.exp %1379 : vector<2x96xf32>
    %cst_436 = arith.constant 1.000000e+00 : f32
    %1381 = vector.broadcast %cst_436 : f32 to vector<2x96xf32>
    %1382 = arith.addf %1381, %1380 : vector<2x96xf32>
    %1383 = arith.divf %1381, %1382 : vector<2x96xf32>
    %1384 = vector.extract_strided_slice %1377 {offsets = [0, 96], sizes = [2, 32], strides = [1, 1]} : vector<2x128xf32> to vector<2x32xf32>
    %1385 = math.tanh %1384 : vector<2x32xf32>
    %1386 = vector.extract_strided_slice %1383 {offsets = [0, 32], sizes = [2, 32], strides = [1, 1]} : vector<2x96xf32> to vector<2x32xf32>
    %1387 = arith.mulf %1386, %1348 : vector<2x32xf32>
    %1388 = vector.extract_strided_slice %1383 {offsets = [0, 0], sizes = [2, 32], strides = [1, 1]} : vector<2x96xf32> to vector<2x32xf32>
    %1389 = arith.mulf %1388, %1385 : vector<2x32xf32>
    %1390 = arith.addf %1387, %1389 : vector<2x32xf32>
    %1391 = vector.extract_strided_slice %1383 {offsets = [0, 64], sizes = [2, 32], strides = [1, 1]} : vector<2x96xf32> to vector<2x32xf32>
    %1392 = math.tanh %1390 : vector<2x32xf32>
    %1393 = arith.mulf %1391, %1392 : vector<2x32xf32>
    %c56_437 = arith.constant 56 : index
    %c0_438 = arith.constant 0 : index
    %1394 = vector.load %arg8[%c56_437, %c0_438] : memref<64x64xf32, #tpu.memory_space<vmem>>, vector<2x32xf32>
    tpu.vector_store %arg8[%c56_437, %c0_438], %1393 {strides = array<i32>} : memref<64x64xf32, #tpu.memory_space<vmem>>, vector<2x32xf32>,
    %c0_439 = arith.constant 0 : index
    %c128_440 = arith.constant 128 : index
    %1395 = vector.load %arg9[%c0_439, %c128_440] : memref<64x256xf32, #tpu.memory_space<vmem>>, vector<2x128xf32>
    %1396 = arith.truncf %1372 : vector<2x32xf32> to vector<2x32xbf16>
    %cst_441 = arith.constant dense<0.000000e+00> : vector<2x128xf32>
    %1397 = tpu.matmul %1396, %1075, %cst_441 {dimension_numbers = #tpu.dot_dimension_numbers<[1], [0], [0], [1], [0, 0, 1, 1], [], []>} : vector<2x32xbf16>, vector<32x128xbf16>, vector<2x128xf32> -> vector<2x128xf32>
    %1398 = arith.addf %1395, %1397 : vector<2x128xf32>
    %1399 = vector.extract_strided_slice %1398 {offsets = [0, 0], sizes = [2, 96], strides = [1, 1]} : vector<2x128xf32> to vector<2x96xf32>
    %1400 = arith.negf %1399 : vector<2x96xf32>
    %1401 = math.exp %1400 : vector<2x96xf32>
    %cst_442 = arith.constant 1.000000e+00 : f32
    %1402 = vector.broadcast %cst_442 : f32 to vector<2x96xf32>
    %1403 = arith.addf %1402, %1401 : vector<2x96xf32>
    %1404 = arith.divf %1402, %1403 : vector<2x96xf32>
    %1405 = vector.extract_strided_slice %1398 {offsets = [0, 96], sizes = [2, 32], strides = [1, 1]} : vector<2x128xf32> to vector<2x32xf32>
    %1406 = math.tanh %1405 : vector<2x32xf32>
    %1407 = vector.extract_strided_slice %1404 {offsets = [0, 32], sizes = [2, 32], strides = [1, 1]} : vector<2x96xf32> to vector<2x32xf32>
    %1408 = arith.mulf %1407, %1369 : vector<2x32xf32>
    %1409 = vector.extract_strided_slice %1404 {offsets = [0, 0], sizes = [2, 32], strides = [1, 1]} : vector<2x96xf32> to vector<2x32xf32>
    %1410 = arith.mulf %1409, %1406 : vector<2x32xf32>
    %1411 = arith.addf %1408, %1410 : vector<2x32xf32>
    %1412 = vector.extract_strided_slice %1404 {offsets = [0, 64], sizes = [2, 32], strides = [1, 1]} : vector<2x96xf32> to vector<2x32xf32>
    %1413 = math.tanh %1411 : vector<2x32xf32>
    %1414 = arith.mulf %1412, %1413 : vector<2x32xf32>
    %c0_443 = arith.constant 0 : index
    %c32_444 = arith.constant 32 : index
    %1415 = vector.load %arg8[%c0_443, %c32_444] : memref<64x64xf32, #tpu.memory_space<vmem>>, vector<2x32xf32>
    tpu.vector_store %arg8[%c0_443, %c32_444], %1414 {strides = array<i32>} : memref<64x64xf32, #tpu.memory_space<vmem>>, vector<2x32xf32>,
    %c56_445 = arith.constant 56 : index
    %c0_446 = arith.constant 0 : index
    %1416 = vector.load %arg8[%c56_445, %c0_446] : memref<64x64xf32, #tpu.memory_space<vmem>>, vector<2x64xf32>
    %1417 = arith.truncf %1416 : vector<2x64xf32> to vector<2x64xbf16>
    %c0_447 = arith.constant 0 : index
    %c0_448 = arith.constant 0 : index
    %1418 = vector.load %arg5[%c0_447, %c0_448] : memref<64x4xbf16, #tpu.memory_space<vmem>>, vector<64x4xbf16>
    %cst_449 = arith.constant dense<0.000000e+00> : vector<2x4xf32>
    %1419 = tpu.matmul %1417, %1418, %cst_449 {dimension_numbers = #tpu.dot_dimension_numbers<[1], [0], [0], [1], [0, 0, 1, 1], [], []>} : vector<2x64xbf16>, vector<64x4xbf16>, vector<2x4xf32> -> vector<2x4xf32>
    %c0_450 = arith.constant 0 : index
    %c0_451 = arith.constant 0 : index
    %1420 = vector.load %arg6[%c0_450, %c0_451] : memref<1x4xf32, #tpu.memory_space<vmem>>, vector<1x4xf32>
    %1421 = vector.broadcast %1420 : vector<1x4xf32> to vector<2x4xf32>
    %1422 = arith.addf %1419, %1421 : vector<2x4xf32>
    %cst_452 = arith.constant dense<0xFF800000> : vector<2xf32>
    %1423 = vector.multi_reduction <maximumf>, %1422, %cst_452 [1] : vector<2x4xf32> to vector<2xf32>
    %1424 = vector.shape_cast %1423 : vector<2xf32> to vector<2x1xf32>
    %1425 = vector.broadcast %1424 : vector<2x1xf32> to vector<2x4xf32>
    %1426 = arith.subf %1422, %1425 : vector<2x4xf32>
    %1427 = math.exp %1426 : vector<2x4xf32>
    %cst_453 = arith.constant dense<0.000000e+00> : vector<2xf32>
    %1428 = vector.multi_reduction <add>, %1427, %cst_453 [1] : vector<2x4xf32> to vector<2xf32>
    %1429 = vector.shape_cast %1428 : vector<2xf32> to vector<2x1xf32>
    %1430 = math.log %1429 : vector<2x1xf32>
    %1431 = vector.broadcast %1430 : vector<2x1xf32> to vector<2x4xf32>
    %1432 = arith.subf %1426, %1431 : vector<2x4xf32>
    %c0_454 = arith.constant 0 : index
    %c0_455 = arith.constant 0 : index
    %1433 = vector.load %arg7[%c0_454, %c0_455] : memref<2x4xf32, #tpu.memory_space<vmem>>, vector<2x4xf32>
    tpu.vector_store %arg7[%c0_454, %c0_455], %1432 {strides = array<i32>} : memref<2x4xf32, #tpu.memory_space<vmem>>, vector<2x4xf32>,
    return
  }
}

</mosaic_0001>

<llo_original>
// kernel: rnn_classifier_forward.1
$region0: #{rnn_classifier_forward.1}
  #allocation0 [shape = 'u32[]', space=smem, size = 0x4, offset = 0x4, fixed_abs, tag = 'smem constant byte address 0x4 - core index']
  #allocation1 [shape = 'u32[144,128]{1,0:T(1,128)}', space=vmem, size = 0x12000, scoped, tag = 'internal scratch']
  #allocation2 [shape = 'f32[64,64]{1,0:T(8,128)}', space=vmem, size = 0x8000, scoped, tag = 'scratch operand']
  #allocation3 [shape = 'f32[64,256]{1,0:T(8,128)}', space=vmem, size = 0x10000, scoped, tag = 'scratch operand']
  %s0 = inlined_call_operand.vmem [shape: bf16[64,32], index: 0, kind: input, shape index: {}]
  %s1 = inlined_call_operand.vmem [shape: bf16[32,256], index: 1, kind: input, shape index: {}]
  %s2 = inlined_call_operand.vmem [shape: bf16[3,64,256], index: 2, kind: input, shape index: {}]
  %s3 = inlined_call_operand.hbm [shape: bf16[4,32,256], index: 3, kind: input, shape index: {}]
  %s4 = inlined_call_operand.vmem [shape: f32[4,1,256], index: 4, kind: input, shape index: {}]
  %s5 = inlined_call_operand.vmem [shape: bf16[64,4], index: 5, kind: input, shape index: {}]
  %s6 = inlined_call_operand.vmem [shape: f32[1,4], index: 6, kind: input, shape index: {}]
  %s7 = inlined_call_operand.hbm [shape: f32[2,4], index: 7, kind: output, shape index: {}]
  %s8 = sld [smem:[#allocation0]]
  $region42: #{rnn_classifier_forward.1} parent=0
    _
  %s10 = ssub.s32 1, %s8
  %s11 = scalar_select 0, %s10, %s8
  $region1: #{rnn_classifier_forward.1} parent=0
    #allocation4 [shape = 'u8[65536]{0}', space=vmem, size = 0x10000, scoped, tag = 'input window, operand 3, single buffered']
    #allocation5 [shape = 's32[1]{0}', space=sflag, size = 0x4, scoped, tag = 'scoped memory for rnn_classifier_forward.1']
    #allocation6 [shape = 's32[1]{0}', space=sflag, size = 0x4, scoped, tag = 'scoped memory for rnn_classifier_forward.1']
    #allocation7 [shape = 'u8[1024]{0}', space=vmem, size = 0x400, scoped, tag = 'output window, operand 0, single buffered']
    %12 = vsyncpa [#allocation5], 0
    %13 = vsyncpa [#allocation6], 0
    // Predicated region
    $region2: #{rnn_classifier_forward.1} parent=1 // pred_check
      _
    $region3: #{rnn_classifier_forward.1} parent=1 // pred_check_branch
      %15 = sbr.rel (0) target = $region5
    $region4: #{rnn_classifier_forward.1} parent=1 // pred_region
      _
    $region5: #{rnn_classifier_forward.1} parent=1 // pred_fallthru
      _
    // Predicated region
    $region6: #{rnn_classifier_forward.1} parent=1 // pred_check
      _
    $region7: #{rnn_classifier_forward.1} parent=1 // pred_check_branch
      %17 = sbr.rel (0) target = $region9
    $region8: #{rnn_classifier_forward.1} parent=1 // pred_region
      _
    $region9: #{rnn_classifier_forward.1} parent=1 // pred_fallthru
      _
    // Predicated region
    $region10: #{rnn_classifier_forward.1} parent=1 // pred_check
      _
    $region11: #{rnn_classifier_forward.1} parent=1 // pred_check_branch
      %19 = sbr.rel (0) target = $region13
    $region12: #{rnn_classifier_forward.1} parent=1 // pred_region
      _
    $region13: #{rnn_classifier_forward.1} parent=1 // pred_fallthru
      _
    // Predicated region
    $region14: #{rnn_classifier_forward.1} parent=1 // pred_check
      _
    $region15: #{rnn_classifier_forward.1} parent=1 // pred_check_branch
      %21 = sbr.rel (0) target = $region17
    $region16: #{rnn_classifier_forward.1} parent=1 // pred_region
      %s23 = ssub.s32 2048, 2048
      %24 = vsyncadd [#allocation5], %s23
      %s25 = sshll.u32 [#allocation4], 4
      %s26 = int_to_ptr.vmem [resolvable:$true] %s25
      %31 = dma.hbm_to_vmem [thread:$0]  %s3, 2048, %s26, [#allocation5], 128, 128, 8
    $region17: #{rnn_classifier_forward.1} parent=1 // pred_fallthru
      _
    // Predicated region
    $region18: #{rnn_classifier_forward.1} parent=1 // pred_check
      _
    $region19: #{rnn_classifier_forward.1} parent=1 // pred_check_branch
      %33 = sbr.rel (0) target = $region21
    $region20: #{rnn_classifier_forward.1} parent=1 // pred_region
      _
    $region21: #{rnn_classifier_forward.1} parent=1 // pred_fallthru
      _
    // Predicated region
    $region22: #{rnn_classifier_forward.1} parent=1 // pred_check
      _
    $region23: #{rnn_classifier_forward.1} parent=1 // pred_check_branch
      %35 = sbr.rel (0) target = $region25
    $region24: #{rnn_classifier_forward.1} parent=1 // pred_region
      _
    $region25: #{rnn_classifier_forward.1} parent=1 // pred_fallthru
      _
    // Predicated region
    $region26: #{rnn_classifier_forward.1} parent=1 // pred_check
      _
    $region27: #{rnn_classifier_forward.1} parent=1 // pred_check_branch
      %37 = sbr.rel (0) target = $region29
    $region28: #{rnn_classifier_forward.1} parent=1 // pred_region
      _
    $region29: #{rnn_classifier_forward.1} parent=1 // pred_fallthru
      _
    // Predicated region
    $region30: #{rnn_classifier_forward.1} parent=1 // pred_check
      _
    $region31: #{rnn_classifier_forward.1} parent=1 // pred_check_branch
      %39 = sbr.rel (0) target = $region33
    $region32: #{rnn_classifier_forward.1} parent=1 // pred_region
      %40 = dma.done [#allocation5], 2048
    $region33: #{rnn_classifier_forward.1} parent=1 // pred_fallthru
      _
    %vm42 = vcmask 523264
    %43 = vst.msk [vmem:[#allocation2] sm:$0xff] %vm42, 0.0
    %44 = vst.msk [vmem:[#allocation2 + $0x8] sm:$0xff] %vm42, 0.0
    %45 = vst.msk [vmem:[#allocation2 + $0x10] sm:$0xff] %vm42, 0.0
    %46 = vst.msk [vmem:[#allocation2 + $0x18] sm:$0xff] %vm42, 0.0
    %47 = vst.msk [vmem:[#allocation2 + $0x20] sm:$0xff] %vm42, 0.0
    %48 = vst.msk [vmem:[#allocation2 + $0x28] sm:$0xff] %vm42, 0.0
    %49 = vst.msk [vmem:[#allocation2 + $0x30] sm:$0xff] %vm42, 0.0
    %50 = vst.msk [vmem:[#allocation2 + $0x38] sm:$0xff] %vm42, 0.0
    %v51 = vld [vmem:[%s0] sm:$0xf]
    %v52 = vld [vmem:[%s0 + $0x4] sm:$0xf]
    %v53 = vld [vmem:[%s0 + $0x8] sm:$0xf]
    %v54 = vld [vmem:[%s0 + $0xc] sm:$0xf]
    %v55 = vld [vmem:[%s0 + $0x10] sm:$0xf]
    %v56 = vld [vmem:[%s0 + $0x14] sm:$0xf]
    %v57 = vld [vmem:[%s0 + $0x18] sm:$0xf]
    %v58 = vld [vmem:[%s0 + $0x1c] sm:$0xf]
    %v59 = vld [vmem:[%s1] sm:$0xff]
    %v60 = vld [vmem:[%s1 + $0x8] sm:$0xff]
    %v61 = vld [vmem:[%s1 + $0x10] sm:$0xff]
    %v62 = vld [vmem:[%s1 + $0x18] sm:$0xff]
    %v63 = vld [vmem:[%s4] sm:$0x3]
    %v65 = vlaneseq
    %v66 = vshrl.u32 %v65, 7
    %v67 = vsub.s32 0, %v66
    %v68 = vrot.slane %v63, %v67
    %v69 = vlaneseq
    %v70 = vshrl.u32 %v69, 7
    %v71 = vsub.s32 1, %v70
    %v72 = vrot.slane %v63, %v71
    %v83 = vunpack.c.l.b16 %v51
    %v84 = vunpack.c.l.b16 %v52
    %v85 = vunpack.c.l.b16 %v53
    %v86 = vunpack.c.l.b16 %v54
    %v87 = vunpack.c.l.b16 %v55
    %v88 = vunpack.c.l.b16 %v56
    %v89 = vunpack.c.l.b16 %v57
    %v90 = vunpack.c.l.b16 %v58
    %v91 = vpack.c.b16 %v84, %v83
    %v92 = vpack.c.b16 %v86, %v85
    %v93 = vpack.c.b16 %v88, %v87
    %v94 = vpack.c.b16 %v90, %v89
    %v99 = vunpack.c.l.b16 %v59
    %v100 = vunpack.c.h.b16 %v59
    %v101 = vunpack.c.l.b16 %v60
    %v102 = vunpack.c.h.b16 %v60
    %v103 = vunpack.c.l.b16 %v61
    %v104 = vunpack.c.h.b16 %v61
    %v105 = vunpack.c.l.b16 %v62
    %v106 = vunpack.c.h.b16 %v62
    %v107 = vpack.c.b16 %v101, %v99
    %v108 = vpack.c.b16 %v102, %v100
    %v109 = vpack.c.b16 %v105, %v103
    %v110 = vpack.c.b16 %v106, %v104
    %vm115 = vcmask 261120
    %v117 = vsel %vm115, %v91, 0
    %v120 = vsel %vm115, %v92, 0
    %v123 = vsel %vm115, %v93, 0
    %v126 = vsel %vm115, %v94, 0
    %128 = vmatprep.subr.bf16.mxu0 0
    %129 = vmatpush1.bf16.msra.mxu0 0
    %130 = vmatprep.subr.bf16.mxu0 0
    %131 = vmatpush1.bf16.msra.mxu0 0
    %132 = vmatprep.subr.bf16.mxu0 0
    %133 = vmatpush1.bf16.msra.mxu0 0
    %134 = vmatprep.subr.bf16.mxu0 0
    %135 = vmatpush1.bf16.msra.mxu0 0
    %136 = vmatprep.subr.bf16.mxu0 0
    %137 = vmatpush1.bf16.msra.mxu0 0
    %138 = vmatprep.subr.bf16.mxu0 0
    %139 = vmatpush1.bf16.msra.mxu0 0
    %140 = vmatprep.subr.bf16.mxu0 %v110
    %141 = vmatpush1.bf16.msra.mxu0 %v109
    %142 = vmatprep.subr.bf16.mxu0 %v108
    %143 = vmatpush1.bf16.msra.mxu0 %v107
    %144 = vmatprep.subr.bf16.mxu0 0
    %145 = vmatpush2.bf16.msra.mxu0 0
    %146 = vmatprep.subr.bf16.mxu0 0
    %147 = vmatpush2.bf16.msra.mxu0 0
    %148 = vmatprep.subr.bf16.mxu0 0
    %149 = vmatpush2.bf16.msra.mxu0 0
    %150 = vmatprep.subr.bf16.mxu0 0
    %151 = vmatpush2.bf16.msra.mxu0 0
    %152 = vmatprep.subr.bf16.mxu0 0
    %153 = vmatpush2.bf16.msra.mxu0 0
    %154 = vmatprep.subr.bf16.mxu0 0
    %155 = vmatpush2.bf16.msra.mxu0 0
    %156 = vmatprep.subr.bf16.mxu0 0
    %157 = vmatpush2.bf16.msra.mxu0 0
    %158 = vmatprep.subr.bf16.mxu0 0
    %159 = vmatpush2.bf16.msra.mxu0 0
    %160 = vmatprep.mubr.bf16.mxu0 0
    %161 = vmatmul.mubr.bf16.gmra.mxu0 %v117
    %v162 = vpop.f32.mrf.mxu0
    %v163 = vadd.f32 %v68, %v162
    %v164 = vpop.f32.mrf.mxu0
    %v165 = vadd.f32 %v72, %v164
    %v166 = vpop.f32.mrf.mxu0
    %v167 = vadd.f32 %v68, %v166
    %v168 = vpop.f32.mrf.mxu0
    %v169 = vadd.f32 %v72, %v168
    %170 = vmatprep.mubr.bf16.mxu0 0
    %171 = vmatmul.mubr.bf16.gmra.mxu0 %v120
    %v172 = vpop.f32.mrf.mxu0
    %v173 = vadd.f32 %v68, %v172
    %v174 = vpop.f32.mrf.mxu0
    %v175 = vadd.f32 %v72, %v174
    %v176 = vpop.f32.mrf.mxu0
    %v177 = vadd.f32 %v68, %v176
    %v178 = vpop.f32.mrf.mxu0
    %v179 = vadd.f32 %v72, %v178
    %180 = vmatprep.mubr.bf16.mxu0 0
    %181 = vmatmul.mubr.bf16.gmra.mxu0 %v123
    %v182 = vpop.f32.mrf.mxu0
    %v183 = vadd.f32 %v68, %v182
    %v184 = vpop.f32.mrf.mxu0
    %v185 = vadd.f32 %v72, %v184
    %v186 = vpop.f32.mrf.mxu0
    %v187 = vadd.f32 %v68, %v186
    %v188 = vpop.f32.mrf.mxu0
    %v189 = vadd.f32 %v72, %v188
    %190 = vmatprep.mubr.bf16.mxu0 0
    %191 = vmatmul.mubr.bf16.gmra.mxu0 %v126
    %v192 = vpop.f32.mrf.mxu0
    %v193 = vadd.f32 %v68, %v192
    %v194 = vpop.f32.mrf.mxu0
    %v195 = vadd.f32 %v72, %v194
    %v196 = vpop.f32.mrf.mxu0
    %v197 = vadd.f32 %v68, %v196
    %v198 = vpop.f32.mrf.mxu0
    %v199 = vadd.f32 %v72, %v198
    %200 = vdwg.mxu0
    %201 = vst [vmem:[#allocation3] sm:$0xff] %v163
    %202 = vst [vmem:[#allocation3 + $0x8] sm:$0xff] %v165
    %203 = vst [vmem:[#allocation3 + $0x10] sm:$0xff] %v167
    %204 = vst [vmem:[#allocation3 + $0x18] sm:$0xff] %v169
    %205 = vst [vmem:[#allocation3 + $0x20] sm:$0xff] %v173
    %206 = vst [vmem:[#allocation3 + $0x28] sm:$0xff] %v175
    %207 = vst [vmem:[#allocation3 + $0x30] sm:$0xff] %v177
    %208 = vst [vmem:[#allocation3 + $0x38] sm:$0xff] %v179
    %209 = vst [vmem:[#allocation3 + $0x40] sm:$0xff] %v183
    %210 = vst [vmem:[#allocation3 + $0x48] sm:$0xff] %v185
    %211 = vst [vmem:[#allocation3 + $0x50] sm:$0xff] %v187
    %212 = vst [vmem:[#allocation3 + $0x58] sm:$0xff] %v189
    %213 = vst [vmem:[#allocation3 + $0x60] sm:$0xff] %v193
    %214 = vst [vmem:[#allocation3 + $0x68] sm:$0xff] %v195
    %215 = vst [vmem:[#allocation3 + $0x70] sm:$0xff] %v197
    %216 = vst [vmem:[#allocation3 + $0x78] sm:$0xff] %v199
    %v217 = vld [vmem:[#allocation4] sm:$0xff]
    %v218 = vld [vmem:[#allocation4 + $0x8] sm:$0xff]
    %v219 = vld [vmem:[#allocation4 + $0x10] sm:$0xff]
    %v220 = vld [vmem:[#allocation4 + $0x18] sm:$0xff]
    %v221 = vld [vmem:[#allocation3] sm:$0x3]
    %v226 = vunpack.c.l.b16 %v217
    %v227 = vunpack.c.l.b16 %v218
    %v228 = vunpack.c.l.b16 %v219
    %v229 = vunpack.c.l.b16 %v220
    %v230 = vpack.c.b16 %v227, %v226
    %v231 = vpack.c.b16 %v229, %v228
    %v235 = vsel %vm115, 0, 0
    %237 = vmatprep.subr.bf16.mxu0 0
    %238 = vmatpush1.bf16.msra.mxu0 0
    %239 = vmatprep.subr.bf16.mxu0 0
    %240 = vmatpush1.bf16.msra.mxu0 0
    %241 = vmatprep.subr.bf16.mxu0 0
    %242 = vmatpush1.bf16.msra.mxu0 0
    %243 = vmatprep.subr.bf16.mxu0 0
    %244 = vmatpush1.bf16.msra.mxu0 0
    %245 = vmatprep.subr.bf16.mxu0 0
    %246 = vmatpush1.bf16.msra.mxu0 0
    %247 = vmatprep.subr.bf16.mxu0 0
    %248 = vmatpush1.bf16.msra.mxu0 0
    %249 = vmatprep.subr.bf16.mxu0 0
    %250 = vmatpush1.bf16.msra.mxu0 %v231
    %251 = vmatprep.subr.bf16.mxu0 0
    %252 = vmatpush1.bf16.msra.mxu0 %v230
    %253 = vmatprep.subr.bf16.mxu0 0
    %254 = vmatpush2.bf16.msra.mxu0 0
    %255 = vmatprep.subr.bf16.mxu0 0
    %256 = vmatpush2.bf16.msra.mxu0 0
    %257 = vmatprep.subr.bf16.mxu0 0
    %258 = vmatpush2.bf16.msra.mxu0 0
    %259 = vmatprep.subr.bf16.mxu0 0
    %260 = vmatpush2.bf16.msra.mxu0 0
    %261 = vmatprep.subr.bf16.mxu0 0
    %262 = vmatpush2.bf16.msra.mxu0 0
    %263 = vmatprep.subr.bf16.mxu0 0
    %264 = vmatpush2.bf16.msra.mxu0 0
    %265 = vmatprep.subr.bf16.mxu0 0
    %266 = vmatpush2.bf16.msra.mxu0 0
    %267 = vmatprep.subr.bf16.mxu0 0
    %268 = vmatpush2.bf16.msra.mxu0 0
    %269 = vmatprep.mubr.bf16.mxu0 0
    %270 = vmatmul.mubr.bf16.gmra.mxu0 %v235
    %v271 = vpop.f32.mrf.mxu0
    %v272 = vadd.f32 0.0, %v271
    %v273 = vpop.f32.mrf.mxu0
    %v274 = vpop.f32.mrf.mxu0
    %v275 = vpop.f32.mrf.mxu0
    %276 = vdwg.mxu0
    %v277 = vadd.f32 %v221, %v272
    %v278 = vxor.u32 %v277, 2147483648
    %v279 = vmul.f32 %v278, 1.442695
    %v280 = vpow.pop %v279
    %v281 = vadd.f32 %v280, 1.0
    %v282 = vrcp.pop %v281
    %v283 = vmul.f32 1.0, %v282
    %v284 = vtanh.pop %v277
    %v285 = vmul.f32 %v283, 0.0
    %287 = vrot.lane.b32.xlu0 %v284, 32
    %v288 = vpop.permute.xlu0 %287
    %v290 = vmul.f32 %v283, %v288
    %292 = vrot.lane.b32.xlu0 %v290, 32
    %v293 = vpop.permute.xlu0 %292
    %v295 = vadd.f32 %v285, %v293
    %v296 = vtanh.pop %v295
    %298 = vrot.lane.b32.xlu0 %v296, 32
    %v299 = vpop.permute.xlu0 %298
    %v301 = vmul.f32 %v283, %v299
    %303 = vrot.lane.b32.xlu0 %v301, 64
    %v304 = vpop.permute.xlu0 %303
    %vm306 = vcmask 254976
    %307 = vst.msk [vmem:[#allocation2] sm:$0x3] %vm306, %v304
    %v308 = vld [vmem:[#allocation3 + $0x78] sm:$0x3]
    %v309 = vunpack.c.h.b16 %v217
    %v310 = vunpack.c.h.b16 %v218
    %v311 = vunpack.c.h.b16 %v219
    %v312 = vunpack.c.h.b16 %v220
    %v313 = vpack.c.b16 %v310, %v309
    %v314 = vpack.c.b16 %v312, %v311
    %317 = vmatprep.subr.bf16.mxu0 0
    %318 = vmatpush1.bf16.msra.mxu0 0
    %319 = vmatprep.subr.bf16.mxu0 0
    %320 = vmatpush1.bf16.msra.mxu0 0
    %321 = vmatprep.subr.bf16.mxu0 0
    %322 = vmatpush1.bf16.msra.mxu0 0
    %323 = vmatprep.subr.bf16.mxu0 0
    %324 = vmatpush1.bf16.msra.mxu0 0
    %325 = vmatprep.subr.bf16.mxu0 0
    %326 = vmatpush1.bf16.msra.mxu0 0
    %327 = vmatprep.subr.bf16.mxu0 0
    %328 = vmatpush1.bf16.msra.mxu0 0
    %329 = vmatprep.subr.bf16.mxu0 0
    %330 = vmatpush1.bf16.msra.mxu0 %v314
    %331 = vmatprep.subr.bf16.mxu0 0
    %332 = vmatpush1.bf16.msra.mxu0 %v313
    %333 = vmatprep.subr.bf16.mxu0 0
    %334 = vmatpush2.bf16.msra.mxu0 0
    %335 = vmatprep.subr.bf16.mxu0 0
    %336 = vmatpush2.bf16.msra.mxu0 0
    %337 = vmatprep.subr.bf16.mxu0 0
    %338 = vmatpush2.bf16.msra.mxu0 0
    %339 = vmatprep.subr.bf16.mxu0 0
    %340 = vmatpush2.bf16.msra.mxu0 0
    %341 = vmatprep.subr.bf16.mxu0 0
    %342 = vmatpush2.bf16.msra.mxu0 0
    %343 = vmatprep.subr.bf16.mxu0 0
    %344 = vmatpush2.bf16.msra.mxu0 0
    %345 = vmatprep.subr.bf16.mxu0 0
    %346 = vmatpush2.bf16.msra.mxu0 0
    %347 = vmatprep.subr.bf16.mxu0 0
    %348 = vmatpush2.bf16.msra.mxu0 0
    %349 = vmatprep.mubr.bf16.mxu0 0
    %350 = vmatmul.mubr.bf16.gmra.mxu0 %v235
    %v351 = vpop.f32.mrf.mxu0
    %v352 = vadd.f32 0.0, %v351
    %v353 = vpop.f32.mrf.mxu0
    %v354 = vpop.f32.mrf.mxu0
    %v355 = vpop.f32.mrf.mxu0
    %356 = vdwg.mxu0
    %v357 = vadd.f32 %v308, %v352
    %v358 = vxor.u32 %v357, 2147483648
    %v359 = vmul.f32 %v358, 1.442695
    %v360 = vpow.pop %v359
    %v361 = vadd.f32 %v360, 1.0
    %v362 = vrcp.pop %v361
    %v363 = vmul.f32 1.0, %v362
    %v364 = vtanh.pop %v357
    %v365 = vmul.f32 %v363, 0.0
    %367 = vrot.lane.b32.xlu0 %v364, 32
    %v368 = vpop.permute.xlu0 %367
    %v370 = vmul.f32 %v363, %v368
    %372 = vrot.lane.b32.xlu0 %v370, 32
    %v373 = vpop.permute.xlu0 %372
    %v375 = vadd.f32 %v365, %v373
    %v376 = vtanh.pop %v375
    %378 = vrot.lane.b32.xlu0 %v376, 32
    %v379 = vpop.permute.xlu0 %378
    %v381 = vmul.f32 %v363, %v379
    %383 = vrot.lane.b32.xlu0 %v381, 96
    %v384 = vpop.permute.xlu0 %383
    %vm386 = vcmask 517376
    %387 = vst.msk [vmem:[#allocation2 + $0x38] sm:$0x3] %vm386, %v384
    %v388 = vld [vmem:[#allocation3 + $0x10] sm:$0x3]
    %v389 = vpack.c.bf16 %v301, %v301
    %391 = vrot.lane.b32.xlu0 %v389, 64
    %v392 = vpop.permute.xlu0 %391
    %v394 = vsel %vm115, %v392, 0
    %396 = vmatprep.subr.bf16.mxu0 0
    %397 = vmatpush1.bf16.msra.mxu0 0
    %398 = vmatprep.subr.bf16.mxu0 0
    %399 = vmatpush1.bf16.msra.mxu0 0
    %400 = vmatprep.subr.bf16.mxu0 0
    %401 = vmatpush1.bf16.msra.mxu0 0
    %402 = vmatprep.subr.bf16.mxu0 0
    %403 = vmatpush1.bf16.msra.mxu0 0
    %404 = vmatprep.subr.bf16.mxu0 0
    %405 = vmatpush1.bf16.msra.mxu0 0
    %406 = vmatprep.subr.bf16.mxu0 0
    %407 = vmatpush1.bf16.msra.mxu0 0
    %408 = vmatprep.subr.bf16.mxu0 0
    %409 = vmatpush1.bf16.msra.mxu0 %v231
    %410 = vmatprep.subr.bf16.mxu0 0
    %411 = vmatpush1.bf16.msra.mxu0 %v230
    %412 = vmatprep.subr.bf16.mxu0 0
    %413 = vmatpush2.bf16.msra.mxu0 0
    %414 = vmatprep.subr.bf16.mxu0 0
    %415 = vmatpush2.bf16.msra.mxu0 0
    %416 = vmatprep.subr.bf16.mxu0 0
    %417 = vmatpush2.bf16.msra.mxu0 0
    %418 = vmatprep.subr.bf16.mxu0 0
    %419 = vmatpush2.bf16.msra.mxu0 0
    %420 = vmatprep.subr.bf16.mxu0 0
    %421 = vmatpush2.bf16.msra.mxu0 0
    %422 = vmatprep.subr.bf16.mxu0 0
    %423 = vmatpush2.bf16.msra.mxu0 0
    %424 = vmatprep.subr.bf16.mxu0 0
    %425 = vmatpush2.bf16.msra.mxu0 0
    %426 = vmatprep.subr.bf16.mxu0 0
    %427 = vmatpush2.bf16.msra.mxu0 0
    %428 = vmatprep.mubr.bf16.mxu0 0
    %429 = vmatmul.mubr.bf16.gmra.mxu0 %v394
    %v430 = vpop.f32.mrf.mxu0
    %v431 = vadd.f32 0.0, %v430
    %v432 = vpop.f32.mrf.mxu0
    %v433 = vpop.f32.mrf.mxu0
    %v434 = vpop.f32.mrf.mxu0
    %435 = vdwg.mxu0
    %v436 = vadd.f32 %v388, %v431
    %v437 = vxor.u32 %v436, 2147483648
    %v438 = vmul.f32 %v437, 1.442695
    %v439 = vpow.pop %v438
    %v440 = vadd.f32 %v439, 1.0
    %v441 = vrcp.pop %v440
    %v442 = vmul.f32 1.0, %v441
    %v443 = vtanh.pop %v436
    %v444 = vmul.f32 %v442, %v295
    %446 = vrot.lane.b32.xlu0 %v443, 32
    %v447 = vpop.permute.xlu0 %446
    %v449 = vmul.f32 %v442, %v447
    %451 = vrot.lane.b32.xlu0 %v449, 32
    %v452 = vpop.permute.xlu0 %451
    %v454 = vadd.f32 %v444, %v452
    %v455 = vtanh.pop %v454
    %457 = vrot.lane.b32.xlu0 %v455, 32
    %v458 = vpop.permute.xlu0 %457
    %v460 = vmul.f32 %v442, %v458
    %462 = vrot.lane.b32.xlu0 %v460, 64
    %v463 = vpop.permute.xlu0 %462
    %465 = vst.msk [vmem:[#allocation2 + $0x8] sm:$0x3] %vm306, %v463
    %v466 = vld [vmem:[#allocation3 + $0x68] sm:$0x3]
    %v467 = vpack.c.bf16 %v381, %v381
    %469 = vrot.lane.b32.xlu0 %v467, 64
    %v470 = vpop.permute.xlu0 %469
    %v472 = vsel %vm115, %v470, 0
    %474 = vmatprep.subr.bf16.mxu0 0
    %475 = vmatpush1.bf16.msra.mxu0 0
    %476 = vmatprep.subr.bf16.mxu0 0
    %477 = vmatpush1.bf16.msra.mxu0 0
    %478 = vmatprep.subr.bf16.mxu0 0
    %479 = vmatpush1.bf16.msra.mxu0 0
    %480 = vmatprep.subr.bf16.mxu0 0
    %481 = vmatpush1.bf16.msra.mxu0 0
    %482 = vmatprep.subr.bf16.mxu0 0
    %483 = vmatpush1.bf16.msra.mxu0 0
    %484 = vmatprep.subr.bf16.mxu0 0
    %485 = vmatpush1.bf16.msra.mxu0 0
    %486 = vmatprep.subr.bf16.mxu0 0
    %487 = vmatpush1.bf16.msra.mxu0 %v314
    %488 = vmatprep.subr.bf16.mxu0 0
    %489 = vmatpush1.bf16.msra.mxu0 %v313
    %490 = vmatprep.subr.bf16.mxu0 0
    %491 = vmatpush2.bf16.msra.mxu0 0
    %492 = vmatprep.subr.bf16.mxu0 0
    %493 = vmatpush2.bf16.msra.mxu0 0
    %494 = vmatprep.subr.bf16.mxu0 0
    %495 = vmatpush2.bf16.msra.mxu0 0
    %496 = vmatprep.subr.bf16.mxu0 0
    %497 = vmatpush2.bf16.msra.mxu0 0
    %498 = vmatprep.subr.bf16.mxu0 0
    %499 = vmatpush2.bf16.msra.mxu0 0
    %500 = vmatprep.subr.bf16.mxu0 0
    %501 = vmatpush2.bf16.msra.mxu0 0
    %502 = vmatprep.subr.bf16.mxu0 0
    %503 = vmatpush2.bf16.msra.mxu0 0
    %504 = vmatprep.subr.bf16.mxu0 0
    %505 = vmatpush2.bf16.msra.mxu0 0
    %506 = vmatprep.mubr.bf16.mxu0 0
    %507 = vmatmul.mubr.bf16.gmra.mxu0 %v472
    %v508 = vpop.f32.mrf.mxu0
    %v509 = vadd.f32 0.0, %v508
    %v510 = vpop.f32.mrf.mxu0
    %v511 = vpop.f32.mrf.mxu0
    %v512 = vpop.f32.mrf.mxu0
    %513 = vdwg.mxu0
    %v514 = vadd.f32 %v466, %v509
    %v515 = vxor.u32 %v514, 2147483648
    %v516 = vmul.f32 %v515, 1.442695
    %v517 = vpow.pop %v516
    %v518 = vadd.f32 %v517, 1.0
    %v519 = vrcp.pop %v518
    %v520 = vmul.f32 1.0, %v519
    %v521 = vtanh.pop %v514
    %v522 = vmul.f32 %v520, %v375
    %524 = vrot.lane.b32.xlu0 %v521, 32
    %v525 = vpop.permute.xlu0 %524
    %v527 = vmul.f32 %v520, %v525
    %529 = vrot.lane.b32.xlu0 %v527, 32
    %v530 = vpop.permute.xlu0 %529
    %v532 = vadd.f32 %v522, %v530
    %v533 = vtanh.pop %v532
    %535 = vrot.lane.b32.xlu0 %v533, 32
    %v536 = vpop.permute.xlu0 %535
    %v538 = vmul.f32 %v520, %v536
    %540 = vrot.lane.b32.xlu0 %v538, 96
    %v541 = vpop.permute.xlu0 %540
    %543 = vst.msk [vmem:[#allocation2 + $0x30] sm:$0x3] %vm386, %v541
    %v544 = vld [vmem:[#allocation3 + $0x20] sm:$0x3]
    %v545 = vpack.c.bf16 %v460, %v460
    %547 = vrot.lane.b32.xlu0 %v545, 64
    %v548 = vpop.permute.xlu0 %547
    %v550 = vsel %vm115, %v548, 0
    %552 = vmatprep.subr.bf16.mxu0 0
    %553 = vmatpush1.bf16.msra.mxu0 0
    %554 = vmatprep.subr.bf16.mxu0 0
    %555 = vmatpush1.bf16.msra.mxu0 0
    %556 = vmatprep.subr.bf16.mxu0 0
    %557 = vmatpush1.bf16.msra.mxu0 0
    %558 = vmatprep.subr.bf16.mxu0 0
    %559 = vmatpush1.bf16.msra.mxu0 0
    %560 = vmatprep.subr.bf16.mxu0 0
    %561 = vmatpush1.bf16.msra.mxu0 0
    %562 = vmatprep.subr.bf16.mxu0 0
    %563 = vmatpush1.bf16.msra.mxu0 0
    %564 = vmatprep.subr.bf16.mxu0 0
    %565 = vmatpush1.bf16.msra.mxu0 %v231
    %566 = vmatprep.subr.bf16.mxu0 0
    %567 = vmatpush1.bf16.msra.mxu0 %v230
    %568 = vmatprep.subr.bf16.mxu0 0
    %569 = vmatpush2.bf16.msra.mxu0 0
    %570 = vmatprep.subr.bf16.mxu0 0
    %571 = vmatpush2.bf16.msra.mxu0 0
    %572 = vmatprep.subr.bf16.mxu0 0
    %573 = vmatpush2.bf16.msra.mxu0 0
    %574 = vmatprep.subr.bf16.mxu0 0
    %575 = vmatpush2.bf16.msra.mxu0 0
    %576 = vmatprep.subr.bf16.mxu0 0
    %577 = vmatpush2.bf16.msra.mxu0 0
    %578 = vmatprep.subr.bf16.mxu0 0
    %579 = vmatpush2.bf16.msra.mxu0 0
    %580 = vmatprep.subr.bf16.mxu0 0
    %581 = vmatpush2.bf16.msra.mxu0 0
    %582 = vmatprep.subr.bf16.mxu0 0
    %583 = vmatpush2.bf16.msra.mxu0 0
    %584 = vmatprep.mubr.bf16.mxu0 0
    %585 = vmatmul.mubr.bf16.gmra.mxu0 %v550
    %v586 = vpop.f32.mrf.mxu0
    %v587 = vadd.f32 0.0, %v586
    %v588 = vpop.f32.mrf.mxu0
    %v589 = vpop.f32.mrf.mxu0
    %v590 = vpop.f32.mrf.mxu0
    %591 = vdwg.mxu0
    %v592 = vadd.f32 %v544, %v587
    %v593 = vxor.u32 %v592, 2147483648
    %v594 = vmul.f32 %v593, 1.442695
    %v595 = vpow.pop %v594
    %v596 = vadd.f32 %v595, 1.0
    %v597 = vrcp.pop %v596
    %v598 = vmul.f32 1.0, %v597
    %v599 = vtanh.pop %v592
    %v600 = vmul.f32 %v598, %v454
    %602 = vrot.lane.b32.xlu0 %v599, 32
    %v603 = vpop.permute.xlu0 %602
    %v605 = vmul.f32 %v598, %v603
    %607 = vrot.lane.b32.xlu0 %v605, 32
    %v608 = vpop.permute.xlu0 %607
    %v610 = vadd.f32 %v600, %v608
    %v611 = vtanh.pop %v610
    %613 = vrot.lane.b32.xlu0 %v611, 32
    %v614 = vpop.permute.xlu0 %613
    %v616 = vmul.f32 %v598, %v614
    %618 = vrot.lane.b32.xlu0 %v616, 64
    %v619 = vpop.permute.xlu0 %618
    %621 = vst.msk [vmem:[#allocation2 + $0x10] sm:$0x3] %vm306, %v619
    %v622 = vld [vmem:[#allocation3 + $0x58] sm:$0x3]
    %v623 = vpack.c.bf16 %v538, %v538
    %625 = vrot.lane.b32.xlu0 %v623, 64
    %v626 = vpop.permute.xlu0 %625
    %v628 = vsel %vm115, %v626, 0
    %630 = vmatprep.subr.bf16.mxu0 0
    %631 = vmatpush1.bf16.msra.mxu0 0
    %632 = vmatprep.subr.bf16.mxu0 0
    %633 = vmatpush1.bf16.msra.mxu0 0
    %634 = vmatprep.subr.bf16.mxu0 0
    %635 = vmatpush1.bf16.msra.mxu0 0
    %636 = vmatprep.subr.bf16.mxu0 0
    %637 = vmatpush1.bf16.msra.mxu0 0
    %638 = vmatprep.subr.bf16.mxu0 0
    %639 = vmatpush1.bf16.msra.mxu0 0
    %640 = vmatprep.subr.bf16.mxu0 0
    %641 = vmatpush1.bf16.msra.mxu0 0
    %642 = vmatprep.subr.bf16.mxu0 0
    %643 = vmatpush1.bf16.msra.mxu0 %v314
    %644 = vmatprep.subr.bf16.mxu0 0
    %645 = vmatpush1.bf16.msra.mxu0 %v313
    %646 = vmatprep.subr.bf16.mxu0 0
    %647 = vmatpush2.bf16.msra.mxu0 0
    %648 = vmatprep.subr.bf16.mxu0 0
    %649 = vmatpush2.bf16.msra.mxu0 0
    %650 = vmatprep.subr.bf16.mxu0 0
    %651 = vmatpush2.bf16.msra.mxu0 0
    %652 = vmatprep.subr.bf16.mxu0 0
    %653 = vmatpush2.bf16.msra.mxu0 0
    %654 = vmatprep.subr.bf16.mxu0 0
    %655 = vmatpush2.bf16.msra.mxu0 0
    %656 = vmatprep.subr.bf16.mxu0 0
    %657 = vmatpush2.bf16.msra.mxu0 0
    %658 = vmatprep.subr.bf16.mxu0 0
    %659 = vmatpush2.bf16.msra.mxu0 0
    %660 = vmatprep.subr.bf16.mxu0 0
    %661 = vmatpush2.bf16.msra.mxu0 0
    %662 = vmatprep.mubr.bf16.mxu0 0
    %663 = vmatmul.mubr.bf16.gmra.mxu0 %v628
    %v664 = vpop.f32.mrf.mxu0
    %v665 = vadd.f32 0.0, %v664
    %v666 = vpop.f32.mrf.mxu0
    %v667 = vpop.f32.mrf.mxu0
    %v668 = vpop.f32.mrf.mxu0
    %669 = vdwg.mxu0
    %v670 = vadd.f32 %v622, %v665
    %v671 = vxor.u32 %v670, 2147483648
    %v672 = vmul.f32 %v671, 1.442695
    %v673 = vpow.pop %v672
    %v674 = vadd.f32 %v673, 1.0
    %v675 = vrcp.pop %v674
    %v676 = vmul.f32 1.0, %v675
    %v677 = vtanh.pop %v670
    %v678 = vmul.f32 %v676, %v532
    %680 = vrot.lane.b32.xlu0 %v677, 32
    %v681 = vpop.permute.xlu0 %680
    %v683 = vmul.f32 %v676, %v681
    %685 = vrot.lane.b32.xlu0 %v683, 32
    %v686 = vpop.permute.xlu0 %685
    %v688 = vadd.f32 %v678, %v686
    %v689 = vtanh.pop %v688
    %691 = vrot.lane.b32.xlu0 %v689, 32
    %v692 = vpop.permute.xlu0 %691
    %v694 = vmul.f32 %v676, %v692
    %696 = vrot.lane.b32.xlu0 %v694, 96
    %v697 = vpop.permute.xlu0 %696
    %699 = vst.msk [vmem:[#allocation2 + $0x28] sm:$0x3] %vm386, %v697
    %v700 = vld [vmem:[#allocation3 + $0x30] sm:$0x3]
    %v701 = vpack.c.bf16 %v616, %v616
    %703 = vrot.lane.b32.xlu0 %v701, 64
    %v704 = vpop.permute.xlu0 %703
    %v706 = vsel %vm115, %v704, 0
    %708 = vmatprep.subr.bf16.mxu0 0
    %709 = vmatpush1.bf16.msra.mxu0 0
    %710 = vmatprep.subr.bf16.mxu0 0
    %711 = vmatpush1.bf16.msra.mxu0 0
    %712 = vmatprep.subr.bf16.mxu0 0
    %713 = vmatpush1.bf16.msra.mxu0 0
    %714 = vmatprep.subr.bf16.mxu0 0
    %715 = vmatpush1.bf16.msra.mxu0 0
    %716 = vmatprep.subr.bf16.mxu0 0
    %717 = vmatpush1.bf16.msra.mxu0 0
    %718 = vmatprep.subr.bf16.mxu0 0
    %719 = vmatpush1.bf16.msra.mxu0 0
    %720 = vmatprep.subr.bf16.mxu0 0
    %721 = vmatpush1.bf16.msra.mxu0 %v231
    %722 = vmatprep.subr.bf16.mxu0 0
    %723 = vmatpush1.bf16.msra.mxu0 %v230
    %724 = vmatprep.subr.bf16.mxu0 0
    %725 = vmatpush2.bf16.msra.mxu0 0
    %726 = vmatprep.subr.bf16.mxu0 0
    %727 = vmatpush2.bf16.msra.mxu0 0
    %728 = vmatprep.subr.bf16.mxu0 0
    %729 = vmatpush2.bf16.msra.mxu0 0
    %730 = vmatprep.subr.bf16.mxu0 0
    %731 = vmatpush2.bf16.msra.mxu0 0
    %732 = vmatprep.subr.bf16.mxu0 0
    %733 = vmatpush2.bf16.msra.mxu0 0
    %734 = vmatprep.subr.bf16.mxu0 0
    %735 = vmatpush2.bf16.msra.mxu0 0
    %736 = vmatprep.subr.bf16.mxu0 0
    %737 = vmatpush2.bf16.msra.mxu0 0
    %738 = vmatprep.subr.bf16.mxu0 0
    %739 = vmatpush2.bf16.msra.mxu0 0
    %740 = vmatprep.mubr.bf16.mxu0 0
    %741 = vmatmul.mubr.bf16.gmra.mxu0 %v706
    %v742 = vpop.f32.mrf.mxu0
    %v743 = vadd.f32 0.0, %v742
    %v744 = vpop.f32.mrf.mxu0
    %v745 = vpop.f32.mrf.mxu0
    %v746 = vpop.f32.mrf.mxu0
    %747 = vdwg.mxu0
    %v748 = vadd.f32 %v700, %v743
    %v749 = vxor.u32 %v748, 2147483648
    %v750 = vmul.f32 %v749, 1.442695
    %v751 = vpow.pop %v750
    %v752 = vadd.f32 %v751, 1.0
    %v753 = vrcp.pop %v752
    %v754 = vmul.f32 1.0, %v753
    %v755 = vtanh.pop %v748
    %v756 = vmul.f32 %v754, %v610
    %758 = vrot.lane.b32.xlu0 %v755, 32
    %v759 = vpop.permute.xlu0 %758
    %v761 = vmul.f32 %v754, %v759
    %763 = vrot.lane.b32.xlu0 %v761, 32
    %v764 = vpop.permute.xlu0 %763
    %v766 = vadd.f32 %v756, %v764
    %v767 = vtanh.pop %v766
    %769 = vrot.lane.b32.xlu0 %v767, 32
    %v770 = vpop.permute.xlu0 %769
    %v772 = vmul.f32 %v754, %v770
    %774 = vrot.lane.b32.xlu0 %v772, 64
    %v775 = vpop.permute.xlu0 %774
    %777 = vst.msk [vmem:[#allocation2 + $0x18] sm:$0x3] %vm306, %v775
    %v778 = vld [vmem:[#allocation3 + $0x48] sm:$0x3]
    %v779 = vpack.c.bf16 %v694, %v694
    %781 = vrot.lane.b32.xlu0 %v779, 64
    %v782 = vpop.permute.xlu0 %781
    %v784 = vsel %vm115, %v782, 0
    %786 = vmatprep.subr.bf16.mxu0 0
    %787 = vmatpush1.bf16.msra.mxu0 0
    %788 = vmatprep.subr.bf16.mxu0 0
    %789 = vmatpush1.bf16.msra.mxu0 0
    %790 = vmatprep.subr.bf16.mxu0 0
    %791 = vmatpush1.bf16.msra.mxu0 0
    %792 = vmatprep.subr.bf16.mxu0 0
    %793 = vmatpush1.bf16.msra.mxu0 0
    %794 = vmatprep.subr.bf16.mxu0 0
    %795 = vmatpush1.bf16.msra.mxu0 0
    %796 = vmatprep.subr.bf16.mxu0 0
    %797 = vmatpush1.bf16.msra.mxu0 0
    %798 = vmatprep.subr.bf16.mxu0 0
    %799 = vmatpush1.bf16.msra.mxu0 %v314
    %800 = vmatprep.subr.bf16.mxu0 0
    %801 = vmatpush1.bf16.msra.mxu0 %v313
    %802 = vmatprep.subr.bf16.mxu0 0
    %803 = vmatpush2.bf16.msra.mxu0 0
    %804 = vmatprep.subr.bf16.mxu0 0
    %805 = vmatpush2.bf16.msra.mxu0 0
    %806 = vmatprep.subr.bf16.mxu0 0
    %807 = vmatpush2.bf16.msra.mxu0 0
    %808 = vmatprep.subr.bf16.mxu0 0
    %809 = vmatpush2.bf16.msra.mxu0 0
    %810 = vmatprep.subr.bf16.mxu0 0
    %811 = vmatpush2.bf16.msra.mxu0 0
    %812 = vmatprep.subr.bf16.mxu0 0
    %813 = vmatpush2.bf16.msra.mxu0 0
    %814 = vmatprep.subr.bf16.mxu0 0
    %815 = vmatpush2.bf16.msra.mxu0 0
    %816 = vmatprep.subr.bf16.mxu0 0
    %817 = vmatpush2.bf16.msra.mxu0 0
    %818 = vmatprep.mubr.bf16.mxu0 0
    %819 = vmatmul.mubr.bf16.gmra.mxu0 %v784
    %v820 = vpop.f32.mrf.mxu0
    %v821 = vadd.f32 0.0, %v820
    %v822 = vpop.f32.mrf.mxu0
    %v823 = vpop.f32.mrf.mxu0
    %v824 = vpop.f32.mrf.mxu0
    %825 = vdwg.mxu0
    %v826 = vadd.f32 %v778, %v821
    %v827 = vxor.u32 %v826, 2147483648
    %v828 = vmul.f32 %v827, 1.442695
    %v829 = vpow.pop %v828
    %v830 = vadd.f32 %v829, 1.0
    %v831 = vrcp.pop %v830
    %v832 = vmul.f32 1.0, %v831
    %v833 = vtanh.pop %v826
    %v834 = vmul.f32 %v832, %v688
    %836 = vrot.lane.b32.xlu0 %v833, 32
    %v837 = vpop.permute.xlu0 %836
    %v839 = vmul.f32 %v832, %v837
    %841 = vrot.lane.b32.xlu0 %v839, 32
    %v842 = vpop.permute.xlu0 %841
    %v844 = vadd.f32 %v834, %v842
    %v845 = vtanh.pop %v844
    %847 = vrot.lane.b32.xlu0 %v845, 32
    %v848 = vpop.permute.xlu0 %847
    %v850 = vmul.f32 %v832, %v848
    %852 = vrot.lane.b32.xlu0 %v850, 96
    %v853 = vpop.permute.xlu0 %852
    %855 = vst.msk [vmem:[#allocation2 + $0x20] sm:$0x3] %vm386, %v853
    %v856 = vld [vmem:[#allocation3 + $0x40] sm:$0x3]
    %v857 = vpack.c.bf16 %v772, %v772
    %859 = vrot.lane.b32.xlu0 %v857, 64
    %v860 = vpop.permute.xlu0 %859
    %v862 = vsel %vm115, %v860, 0
    %864 = vmatprep.subr.bf16.mxu0 0
    %865 = vmatpush1.bf16.msra.mxu0 0
    %866 = vmatprep.subr.bf16.mxu0 0
    %867 = vmatpush1.bf16.msra.mxu0 0
    %868 = vmatprep.subr.bf16.mxu0 0
    %869 = vmatpush1.bf16.msra.mxu0 0
    %870 = vmatprep.subr.bf16.mxu0 0
    %871 = vmatpush1.bf16.msra.mxu0 0
    %872 = vmatprep.subr.bf16.mxu0 0
    %873 = vmatpush1.bf16.msra.mxu0 0
    %874 = vmatprep.subr.bf16.mxu0 0
    %875 = vmatpush1.bf16.msra.mxu0 0
    %876 = vmatprep.subr.bf16.mxu0 0
    %877 = vmatpush1.bf16.msra.mxu0 %v231
    %878 = vmatprep.subr.bf16.mxu0 0
    %879 = vmatpush1.bf16.msra.mxu0 %v230
    %880 = vmatprep.subr.bf16.mxu0 0
    %881 = vmatpush2.bf16.msra.mxu0 0
    %882 = vmatprep.subr.bf16.mxu0 0
    %883 = vmatpush2.bf16.msra.mxu0 0
    %884 = vmatprep.subr.bf16.mxu0 0
    %885 = vmatpush2.bf16.msra.mxu0 0
    %886 = vmatprep.subr.bf16.mxu0 0
    %887 = vmatpush2.bf16.msra.mxu0 0
    %888 = vmatprep.subr.bf16.mxu0 0
    %889 = vmatpush2.bf16.msra.mxu0 0
    %890 = vmatprep.subr.bf16.mxu0 0
    %891 = vmatpush2.bf16.msra.mxu0 0
    %892 = vmatprep.subr.bf16.mxu0 0
    %893 = vmatpush2.bf16.msra.mxu0 0
    %894 = vmatprep.subr.bf16.mxu0 0
    %895 = vmatpush2.bf16.msra.mxu0 0
    %896 = vmatprep.mubr.bf16.mxu0 0
    %897 = vmatmul.mubr.bf16.gmra.mxu0 %v862
    %v898 = vpop.f32.mrf.mxu0
    %v899 = vadd.f32 0.0, %v898
    %v900 = vpop.f32.mrf.mxu0
    %v901 = vpop.f32.mrf.mxu0
    %v902 = vpop.f32.mrf.mxu0
    %903 = vdwg.mxu0
    %v904 = vadd.f32 %v856, %v899
    %v905 = vxor.u32 %v904, 2147483648
    %v906 = vmul.f32 %v905, 1.442695
    %v907 = vpow.pop %v906
    %v908 = vadd.f32 %v907, 1.0
    %v909 = vrcp.pop %v908
    %v910 = vmul.f32 1.0, %v909
    %v911 = vtanh.pop %v904
    %v912 = vmul.f32 %v910, %v766
    %914 = vrot.lane.b32.xlu0 %v911, 32
    %v915 = vpop.permute.xlu0 %914
    %v917 = vmul.f32 %v910, %v915
    %919 = vrot.lane.b32.xlu0 %v917, 32
    %v920 = vpop.permute.xlu0 %919
    %v922 = vadd.f32 %v912, %v920
    %v923 = vtanh.pop %v922
    %925 = vrot.lane.b32.xlu0 %v923, 32
    %v926 = vpop.permute.xlu0 %925
    %v928 = vmul.f32 %v910, %v926
    %930 = vrot.lane.b32.xlu0 %v928, 64
    %v931 = vpop.permute.xlu0 %930
    %933 = vst.msk [vmem:[#allocation2 + $0x20] sm:$0x3] %vm306, %v931
    %v934 = vld [vmem:[#allocation3 + $0x38] sm:$0x3]
    %v935 = vpack.c.bf16 %v850, %v850
    %937 = vrot.lane.b32.xlu0 %v935, 64
    %v938 = vpop.permute.xlu0 %937
    %v940 = vsel %vm115, %v938, 0
    %942 = vmatprep.subr.bf16.mxu0 0
    %943 = vmatpush1.bf16.msra.mxu0 0
    %944 = vmatprep.subr.bf16.mxu0 0
    %945 = vmatpush1.bf16.msra.mxu0 0
    %946 = vmatprep.subr.bf16.mxu0 0
    %947 = vmatpush1.bf16.msra.mxu0 0
    %948 = vmatprep.subr.bf16.mxu0 0
    %949 = vmatpush1.bf16.msra.mxu0 0
    %950 = vmatprep.subr.bf16.mxu0 0
    %951 = vmatpush1.bf16.msra.mxu0 0
    %952 = vmatprep.subr.bf16.mxu0 0
    %953 = vmatpush1.bf16.msra.mxu0 0
    %954 = vmatprep.subr.bf16.mxu0 0
    %955 = vmatpush1.bf16.msra.mxu0 %v314
    %956 = vmatprep.subr.bf16.mxu0 0
    %957 = vmatpush1.bf16.msra.mxu0 %v313
    %958 = vmatprep.subr.bf16.mxu0 0
    %959 = vmatpush2.bf16.msra.mxu0 0
    %960 = vmatprep.subr.bf16.mxu0 0
    %961 = vmatpush2.bf16.msra.mxu0 0
    %962 = vmatprep.subr.bf16.mxu0 0
    %963 = vmatpush2.bf16.msra.mxu0 0
    %964 = vmatprep.subr.bf16.mxu0 0
    %965 = vmatpush2.bf16.msra.mxu0 0
    %966 = vmatprep.subr.bf16.mxu0 0
    %967 = vmatpush2.bf16.msra.mxu0 0
    %968 = vmatprep.subr.bf16.mxu0 0
    %969 = vmatpush2.bf16.msra.mxu0 0
    %970 = vmatprep.subr.bf16.mxu0 0
    %971 = vmatpush2.bf16.msra.mxu0 0
    %972 = vmatprep.subr.bf16.mxu0 0
    %973 = vmatpush2.bf16.msra.mxu0 0
    %974 = vmatprep.mubr.bf16.mxu0 0
    %975 = vmatmul.mubr.bf16.gmra.mxu0 %v940
    %v976 = vpop.f32.mrf.mxu0
    %v977 = vadd.f32 0.0, %v976
    %v978 = vpop.f32.mrf.mxu0
    %v979 = vpop.f32.mrf.mxu0
    %v980 = vpop.f32.mrf.mxu0
    %981 = vdwg.mxu0
    %v982 = vadd.f32 %v934, %v977
    %v983 = vxor.u32 %v982, 2147483648
    %v984 = vmul.f32 %v983, 1.442695
    %v985 = vpow.pop %v984
    %v986 = vadd.f32 %v985, 1.0
    %v987 = vrcp.pop %v986
    %v988 = vmul.f32 1.0, %v987
    %v989 = vtanh.pop %v982
    %v990 = vmul.f32 %v988, %v844
    %992 = vrot.lane.b32.xlu0 %v989, 32
    %v993 = vpop.permute.xlu0 %992
    %v995 = vmul.f32 %v988, %v993
    %997 = vrot.lane.b32.xlu0 %v995, 32
    %v998 = vpop.permute.xlu0 %997
    %v1000 = vadd.f32 %v990, %v998
    %v1001 = vtanh.pop %v1000
    %1003 = vrot.lane.b32.xlu0 %v1001, 32
    %v1004 = vpop.permute.xlu0 %1003
    %v1006 = vmul.f32 %v988, %v1004
    %1008 = vrot.lane.b32.xlu0 %v1006, 96
    %v1009 = vpop.permute.xlu0 %1008
    %1011 = vst.msk [vmem:[#allocation2 + $0x18] sm:$0x3] %vm386, %v1009
    %v1012 = vld [vmem:[#allocation3 + $0x50] sm:$0x3]
    %v1013 = vpack.c.bf16 %v928, %v928
    %1015 = vrot.lane.b32.xlu0 %v1013, 64
    %v1016 = vpop.permute.xlu0 %1015
    %v1018 = vsel %vm115, %v1016, 0
    %1020 = vmatprep.subr.bf16.mxu0 0
    %1021 = vmatpush1.bf16.msra.mxu0 0
    %1022 = vmatprep.subr.bf16.mxu0 0
    %1023 = vmatpush1.bf16.msra.mxu0 0
    %1024 = vmatprep.subr.bf16.mxu0 0
    %1025 = vmatpush1.bf16.msra.mxu0 0
    %1026 = vmatprep.subr.bf16.mxu0 0
    %1027 = vmatpush1.bf16.msra.mxu0 0
    %1028 = vmatprep.subr.bf16.mxu0 0
    %1029 = vmatpush1.bf16.msra.mxu0 0
    %1030 = vmatprep.subr.bf16.mxu0 0
    %1031 = vmatpush1.bf16.msra.mxu0 0
    %1032 = vmatprep.subr.bf16.mxu0 0
    %1033 = vmatpush1.bf16.msra.mxu0 %v231
    %1034 = vmatprep.subr.bf16.mxu0 0
    %1035 = vmatpush1.bf16.msra.mxu0 %v230
    %1036 = vmatprep.subr.bf16.mxu0 0
    %1037 = vmatpush2.bf16.msra.mxu0 0
    %1038 = vmatprep.subr.bf16.mxu0 0
    %1039 = vmatpush2.bf16.msra.mxu0 0
    %1040 = vmatprep.subr.bf16.mxu0 0
    %1041 = vmatpush2.bf16.msra.mxu0 0
    %1042 = vmatprep.subr.bf16.mxu0 0
    %1043 = vmatpush2.bf16.msra.mxu0 0
    %1044 = vmatprep.subr.bf16.mxu0 0
    %1045 = vmatpush2.bf16.msra.mxu0 0
    %1046 = vmatprep.subr.bf16.mxu0 0
    %1047 = vmatpush2.bf16.msra.mxu0 0
    %1048 = vmatprep.subr.bf16.mxu0 0
    %1049 = vmatpush2.bf16.msra.mxu0 0
    %1050 = vmatprep.subr.bf16.mxu0 0
    %1051 = vmatpush2.bf16.msra.mxu0 0
    %1052 = vmatprep.mubr.bf16.mxu0 0
    %1053 = vmatmul.mubr.bf16.gmra.mxu0 %v1018
    %v1054 = vpop.f32.mrf.mxu0
    %v1055 = vadd.f32 0.0, %v1054
    %v1056 = vpop.f32.mrf.mxu0
    %v1057 = vpop.f32.mrf.mxu0
    %v1058 = vpop.f32.mrf.mxu0
    %1059 = vdwg.mxu0
    %v1060 = vadd.f32 %v1012, %v1055
    %v1061 = vxor.u32 %v1060, 2147483648
    %v1062 = vmul.f32 %v1061, 1.442695
    %v1063 = vpow.pop %v1062
    %v1064 = vadd.f32 %v1063, 1.0
    %v1065 = vrcp.pop %v1064
    %v1066 = vmul.f32 1.0, %v1065
    %v1067 = vtanh.pop %v1060
    %v1068 = vmul.f32 %v1066, %v922
    %1070 = vrot.lane.b32.xlu0 %v1067, 32
    %v1071 = vpop.permute.xlu0 %1070
    %v1073 = vmul.f32 %v1066, %v1071
    %1075 = vrot.lane.b32.xlu0 %v1073, 32
    %v1076 = vpop.permute.xlu0 %1075
    %v1078 = vadd.f32 %v1068, %v1076
    %v1079 = vtanh.pop %v1078
    %1081 = vrot.lane.b32.xlu0 %v1079, 32
    %v1082 = vpop.permute.xlu0 %1081
    %v1084 = vmul.f32 %v1066, %v1082
    %1086 = vrot.lane.b32.xlu0 %v1084, 64
    %v1087 = vpop.permute.xlu0 %1086
    %1089 = vst.msk [vmem:[#allocation2 + $0x28] sm:$0x3] %vm306, %v1087
    %v1090 = vld [vmem:[#allocation3 + $0x28] sm:$0x3]
    %v1091 = vpack.c.bf16 %v1006, %v1006
    %1093 = vrot.lane.b32.xlu0 %v1091, 64
    %v1094 = vpop.permute.xlu0 %1093
    %v1096 = vsel %vm115, %v1094, 0
    %1098 = vmatprep.subr.bf16.mxu0 0
    %1099 = vmatpush1.bf16.msra.mxu0 0
    %1100 = vmatprep.subr.bf16.mxu0 0
    %1101 = vmatpush1.bf16.msra.mxu0 0
    %1102 = vmatprep.subr.bf16.mxu0 0
    %1103 = vmatpush1.bf16.msra.mxu0 0
    %1104 = vmatprep.subr.bf16.mxu0 0
    %1105 = vmatpush1.bf16.msra.mxu0 0
    %1106 = vmatprep.subr.bf16.mxu0 0
    %1107 = vmatpush1.bf16.msra.mxu0 0
    %1108 = vmatprep.subr.bf16.mxu0 0
    %1109 = vmatpush1.bf16.msra.mxu0 0
    %1110 = vmatprep.subr.bf16.mxu0 0
    %1111 = vmatpush1.bf16.msra.mxu0 %v314
    %1112 = vmatprep.subr.bf16.mxu0 0
    %1113 = vmatpush1.bf16.msra.mxu0 %v313
    %1114 = vmatprep.subr.bf16.mxu0 0
    %1115 = vmatpush2.bf16.msra.mxu0 0
    %1116 = vmatprep.subr.bf16.mxu0 0
    %1117 = vmatpush2.bf16.msra.mxu0 0
    %1118 = vmatprep.subr.bf16.mxu0 0
    %1119 = vmatpush2.bf16.msra.mxu0 0
    %1120 = vmatprep.subr.bf16.mxu0 0
    %1121 = vmatpush2.bf16.msra.mxu0 0
    %1122 = vmatprep.subr.bf16.mxu0 0
    %1123 = vmatpush2.bf16.msra.mxu0 0
    %1124 = vmatprep.subr.bf16.mxu0 0
    %1125 = vmatpush2.bf16.msra.mxu0 0
    %1126 = vmatprep.subr.bf16.mxu0 0
    %1127 = vmatpush2.bf16.msra.mxu0 0
    %1128 = vmatprep.subr.bf16.mxu0 0
    %1129 = vmatpush2.bf16.msra.mxu0 0
    %1130 = vmatprep.mubr.bf16.mxu0 0
    %1131 = vmatmul.mubr.bf16.gmra.mxu0 %v1096
    %v1132 = vpop.f32.mrf.mxu0
    %v1133 = vadd.f32 0.0, %v1132
    %v1134 = vpop.f32.mrf.mxu0
    %v1135 = vpop.f32.mrf.mxu0
    %v1136 = vpop.f32.mrf.mxu0
    %1137 = vdwg.mxu0
    %v1138 = vadd.f32 %v1090, %v1133
    %v1139 = vxor.u32 %v1138, 2147483648
    %v1140 = vmul.f32 %v1139, 1.442695
    %v1141 = vpow.pop %v1140
    %v1142 = vadd.f32 %v1141, 1.0
    %v1143 = vrcp.pop %v1142
    %v1144 = vmul.f32 1.0, %v1143
    %v1145 = vtanh.pop %v1138
    %v1146 = vmul.f32 %v1144, %v1000
    %1148 = vrot.lane.b32.xlu0 %v1145, 32
    %v1149 = vpop.permute.xlu0 %1148
    %v1151 = vmul.f32 %v1144, %v1149
    %1153 = vrot.lane.b32.xlu0 %v1151, 32
    %v1154 = vpop.permute.xlu0 %1153
    %v1156 = vadd.f32 %v1146, %v1154
    %v1157 = vtanh.pop %v1156
    %1159 = vrot.lane.b32.xlu0 %v1157, 32
    %v1160 = vpop.permute.xlu0 %1159
    %v1162 = vmul.f32 %v1144, %v1160
    %1164 = vrot.lane.b32.xlu0 %v1162, 96
    %v1165 = vpop.permute.xlu0 %1164
    %1167 = vst.msk [vmem:[#allocation2 + $0x10] sm:$0x3] %vm386, %v1165
    %v1168 = vld [vmem:[#allocation3 + $0x60] sm:$0x3]
    %v1169 = vpack.c.bf16 %v1084, %v1084
    %1171 = vrot.lane.b32.xlu0 %v1169, 64
    %v1172 = vpop.permute.xlu0 %1171
    %v1174 = vsel %vm115, %v1172, 0
    %1176 = vmatprep.subr.bf16.mxu0 0
    %1177 = vmatpush1.bf16.msra.mxu0 0
    %1178 = vmatprep.subr.bf16.mxu0 0
    %1179 = vmatpush1.bf16.msra.mxu0 0
    %1180 = vmatprep.subr.bf16.mxu0 0
    %1181 = vmatpush1.bf16.msra.mxu0 0
    %1182 = vmatprep.subr.bf16.mxu0 0
    %1183 = vmatpush1.bf16.msra.mxu0 0
    %1184 = vmatprep.subr.bf16.mxu0 0
    %1185 = vmatpush1.bf16.msra.mxu0 0
    %1186 = vmatprep.subr.bf16.mxu0 0
    %1187 = vmatpush1.bf16.msra.mxu0 0
    %1188 = vmatprep.subr.bf16.mxu0 0
    %1189 = vmatpush1.bf16.msra.mxu0 %v231
    %1190 = vmatprep.subr.bf16.mxu0 0
    %1191 = vmatpush1.bf16.msra.mxu0 %v230
    %1192 = vmatprep.subr.bf16.mxu0 0
    %1193 = vmatpush2.bf16.msra.mxu0 0
    %1194 = vmatprep.subr.bf16.mxu0 0
    %1195 = vmatpush2.bf16.msra.mxu0 0
    %1196 = vmatprep.subr.bf16.mxu0 0
    %1197 = vmatpush2.bf16.msra.mxu0 0
    %1198 = vmatprep.subr.bf16.mxu0 0
    %1199 = vmatpush2.bf16.msra.mxu0 0
    %1200 = vmatprep.subr.bf16.mxu0 0
    %1201 = vmatpush2.bf16.msra.mxu0 0
    %1202 = vmatprep.subr.bf16.mxu0 0
    %1203 = vmatpush2.bf16.msra.mxu0 0
    %1204 = vmatprep.subr.bf16.mxu0 0
    %1205 = vmatpush2.bf16.msra.mxu0 0
    %1206 = vmatprep.subr.bf16.mxu0 0
    %1207 = vmatpush2.bf16.msra.mxu0 0
    %1208 = vmatprep.mubr.bf16.mxu0 0
    %1209 = vmatmul.mubr.bf16.gmra.mxu0 %v1174
    %v1210 = vpop.f32.mrf.mxu0
    %v1211 = vadd.f32 0.0, %v1210
    %v1212 = vpop.f32.mrf.mxu0
    %v1213 = vpop.f32.mrf.mxu0
    %v1214 = vpop.f32.mrf.mxu0
    %1215 = vdwg.mxu0
    %v1216 = vadd.f32 %v1168, %v1211
    %v1217 = vxor.u32 %v1216, 2147483648
    %v1218 = vmul.f32 %v1217, 1.442695
    %v1219 = vpow.pop %v1218
    %v1220 = vadd.f32 %v1219, 1.0
    %v1221 = vrcp.pop %v1220
    %v1222 = vmul.f32 1.0, %v1221
    %v1223 = vtanh.pop %v1216
    %v1224 = vmul.f32 %v1222, %v1078
    %1226 = vrot.lane.b32.xlu0 %v1223, 32
    %v1227 = vpop.permute.xlu0 %1226
    %v1229 = vmul.f32 %v1222, %v1227
    %1231 = vrot.lane.b32.xlu0 %v1229, 32
    %v1232 = vpop.permute.xlu0 %1231
    %v1234 = vadd.f32 %v1224, %v1232
    %v1235 = vtanh.pop %v1234
    %1237 = vrot.lane.b32.xlu0 %v1235, 32
    %v1238 = vpop.permute.xlu0 %1237
    %v1240 = vmul.f32 %v1222, %v1238
    %1242 = vrot.lane.b32.xlu0 %v1240, 64
    %v1243 = vpop.permute.xlu0 %1242
    %1245 = vst.msk [vmem:[#allocation2 + $0x30] sm:$0x3] %vm306, %v1243
    %v1246 = vld [vmem:[#allocation3 + $0x18] sm:$0x3]
    %v1247 = vpack.c.bf16 %v1162, %v1162
    %1249 = vrot.lane.b32.xlu0 %v1247, 64
    %v1250 = vpop.permute.xlu0 %1249
    %v1252 = vsel %vm115, %v1250, 0
    %1254 = vmatprep.subr.bf16.mxu0 0
    %1255 = vmatpush1.bf16.msra.mxu0 0
    %1256 = vmatprep.subr.bf16.mxu0 0
    %1257 = vmatpush1.bf16.msra.mxu0 0
    %1258 = vmatprep.subr.bf16.mxu0 0
    %1259 = vmatpush1.bf16.msra.mxu0 0
    %1260 = vmatprep.subr.bf16.mxu0 0
    %1261 = vmatpush1.bf16.msra.mxu0 0
    %1262 = vmatprep.subr.bf16.mxu0 0
    %1263 = vmatpush1.bf16.msra.mxu0 0
    %1264 = vmatprep.subr.bf16.mxu0 0
    %1265 = vmatpush1.bf16.msra.mxu0 0
    %1266 = vmatprep.subr.bf16.mxu0 0
    %1267 = vmatpush1.bf16.msra.mxu0 %v314
    %1268 = vmatprep.subr.bf16.mxu0 0
    %1269 = vmatpush1.bf16.msra.mxu0 %v313
    %1270 = vmatprep.subr.bf16.mxu0 0
    %1271 = vmatpush2.bf16.msra.mxu0 0
    %1272 = vmatprep.subr.bf16.mxu0 0
    %1273 = vmatpush2.bf16.msra.mxu0 0
    %1274 = vmatprep.subr.bf16.mxu0 0
    %1275 = vmatpush2.bf16.msra.mxu0 0
    %1276 = vmatprep.subr.bf16.mxu0 0
    %1277 = vmatpush2.bf16.msra.mxu0 0
    %1278 = vmatprep.subr.bf16.mxu0 0
    %1279 = vmatpush2.bf16.msra.mxu0 0
    %1280 = vmatprep.subr.bf16.mxu0 0
    %1281 = vmatpush2.bf16.msra.mxu0 0
    %1282 = vmatprep.subr.bf16.mxu0 0
    %1283 = vmatpush2.bf16.msra.mxu0 0
    %1284 = vmatprep.subr.bf16.mxu0 0
    %1285 = vmatpush2.bf16.msra.mxu0 0
    %1286 = vmatprep.mubr.bf16.mxu0 0
    %1287 = vmatmul.mubr.bf16.gmra.mxu0 %v1252
    %v1288 = vpop.f32.mrf.mxu0
    %v1289 = vadd.f32 0.0, %v1288
    %v1290 = vpop.f32.mrf.mxu0
    %v1291 = vpop.f32.mrf.mxu0
    %v1292 = vpop.f32.mrf.mxu0
    %1293 = vdwg.mxu0
    %v1294 = vadd.f32 %v1246, %v1289
    %v1295 = vxor.u32 %v1294, 2147483648
    %v1296 = vmul.f32 %v1295, 1.442695
    %v1297 = vpow.pop %v1296
    %v1298 = vadd.f32 %v1297, 1.0
    %v1299 = vrcp.pop %v1298
    %v1300 = vmul.f32 1.0, %v1299
    %v1301 = vtanh.pop %v1294
    %v1302 = vmul.f32 %v1300, %v1156
    %1304 = vrot.lane.b32.xlu0 %v1301, 32
    %v1305 = vpop.permute.xlu0 %1304
    %v1307 = vmul.f32 %v1300, %v1305
    %1309 = vrot.lane.b32.xlu0 %v1307, 32
    %v1310 = vpop.permute.xlu0 %1309
    %v1312 = vadd.f32 %v1302, %v1310
    %v1313 = vtanh.pop %v1312
    %1315 = vrot.lane.b32.xlu0 %v1313, 32
    %v1316 = vpop.permute.xlu0 %1315
    %v1318 = vmul.f32 %v1300, %v1316
    %1320 = vrot.lane.b32.xlu0 %v1318, 96
    %v1321 = vpop.permute.xlu0 %1320
    %1323 = vst.msk [vmem:[#allocation2 + $0x8] sm:$0x3] %vm386, %v1321
    %v1324 = vld [vmem:[#allocation3 + $0x70] sm:$0x3]
    %v1325 = vpack.c.bf16 %v1240, %v1240
    %1327 = vrot.lane.b32.xlu0 %v1325, 64
    %v1328 = vpop.permute.xlu0 %1327
    %v1330 = vsel %vm115, %v1328, 0
    %1332 = vmatprep.subr.bf16.mxu0 0
    %1333 = vmatpush1.bf16.msra.mxu0 0
    %1334 = vmatprep.subr.bf16.mxu0 0
    %1335 = vmatpush1.bf16.msra.mxu0 0
    %1336 = vmatprep.subr.bf16.mxu0 0
    %1337 = vmatpush1.bf16.msra.mxu0 0
    %1338 = vmatprep.subr.bf16.mxu0 0
    %1339 = vmatpush1.bf16.msra.mxu0 0
    %1340 = vmatprep.subr.bf16.mxu0 0
    %1341 = vmatpush1.bf16.msra.mxu0 0
    %1342 = vmatprep.subr.bf16.mxu0 0
    %1343 = vmatpush1.bf16.msra.mxu0 0
    %1344 = vmatprep.subr.bf16.mxu0 0
    %1345 = vmatpush1.bf16.msra.mxu0 %v231
    %1346 = vmatprep.subr.bf16.mxu0 0
    %1347 = vmatpush1.bf16.msra.mxu0 %v230
    %1348 = vmatprep.subr.bf16.mxu0 0
    %1349 = vmatpush2.bf16.msra.mxu0 0
    %1350 = vmatprep.subr.bf16.mxu0 0
    %1351 = vmatpush2.bf16.msra.mxu0 0
    %1352 = vmatprep.subr.bf16.mxu0 0
    %1353 = vmatpush2.bf16.msra.mxu0 0
    %1354 = vmatprep.subr.bf16.mxu0 0
    %1355 = vmatpush2.bf16.msra.mxu0 0
    %1356 = vmatprep.subr.bf16.mxu0 0
    %1357 = vmatpush2.bf16.msra.mxu0 0
    %1358 = vmatprep.subr.bf16.mxu0 0
    %1359 = vmatpush2.bf16.msra.mxu0 0
    %1360 = vmatprep.subr.bf16.mxu0 0
    %1361 = vmatpush2.bf16.msra.mxu0 0
    %1362 = vmatprep.subr.bf16.mxu0 0
    %1363 = vmatpush2.bf16.msra.mxu0 0
    %1364 = vmatprep.mubr.bf16.mxu0 0
    %1365 = vmatmul.mubr.bf16.gmra.mxu0 %v1330
    %v1366 = vpop.f32.mrf.mxu0
    %v1367 = vadd.f32 0.0, %v1366
    %v1368 = vpop.f32.mrf.mxu0
    %v1369 = vpop.f32.mrf.mxu0
    %v1370 = vpop.f32.mrf.mxu0
    %1371 = vdwg.mxu0
    %v1372 = vadd.f32 %v1324, %v1367
    %v1373 = vxor.u32 %v1372, 2147483648
    %v1374 = vmul.f32 %v1373, 1.442695
    %v1375 = vpow.pop %v1374
    %v1376 = vadd.f32 %v1375, 1.0
    %v1377 = vrcp.pop %v1376
    %v1378 = vmul.f32 1.0, %v1377
    %v1379 = vtanh.pop %v1372
    %v1380 = vmul.f32 %v1378, %v1234
    %1382 = vrot.lane.b32.xlu0 %v1379, 32
    %v1383 = vpop.permute.xlu0 %1382
    %v1385 = vmul.f32 %v1378, %v1383
    %1387 = vrot.lane.b32.xlu0 %v1385, 32
    %v1388 = vpop.permute.xlu0 %1387
    %v1390 = vadd.f32 %v1380, %v1388
    %v1391 = vtanh.pop %v1390
    %1393 = vrot.lane.b32.xlu0 %v1391, 32
    %v1394 = vpop.permute.xlu0 %1393
    %v1396 = vmul.f32 %v1378, %v1394
    %1398 = vrot.lane.b32.xlu0 %v1396, 64
    %v1399 = vpop.permute.xlu0 %1398
    %1401 = vst.msk [vmem:[#allocation2 + $0x38] sm:$0x3] %vm306, %v1399
    %v1402 = vld [vmem:[#allocation3 + $0x8] sm:$0x3]
    %v1403 = vpack.c.bf16 %v1318, %v1318
    %1405 = vrot.lane.b32.xlu0 %v1403, 64
    %v1406 = vpop.permute.xlu0 %1405
    %v1408 = vsel %vm115, %v1406, 0
    %1410 = vmatprep.subr.bf16.mxu0 0
    %1411 = vmatpush1.bf16.msra.mxu0 0
    %1412 = vmatprep.subr.bf16.mxu0 0
    %1413 = vmatpush1.bf16.msra.mxu0 0
    %1414 = vmatprep.subr.bf16.mxu0 0
    %1415 = vmatpush1.bf16.msra.mxu0 0
    %1416 = vmatprep.subr.bf16.mxu0 0
    %1417 = vmatpush1.bf16.msra.mxu0 0
    %1418 = vmatprep.subr.bf16.mxu0 0
    %1419 = vmatpush1.bf16.msra.mxu0 0
    %1420 = vmatprep.subr.bf16.mxu0 0
    %1421 = vmatpush1.bf16.msra.mxu0 0
    %1422 = vmatprep.subr.bf16.mxu0 0
    %1423 = vmatpush1.bf16.msra.mxu0 %v314
    %1424 = vmatprep.subr.bf16.mxu0 0
    %1425 = vmatpush1.bf16.msra.mxu0 %v313
    %1426 = vmatprep.subr.bf16.mxu0 0
    %1427 = vmatpush2.bf16.msra.mxu0 0
    %1428 = vmatprep.subr.bf16.mxu0 0
    %1429 = vmatpush2.bf16.msra.mxu0 0
    %1430 = vmatprep.subr.bf16.mxu0 0
    %1431 = vmatpush2.bf16.msra.mxu0 0
    %1432 = vmatprep.subr.bf16.mxu0 0
    %1433 = vmatpush2.bf16.msra.mxu0 0
    %1434 = vmatprep.subr.bf16.mxu0 0
    %1435 = vmatpush2.bf16.msra.mxu0 0
    %1436 = vmatprep.subr.bf16.mxu0 0
    %1437 = vmatpush2.bf16.msra.mxu0 0
    %1438 = vmatprep.subr.bf16.mxu0 0
    %1439 = vmatpush2.bf16.msra.mxu0 0
    %1440 = vmatprep.subr.bf16.mxu0 0
    %1441 = vmatpush2.bf16.msra.mxu0 0
    %1442 = vmatprep.mubr.bf16.mxu0 0
    %1443 = vmatmul.mubr.bf16.gmra.mxu0 %v1408
    %v1444 = vpop.f32.mrf.mxu0
    %v1445 = vadd.f32 0.0, %v1444
    %v1446 = vpop.f32.mrf.mxu0
    %v1447 = vpop.f32.mrf.mxu0
    %v1448 = vpop.f32.mrf.mxu0
    %1449 = vdwg.mxu0
    %v1450 = vadd.f32 %v1402, %v1445
    %v1451 = vxor.u32 %v1450, 2147483648
    %v1452 = vmul.f32 %v1451, 1.442695
    %v1453 = vpow.pop %v1452
    %v1454 = vadd.f32 %v1453, 1.0
    %v1455 = vrcp.pop %v1454
    %v1456 = vmul.f32 1.0, %v1455
    %v1457 = vtanh.pop %v1450
    %v1458 = vmul.f32 %v1456, %v1312
    %1460 = vrot.lane.b32.xlu0 %v1457, 32
    %v1461 = vpop.permute.xlu0 %1460
    %v1463 = vmul.f32 %v1456, %v1461
    %1465 = vrot.lane.b32.xlu0 %v1463, 32
    %v1466 = vpop.permute.xlu0 %1465
    %v1468 = vadd.f32 %v1458, %v1466
    %v1469 = vtanh.pop %v1468
    %1471 = vrot.lane.b32.xlu0 %v1469, 32
    %v1472 = vpop.permute.xlu0 %1471
    %v1474 = vmul.f32 %v1456, %v1472
    %1476 = vrot.lane.b32.xlu0 %v1474, 96
    %v1477 = vpop.permute.xlu0 %1476
    %1479 = vst.msk [vmem:[#allocation2] sm:$0x3] %vm386, %v1477
    %v1480 = vld [vmem:[#allocation2] sm:$0xff]
    %v1481 = vld [vmem:[#allocation2 + $0x8] sm:$0xff]
    %v1482 = vld [vmem:[#allocation2 + $0x10] sm:$0xff]
    %v1483 = vld [vmem:[#allocation2 + $0x18] sm:$0xff]
    %v1484 = vld [vmem:[#allocation2 + $0x20] sm:$0xff]
    %v1485 = vld [vmem:[#allocation2 + $0x28] sm:$0xff]
    %v1486 = vld [vmem:[#allocation2 + $0x30] sm:$0xff]
    %v1487 = vld [vmem:[#allocation2 + $0x38] sm:$0xff]
    %v1488 = vpack.c.bf16 %v1481, %v1480
    %v1489 = vpack.c.bf16 %v1483, %v1482
    %v1490 = vpack.c.bf16 %v1485, %v1484
    %v1491 = vpack.c.bf16 %v1487, %v1486
    %v1492 = vld [vmem:[%s2] sm:$0xff]
    %v1493 = vld [vmem:[%s2 + $0x8] sm:$0xff]
    %v1494 = vld [vmem:[%s2 + $0x10] sm:$0xff]
    %v1495 = vld [vmem:[%s2 + $0x18] sm:$0xff]
    %v1496 = vld [vmem:[%s2 + $0x20] sm:$0xff]
    %v1497 = vld [vmem:[%s2 + $0x28] sm:$0xff]
    %v1498 = vld [vmem:[%s2 + $0x30] sm:$0xff]
    %v1499 = vld [vmem:[%s2 + $0x38] sm:$0xff]
    %s1500 = scalar_lea.vmem %s4, 2
    %v1501 = vld [vmem:[%s1500] sm:$0x3]
    %v1503 = vlaneseq
    %v1504 = vshrl.u32 %v1503, 7
    %v1505 = vsub.s32 0, %v1504
    %v1506 = vrot.slane %v1501, %v1505
    %v1507 = vlaneseq
    %v1508 = vshrl.u32 %v1507, 7
    %v1509 = vsub.s32 1, %v1508
    %v1510 = vrot.slane %v1501, %v1509
    %v1521 = vunpack.c.l.b16 %v1492
    %v1522 = vunpack.c.h.b16 %v1492
    %v1523 = vunpack.c.l.b16 %v1493
    %v1524 = vunpack.c.h.b16 %v1493
    %v1525 = vunpack.c.l.b16 %v1494
    %v1526 = vunpack.c.h.b16 %v1494
    %v1527 = vunpack.c.l.b16 %v1495
    %v1528 = vunpack.c.h.b16 %v1495
    %v1529 = vunpack.c.l.b16 %v1496
    %v1530 = vunpack.c.h.b16 %v1496
    %v1531 = vunpack.c.l.b16 %v1497
    %v1532 = vunpack.c.h.b16 %v1497
    %v1533 = vunpack.c.l.b16 %v1498
    %v1534 = vunpack.c.h.b16 %v1498
    %v1535 = vunpack.c.l.b16 %v1499
    %v1536 = vunpack.c.h.b16 %v1499
    %v1537 = vpack.c.b16 %v1523, %v1521
    %v1538 = vpack.c.b16 %v1524, %v1522
    %v1539 = vpack.c.b16 %v1527, %v1525
    %v1540 = vpack.c.b16 %v1528, %v1526
    %v1541 = vpack.c.b16 %v1531, %v1529
    %v1542 = vpack.c.b16 %v1532, %v1530
    %v1543 = vpack.c.b16 %v1535, %v1533
    %v1544 = vpack.c.b16 %v1536, %v1534
    %v1554 = vsel %vm42, %v1488, 0
    %v1557 = vsel %vm42, %v1489, 0
    %v1560 = vsel %vm42, %v1490, 0
    %v1563 = vsel %vm42, %v1491, 0
    %1565 = vmatprep.subr.bf16.mxu0 0
    %1566 = vmatpush1.bf16.msra.mxu0 0
    %1567 = vmatprep.subr.bf16.mxu0 0
    %1568 = vmatpush1.bf16.msra.mxu0 0
    %1569 = vmatprep.subr.bf16.mxu0 0
    %1570 = vmatpush1.bf16.msra.mxu0 0
    %1571 = vmatprep.subr.bf16.mxu0 0
    %1572 = vmatpush1.bf16.msra.mxu0 0
    %1573 = vmatprep.subr.bf16.mxu0 %v1544
    %1574 = vmatpush1.bf16.msra.mxu0 %v1543
    %1575 = vmatprep.subr.bf16.mxu0 %v1542
    %1576 = vmatpush1.bf16.msra.mxu0 %v1541
    %1577 = vmatprep.subr.bf16.mxu0 %v1540
    %1578 = vmatpush1.bf16.msra.mxu0 %v1539
    %1579 = vmatprep.subr.bf16.mxu0 %v1538
    %1580 = vmatpush1.bf16.msra.mxu0 %v1537
    %1581 = vmatprep.subr.bf16.mxu0 0
    %1582 = vmatpush2.bf16.msra.mxu0 0
    %1583 = vmatprep.subr.bf16.mxu0 0
    %1584 = vmatpush2.bf16.msra.mxu0 0
    %1585 = vmatprep.subr.bf16.mxu0 0
    %1586 = vmatpush2.bf16.msra.mxu0 0
    %1587 = vmatprep.subr.bf16.mxu0 0
    %1588 = vmatpush2.bf16.msra.mxu0 0
    %1589 = vmatprep.subr.bf16.mxu0 0
    %1590 = vmatpush2.bf16.msra.mxu0 0
    %1591 = vmatprep.subr.bf16.mxu0 0
    %1592 = vmatpush2.bf16.msra.mxu0 0
    %1593 = vmatprep.subr.bf16.mxu0 0
    %1594 = vmatpush2.bf16.msra.mxu0 0
    %1595 = vmatprep.subr.bf16.mxu0 0
    %1596 = vmatpush2.bf16.msra.mxu0 0
    %1597 = vmatprep.mubr.bf16.mxu0 0
    %1598 = vmatmul.mubr.bf16.gmra.mxu0 %v1554
    %v1599 = vpop.f32.mrf.mxu0
    %v1600 = vadd.f32 %v1506, %v1599
    %v1601 = vpop.f32.mrf.mxu0
    %v1602 = vadd.f32 %v1510, %v1601
    %v1603 = vpop.f32.mrf.mxu0
    %v1604 = vadd.f32 %v1506, %v1603
    %v1605 = vpop.f32.mrf.mxu0
    %v1606 = vadd.f32 %v1510, %v1605
    %1607 = vmatprep.mubr.bf16.mxu0 0
    %1608 = vmatmul.mubr.bf16.gmra.mxu0 %v1557
    %v1609 = vpop.f32.mrf.mxu0
    %v1610 = vadd.f32 %v1506, %v1609
    %v1611 = vpop.f32.mrf.mxu0
    %v1612 = vadd.f32 %v1510, %v1611
    %v1613 = vpop.f32.mrf.mxu0
    %v1614 = vadd.f32 %v1506, %v1613
    %v1615 = vpop.f32.mrf.mxu0
    %v1616 = vadd.f32 %v1510, %v1615
    %1617 = vmatprep.mubr.bf16.mxu0 0
    %1618 = vmatmul.mubr.bf16.gmra.mxu0 %v1560
    %v1619 = vpop.f32.mrf.mxu0
    %v1620 = vadd.f32 %v1506, %v1619
    %v1621 = vpop.f32.mrf.mxu0
    %v1622 = vadd.f32 %v1510, %v1621
    %v1623 = vpop.f32.mrf.mxu0
    %v1624 = vadd.f32 %v1506, %v1623
    %v1625 = vpop.f32.mrf.mxu0
    %v1626 = vadd.f32 %v1510, %v1625
    %1627 = vmatprep.mubr.bf16.mxu0 0
    %1628 = vmatmul.mubr.bf16.gmra.mxu0 %v1563
    %v1629 = vpop.f32.mrf.mxu0
    %v1630 = vadd.f32 %v1506, %v1629
    %v1631 = vpop.f32.mrf.mxu0
    %v1632 = vadd.f32 %v1510, %v1631
    %v1633 = vpop.f32.mrf.mxu0
    %v1634 = vadd.f32 %v1506, %v1633
    %v1635 = vpop.f32.mrf.mxu0
    %v1636 = vadd.f32 %v1510, %v1635
    %1637 = vdwg.mxu0
    %1638 = vst [vmem:[#allocation3] sm:$0xff] %v1600
    %1639 = vst [vmem:[#allocation3 + $0x8] sm:$0xff] %v1602
    %1640 = vst [vmem:[#allocation3 + $0x10] sm:$0xff] %v1604
    %1641 = vst [vmem:[#allocation3 + $0x18] sm:$0xff] %v1606
    %1642 = vst [vmem:[#allocation3 + $0x20] sm:$0xff] %v1610
    %1643 = vst [vmem:[#allocation3 + $0x28] sm:$0xff] %v1612
    %1644 = vst [vmem:[#allocation3 + $0x30] sm:$0xff] %v1614
    %1645 = vst [vmem:[#allocation3 + $0x38] sm:$0xff] %v1616
    %1646 = vst [vmem:[#allocation3 + $0x40] sm:$0xff] %v1620
    %1647 = vst [vmem:[#allocation3 + $0x48] sm:$0xff] %v1622
    %1648 = vst [vmem:[#allocation3 + $0x50] sm:$0xff] %v1624
    %1649 = vst [vmem:[#allocation3 + $0x58] sm:$0xff] %v1626
    %1650 = vst [vmem:[#allocation3 + $0x60] sm:$0xff] %v1630
    %1651 = vst [vmem:[#allocation3 + $0x68] sm:$0xff] %v1632
    %1652 = vst [vmem:[#allocation3 + $0x70] sm:$0xff] %v1634
    %1653 = vst [vmem:[#allocation3 + $0x78] sm:$0xff] %v1636
    %s1654 = scalar_lea.vmem [#allocation4], 32
    %v1655 = vld [vmem:[%s1654] sm:$0xff]
    %v1656 = vld [vmem:[%s1654 + $0x8] sm:$0xff]
    %v1657 = vld [vmem:[%s1654 + $0x10] sm:$0xff]
    %v1658 = vld [vmem:[%s1654 + $0x18] sm:$0xff]
    %v1659 = vld [vmem:[#allocation3] sm:$0x3]
    %v1664 = vunpack.c.l.b16 %v1655
    %v1665 = vunpack.c.l.b16 %v1656
    %v1666 = vunpack.c.l.b16 %v1657
    %v1667 = vunpack.c.l.b16 %v1658
    %v1668 = vpack.c.b16 %v1665, %v1664
    %v1669 = vpack.c.b16 %v1667, %v1666
    %1672 = vmatprep.subr.bf16.mxu0 0
    %1673 = vmatpush1.bf16.msra.mxu0 0
    %1674 = vmatprep.subr.bf16.mxu0 0
    %1675 = vmatpush1.bf16.msra.mxu0 0
    %1676 = vmatprep.subr.bf16.mxu0 0
    %1677 = vmatpush1.bf16.msra.mxu0 0
    %1678 = vmatprep.subr.bf16.mxu0 0
    %1679 = vmatpush1.bf16.msra.mxu0 0
    %1680 = vmatprep.subr.bf16.mxu0 0
    %1681 = vmatpush1.bf16.msra.mxu0 0
    %1682 = vmatprep.subr.bf16.mxu0 0
    %1683 = vmatpush1.bf16.msra.mxu0 0
    %1684 = vmatprep.subr.bf16.mxu0 0
    %1685 = vmatpush1.bf16.msra.mxu0 %v1669
    %1686 = vmatprep.subr.bf16.mxu0 0
    %1687 = vmatpush1.bf16.msra.mxu0 %v1668
    %1688 = vmatprep.subr.bf16.mxu0 0
    %1689 = vmatpush2.bf16.msra.mxu0 0
    %1690 = vmatprep.subr.bf16.mxu0 0
    %1691 = vmatpush2.bf16.msra.mxu0 0
    %1692 = vmatprep.subr.bf16.mxu0 0
    %1693 = vmatpush2.bf16.msra.mxu0 0
    %1694 = vmatprep.subr.bf16.mxu0 0
    %1695 = vmatpush2.bf16.msra.mxu0 0
    %1696 = vmatprep.subr.bf16.mxu0 0
    %1697 = vmatpush2.bf16.msra.mxu0 0
    %1698 = vmatprep.subr.bf16.mxu0 0
    %1699 = vmatpush2.bf16.msra.mxu0 0
    %1700 = vmatprep.subr.bf16.mxu0 0
    %1701 = vmatpush2.bf16.msra.mxu0 0
    %1702 = vmatprep.subr.bf16.mxu0 0
    %1703 = vmatpush2.bf16.msra.mxu0 0
    %1704 = vmatprep.mubr.bf16.mxu0 0
    %1705 = vmatmul.mubr.bf16.gmra.mxu0 %v235
    %v1706 = vpop.f32.mrf.mxu0
    %v1707 = vadd.f32 0.0, %v1706
    %v1708 = vpop.f32.mrf.mxu0
    %v1709 = vpop.f32.mrf.mxu0
    %v1710 = vpop.f32.mrf.mxu0
    %1711 = vdwg.mxu0
    %v1712 = vadd.f32 %v1659, %v1707
    %v1713 = vxor.u32 %v1712, 2147483648
    %v1714 = vmul.f32 %v1713, 1.442695
    %v1715 = vpow.pop %v1714
    %v1716 = vadd.f32 %v1715, 1.0
    %v1717 = vrcp.pop %v1716
    %v1718 = vmul.f32 1.0, %v1717
    %v1719 = vtanh.pop %v1712
    %v1720 = vmul.f32 %v1718, 0.0
    %1722 = vrot.lane.b32.xlu0 %v1719, 32
    %v1723 = vpop.permute.xlu0 %1722
    %v1725 = vmul.f32 %v1718, %v1723
    %1727 = vrot.lane.b32.xlu0 %v1725, 32
    %v1728 = vpop.permute.xlu0 %1727
    %v1730 = vadd.f32 %v1720, %v1728
    %v1731 = vtanh.pop %v1730
    %1733 = vrot.lane.b32.xlu0 %v1731, 32
    %v1734 = vpop.permute.xlu0 %1733
    %v1736 = vmul.f32 %v1718, %v1734
    %1738 = vrot.lane.b32.xlu0 %v1736, 64
    %v1739 = vpop.permute.xlu0 %1738
    %1741 = vst.msk [vmem:[#allocation2] sm:$0x3] %vm306, %v1739
    %v1742 = vld [vmem:[#allocation3 + $0x78] sm:$0x3]
    %v1743 = vunpack.c.h.b16 %v1655
    %v1744 = vunpack.c.h.b16 %v1656
    %v1745 = vunpack.c.h.b16 %v1657
    %v1746 = vunpack.c.h.b16 %v1658
    %v1747 = vpack.c.b16 %v1744, %v1743
    %v1748 = vpack.c.b16 %v1746, %v1745
    %1751 = vmatprep.subr.bf16.mxu0 0
    %1752 = vmatpush1.bf16.msra.mxu0 0
    %1753 = vmatprep.subr.bf16.mxu0 0
    %1754 = vmatpush1.bf16.msra.mxu0 0
    %1755 = vmatprep.subr.bf16.mxu0 0
    %1756 = vmatpush1.bf16.msra.mxu0 0
    %1757 = vmatprep.subr.bf16.mxu0 0
    %1758 = vmatpush1.bf16.msra.mxu0 0
    %1759 = vmatprep.subr.bf16.mxu0 0
    %1760 = vmatpush1.bf16.msra.mxu0 0
    %1761 = vmatprep.subr.bf16.mxu0 0
    %1762 = vmatpush1.bf16.msra.mxu0 0
    %1763 = vmatprep.subr.bf16.mxu0 0
    %1764 = vmatpush1.bf16.msra.mxu0 %v1748
    %1765 = vmatprep.subr.bf16.mxu0 0
    %1766 = vmatpush1.bf16.msra.mxu0 %v1747
    %1767 = vmatprep.subr.bf16.mxu0 0
    %1768 = vmatpush2.bf16.msra.mxu0 0
    %1769 = vmatprep.subr.bf16.mxu0 0
    %1770 = vmatpush2.bf16.msra.mxu0 0
    %1771 = vmatprep.subr.bf16.mxu0 0
    %1772 = vmatpush2.bf16.msra.mxu0 0
    %1773 = vmatprep.subr.bf16.mxu0 0
    %1774 = vmatpush2.bf16.msra.mxu0 0
    %1775 = vmatprep.subr.bf16.mxu0 0
    %1776 = vmatpush2.bf16.msra.mxu0 0
    %1777 = vmatprep.subr.bf16.mxu0 0
    %1778 = vmatpush2.bf16.msra.mxu0 0
    %1779 = vmatprep.subr.bf16.mxu0 0
    %1780 = vmatpush2.bf16.msra.mxu0 0
    %1781 = vmatprep.subr.bf16.mxu0 0
    %1782 = vmatpush2.bf16.msra.mxu0 0
    %1783 = vmatprep.mubr.bf16.mxu0 0
    %1784 = vmatmul.mubr.bf16.gmra.mxu0 %v235
    %v1785 = vpop.f32.mrf.mxu0
    %v1786 = vadd.f32 0.0, %v1785
    %v1787 = vpop.f32.mrf.mxu0
    %v1788 = vpop.f32.mrf.mxu0
    %v1789 = vpop.f32.mrf.mxu0
    %1790 = vdwg.mxu0
    %v1791 = vadd.f32 %v1742, %v1786
    %v1792 = vxor.u32 %v1791, 2147483648
    %v1793 = vmul.f32 %v1792, 1.442695
    %v1794 = vpow.pop %v1793
    %v1795 = vadd.f32 %v1794, 1.0
    %v1796 = vrcp.pop %v1795
    %v1797 = vmul.f32 1.0, %v1796
    %v1798 = vtanh.pop %v1791
    %v1799 = vmul.f32 %v1797, 0.0
    %1801 = vrot.lane.b32.xlu0 %v1798, 32
    %v1802 = vpop.permute.xlu0 %1801
    %v1804 = vmul.f32 %v1797, %v1802
    %1806 = vrot.lane.b32.xlu0 %v1804, 32
    %v1807 = vpop.permute.xlu0 %1806
    %v1809 = vadd.f32 %v1799, %v1807
    %v1810 = vtanh.pop %v1809
    %1812 = vrot.lane.b32.xlu0 %v1810, 32
    %v1813 = vpop.permute.xlu0 %1812
    %v1815 = vmul.f32 %v1797, %v1813
    %1817 = vrot.lane.b32.xlu0 %v1815, 96
    %v1818 = vpop.permute.xlu0 %1817
    %1820 = vst.msk [vmem:[#allocation2 + $0x38] sm:$0x3] %vm386, %v1818
    %v1821 = vld [vmem:[#allocation3 + $0x10] sm:$0x3]
    %v1822 = vpack.c.bf16 %v1736, %v1736
    %1824 = vrot.lane.b32.xlu0 %v1822, 64
    %v1825 = vpop.permute.xlu0 %1824
    %v1827 = vsel %vm115, %v1825, 0
    %1829 = vmatprep.subr.bf16.mxu0 0
    %1830 = vmatpush1.bf16.msra.mxu0 0
    %1831 = vmatprep.subr.bf16.mxu0 0
    %1832 = vmatpush1.bf16.msra.mxu0 0
    %1833 = vmatprep.subr.bf16.mxu0 0
    %1834 = vmatpush1.bf16.msra.mxu0 0
    %1835 = vmatprep.subr.bf16.mxu0 0
    %1836 = vmatpush1.bf16.msra.mxu0 0
    %1837 = vmatprep.subr.bf16.mxu0 0
    %1838 = vmatpush1.bf16.msra.mxu0 0
    %1839 = vmatprep.subr.bf16.mxu0 0
    %1840 = vmatpush1.bf16.msra.mxu0 0
    %1841 = vmatprep.subr.bf16.mxu0 0
    %1842 = vmatpush1.bf16.msra.mxu0 %v1669
    %1843 = vmatprep.subr.bf16.mxu0 0
    %1844 = vmatpush1.bf16.msra.mxu0 %v1668
    %1845 = vmatprep.subr.bf16.mxu0 0
    %1846 = vmatpush2.bf16.msra.mxu0 0
    %1847 = vmatprep.subr.bf16.mxu0 0
    %1848 = vmatpush2.bf16.msra.mxu0 0
    %1849 = vmatprep.subr.bf16.mxu0 0
    %1850 = vmatpush2.bf16.msra.mxu0 0
    %1851 = vmatprep.subr.bf16.mxu0 0
    %1852 = vmatpush2.bf16.msra.mxu0 0
    %1853 = vmatprep.subr.bf16.mxu0 0
    %1854 = vmatpush2.bf16.msra.mxu0 0
    %1855 = vmatprep.subr.bf16.mxu0 0
    %1856 = vmatpush2.bf16.msra.mxu0 0
    %1857 = vmatprep.subr.bf16.mxu0 0
    %1858 = vmatpush2.bf16.msra.mxu0 0
    %1859 = vmatprep.subr.bf16.mxu0 0
    %1860 = vmatpush2.bf16.msra.mxu0 0
    %1861 = vmatprep.mubr.bf16.mxu0 0
    %1862 = vmatmul.mubr.bf16.gmra.mxu0 %v1827
    %v1863 = vpop.f32.mrf.mxu0
    %v1864 = vadd.f32 0.0, %v1863
    %v1865 = vpop.f32.mrf.mxu0
    %v1866 = vpop.f32.mrf.mxu0
    %v1867 = vpop.f32.mrf.mxu0
    %1868 = vdwg.mxu0
    %v1869 = vadd.f32 %v1821, %v1864
    %v1870 = vxor.u32 %v1869, 2147483648
    %v1871 = vmul.f32 %v1870, 1.442695
    %v1872 = vpow.pop %v1871
    %v1873 = vadd.f32 %v1872, 1.0
    %v1874 = vrcp.pop %v1873
    %v1875 = vmul.f32 1.0, %v1874
    %v1876 = vtanh.pop %v1869
    %v1877 = vmul.f32 %v1875, %v1730
    %1879 = vrot.lane.b32.xlu0 %v1876, 32
    %v1880 = vpop.permute.xlu0 %1879
    %v1882 = vmul.f32 %v1875, %v1880
    %1884 = vrot.lane.b32.xlu0 %v1882, 32
    %v1885 = vpop.permute.xlu0 %1884
    %v1887 = vadd.f32 %v1877, %v1885
    %v1888 = vtanh.pop %v1887
    %1890 = vrot.lane.b32.xlu0 %v1888, 32
    %v1891 = vpop.permute.xlu0 %1890
    %v1893 = vmul.f32 %v1875, %v1891
    %1895 = vrot.lane.b32.xlu0 %v1893, 64
    %v1896 = vpop.permute.xlu0 %1895
    %1898 = vst.msk [vmem:[#allocation2 + $0x8] sm:$0x3] %vm306, %v1896
    %v1899 = vld [vmem:[#allocation3 + $0x68] sm:$0x3]
    %v1900 = vpack.c.bf16 %v1815, %v1815
    %1902 = vrot.lane.b32.xlu0 %v1900, 64
    %v1903 = vpop.permute.xlu0 %1902
    %v1905 = vsel %vm115, %v1903, 0
    %1907 = vmatprep.subr.bf16.mxu0 0
    %1908 = vmatpush1.bf16.msra.mxu0 0
    %1909 = vmatprep.subr.bf16.mxu0 0
    %1910 = vmatpush1.bf16.msra.mxu0 0
    %1911 = vmatprep.subr.bf16.mxu0 0
    %1912 = vmatpush1.bf16.msra.mxu0 0
    %1913 = vmatprep.subr.bf16.mxu0 0
    %1914 = vmatpush1.bf16.msra.mxu0 0
    %1915 = vmatprep.subr.bf16.mxu0 0
    %1916 = vmatpush1.bf16.msra.mxu0 0
    %1917 = vmatprep.subr.bf16.mxu0 0
    %1918 = vmatpush1.bf16.msra.mxu0 0
    %1919 = vmatprep.subr.bf16.mxu0 0
    %1920 = vmatpush1.bf16.msra.mxu0 %v1748
    %1921 = vmatprep.subr.bf16.mxu0 0
    %1922 = vmatpush1.bf16.msra.mxu0 %v1747
    %1923 = vmatprep.subr.bf16.mxu0 0
    %1924 = vmatpush2.bf16.msra.mxu0 0
    %1925 = vmatprep.subr.bf16.mxu0 0
    %1926 = vmatpush2.bf16.msra.mxu0 0
    %1927 = vmatprep.subr.bf16.mxu0 0
    %1928 = vmatpush2.bf16.msra.mxu0 0
    %1929 = vmatprep.subr.bf16.mxu0 0
    %1930 = vmatpush2.bf16.msra.mxu0 0
    %1931 = vmatprep.subr.bf16.mxu0 0
    %1932 = vmatpush2.bf16.msra.mxu0 0
    %1933 = vmatprep.subr.bf16.mxu0 0
    %1934 = vmatpush2.bf16.msra.mxu0 0
    %1935 = vmatprep.subr.bf16.mxu0 0
    %1936 = vmatpush2.bf16.msra.mxu0 0
    %1937 = vmatprep.subr.bf16.mxu0 0
    %1938 = vmatpush2.bf16.msra.mxu0 0
    %1939 = vmatprep.mubr.bf16.mxu0 0
    %1940 = vmatmul.mubr.bf16.gmra.mxu0 %v1905
    %v1941 = vpop.f32.mrf.mxu0
    %v1942 = vadd.f32 0.0, %v1941
    %v1943 = vpop.f32.mrf.mxu0
    %v1944 = vpop.f32.mrf.mxu0
    %v1945 = vpop.f32.mrf.mxu0
    %1946 = vdwg.mxu0
    %v1947 = vadd.f32 %v1899, %v1942
    %v1948 = vxor.u32 %v1947, 2147483648
    %v1949 = vmul.f32 %v1948, 1.442695
    %v1950 = vpow.pop %v1949
    %v1951 = vadd.f32 %v1950, 1.0
    %v1952 = vrcp.pop %v1951
    %v1953 = vmul.f32 1.0, %v1952
    %v1954 = vtanh.pop %v1947
    %v1955 = vmul.f32 %v1953, %v1809
    %1957 = vrot.lane.b32.xlu0 %v1954, 32
    %v1958 = vpop.permute.xlu0 %1957
    %v1960 = vmul.f32 %v1953, %v1958
    %1962 = vrot.lane.b32.xlu0 %v1960, 32
    %v1963 = vpop.permute.xlu0 %1962
    %v1965 = vadd.f32 %v1955, %v1963
    %v1966 = vtanh.pop %v1965
    %1968 = vrot.lane.b32.xlu0 %v1966, 32
    %v1969 = vpop.permute.xlu0 %1968
    %v1971 = vmul.f32 %v1953, %v1969
    %1973 = vrot.lane.b32.xlu0 %v1971, 96
    %v1974 = vpop.permute.xlu0 %1973
    %1976 = vst.msk [vmem:[#allocation2 + $0x30] sm:$0x3] %vm386, %v1974
    %v1977 = vld [vmem:[#allocation3 + $0x20] sm:$0x3]
    %v1978 = vpack.c.bf16 %v1893, %v1893
    %1980 = vrot.lane.b32.xlu0 %v1978, 64
    %v1981 = vpop.permute.xlu0 %1980
    %v1983 = vsel %vm115, %v1981, 0
    %1985 = vmatprep.subr.bf16.mxu0 0
    %1986 = vmatpush1.bf16.msra.mxu0 0
    %1987 = vmatprep.subr.bf16.mxu0 0
    %1988 = vmatpush1.bf16.msra.mxu0 0
    %1989 = vmatprep.subr.bf16.mxu0 0
    %1990 = vmatpush1.bf16.msra.mxu0 0
    %1991 = vmatprep.subr.bf16.mxu0 0
    %1992 = vmatpush1.bf16.msra.mxu0 0
    %1993 = vmatprep.subr.bf16.mxu0 0
    %1994 = vmatpush1.bf16.msra.mxu0 0
    %1995 = vmatprep.subr.bf16.mxu0 0
    %1996 = vmatpush1.bf16.msra.mxu0 0
    %1997 = vmatprep.subr.bf16.mxu0 0
    %1998 = vmatpush1.bf16.msra.mxu0 %v1669
    %1999 = vmatprep.subr.bf16.mxu0 0
    %2000 = vmatpush1.bf16.msra.mxu0 %v1668
    %2001 = vmatprep.subr.bf16.mxu0 0
    %2002 = vmatpush2.bf16.msra.mxu0 0
    %2003 = vmatprep.subr.bf16.mxu0 0
    %2004 = vmatpush2.bf16.msra.mxu0 0
    %2005 = vmatprep.subr.bf16.mxu0 0
    %2006 = vmatpush2.bf16.msra.mxu0 0
    %2007 = vmatprep.subr.bf16.mxu0 0
    %2008 = vmatpush2.bf16.msra.mxu0 0
    %2009 = vmatprep.subr.bf16.mxu0 0
    %2010 = vmatpush2.bf16.msra.mxu0 0
    %2011 = vmatprep.subr.bf16.mxu0 0
    %2012 = vmatpush2.bf16.msra.mxu0 0
    %2013 = vmatprep.subr.bf16.mxu0 0
    %2014 = vmatpush2.bf16.msra.mxu0 0
    %2015 = vmatprep.subr.bf16.mxu0 0
    %2016 = vmatpush2.bf16.msra.mxu0 0
    %2017 = vmatprep.mubr.bf16.mxu0 0
    %2018 = vmatmul.mubr.bf16.gmra.mxu0 %v1983
    %v2019 = vpop.f32.mrf.mxu0
    %v2020 = vadd.f32 0.0, %v2019
    %v2021 = vpop.f32.mrf.mxu0
    %v2022 = vpop.f32.mrf.mxu0
    %v2023 = vpop.f32.mrf.mxu0
    %2024 = vdwg.mxu0
    %v2025 = vadd.f32 %v1977, %v2020
    %v2026 = vxor.u32 %v2025, 2147483648
    %v2027 = vmul.f32 %v2026, 1.442695
    %v2028 = vpow.pop %v2027
    %v2029 = vadd.f32 %v2028, 1.0
    %v2030 = vrcp.pop %v2029
    %v2031 = vmul.f32 1.0, %v2030
    %v2032 = vtanh.pop %v2025
    %v2033 = vmul.f32 %v2031, %v1887
    %2035 = vrot.lane.b32.xlu0 %v2032, 32
    %v2036 = vpop.permute.xlu0 %2035
    %v2038 = vmul.f32 %v2031, %v2036
    %2040 = vrot.lane.b32.xlu0 %v2038, 32
    %v2041 = vpop.permute.xlu0 %2040
    %v2043 = vadd.f32 %v2033, %v2041
    %v2044 = vtanh.pop %v2043
    %2046 = vrot.lane.b32.xlu0 %v2044, 32
    %v2047 = vpop.permute.xlu0 %2046
    %v2049 = vmul.f32 %v2031, %v2047
    %2051 = vrot.lane.b32.xlu0 %v2049, 64
    %v2052 = vpop.permute.xlu0 %2051
    %2054 = vst.msk [vmem:[#allocation2 + $0x10] sm:$0x3] %vm306, %v2052
    %v2055 = vld [vmem:[#allocation3 + $0x58] sm:$0x3]
    %v2056 = vpack.c.bf16 %v1971, %v1971
    %2058 = vrot.lane.b32.xlu0 %v2056, 64
    %v2059 = vpop.permute.xlu0 %2058
    %v2061 = vsel %vm115, %v2059, 0
    %2063 = vmatprep.subr.bf16.mxu0 0
    %2064 = vmatpush1.bf16.msra.mxu0 0
    %2065 = vmatprep.subr.bf16.mxu0 0
    %2066 = vmatpush1.bf16.msra.mxu0 0
    %2067 = vmatprep.subr.bf16.mxu0 0
    %2068 = vmatpush1.bf16.msra.mxu0 0
    %2069 = vmatprep.subr.bf16.mxu0 0
    %2070 = vmatpush1.bf16.msra.mxu0 0
    %2071 = vmatprep.subr.bf16.mxu0 0
    %2072 = vmatpush1.bf16.msra.mxu0 0
    %2073 = vmatprep.subr.bf16.mxu0 0
    %2074 = vmatpush1.bf16.msra.mxu0 0
    %2075 = vmatprep.subr.bf16.mxu0 0
    %2076 = vmatpush1.bf16.msra.mxu0 %v1748
    %2077 = vmatprep.subr.bf16.mxu0 0
    %2078 = vmatpush1.bf16.msra.mxu0 %v1747
    %2079 = vmatprep.subr.bf16.mxu0 0
    %2080 = vmatpush2.bf16.msra.mxu0 0
    %2081 = vmatprep.subr.bf16.mxu0 0
    %2082 = vmatpush2.bf16.msra.mxu0 0
    %2083 = vmatprep.subr.bf16.mxu0 0
    %2084 = vmatpush2.bf16.msra.mxu0 0
    %2085 = vmatprep.subr.bf16.mxu0 0
    %2086 = vmatpush2.bf16.msra.mxu0 0
    %2087 = vmatprep.subr.bf16.mxu0 0
    %2088 = vmatpush2.bf16.msra.mxu0 0
    %2089 = vmatprep.subr.bf16.mxu0 0
    %2090 = vmatpush2.bf16.msra.mxu0 0
    %2091 = vmatprep.subr.bf16.mxu0 0
    %2092 = vmatpush2.bf16.msra.mxu0 0
    %2093 = vmatprep.subr.bf16.mxu0 0
    %2094 = vmatpush2.bf16.msra.mxu0 0
    %2095 = vmatprep.mubr.bf16.mxu0 0
    %2096 = vmatmul.mubr.bf16.gmra.mxu0 %v2061
    %v2097 = vpop.f32.mrf.mxu0
    %v2098 = vadd.f32 0.0, %v2097
    %v2099 = vpop.f32.mrf.mxu0
    %v2100 = vpop.f32.mrf.mxu0
    %v2101 = vpop.f32.mrf.mxu0
    %2102 = vdwg.mxu0
    %v2103 = vadd.f32 %v2055, %v2098
    %v2104 = vxor.u32 %v2103, 2147483648
    %v2105 = vmul.f32 %v2104, 1.442695
    %v2106 = vpow.pop %v2105
    %v2107 = vadd.f32 %v2106, 1.0
    %v2108 = vrcp.pop %v2107
    %v2109 = vmul.f32 1.0, %v2108
    %v2110 = vtanh.pop %v2103
    %v2111 = vmul.f32 %v2109, %v1965
    %2113 = vrot.lane.b32.xlu0 %v2110, 32
    %v2114 = vpop.permute.xlu0 %2113
    %v2116 = vmul.f32 %v2109, %v2114
    %2118 = vrot.lane.b32.xlu0 %v2116, 32
    %v2119 = vpop.permute.xlu0 %2118
    %v2121 = vadd.f32 %v2111, %v2119
    %v2122 = vtanh.pop %v2121
    %2124 = vrot.lane.b32.xlu0 %v2122, 32
    %v2125 = vpop.permute.xlu0 %2124
    %v2127 = vmul.f32 %v2109, %v2125
    %2129 = vrot.lane.b32.xlu0 %v2127, 96
    %v2130 = vpop.permute.xlu0 %2129
    %2132 = vst.msk [vmem:[#allocation2 + $0x28] sm:$0x3] %vm386, %v2130
    %v2133 = vld [vmem:[#allocation3 + $0x30] sm:$0x3]
    %v2134 = vpack.c.bf16 %v2049, %v2049
    %2136 = vrot.lane.b32.xlu0 %v2134, 64
    %v2137 = vpop.permute.xlu0 %2136
    %v2139 = vsel %vm115, %v2137, 0
    %2141 = vmatprep.subr.bf16.mxu0 0
    %2142 = vmatpush1.bf16.msra.mxu0 0
    %2143 = vmatprep.subr.bf16.mxu0 0
    %2144 = vmatpush1.bf16.msra.mxu0 0
    %2145 = vmatprep.subr.bf16.mxu0 0
    %2146 = vmatpush1.bf16.msra.mxu0 0
    %2147 = vmatprep.subr.bf16.mxu0 0
    %2148 = vmatpush1.bf16.msra.mxu0 0
    %2149 = vmatprep.subr.bf16.mxu0 0
    %2150 = vmatpush1.bf16.msra.mxu0 0
    %2151 = vmatprep.subr.bf16.mxu0 0
    %2152 = vmatpush1.bf16.msra.mxu0 0
    %2153 = vmatprep.subr.bf16.mxu0 0
    %2154 = vmatpush1.bf16.msra.mxu0 %v1669
    %2155 = vmatprep.subr.bf16.mxu0 0
    %2156 = vmatpush1.bf16.msra.mxu0 %v1668
    %2157 = vmatprep.subr.bf16.mxu0 0
    %2158 = vmatpush2.bf16.msra.mxu0 0
    %2159 = vmatprep.subr.bf16.mxu0 0
    %2160 = vmatpush2.bf16.msra.mxu0 0
    %2161 = vmatprep.subr.bf16.mxu0 0
    %2162 = vmatpush2.bf16.msra.mxu0 0
    %2163 = vmatprep.subr.bf16.mxu0 0
    %2164 = vmatpush2.bf16.msra.mxu0 0
    %2165 = vmatprep.subr.bf16.mxu0 0
    %2166 = vmatpush2.bf16.msra.mxu0 0
    %2167 = vmatprep.subr.bf16.mxu0 0
    %2168 = vmatpush2.bf16.msra.mxu0 0
    %2169 = vmatprep.subr.bf16.mxu0 0
    %2170 = vmatpush2.bf16.msra.mxu0 0
    %2171 = vmatprep.subr.bf16.mxu0 0
    %2172 = vmatpush2.bf16.msra.mxu0 0
    %2173 = vmatprep.mubr.bf16.mxu0 0
    %2174 = vmatmul.mubr.bf16.gmra.mxu0 %v2139
    %v2175 = vpop.f32.mrf.mxu0
    %v2176 = vadd.f32 0.0, %v2175
    %v2177 = vpop.f32.mrf.mxu0
    %v2178 = vpop.f32.mrf.mxu0
    %v2179 = vpop.f32.mrf.mxu0
    %2180 = vdwg.mxu0
    %v2181 = vadd.f32 %v2133, %v2176
    %v2182 = vxor.u32 %v2181, 2147483648
    %v2183 = vmul.f32 %v2182, 1.442695
    %v2184 = vpow.pop %v2183
    %v2185 = vadd.f32 %v2184, 1.0
    %v2186 = vrcp.pop %v2185
    %v2187 = vmul.f32 1.0, %v2186
    %v2188 = vtanh.pop %v2181
    %v2189 = vmul.f32 %v2187, %v2043
    %2191 = vrot.lane.b32.xlu0 %v2188, 32
    %v2192 = vpop.permute.xlu0 %2191
    %v2194 = vmul.f32 %v2187, %v2192
    %2196 = vrot.lane.b32.xlu0 %v2194, 32
    %v2197 = vpop.permute.xlu0 %2196
    %v2199 = vadd.f32 %v2189, %v2197
    %v2200 = vtanh.pop %v2199
    %2202 = vrot.lane.b32.xlu0 %v2200, 32
    %v2203 = vpop.permute.xlu0 %2202
    %v2205 = vmul.f32 %v2187, %v2203
    %2207 = vrot.lane.b32.xlu0 %v2205, 64
    %v2208 = vpop.permute.xlu0 %2207
    %2210 = vst.msk [vmem:[#allocation2 + $0x18] sm:$0x3] %vm306, %v2208
    %v2211 = vld [vmem:[#allocation3 + $0x48] sm:$0x3]
    %v2212 = vpack.c.bf16 %v2127, %v2127
    %2214 = vrot.lane.b32.xlu0 %v2212, 64
    %v2215 = vpop.permute.xlu0 %2214
    %v2217 = vsel %vm115, %v2215, 0
    %2219 = vmatprep.subr.bf16.mxu0 0
    %2220 = vmatpush1.bf16.msra.mxu0 0
    %2221 = vmatprep.subr.bf16.mxu0 0
    %2222 = vmatpush1.bf16.msra.mxu0 0
    %2223 = vmatprep.subr.bf16.mxu0 0
    %2224 = vmatpush1.bf16.msra.mxu0 0
    %2225 = vmatprep.subr.bf16.mxu0 0
    %2226 = vmatpush1.bf16.msra.mxu0 0
    %2227 = vmatprep.subr.bf16.mxu0 0
    %2228 = vmatpush1.bf16.msra.mxu0 0
    %2229 = vmatprep.subr.bf16.mxu0 0
    %2230 = vmatpush1.bf16.msra.mxu0 0
    %2231 = vmatprep.subr.bf16.mxu0 0
    %2232 = vmatpush1.bf16.msra.mxu0 %v1748
    %2233 = vmatprep.subr.bf16.mxu0 0
    %2234 = vmatpush1.bf16.msra.mxu0 %v1747
    %2235 = vmatprep.subr.bf16.mxu0 0
    %2236 = vmatpush2.bf16.msra.mxu0 0
    %2237 = vmatprep.subr.bf16.mxu0 0
    %2238 = vmatpush2.bf16.msra.mxu0 0
    %2239 = vmatprep.subr.bf16.mxu0 0
    %2240 = vmatpush2.bf16.msra.mxu0 0
    %2241 = vmatprep.subr.bf16.mxu0 0
    %2242 = vmatpush2.bf16.msra.mxu0 0
    %2243 = vmatprep.subr.bf16.mxu0 0
    %2244 = vmatpush2.bf16.msra.mxu0 0
    %2245 = vmatprep.subr.bf16.mxu0 0
    %2246 = vmatpush2.bf16.msra.mxu0 0
    %2247 = vmatprep.subr.bf16.mxu0 0
    %2248 = vmatpush2.bf16.msra.mxu0 0
    %2249 = vmatprep.subr.bf16.mxu0 0
    %2250 = vmatpush2.bf16.msra.mxu0 0
    %2251 = vmatprep.mubr.bf16.mxu0 0
    %2252 = vmatmul.mubr.bf16.gmra.mxu0 %v2217
    %v2253 = vpop.f32.mrf.mxu0
    %v2254 = vadd.f32 0.0, %v2253
    %v2255 = vpop.f32.mrf.mxu0
    %v2256 = vpop.f32.mrf.mxu0
    %v2257 = vpop.f32.mrf.mxu0
    %2258 = vdwg.mxu0
    %v2259 = vadd.f32 %v2211, %v2254
    %v2260 = vxor.u32 %v2259, 2147483648
    %v2261 = vmul.f32 %v2260, 1.442695
    %v2262 = vpow.pop %v2261
    %v2263 = vadd.f32 %v2262, 1.0
    %v2264 = vrcp.pop %v2263
    %v2265 = vmul.f32 1.0, %v2264
    %v2266 = vtanh.pop %v2259
    %v2267 = vmul.f32 %v2265, %v2121
    %2269 = vrot.lane.b32.xlu0 %v2266, 32
    %v2270 = vpop.permute.xlu0 %2269
    %v2272 = vmul.f32 %v2265, %v2270
    %2274 = vrot.lane.b32.xlu0 %v2272, 32
    %v2275 = vpop.permute.xlu0 %2274
    %v2277 = vadd.f32 %v2267, %v2275
    %v2278 = vtanh.pop %v2277
    %2280 = vrot.lane.b32.xlu0 %v2278, 32
    %v2281 = vpop.permute.xlu0 %2280
    %v2283 = vmul.f32 %v2265, %v2281
    %2285 = vrot.lane.b32.xlu0 %v2283, 96
    %v2286 = vpop.permute.xlu0 %2285
    %2288 = vst.msk [vmem:[#allocation2 + $0x20] sm:$0x3] %vm386, %v2286
    %v2289 = vld [vmem:[#allocation3 + $0x40] sm:$0x3]
    %v2290 = vpack.c.bf16 %v2205, %v2205
    %2292 = vrot.lane.b32.xlu0 %v2290, 64
    %v2293 = vpop.permute.xlu0 %2292
    %v2295 = vsel %vm115, %v2293, 0
    %2297 = vmatprep.subr.bf16.mxu0 0
    %2298 = vmatpush1.bf16.msra.mxu0 0
    %2299 = vmatprep.subr.bf16.mxu0 0
    %2300 = vmatpush1.bf16.msra.mxu0 0
    %2301 = vmatprep.subr.bf16.mxu0 0
    %2302 = vmatpush1.bf16.msra.mxu0 0
    %2303 = vmatprep.subr.bf16.mxu0 0
    %2304 = vmatpush1.bf16.msra.mxu0 0
    %2305 = vmatprep.subr.bf16.mxu0 0
    %2306 = vmatpush1.bf16.msra.mxu0 0
    %2307 = vmatprep.subr.bf16.mxu0 0
    %2308 = vmatpush1.bf16.msra.mxu0 0
    %2309 = vmatprep.subr.bf16.mxu0 0
    %2310 = vmatpush1.bf16.msra.mxu0 %v1669
    %2311 = vmatprep.subr.bf16.mxu0 0
    %2312 = vmatpush1.bf16.msra.mxu0 %v1668
    %2313 = vmatprep.subr.bf16.mxu0 0
    %2314 = vmatpush2.bf16.msra.mxu0 0
    %2315 = vmatprep.subr.bf16.mxu0 0
    %2316 = vmatpush2.bf16.msra.mxu0 0
    %2317 = vmatprep.subr.bf16.mxu0 0
    %2318 = vmatpush2.bf16.msra.mxu0 0
    %2319 = vmatprep.subr.bf16.mxu0 0
    %2320 = vmatpush2.bf16.msra.mxu0 0
    %2321 = vmatprep.subr.bf16.mxu0 0
    %2322 = vmatpush2.bf16.msra.mxu0 0
    %2323 = vmatprep.subr.bf16.mxu0 0
    %2324 = vmatpush2.bf16.msra.mxu0 0
    %2325 = vmatprep.subr.bf16.mxu0 0
    %2326 = vmatpush2.bf16.msra.mxu0 0
    %2327 = vmatprep.subr.bf16.mxu0 0
    %2328 = vmatpush2.bf16.msra.mxu0 0
    %2329 = vmatprep.mubr.bf16.mxu0 0
    %2330 = vmatmul.mubr.bf16.gmra.mxu0 %v2295
    %v2331 = vpop.f32.mrf.mxu0
    %v2332 = vadd.f32 0.0, %v2331
    %v2333 = vpop.f32.mrf.mxu0
    %v2334 = vpop.f32.mrf.mxu0
    %v2335 = vpop.f32.mrf.mxu0
    %2336 = vdwg.mxu0
    %v2337 = vadd.f32 %v2289, %v2332
    %v2338 = vxor.u32 %v2337, 2147483648
    %v2339 = vmul.f32 %v2338, 1.442695
    %v2340 = vpow.pop %v2339
    %v2341 = vadd.f32 %v2340, 1.0
    %v2342 = vrcp.pop %v2341
    %v2343 = vmul.f32 1.0, %v2342
    %v2344 = vtanh.pop %v2337
    %v2345 = vmul.f32 %v2343, %v2199
    %2347 = vrot.lane.b32.xlu0 %v2344, 32
    %v2348 = vpop.permute.xlu0 %2347
    %v2350 = vmul.f32 %v2343, %v2348
    %2352 = vrot.lane.b32.xlu0 %v2350, 32
    %v2353 = vpop.permute.xlu0 %2352
    %v2355 = vadd.f32 %v2345, %v2353
    %v2356 = vtanh.pop %v2355
    %2358 = vrot.lane.b32.xlu0 %v2356, 32
    %v2359 = vpop.permute.xlu0 %2358
    %v2361 = vmul.f32 %v2343, %v2359
    %2363 = vrot.lane.b32.xlu0 %v2361, 64
    %v2364 = vpop.permute.xlu0 %2363
    %2366 = vst.msk [vmem:[#allocation2 + $0x20] sm:$0x3] %vm306, %v2364
    %v2367 = vld [vmem:[#allocation3 + $0x38] sm:$0x3]
    %v2368 = vpack.c.bf16 %v2283, %v2283
    %2370 = vrot.lane.b32.xlu0 %v2368, 64
    %v2371 = vpop.permute.xlu0 %2370
    %v2373 = vsel %vm115, %v2371, 0
    %2375 = vmatprep.subr.bf16.mxu0 0
    %2376 = vmatpush1.bf16.msra.mxu0 0
    %2377 = vmatprep.subr.bf16.mxu0 0
    %2378 = vmatpush1.bf16.msra.mxu0 0
    %2379 = vmatprep.subr.bf16.mxu0 0
    %2380 = vmatpush1.bf16.msra.mxu0 0
    %2381 = vmatprep.subr.bf16.mxu0 0
    %2382 = vmatpush1.bf16.msra.mxu0 0
    %2383 = vmatprep.subr.bf16.mxu0 0
    %2384 = vmatpush1.bf16.msra.mxu0 0
    %2385 = vmatprep.subr.bf16.mxu0 0
    %2386 = vmatpush1.bf16.msra.mxu0 0
    %2387 = vmatprep.subr.bf16.mxu0 0
    %2388 = vmatpush1.bf16.msra.mxu0 %v1748
    %2389 = vmatprep.subr.bf16.mxu0 0
    %2390 = vmatpush1.bf16.msra.mxu0 %v1747
    %2391 = vmatprep.subr.bf16.mxu0 0
    %2392 = vmatpush2.bf16.msra.mxu0 0
    %2393 = vmatprep.subr.bf16.mxu0 0
    %2394 = vmatpush2.bf16.msra.mxu0 0
    %2395 = vmatprep.subr.bf16.mxu0 0
    %2396 = vmatpush2.bf16.msra.mxu0 0
    %2397 = vmatprep.subr.bf16.mxu0 0
    %2398 = vmatpush2.bf16.msra.mxu0 0
    %2399 = vmatprep.subr.bf16.mxu0 0
    %2400 = vmatpush2.bf16.msra.mxu0 0
    %2401 = vmatprep.subr.bf16.mxu0 0
    %2402 = vmatpush2.bf16.msra.mxu0 0
    %2403 = vmatprep.subr.bf16.mxu0 0
    %2404 = vmatpush2.bf16.msra.mxu0 0
    %2405 = vmatprep.subr.bf16.mxu0 0
    %2406 = vmatpush2.bf16.msra.mxu0 0
    %2407 = vmatprep.mubr.bf16.mxu0 0
    %2408 = vmatmul.mubr.bf16.gmra.mxu0 %v2373
    %v2409 = vpop.f32.mrf.mxu0
    %v2410 = vadd.f32 0.0, %v2409
    %v2411 = vpop.f32.mrf.mxu0
    %v2412 = vpop.f32.mrf.mxu0
    %v2413 = vpop.f32.mrf.mxu0
    %2414 = vdwg.mxu0
    %v2415 = vadd.f32 %v2367, %v2410
    %v2416 = vxor.u32 %v2415, 2147483648
    %v2417 = vmul.f32 %v2416, 1.442695
    %v2418 = vpow.pop %v2417
    %v2419 = vadd.f32 %v2418, 1.0
    %v2420 = vrcp.pop %v2419
    %v2421 = vmul.f32 1.0, %v2420
    %v2422 = vtanh.pop %v2415
    %v2423 = vmul.f32 %v2421, %v2277
    %2425 = vrot.lane.b32.xlu0 %v2422, 32
    %v2426 = vpop.permute.xlu0 %2425
    %v2428 = vmul.f32 %v2421, %v2426
    %2430 = vrot.lane.b32.xlu0 %v2428, 32
    %v2431 = vpop.permute.xlu0 %2430
    %v2433 = vadd.f32 %v2423, %v2431
    %v2434 = vtanh.pop %v2433
    %2436 = vrot.lane.b32.xlu0 %v2434, 32
    %v2437 = vpop.permute.xlu0 %2436
    %v2439 = vmul.f32 %v2421, %v2437
    %2441 = vrot.lane.b32.xlu0 %v2439, 96
    %v2442 = vpop.permute.xlu0 %2441
    %2444 = vst.msk [vmem:[#allocation2 + $0x18] sm:$0x3] %vm386, %v2442
    %v2445 = vld [vmem:[#allocation3 + $0x50] sm:$0x3]
    %v2446 = vpack.c.bf16 %v2361, %v2361
    %2448 = vrot.lane.b32.xlu0 %v2446, 64
    %v2449 = vpop.permute.xlu0 %2448
    %v2451 = vsel %vm115, %v2449, 0
    %2453 = vmatprep.subr.bf16.mxu0 0
    %2454 = vmatpush1.bf16.msra.mxu0 0
    %2455 = vmatprep.subr.bf16.mxu0 0
    %2456 = vmatpush1.bf16.msra.mxu0 0
    %2457 = vmatprep.subr.bf16.mxu0 0
    %2458 = vmatpush1.bf16.msra.mxu0 0
    %2459 = vmatprep.subr.bf16.mxu0 0
    %2460 = vmatpush1.bf16.msra.mxu0 0
    %2461 = vmatprep.subr.bf16.mxu0 0
    %2462 = vmatpush1.bf16.msra.mxu0 0
    %2463 = vmatprep.subr.bf16.mxu0 0
    %2464 = vmatpush1.bf16.msra.mxu0 0
    %2465 = vmatprep.subr.bf16.mxu0 0
    %2466 = vmatpush1.bf16.msra.mxu0 %v1669
    %2467 = vmatprep.subr.bf16.mxu0 0
    %2468 = vmatpush1.bf16.msra.mxu0 %v1668
    %2469 = vmatprep.subr.bf16.mxu0 0
    %2470 = vmatpush2.bf16.msra.mxu0 0
    %2471 = vmatprep.subr.bf16.mxu0 0
    %2472 = vmatpush2.bf16.msra.mxu0 0
    %2473 = vmatprep.subr.bf16.mxu0 0
    %2474 = vmatpush2.bf16.msra.mxu0 0
    %2475 = vmatprep.subr.bf16.mxu0 0
    %2476 = vmatpush2.bf16.msra.mxu0 0
    %2477 = vmatprep.subr.bf16.mxu0 0
    %2478 = vmatpush2.bf16.msra.mxu0 0
    %2479 = vmatprep.subr.bf16.mxu0 0
    %2480 = vmatpush2.bf16.msra.mxu0 0
    %2481 = vmatprep.subr.bf16.mxu0 0
    %2482 = vmatpush2.bf16.msra.mxu0 0
    %2483 = vmatprep.subr.bf16.mxu0 0
    %2484 = vmatpush2.bf16.msra.mxu0 0
    %2485 = vmatprep.mubr.bf16.mxu0 0
    %2486 = vmatmul.mubr.bf16.gmra.mxu0 %v2451
    %v2487 = vpop.f32.mrf.mxu0
    %v2488 = vadd.f32 0.0, %v2487
    %v2489 = vpop.f32.mrf.mxu0
    %v2490 = vpop.f32.mrf.mxu0
    %v2491 = vpop.f32.mrf.mxu0
    %2492 = vdwg.mxu0
    %v2493 = vadd.f32 %v2445, %v2488
    %v2494 = vxor.u32 %v2493, 2147483648
    %v2495 = vmul.f32 %v2494, 1.442695
    %v2496 = vpow.pop %v2495
    %v2497 = vadd.f32 %v2496, 1.0
    %v2498 = vrcp.pop %v2497
    %v2499 = vmul.f32 1.0, %v2498
    %v2500 = vtanh.pop %v2493
    %v2501 = vmul.f32 %v2499, %v2355
    %2503 = vrot.lane.b32.xlu0 %v2500, 32
    %v2504 = vpop.permute.xlu0 %2503
    %v2506 = vmul.f32 %v2499, %v2504
    %2508 = vrot.lane.b32.xlu0 %v2506, 32
    %v2509 = vpop.permute.xlu0 %2508
    %v2511 = vadd.f32 %v2501, %v2509
    %v2512 = vtanh.pop %v2511
    %2514 = vrot.lane.b32.xlu0 %v2512, 32
    %v2515 = vpop.permute.xlu0 %2514
    %v2517 = vmul.f32 %v2499, %v2515
    %2519 = vrot.lane.b32.xlu0 %v2517, 64
    %v2520 = vpop.permute.xlu0 %2519
    %2522 = vst.msk [vmem:[#allocation2 + $0x28] sm:$0x3] %vm306, %v2520
    %v2523 = vld [vmem:[#allocation3 + $0x28] sm:$0x3]
    %v2524 = vpack.c.bf16 %v2439, %v2439
    %2526 = vrot.lane.b32.xlu0 %v2524, 64
    %v2527 = vpop.permute.xlu0 %2526
    %v2529 = vsel %vm115, %v2527, 0
    %2531 = vmatprep.subr.bf16.mxu0 0
    %2532 = vmatpush1.bf16.msra.mxu0 0
    %2533 = vmatprep.subr.bf16.mxu0 0
    %2534 = vmatpush1.bf16.msra.mxu0 0
    %2535 = vmatprep.subr.bf16.mxu0 0
    %2536 = vmatpush1.bf16.msra.mxu0 0
    %2537 = vmatprep.subr.bf16.mxu0 0
    %2538 = vmatpush1.bf16.msra.mxu0 0
    %2539 = vmatprep.subr.bf16.mxu0 0
    %2540 = vmatpush1.bf16.msra.mxu0 0
    %2541 = vmatprep.subr.bf16.mxu0 0
    %2542 = vmatpush1.bf16.msra.mxu0 0
    %2543 = vmatprep.subr.bf16.mxu0 0
    %2544 = vmatpush1.bf16.msra.mxu0 %v1748
    %2545 = vmatprep.subr.bf16.mxu0 0
    %2546 = vmatpush1.bf16.msra.mxu0 %v1747
    %2547 = vmatprep.subr.bf16.mxu0 0
    %2548 = vmatpush2.bf16.msra.mxu0 0
    %2549 = vmatprep.subr.bf16.mxu0 0
    %2550 = vmatpush2.bf16.msra.mxu0 0
    %2551 = vmatprep.subr.bf16.mxu0 0
    %2552 = vmatpush2.bf16.msra.mxu0 0
    %2553 = vmatprep.subr.bf16.mxu0 0
    %2554 = vmatpush2.bf16.msra.mxu0 0
    %2555 = vmatprep.subr.bf16.mxu0 0
    %2556 = vmatpush2.bf16.msra.mxu0 0
    %2557 = vmatprep.subr.bf16.mxu0 0
    %2558 = vmatpush2.bf16.msra.mxu0 0
    %2559 = vmatprep.subr.bf16.mxu0 0
    %2560 = vmatpush2.bf16.msra.mxu0 0
    %2561 = vmatprep.subr.bf16.mxu0 0
    %2562 = vmatpush2.bf16.msra.mxu0 0
    %2563 = vmatprep.mubr.bf16.mxu0 0
    %2564 = vmatmul.mubr.bf16.gmra.mxu0 %v2529
    %v2565 = vpop.f32.mrf.mxu0
    %v2566 = vadd.f32 0.0, %v2565
    %v2567 = vpop.f32.mrf.mxu0
    %v2568 = vpop.f32.mrf.mxu0
    %v2569 = vpop.f32.mrf.mxu0
    %2570 = vdwg.mxu0
    %v2571 = vadd.f32 %v2523, %v2566
    %v2572 = vxor.u32 %v2571, 2147483648
    %v2573 = vmul.f32 %v2572, 1.442695
    %v2574 = vpow.pop %v2573
    %v2575 = vadd.f32 %v2574, 1.0
    %v2576 = vrcp.pop %v2575
    %v2577 = vmul.f32 1.0, %v2576
    %v2578 = vtanh.pop %v2571
    %v2579 = vmul.f32 %v2577, %v2433
    %2581 = vrot.lane.b32.xlu0 %v2578, 32
    %v2582 = vpop.permute.xlu0 %2581
    %v2584 = vmul.f32 %v2577, %v2582
    %2586 = vrot.lane.b32.xlu0 %v2584, 32
    %v2587 = vpop.permute.xlu0 %2586
    %v2589 = vadd.f32 %v2579, %v2587
    %v2590 = vtanh.pop %v2589
    %2592 = vrot.lane.b32.xlu0 %v2590, 32
    %v2593 = vpop.permute.xlu0 %2592
    %v2595 = vmul.f32 %v2577, %v2593
    %2597 = vrot.lane.b32.xlu0 %v2595, 96
    %v2598 = vpop.permute.xlu0 %2597
    %2600 = vst.msk [vmem:[#allocation2 + $0x10] sm:$0x3] %vm386, %v2598
    %v2601 = vld [vmem:[#allocation3 + $0x60] sm:$0x3]
    %v2602 = vpack.c.bf16 %v2517, %v2517
    %2604 = vrot.lane.b32.xlu0 %v2602, 64
    %v2605 = vpop.permute.xlu0 %2604
    %v2607 = vsel %vm115, %v2605, 0
    %2609 = vmatprep.subr.bf16.mxu0 0
    %2610 = vmatpush1.bf16.msra.mxu0 0
    %2611 = vmatprep.subr.bf16.mxu0 0
    %2612 = vmatpush1.bf16.msra.mxu0 0
    %2613 = vmatprep.subr.bf16.mxu0 0
    %2614 = vmatpush1.bf16.msra.mxu0 0
    %2615 = vmatprep.subr.bf16.mxu0 0
    %2616 = vmatpush1.bf16.msra.mxu0 0
    %2617 = vmatprep.subr.bf16.mxu0 0
    %2618 = vmatpush1.bf16.msra.mxu0 0
    %2619 = vmatprep.subr.bf16.mxu0 0
    %2620 = vmatpush1.bf16.msra.mxu0 0
    %2621 = vmatprep.subr.bf16.mxu0 0
    %2622 = vmatpush1.bf16.msra.mxu0 %v1669
    %2623 = vmatprep.subr.bf16.mxu0 0
    %2624 = vmatpush1.bf16.msra.mxu0 %v1668
    %2625 = vmatprep.subr.bf16.mxu0 0
    %2626 = vmatpush2.bf16.msra.mxu0 0
    %2627 = vmatprep.subr.bf16.mxu0 0
    %2628 = vmatpush2.bf16.msra.mxu0 0
    %2629 = vmatprep.subr.bf16.mxu0 0
    %2630 = vmatpush2.bf16.msra.mxu0 0
    %2631 = vmatprep.subr.bf16.mxu0 0
    %2632 = vmatpush2.bf16.msra.mxu0 0
    %2633 = vmatprep.subr.bf16.mxu0 0
    %2634 = vmatpush2.bf16.msra.mxu0 0
    %2635 = vmatprep.subr.bf16.mxu0 0
    %2636 = vmatpush2.bf16.msra.mxu0 0
    %2637 = vmatprep.subr.bf16.mxu0 0
    %2638 = vmatpush2.bf16.msra.mxu0 0
    %2639 = vmatprep.subr.bf16.mxu0 0
    %2640 = vmatpush2.bf16.msra.mxu0 0
    %2641 = vmatprep.mubr.bf16.mxu0 0
    %2642 = vmatmul.mubr.bf16.gmra.mxu0 %v2607
    %v2643 = vpop.f32.mrf.mxu0
    %v2644 = vadd.f32 0.0, %v2643
    %v2645 = vpop.f32.mrf.mxu0
    %v2646 = vpop.f32.mrf.mxu0
    %v2647 = vpop.f32.mrf.mxu0
    %2648 = vdwg.mxu0
    %v2649 = vadd.f32 %v2601, %v2644
    %v2650 = vxor.u32 %v2649, 2147483648
    %v2651 = vmul.f32 %v2650, 1.442695
    %v2652 = vpow.pop %v2651
    %v2653 = vadd.f32 %v2652, 1.0
    %v2654 = vrcp.pop %v2653
    %v2655 = vmul.f32 1.0, %v2654
    %v2656 = vtanh.pop %v2649
    %v2657 = vmul.f32 %v2655, %v2511
    %2659 = vrot.lane.b32.xlu0 %v2656, 32
    %v2660 = vpop.permute.xlu0 %2659
    %v2662 = vmul.f32 %v2655, %v2660
    %2664 = vrot.lane.b32.xlu0 %v2662, 32
    %v2665 = vpop.permute.xlu0 %2664
    %v2667 = vadd.f32 %v2657, %v2665
    %v2668 = vtanh.pop %v2667
    %2670 = vrot.lane.b32.xlu0 %v2668, 32
    %v2671 = vpop.permute.xlu0 %2670
    %v2673 = vmul.f32 %v2655, %v2671
    %2675 = vrot.lane.b32.xlu0 %v2673, 64
    %v2676 = vpop.permute.xlu0 %2675
    %2678 = vst.msk [vmem:[#allocation2 + $0x30] sm:$0x3] %vm306, %v2676
    %v2679 = vld [vmem:[#allocation3 + $0x18] sm:$0x3]
    %v2680 = vpack.c.bf16 %v2595, %v2595
    %2682 = vrot.lane.b32.xlu0 %v2680, 64
    %v2683 = vpop.permute.xlu0 %2682
    %v2685 = vsel %vm115, %v2683, 0
    %2687 = vmatprep.subr.bf16.mxu0 0
    %2688 = vmatpush1.bf16.msra.mxu0 0
    %2689 = vmatprep.subr.bf16.mxu0 0
    %2690 = vmatpush1.bf16.msra.mxu0 0
    %2691 = vmatprep.subr.bf16.mxu0 0
    %2692 = vmatpush1.bf16.msra.mxu0 0
    %2693 = vmatprep.subr.bf16.mxu0 0
    %2694 = vmatpush1.bf16.msra.mxu0 0
    %2695 = vmatprep.subr.bf16.mxu0 0
    %2696 = vmatpush1.bf16.msra.mxu0 0
    %2697 = vmatprep.subr.bf16.mxu0 0
    %2698 = vmatpush1.bf16.msra.mxu0 0
    %2699 = vmatprep.subr.bf16.mxu0 0
    %2700 = vmatpush1.bf16.msra.mxu0 %v1748
    %2701 = vmatprep.subr.bf16.mxu0 0
    %2702 = vmatpush1.bf16.msra.mxu0 %v1747
    %2703 = vmatprep.subr.bf16.mxu0 0
    %2704 = vmatpush2.bf16.msra.mxu0 0
    %2705 = vmatprep.subr.bf16.mxu0 0
    %2706 = vmatpush2.bf16.msra.mxu0 0
    %2707 = vmatprep.subr.bf16.mxu0 0
    %2708 = vmatpush2.bf16.msra.mxu0 0
    %2709 = vmatprep.subr.bf16.mxu0 0
    %2710 = vmatpush2.bf16.msra.mxu0 0
    %2711 = vmatprep.subr.bf16.mxu0 0
    %2712 = vmatpush2.bf16.msra.mxu0 0
    %2713 = vmatprep.subr.bf16.mxu0 0
    %2714 = vmatpush2.bf16.msra.mxu0 0
    %2715 = vmatprep.subr.bf16.mxu0 0
    %2716 = vmatpush2.bf16.msra.mxu0 0
    %2717 = vmatprep.subr.bf16.mxu0 0
    %2718 = vmatpush2.bf16.msra.mxu0 0
    %2719 = vmatprep.mubr.bf16.mxu0 0
    %2720 = vmatmul.mubr.bf16.gmra.mxu0 %v2685
    %v2721 = vpop.f32.mrf.mxu0
    %v2722 = vadd.f32 0.0, %v2721
    %v2723 = vpop.f32.mrf.mxu0
    %v2724 = vpop.f32.mrf.mxu0
    %v2725 = vpop.f32.mrf.mxu0
    %2726 = vdwg.mxu0
    %v2727 = vadd.f32 %v2679, %v2722
    %v2728 = vxor.u32 %v2727, 2147483648
    %v2729 = vmul.f32 %v2728, 1.442695
    %v2730 = vpow.pop %v2729
    %v2731 = vadd.f32 %v2730, 1.0
    %v2732 = vrcp.pop %v2731
    %v2733 = vmul.f32 1.0, %v2732
    %v2734 = vtanh.pop %v2727
    %v2735 = vmul.f32 %v2733, %v2589
    %2737 = vrot.lane.b32.xlu0 %v2734, 32
    %v2738 = vpop.permute.xlu0 %2737
    %v2740 = vmul.f32 %v2733, %v2738
    %2742 = vrot.lane.b32.xlu0 %v2740, 32
    %v2743 = vpop.permute.xlu0 %2742
    %v2745 = vadd.f32 %v2735, %v2743
    %v2746 = vtanh.pop %v2745
    %2748 = vrot.lane.b32.xlu0 %v2746, 32
    %v2749 = vpop.permute.xlu0 %2748
    %v2751 = vmul.f32 %v2733, %v2749
    %2753 = vrot.lane.b32.xlu0 %v2751, 96
    %v2754 = vpop.permute.xlu0 %2753
    %2756 = vst.msk [vmem:[#allocation2 + $0x8] sm:$0x3] %vm386, %v2754
    %v2757 = vld [vmem:[#allocation3 + $0x70] sm:$0x3]
    %v2758 = vpack.c.bf16 %v2673, %v2673
    %2760 = vrot.lane.b32.xlu0 %v2758, 64
    %v2761 = vpop.permute.xlu0 %2760
    %v2763 = vsel %vm115, %v2761, 0
    %2765 = vmatprep.subr.bf16.mxu0 0
    %2766 = vmatpush1.bf16.msra.mxu0 0
    %2767 = vmatprep.subr.bf16.mxu0 0
    %2768 = vmatpush1.bf16.msra.mxu0 0
    %2769 = vmatprep.subr.bf16.mxu0 0
    %2770 = vmatpush1.bf16.msra.mxu0 0
    %2771 = vmatprep.subr.bf16.mxu0 0
    %2772 = vmatpush1.bf16.msra.mxu0 0
    %2773 = vmatprep.subr.bf16.mxu0 0
    %2774 = vmatpush1.bf16.msra.mxu0 0
    %2775 = vmatprep.subr.bf16.mxu0 0
    %2776 = vmatpush1.bf16.msra.mxu0 0
    %2777 = vmatprep.subr.bf16.mxu0 0
    %2778 = vmatpush1.bf16.msra.mxu0 %v1669
    %2779 = vmatprep.subr.bf16.mxu0 0
    %2780 = vmatpush1.bf16.msra.mxu0 %v1668
    %2781 = vmatprep.subr.bf16.mxu0 0
    %2782 = vmatpush2.bf16.msra.mxu0 0
    %2783 = vmatprep.subr.bf16.mxu0 0
    %2784 = vmatpush2.bf16.msra.mxu0 0
    %2785 = vmatprep.subr.bf16.mxu0 0
    %2786 = vmatpush2.bf16.msra.mxu0 0
    %2787 = vmatprep.subr.bf16.mxu0 0
    %2788 = vmatpush2.bf16.msra.mxu0 0
    %2789 = vmatprep.subr.bf16.mxu0 0
    %2790 = vmatpush2.bf16.msra.mxu0 0
    %2791 = vmatprep.subr.bf16.mxu0 0
    %2792 = vmatpush2.bf16.msra.mxu0 0
    %2793 = vmatprep.subr.bf16.mxu0 0
    %2794 = vmatpush2.bf16.msra.mxu0 0
    %2795 = vmatprep.subr.bf16.mxu0 0
    %2796 = vmatpush2.bf16.msra.mxu0 0
    %2797 = vmatprep.mubr.bf16.mxu0 0
    %2798 = vmatmul.mubr.bf16.gmra.mxu0 %v2763
    %v2799 = vpop.f32.mrf.mxu0
    %v2800 = vadd.f32 0.0, %v2799
    %v2801 = vpop.f32.mrf.mxu0
    %v2802 = vpop.f32.mrf.mxu0
    %v2803 = vpop.f32.mrf.mxu0
    %2804 = vdwg.mxu0
    %v2805 = vadd.f32 %v2757, %v2800
    %v2806 = vxor.u32 %v2805, 2147483648
    %v2807 = vmul.f32 %v2806, 1.442695
    %v2808 = vpow.pop %v2807
    %v2809 = vadd.f32 %v2808, 1.0
    %v2810 = vrcp.pop %v2809
    %v2811 = vmul.f32 1.0, %v2810
    %v2812 = vtanh.pop %v2805
    %v2813 = vmul.f32 %v2811, %v2667
    %2815 = vrot.lane.b32.xlu0 %v2812, 32
    %v2816 = vpop.permute.xlu0 %2815
    %v2818 = vmul.f32 %v2811, %v2816
    %2820 = vrot.lane.b32.xlu0 %v2818, 32
    %v2821 = vpop.permute.xlu0 %2820
    %v2823 = vadd.f32 %v2813, %v2821
    %v2824 = vtanh.pop %v2823
    %2826 = vrot.lane.b32.xlu0 %v2824, 32
    %v2827 = vpop.permute.xlu0 %2826
    %v2829 = vmul.f32 %v2811, %v2827
    %2831 = vrot.lane.b32.xlu0 %v2829, 64
    %v2832 = vpop.permute.xlu0 %2831
    %2834 = vst.msk [vmem:[#allocation2 + $0x38] sm:$0x3] %vm306, %v2832
    %v2835 = vld [vmem:[#allocation3 + $0x8] sm:$0x3]
    %v2836 = vpack.c.bf16 %v2751, %v2751
    %2838 = vrot.lane.b32.xlu0 %v2836, 64
    %v2839 = vpop.permute.xlu0 %2838
    %v2841 = vsel %vm115, %v2839, 0
    %2843 = vmatprep.subr.bf16.mxu0 0
    %2844 = vmatpush1.bf16.msra.mxu0 0
    %2845 = vmatprep.subr.bf16.mxu0 0
    %2846 = vmatpush1.bf16.msra.mxu0 0
    %2847 = vmatprep.subr.bf16.mxu0 0
    %2848 = vmatpush1.bf16.msra.mxu0 0
    %2849 = vmatprep.subr.bf16.mxu0 0
    %2850 = vmatpush1.bf16.msra.mxu0 0
    %2851 = vmatprep.subr.bf16.mxu0 0
    %2852 = vmatpush1.bf16.msra.mxu0 0
    %2853 = vmatprep.subr.bf16.mxu0 0
    %2854 = vmatpush1.bf16.msra.mxu0 0
    %2855 = vmatprep.subr.bf16.mxu0 0
    %2856 = vmatpush1.bf16.msra.mxu0 %v1748
    %2857 = vmatprep.subr.bf16.mxu0 0
    %2858 = vmatpush1.bf16.msra.mxu0 %v1747
    %2859 = vmatprep.subr.bf16.mxu0 0
    %2860 = vmatpush2.bf16.msra.mxu0 0
    %2861 = vmatprep.subr.bf16.mxu0 0
    %2862 = vmatpush2.bf16.msra.mxu0 0
    %2863 = vmatprep.subr.bf16.mxu0 0
    %2864 = vmatpush2.bf16.msra.mxu0 0
    %2865 = vmatprep.subr.bf16.mxu0 0
    %2866 = vmatpush2.bf16.msra.mxu0 0
    %2867 = vmatprep.subr.bf16.mxu0 0
    %2868 = vmatpush2.bf16.msra.mxu0 0
    %2869 = vmatprep.subr.bf16.mxu0 0
    %2870 = vmatpush2.bf16.msra.mxu0 0
    %2871 = vmatprep.subr.bf16.mxu0 0
    %2872 = vmatpush2.bf16.msra.mxu0 0
    %2873 = vmatprep.subr.bf16.mxu0 0
    %2874 = vmatpush2.bf16.msra.mxu0 0
    %2875 = vmatprep.mubr.bf16.mxu0 0
    %2876 = vmatmul.mubr.bf16.gmra.mxu0 %v2841
    %v2877 = vpop.f32.mrf.mxu0
    %v2878 = vadd.f32 0.0, %v2877
    %v2879 = vpop.f32.mrf.mxu0
    %v2880 = vpop.f32.mrf.mxu0
    %v2881 = vpop.f32.mrf.mxu0
    %2882 = vdwg.mxu0
    %v2883 = vadd.f32 %v2835, %v2878
    %v2884 = vxor.u32 %v2883, 2147483648
    %v2885 = vmul.f32 %v2884, 1.442695
    %v2886 = vpow.pop %v2885
    %v2887 = vadd.f32 %v2886, 1.0
    %v2888 = vrcp.pop %v2887
    %v2889 = vmul.f32 1.0, %v2888
    %v2890 = vtanh.pop %v2883
    %v2891 = vmul.f32 %v2889, %v2745
    %2893 = vrot.lane.b32.xlu0 %v2890, 32
    %v2894 = vpop.permute.xlu0 %2893
    %v2896 = vmul.f32 %v2889, %v2894
    %2898 = vrot.lane.b32.xlu0 %v2896, 32
    %v2899 = vpop.permute.xlu0 %2898
    %v2901 = vadd.f32 %v2891, %v2899
    %v2902 = vtanh.pop %v2901
    %2904 = vrot.lane.b32.xlu0 %v2902, 32
    %v2905 = vpop.permute.xlu0 %2904
    %v2907 = vmul.f32 %v2889, %v2905
    %2909 = vrot.lane.b32.xlu0 %v2907, 96
    %v2910 = vpop.permute.xlu0 %2909
    %2912 = vst.msk [vmem:[#allocation2] sm:$0x3] %vm386, %v2910
    %v2913 = vld [vmem:[#allocation2] sm:$0xff]
    %v2914 = vld [vmem:[#allocation2 + $0x8] sm:$0xff]
    %v2915 = vld [vmem:[#allocation2 + $0x10] sm:$0xff]
    %v2916 = vld [vmem:[#allocation2 + $0x18] sm:$0xff]
    %v2917 = vld [vmem:[#allocation2 + $0x20] sm:$0xff]
    %v2918 = vld [vmem:[#allocation2 + $0x28] sm:$0xff]
    %v2919 = vld [vmem:[#allocation2 + $0x30] sm:$0xff]
    %v2920 = vld [vmem:[#allocation2 + $0x38] sm:$0xff]
    %v2921 = vpack.c.bf16 %v2914, %v2913
    %v2922 = vpack.c.bf16 %v2916, %v2915
    %v2923 = vpack.c.bf16 %v2918, %v2917
    %v2924 = vpack.c.bf16 %v2920, %v2919
    %s2925 = scalar_lea.vmem %s2, 64
    %v2926 = vld [vmem:[%s2925] sm:$0xff]
    %v2927 = vld [vmem:[%s2925 + $0x8] sm:$0xff]
    %v2928 = vld [vmem:[%s2925 + $0x10] sm:$0xff]
    %v2929 = vld [vmem:[%s2925 + $0x18] sm:$0xff]
    %v2930 = vld [vmem:[%s2925 + $0x20] sm:$0xff]
    %v2931 = vld [vmem:[%s2925 + $0x28] sm:$0xff]
    %v2932 = vld [vmem:[%s2925 + $0x30] sm:$0xff]
    %v2933 = vld [vmem:[%s2925 + $0x38] sm:$0xff]
    %s2934 = scalar_lea.vmem %s4, 4
    %v2935 = vld [vmem:[%s2934] sm:$0x3]
    %v2937 = vlaneseq
    %v2938 = vshrl.u32 %v2937, 7
    %v2939 = vsub.s32 0, %v2938
    %v2940 = vrot.slane %v2935, %v2939
    %v2941 = vlaneseq
    %v2942 = vshrl.u32 %v2941, 7
    %v2943 = vsub.s32 1, %v2942
    %v2944 = vrot.slane %v2935, %v2943
    %v2955 = vunpack.c.l.b16 %v2926
    %v2956 = vunpack.c.h.b16 %v2926
    %v2957 = vunpack.c.l.b16 %v2927
    %v2958 = vunpack.c.h.b16 %v2927
    %v2959 = vunpack.c.l.b16 %v2928
    %v2960 = vunpack.c.h.b16 %v2928
    %v2961 = vunpack.c.l.b16 %v2929
    %v2962 = vunpack.c.h.b16 %v2929
    %v2963 = vunpack.c.l.b16 %v2930
    %v2964 = vunpack.c.h.b16 %v2930
    %v2965 = vunpack.c.l.b16 %v2931
    %v2966 = vunpack.c.h.b16 %v2931
    %v2967 = vunpack.c.l.b16 %v2932
    %v2968 = vunpack.c.h.b16 %v2932
    %v2969 = vunpack.c.l.b16 %v2933
    %v2970 = vunpack.c.h.b16 %v2933
    %v2971 = vpack.c.b16 %v2957, %v2955
    %v2972 = vpack.c.b16 %v2958, %v2956
    %v2973 = vpack.c.b16 %v2961, %v2959
    %v2974 = vpack.c.b16 %v2962, %v2960
    %v2975 = vpack.c.b16 %v2965, %v2963
    %v2976 = vpack.c.b16 %v2966, %v2964
    %v2977 = vpack.c.b16 %v2969, %v2967
    %v2978 = vpack.c.b16 %v2970, %v2968
    %v2988 = vsel %vm42, %v2921, 0
    %v2991 = vsel %vm42, %v2922, 0
    %v2994 = vsel %vm42, %v2923, 0
    %v2997 = vsel %vm42, %v2924, 0
    %2999 = vmatprep.subr.bf16.mxu0 0
    %3000 = vmatpush1.bf16.msra.mxu0 0
    %3001 = vmatprep.subr.bf16.mxu0 0
    %3002 = vmatpush1.bf16.msra.mxu0 0
    %3003 = vmatprep.subr.bf16.mxu0 0
    %3004 = vmatpush1.bf16.msra.mxu0 0
    %3005 = vmatprep.subr.bf16.mxu0 0
    %3006 = vmatpush1.bf16.msra.mxu0 0
    %3007 = vmatprep.subr.bf16.mxu0 %v2978
    %3008 = vmatpush1.bf16.msra.mxu0 %v2977
    %3009 = vmatprep.subr.bf16.mxu0 %v2976
    %3010 = vmatpush1.bf16.msra.mxu0 %v2975
    %3011 = vmatprep.subr.bf16.mxu0 %v2974
    %3012 = vmatpush1.bf16.msra.mxu0 %v2973
    %3013 = vmatprep.subr.bf16.mxu0 %v2972
    %3014 = vmatpush1.bf16.msra.mxu0 %v2971
    %3015 = vmatprep.subr.bf16.mxu0 0
    %3016 = vmatpush2.bf16.msra.mxu0 0
    %3017 = vmatprep.subr.bf16.mxu0 0
    %3018 = vmatpush2.bf16.msra.mxu0 0
    %3019 = vmatprep.subr.bf16.mxu0 0
    %3020 = vmatpush2.bf16.msra.mxu0 0
    %3021 = vmatprep.subr.bf16.mxu0 0
    %3022 = vmatpush2.bf16.msra.mxu0 0
    %3023 = vmatprep.subr.bf16.mxu0 0
    %3024 = vmatpush2.bf16.msra.mxu0 0
    %3025 = vmatprep.subr.bf16.mxu0 0
    %3026 = vmatpush2.bf16.msra.mxu0 0
    %3027 = vmatprep.subr.bf16.mxu0 0
    %3028 = vmatpush2.bf16.msra.mxu0 0
    %3029 = vmatprep.subr.bf16.mxu0 0
    %3030 = vmatpush2.bf16.msra.mxu0 0
    %3031 = vmatprep.mubr.bf16.mxu0 0
    %3032 = vmatmul.mubr.bf16.gmra.mxu0 %v2988
    %v3033 = vpop.f32.mrf.mxu0
    %v3034 = vadd.f32 %v2940, %v3033
    %v3035 = vpop.f32.mrf.mxu0
    %v3036 = vadd.f32 %v2944, %v3035
    %v3037 = vpop.f32.mrf.mxu0
    %v3038 = vadd.f32 %v2940, %v3037
    %v3039 = vpop.f32.mrf.mxu0
    %v3040 = vadd.f32 %v2944, %v3039
    %3041 = vmatprep.mubr.bf16.mxu0 0
    %3042 = vmatmul.mubr.bf16.gmra.mxu0 %v2991
    %v3043 = vpop.f32.mrf.mxu0
    %v3044 = vadd.f32 %v2940, %v3043
    %v3045 = vpop.f32.mrf.mxu0
    %v3046 = vadd.f32 %v2944, %v3045
    %v3047 = vpop.f32.mrf.mxu0
    %v3048 = vadd.f32 %v2940, %v3047
    %v3049 = vpop.f32.mrf.mxu0
    %v3050 = vadd.f32 %v2944, %v3049
    %3051 = vmatprep.mubr.bf16.mxu0 0
    %3052 = vmatmul.mubr.bf16.gmra.mxu0 %v2994
    %v3053 = vpop.f32.mrf.mxu0
    %v3054 = vadd.f32 %v2940, %v3053
    %v3055 = vpop.f32.mrf.mxu0
    %v3056 = vadd.f32 %v2944, %v3055
    %v3057 = vpop.f32.mrf.mxu0
    %v3058 = vadd.f32 %v2940, %v3057
    %v3059 = vpop.f32.mrf.mxu0
    %v3060 = vadd.f32 %v2944, %v3059
    %3061 = vmatprep.mubr.bf16.mxu0 0
    %3062 = vmatmul.mubr.bf16.gmra.mxu0 %v2997
    %v3063 = vpop.f32.mrf.mxu0
    %v3064 = vadd.f32 %v2940, %v3063
    %v3065 = vpop.f32.mrf.mxu0
    %v3066 = vadd.f32 %v2944, %v3065
    %v3067 = vpop.f32.mrf.mxu0
    %v3068 = vadd.f32 %v2940, %v3067
    %v3069 = vpop.f32.mrf.mxu0
    %v3070 = vadd.f32 %v2944, %v3069
    %3071 = vdwg.mxu0
    %3072 = vst [vmem:[#allocation3] sm:$0xff] %v3034
    %3073 = vst [vmem:[#allocation3 + $0x8] sm:$0xff] %v3036
    %3074 = vst [vmem:[#allocation3 + $0x10] sm:$0xff] %v3038
    %3075 = vst [vmem:[#allocation3 + $0x18] sm:$0xff] %v3040
    %3076 = vst [vmem:[#allocation3 + $0x20] sm:$0xff] %v3044
    %3077 = vst [vmem:[#allocation3 + $0x28] sm:$0xff] %v3046
    %3078 = vst [vmem:[#allocation3 + $0x30] sm:$0xff] %v3048
    %3079 = vst [vmem:[#allocation3 + $0x38] sm:$0xff] %v3050
    %3080 = vst [vmem:[#allocation3 + $0x40] sm:$0xff] %v3054
    %3081 = vst [vmem:[#allocation3 + $0x48] sm:$0xff] %v3056
    %3082 = vst [vmem:[#allocation3 + $0x50] sm:$0xff] %v3058
    %3083 = vst [vmem:[#allocation3 + $0x58] sm:$0xff] %v3060
    %3084 = vst [vmem:[#allocation3 + $0x60] sm:$0xff] %v3064
    %3085 = vst [vmem:[#allocation3 + $0x68] sm:$0xff] %v3066
    %3086 = vst [vmem:[#allocation3 + $0x70] sm:$0xff] %v3068
    %3087 = vst [vmem:[#allocation3 + $0x78] sm:$0xff] %v3070
    %s3088 = scalar_lea.vmem [#allocation4], 64
    %v3089 = vld [vmem:[%s3088] sm:$0xff]
    %v3090 = vld [vmem:[%s3088 + $0x8] sm:$0xff]
    %v3091 = vld [vmem:[%s3088 + $0x10] sm:$0xff]
    %v3092 = vld [vmem:[%s3088 + $0x18] sm:$0xff]
    %v3093 = vld [vmem:[#allocation3] sm:$0x3]
    %v3098 = vunpack.c.l.b16 %v3089
    %v3099 = vunpack.c.l.b16 %v3090
    %v3100 = vunpack.c.l.b16 %v3091
    %v3101 = vunpack.c.l.b16 %v3092
    %v3102 = vpack.c.b16 %v3099, %v3098
    %v3103 = vpack.c.b16 %v3101, %v3100
    %3106 = vmatprep.subr.bf16.mxu0 0
    %3107 = vmatpush1.bf16.msra.mxu0 0
    %3108 = vmatprep.subr.bf16.mxu0 0
    %3109 = vmatpush1.bf16.msra.mxu0 0
    %3110 = vmatprep.subr.bf16.mxu0 0
    %3111 = vmatpush1.bf16.msra.mxu0 0
    %3112 = vmatprep.subr.bf16.mxu0 0
    %3113 = vmatpush1.bf16.msra.mxu0 0
    %3114 = vmatprep.subr.bf16.mxu0 0
    %3115 = vmatpush1.bf16.msra.mxu0 0
    %3116 = vmatprep.subr.bf16.mxu0 0
    %3117 = vmatpush1.bf16.msra.mxu0 0
    %3118 = vmatprep.subr.bf16.mxu0 0
    %3119 = vmatpush1.bf16.msra.mxu0 %v3103
    %3120 = vmatprep.subr.bf16.mxu0 0
    %3121 = vmatpush1.bf16.msra.mxu0 %v3102
    %3122 = vmatprep.subr.bf16.mxu0 0
    %3123 = vmatpush2.bf16.msra.mxu0 0
    %3124 = vmatprep.subr.bf16.mxu0 0
    %3125 = vmatpush2.bf16.msra.mxu0 0
    %3126 = vmatprep.subr.bf16.mxu0 0
    %3127 = vmatpush2.bf16.msra.mxu0 0
    %3128 = vmatprep.subr.bf16.mxu0 0
    %3129 = vmatpush2.bf16.msra.mxu0 0
    %3130 = vmatprep.subr.bf16.mxu0 0
    %3131 = vmatpush2.bf16.msra.mxu0 0
    %3132 = vmatprep.subr.bf16.mxu0 0
    %3133 = vmatpush2.bf16.msra.mxu0 0
    %3134 = vmatprep.subr.bf16.mxu0 0
    %3135 = vmatpush2.bf16.msra.mxu0 0
    %3136 = vmatprep.subr.bf16.mxu0 0
    %3137 = vmatpush2.bf16.msra.mxu0 0
    %3138 = vmatprep.mubr.bf16.mxu0 0
    %3139 = vmatmul.mubr.bf16.gmra.mxu0 %v235
    %v3140 = vpop.f32.mrf.mxu0
    %v3141 = vadd.f32 0.0, %v3140
    %v3142 = vpop.f32.mrf.mxu0
    %v3143 = vpop.f32.mrf.mxu0
    %v3144 = vpop.f32.mrf.mxu0
    %3145 = vdwg.mxu0
    %v3146 = vadd.f32 %v3093, %v3141
    %v3147 = vxor.u32 %v3146, 2147483648
    %v3148 = vmul.f32 %v3147, 1.442695
    %v3149 = vpow.pop %v3148
    %v3150 = vadd.f32 %v3149, 1.0
    %v3151 = vrcp.pop %v3150
    %v3152 = vmul.f32 1.0, %v3151
    %v3153 = vtanh.pop %v3146
    %v3154 = vmul.f32 %v3152, 0.0
    %3156 = vrot.lane.b32.xlu0 %v3153, 32
    %v3157 = vpop.permute.xlu0 %3156
    %v3159 = vmul.f32 %v3152, %v3157
    %3161 = vrot.lane.b32.xlu0 %v3159, 32
    %v3162 = vpop.permute.xlu0 %3161
    %v3164 = vadd.f32 %v3154, %v3162
    %v3165 = vtanh.pop %v3164
    %3167 = vrot.lane.b32.xlu0 %v3165, 32
    %v3168 = vpop.permute.xlu0 %3167
    %v3170 = vmul.f32 %v3152, %v3168
    %3172 = vrot.lane.b32.xlu0 %v3170, 64
    %v3173 = vpop.permute.xlu0 %3172
    %3175 = vst.msk [vmem:[#allocation2] sm:$0x3] %vm306, %v3173
    %v3176 = vld [vmem:[#allocation3 + $0x78] sm:$0x3]
    %v3177 = vunpack.c.h.b16 %v3089
    %v3178 = vunpack.c.h.b16 %v3090
    %v3179 = vunpack.c.h.b16 %v3091
    %v3180 = vunpack.c.h.b16 %v3092
    %v3181 = vpack.c.b16 %v3178, %v3177
    %v3182 = vpack.c.b16 %v3180, %v3179
    %3185 = vmatprep.subr.bf16.mxu0 0
    %3186 = vmatpush1.bf16.msra.mxu0 0
    %3187 = vmatprep.subr.bf16.mxu0 0
    %3188 = vmatpush1.bf16.msra.mxu0 0
    %3189 = vmatprep.subr.bf16.mxu0 0
    %3190 = vmatpush1.bf16.msra.mxu0 0
    %3191 = vmatprep.subr.bf16.mxu0 0
    %3192 = vmatpush1.bf16.msra.mxu0 0
    %3193 = vmatprep.subr.bf16.mxu0 0
    %3194 = vmatpush1.bf16.msra.mxu0 0
    %3195 = vmatprep.subr.bf16.mxu0 0
    %3196 = vmatpush1.bf16.msra.mxu0 0
    %3197 = vmatprep.subr.bf16.mxu0 0
    %3198 = vmatpush1.bf16.msra.mxu0 %v3182
    %3199 = vmatprep.subr.bf16.mxu0 0
    %3200 = vmatpush1.bf16.msra.mxu0 %v3181
    %3201 = vmatprep.subr.bf16.mxu0 0
    %3202 = vmatpush2.bf16.msra.mxu0 0
    %3203 = vmatprep.subr.bf16.mxu0 0
    %3204 = vmatpush2.bf16.msra.mxu0 0
    %3205 = vmatprep.subr.bf16.mxu0 0
    %3206 = vmatpush2.bf16.msra.mxu0 0
    %3207 = vmatprep.subr.bf16.mxu0 0
    %3208 = vmatpush2.bf16.msra.mxu0 0
    %3209 = vmatprep.subr.bf16.mxu0 0
    %3210 = vmatpush2.bf16.msra.mxu0 0
    %3211 = vmatprep.subr.bf16.mxu0 0
    %3212 = vmatpush2.bf16.msra.mxu0 0
    %3213 = vmatprep.subr.bf16.mxu0 0
    %3214 = vmatpush2.bf16.msra.mxu0 0
    %3215 = vmatprep.subr.bf16.mxu0 0
    %3216 = vmatpush2.bf16.msra.mxu0 0
    %3217 = vmatprep.mubr.bf16.mxu0 0
    %3218 = vmatmul.mubr.bf16.gmra.mxu0 %v235
    %v3219 = vpop.f32.mrf.mxu0
    %v3220 = vadd.f32 0.0, %v3219
    %v3221 = vpop.f32.mrf.mxu0
    %v3222 = vpop.f32.mrf.mxu0
    %v3223 = vpop.f32.mrf.mxu0
    %3224 = vdwg.mxu0
    %v3225 = vadd.f32 %v3176, %v3220
    %v3226 = vxor.u32 %v3225, 2147483648
    %v3227 = vmul.f32 %v3226, 1.442695
    %v3228 = vpow.pop %v3227
    %v3229 = vadd.f32 %v3228, 1.0
    %v3230 = vrcp.pop %v3229
    %v3231 = vmul.f32 1.0, %v3230
    %v3232 = vtanh.pop %v3225
    %v3233 = vmul.f32 %v3231, 0.0
    %3235 = vrot.lane.b32.xlu0 %v3232, 32
    %v3236 = vpop.permute.xlu0 %3235
    %v3238 = vmul.f32 %v3231, %v3236
    %3240 = vrot.lane.b32.xlu0 %v3238, 32
    %v3241 = vpop.permute.xlu0 %3240
    %v3243 = vadd.f32 %v3233, %v3241
    %v3244 = vtanh.pop %v3243
    %3246 = vrot.lane.b32.xlu0 %v3244, 32
    %v3247 = vpop.permute.xlu0 %3246
    %v3249 = vmul.f32 %v3231, %v3247
    %3251 = vrot.lane.b32.xlu0 %v3249, 96
    %v3252 = vpop.permute.xlu0 %3251
    %3254 = vst.msk [vmem:[#allocation2 + $0x38] sm:$0x3] %vm386, %v3252
    %v3255 = vld [vmem:[#allocation3 + $0x10] sm:$0x3]
    %v3256 = vpack.c.bf16 %v3170, %v3170
    %3258 = vrot.lane.b32.xlu0 %v3256, 64
    %v3259 = vpop.permute.xlu0 %3258
    %v3261 = vsel %vm115, %v3259, 0
    %3263 = vmatprep.subr.bf16.mxu0 0
    %3264 = vmatpush1.bf16.msra.mxu0 0
    %3265 = vmatprep.subr.bf16.mxu0 0
    %3266 = vmatpush1.bf16.msra.mxu0 0
    %3267 = vmatprep.subr.bf16.mxu0 0
    %3268 = vmatpush1.bf16.msra.mxu0 0
    %3269 = vmatprep.subr.bf16.mxu0 0
    %3270 = vmatpush1.bf16.msra.mxu0 0
    %3271 = vmatprep.subr.bf16.mxu0 0
    %3272 = vmatpush1.bf16.msra.mxu0 0
    %3273 = vmatprep.subr.bf16.mxu0 0
    %3274 = vmatpush1.bf16.msra.mxu0 0
    %3275 = vmatprep.subr.bf16.mxu0 0
    %3276 = vmatpush1.bf16.msra.mxu0 %v3103
    %3277 = vmatprep.subr.bf16.mxu0 0
    %3278 = vmatpush1.bf16.msra.mxu0 %v3102
    %3279 = vmatprep.subr.bf16.mxu0 0
    %3280 = vmatpush2.bf16.msra.mxu0 0
    %3281 = vmatprep.subr.bf16.mxu0 0
    %3282 = vmatpush2.bf16.msra.mxu0 0
    %3283 = vmatprep.subr.bf16.mxu0 0
    %3284 = vmatpush2.bf16.msra.mxu0 0
    %3285 = vmatprep.subr.bf16.mxu0 0
    %3286 = vmatpush2.bf16.msra.mxu0 0
    %3287 = vmatprep.subr.bf16.mxu0 0
    %3288 = vmatpush2.bf16.msra.mxu0 0
    %3289 = vmatprep.subr.bf16.mxu0 0
    %3290 = vmatpush2.bf16.msra.mxu0 0
    %3291 = vmatprep.subr.bf16.mxu0 0
    %3292 = vmatpush2.bf16.msra.mxu0 0
    %3293 = vmatprep.subr.bf16.mxu0 0
    %3294 = vmatpush2.bf16.msra.mxu0 0
    %3295 = vmatprep.mubr.bf16.mxu0 0
    %3296 = vmatmul.mubr.bf16.gmra.mxu0 %v3261
    %v3297 = vpop.f32.mrf.mxu0
    %v3298 = vadd.f32 0.0, %v3297
    %v3299 = vpop.f32.mrf.mxu0
    %v3300 = vpop.f32.mrf.mxu0
    %v3301 = vpop.f32.mrf.mxu0
    %3302 = vdwg.mxu0
    %v3303 = vadd.f32 %v3255, %v3298
    %v3304 = vxor.u32 %v3303, 2147483648
    %v3305 = vmul.f32 %v3304, 1.442695
    %v3306 = vpow.pop %v3305
    %v3307 = vadd.f32 %v3306, 1.0
    %v3308 = vrcp.pop %v3307
    %v3309 = vmul.f32 1.0, %v3308
    %v3310 = vtanh.pop %v3303
    %v3311 = vmul.f32 %v3309, %v3164
    %3313 = vrot.lane.b32.xlu0 %v3310, 32
    %v3314 = vpop.permute.xlu0 %3313
    %v3316 = vmul.f32 %v3309, %v3314
    %3318 = vrot.lane.b32.xlu0 %v3316, 32
    %v3319 = vpop.permute.xlu0 %3318
    %v3321 = vadd.f32 %v3311, %v3319
    %v3322 = vtanh.pop %v3321
    %3324 = vrot.lane.b32.xlu0 %v3322, 32
    %v3325 = vpop.permute.xlu0 %3324
    %v3327 = vmul.f32 %v3309, %v3325
    %3329 = vrot.lane.b32.xlu0 %v3327, 64
    %v3330 = vpop.permute.xlu0 %3329
    %3332 = vst.msk [vmem:[#allocation2 + $0x8] sm:$0x3] %vm306, %v3330
    %v3333 = vld [vmem:[#allocation3 + $0x68] sm:$0x3]
    %v3334 = vpack.c.bf16 %v3249, %v3249
    %3336 = vrot.lane.b32.xlu0 %v3334, 64
    %v3337 = vpop.permute.xlu0 %3336
    %v3339 = vsel %vm115, %v3337, 0
    %3341 = vmatprep.subr.bf16.mxu0 0
    %3342 = vmatpush1.bf16.msra.mxu0 0
    %3343 = vmatprep.subr.bf16.mxu0 0
    %3344 = vmatpush1.bf16.msra.mxu0 0
    %3345 = vmatprep.subr.bf16.mxu0 0
    %3346 = vmatpush1.bf16.msra.mxu0 0
    %3347 = vmatprep.subr.bf16.mxu0 0
    %3348 = vmatpush1.bf16.msra.mxu0 0
    %3349 = vmatprep.subr.bf16.mxu0 0
    %3350 = vmatpush1.bf16.msra.mxu0 0
    %3351 = vmatprep.subr.bf16.mxu0 0
    %3352 = vmatpush1.bf16.msra.mxu0 0
    %3353 = vmatprep.subr.bf16.mxu0 0
    %3354 = vmatpush1.bf16.msra.mxu0 %v3182
    %3355 = vmatprep.subr.bf16.mxu0 0
    %3356 = vmatpush1.bf16.msra.mxu0 %v3181
    %3357 = vmatprep.subr.bf16.mxu0 0
    %3358 = vmatpush2.bf16.msra.mxu0 0
    %3359 = vmatprep.subr.bf16.mxu0 0
    %3360 = vmatpush2.bf16.msra.mxu0 0
    %3361 = vmatprep.subr.bf16.mxu0 0
    %3362 = vmatpush2.bf16.msra.mxu0 0
    %3363 = vmatprep.subr.bf16.mxu0 0
    %3364 = vmatpush2.bf16.msra.mxu0 0
    %3365 = vmatprep.subr.bf16.mxu0 0
    %3366 = vmatpush2.bf16.msra.mxu0 0
    %3367 = vmatprep.subr.bf16.mxu0 0
    %3368 = vmatpush2.bf16.msra.mxu0 0
    %3369 = vmatprep.subr.bf16.mxu0 0
    %3370 = vmatpush2.bf16.msra.mxu0 0
    %3371 = vmatprep.subr.bf16.mxu0 0
    %3372 = vmatpush2.bf16.msra.mxu0 0
    %3373 = vmatprep.mubr.bf16.mxu0 0
    %3374 = vmatmul.mubr.bf16.gmra.mxu0 %v3339
    %v3375 = vpop.f32.mrf.mxu0
    %v3376 = vadd.f32 0.0, %v3375
    %v3377 = vpop.f32.mrf.mxu0
    %v3378 = vpop.f32.mrf.mxu0
    %v3379 = vpop.f32.mrf.mxu0
    %3380 = vdwg.mxu0
    %v3381 = vadd.f32 %v3333, %v3376
    %v3382 = vxor.u32 %v3381, 2147483648
    %v3383 = vmul.f32 %v3382, 1.442695
    %v3384 = vpow.pop %v3383
    %v3385 = vadd.f32 %v3384, 1.0
    %v3386 = vrcp.pop %v3385
    %v3387 = vmul.f32 1.0, %v3386
    %v3388 = vtanh.pop %v3381
    %v3389 = vmul.f32 %v3387, %v3243
    %3391 = vrot.lane.b32.xlu0 %v3388, 32
    %v3392 = vpop.permute.xlu0 %3391
    %v3394 = vmul.f32 %v3387, %v3392
    %3396 = vrot.lane.b32.xlu0 %v3394, 32
    %v3397 = vpop.permute.xlu0 %3396
    %v3399 = vadd.f32 %v3389, %v3397
    %v3400 = vtanh.pop %v3399
    %3402 = vrot.lane.b32.xlu0 %v3400, 32
    %v3403 = vpop.permute.xlu0 %3402
    %v3405 = vmul.f32 %v3387, %v3403
    %3407 = vrot.lane.b32.xlu0 %v3405, 96
    %v3408 = vpop.permute.xlu0 %3407
    %3410 = vst.msk [vmem:[#allocation2 + $0x30] sm:$0x3] %vm386, %v3408
    %v3411 = vld [vmem:[#allocation3 + $0x20] sm:$0x3]
    %v3412 = vpack.c.bf16 %v3327, %v3327
    %3414 = vrot.lane.b32.xlu0 %v3412, 64
    %v3415 = vpop.permute.xlu0 %3414
    %v3417 = vsel %vm115, %v3415, 0
    %3419 = vmatprep.subr.bf16.mxu0 0
    %3420 = vmatpush1.bf16.msra.mxu0 0
    %3421 = vmatprep.subr.bf16.mxu0 0
    %3422 = vmatpush1.bf16.msra.mxu0 0
    %3423 = vmatprep.subr.bf16.mxu0 0
    %3424 = vmatpush1.bf16.msra.mxu0 0
    %3425 = vmatprep.subr.bf16.mxu0 0
    %3426 = vmatpush1.bf16.msra.mxu0 0
    %3427 = vmatprep.subr.bf16.mxu0 0
    %3428 = vmatpush1.bf16.msra.mxu0 0
    %3429 = vmatprep.subr.bf16.mxu0 0
    %3430 = vmatpush1.bf16.msra.mxu0 0
    %3431 = vmatprep.subr.bf16.mxu0 0
    %3432 = vmatpush1.bf16.msra.mxu0 %v3103
    %3433 = vmatprep.subr.bf16.mxu0 0
    %3434 = vmatpush1.bf16.msra.mxu0 %v3102
    %3435 = vmatprep.subr.bf16.mxu0 0
    %3436 = vmatpush2.bf16.msra.mxu0 0
    %3437 = vmatprep.subr.bf16.mxu0 0
    %3438 = vmatpush2.bf16.msra.mxu0 0
    %3439 = vmatprep.subr.bf16.mxu0 0
    %3440 = vmatpush2.bf16.msra.mxu0 0
    %3441 = vmatprep.subr.bf16.mxu0 0
    %3442 = vmatpush2.bf16.msra.mxu0 0
    %3443 = vmatprep.subr.bf16.mxu0 0
    %3444 = vmatpush2.bf16.msra.mxu0 0
    %3445 = vmatprep.subr.bf16.mxu0 0
    %3446 = vmatpush2.bf16.msra.mxu0 0
    %3447 = vmatprep.subr.bf16.mxu0 0
    %3448 = vmatpush2.bf16.msra.mxu0 0
    %3449 = vmatprep.subr.bf16.mxu0 0
    %3450 = vmatpush2.bf16.msra.mxu0 0
    %3451 = vmatprep.mubr.bf16.mxu0 0
    %3452 = vmatmul.mubr.bf16.gmra.mxu0 %v3417
    %v3453 = vpop.f32.mrf.mxu0
    %v3454 = vadd.f32 0.0, %v3453
    %v3455 = vpop.f32.mrf.mxu0
    %v3456 = vpop.f32.mrf.mxu0
    %v3457 = vpop.f32.mrf.mxu0
    %3458 = vdwg.mxu0
    %v3459 = vadd.f32 %v3411, %v3454
    %v3460 = vxor.u32 %v3459, 2147483648
    %v3461 = vmul.f32 %v3460, 1.442695
    %v3462 = vpow.pop %v3461
    %v3463 = vadd.f32 %v3462, 1.0
    %v3464 = vrcp.pop %v3463
    %v3465 = vmul.f32 1.0, %v3464
    %v3466 = vtanh.pop %v3459
    %v3467 = vmul.f32 %v3465, %v3321
    %3469 = vrot.lane.b32.xlu0 %v3466, 32
    %v3470 = vpop.permute.xlu0 %3469
    %v3472 = vmul.f32 %v3465, %v3470
    %3474 = vrot.lane.b32.xlu0 %v3472, 32
    %v3475 = vpop.permute.xlu0 %3474
    %v3477 = vadd.f32 %v3467, %v3475
    %v3478 = vtanh.pop %v3477
    %3480 = vrot.lane.b32.xlu0 %v3478, 32
    %v3481 = vpop.permute.xlu0 %3480
    %v3483 = vmul.f32 %v3465, %v3481
    %3485 = vrot.lane.b32.xlu0 %v3483, 64
    %v3486 = vpop.permute.xlu0 %3485
    %3488 = vst.msk [vmem:[#allocation2 + $0x10] sm:$0x3] %vm306, %v3486
    %v3489 = vld [vmem:[#allocation3 + $0x58] sm:$0x3]
    %v3490 = vpack.c.bf16 %v3405, %v3405
    %3492 = vrot.lane.b32.xlu0 %v3490, 64
    %v3493 = vpop.permute.xlu0 %3492
    %v3495 = vsel %vm115, %v3493, 0
    %3497 = vmatprep.subr.bf16.mxu0 0
    %3498 = vmatpush1.bf16.msra.mxu0 0
    %3499 = vmatprep.subr.bf16.mxu0 0
    %3500 = vmatpush1.bf16.msra.mxu0 0
    %3501 = vmatprep.subr.bf16.mxu0 0
    %3502 = vmatpush1.bf16.msra.mxu0 0
    %3503 = vmatprep.subr.bf16.mxu0 0
    %3504 = vmatpush1.bf16.msra.mxu0 0
    %3505 = vmatprep.subr.bf16.mxu0 0
    %3506 = vmatpush1.bf16.msra.mxu0 0
    %3507 = vmatprep.subr.bf16.mxu0 0
    %3508 = vmatpush1.bf16.msra.mxu0 0
    %3509 = vmatprep.subr.bf16.mxu0 0
    %3510 = vmatpush1.bf16.msra.mxu0 %v3182
    %3511 = vmatprep.subr.bf16.mxu0 0
    %3512 = vmatpush1.bf16.msra.mxu0 %v3181
    %3513 = vmatprep.subr.bf16.mxu0 0
    %3514 = vmatpush2.bf16.msra.mxu0 0
    %3515 = vmatprep.subr.bf16.mxu0 0
    %3516 = vmatpush2.bf16.msra.mxu0 0
    %3517 = vmatprep.subr.bf16.mxu0 0
    %3518 = vmatpush2.bf16.msra.mxu0 0
    %3519 = vmatprep.subr.bf16.mxu0 0
    %3520 = vmatpush2.bf16.msra.mxu0 0
    %3521 = vmatprep.subr.bf16.mxu0 0
    %3522 = vmatpush2.bf16.msra.mxu0 0
    %3523 = vmatprep.subr.bf16.mxu0 0
    %3524 = vmatpush2.bf16.msra.mxu0 0
    %3525 = vmatprep.subr.bf16.mxu0 0
    %3526 = vmatpush2.bf16.msra.mxu0 0
    %3527 = vmatprep.subr.bf16.mxu0 0
    %3528 = vmatpush2.bf16.msra.mxu0 0
    %3529 = vmatprep.mubr.bf16.mxu0 0
    %3530 = vmatmul.mubr.bf16.gmra.mxu0 %v3495
    %v3531 = vpop.f32.mrf.mxu0
    %v3532 = vadd.f32 0.0, %v3531
    %v3533 = vpop.f32.mrf.mxu0
    %v3534 = vpop.f32.mrf.mxu0
    %v3535 = vpop.f32.mrf.mxu0
    %3536 = vdwg.mxu0
    %v3537 = vadd.f32 %v3489, %v3532
    %v3538 = vxor.u32 %v3537, 2147483648
    %v3539 = vmul.f32 %v3538, 1.442695
    %v3540 = vpow.pop %v3539
    %v3541 = vadd.f32 %v3540, 1.0
    %v3542 = vrcp.pop %v3541
    %v3543 = vmul.f32 1.0, %v3542
    %v3544 = vtanh.pop %v3537
    %v3545 = vmul.f32 %v3543, %v3399
    %3547 = vrot.lane.b32.xlu0 %v3544, 32
    %v3548 = vpop.permute.xlu0 %3547
    %v3550 = vmul.f32 %v3543, %v3548
    %3552 = vrot.lane.b32.xlu0 %v3550, 32
    %v3553 = vpop.permute.xlu0 %3552
    %v3555 = vadd.f32 %v3545, %v3553
    %v3556 = vtanh.pop %v3555
    %3558 = vrot.lane.b32.xlu0 %v3556, 32
    %v3559 = vpop.permute.xlu0 %3558
    %v3561 = vmul.f32 %v3543, %v3559
    %3563 = vrot.lane.b32.xlu0 %v3561, 96
    %v3564 = vpop.permute.xlu0 %3563
    %3566 = vst.msk [vmem:[#allocation2 + $0x28] sm:$0x3] %vm386, %v3564
    %v3567 = vld [vmem:[#allocation3 + $0x30] sm:$0x3]
    %v3568 = vpack.c.bf16 %v3483, %v3483
    %3570 = vrot.lane.b32.xlu0 %v3568, 64
    %v3571 = vpop.permute.xlu0 %3570
    %v3573 = vsel %vm115, %v3571, 0
    %3575 = vmatprep.subr.bf16.mxu0 0
    %3576 = vmatpush1.bf16.msra.mxu0 0
    %3577 = vmatprep.subr.bf16.mxu0 0
    %3578 = vmatpush1.bf16.msra.mxu0 0
    %3579 = vmatprep.subr.bf16.mxu0 0
    %3580 = vmatpush1.bf16.msra.mxu0 0
    %3581 = vmatprep.subr.bf16.mxu0 0
    %3582 = vmatpush1.bf16.msra.mxu0 0
    %3583 = vmatprep.subr.bf16.mxu0 0
    %3584 = vmatpush1.bf16.msra.mxu0 0
    %3585 = vmatprep.subr.bf16.mxu0 0
    %3586 = vmatpush1.bf16.msra.mxu0 0
    %3587 = vmatprep.subr.bf16.mxu0 0
    %3588 = vmatpush1.bf16.msra.mxu0 %v3103
    %3589 = vmatprep.subr.bf16.mxu0 0
    %3590 = vmatpush1.bf16.msra.mxu0 %v3102
    %3591 = vmatprep.subr.bf16.mxu0 0
    %3592 = vmatpush2.bf16.msra.mxu0 0
    %3593 = vmatprep.subr.bf16.mxu0 0
    %3594 = vmatpush2.bf16.msra.mxu0 0
    %3595 = vmatprep.subr.bf16.mxu0 0
    %3596 = vmatpush2.bf16.msra.mxu0 0
    %3597 = vmatprep.subr.bf16.mxu0 0
    %3598 = vmatpush2.bf16.msra.mxu0 0
    %3599 = vmatprep.subr.bf16.mxu0 0
    %3600 = vmatpush2.bf16.msra.mxu0 0
    %3601 = vmatprep.subr.bf16.mxu0 0
    %3602 = vmatpush2.bf16.msra.mxu0 0
    %3603 = vmatprep.subr.bf16.mxu0 0
    %3604 = vmatpush2.bf16.msra.mxu0 0
    %3605 = vmatprep.subr.bf16.mxu0 0
    %3606 = vmatpush2.bf16.msra.mxu0 0
    %3607 = vmatprep.mubr.bf16.mxu0 0
    %3608 = vmatmul.mubr.bf16.gmra.mxu0 %v3573
    %v3609 = vpop.f32.mrf.mxu0
    %v3610 = vadd.f32 0.0, %v3609
    %v3611 = vpop.f32.mrf.mxu0
    %v3612 = vpop.f32.mrf.mxu0
    %v3613 = vpop.f32.mrf.mxu0
    %3614 = vdwg.mxu0
    %v3615 = vadd.f32 %v3567, %v3610
    %v3616 = vxor.u32 %v3615, 2147483648
    %v3617 = vmul.f32 %v3616, 1.442695
    %v3618 = vpow.pop %v3617
    %v3619 = vadd.f32 %v3618, 1.0
    %v3620 = vrcp.pop %v3619
    %v3621 = vmul.f32 1.0, %v3620
    %v3622 = vtanh.pop %v3615
    %v3623 = vmul.f32 %v3621, %v3477
    %3625 = vrot.lane.b32.xlu0 %v3622, 32
    %v3626 = vpop.permute.xlu0 %3625
    %v3628 = vmul.f32 %v3621, %v3626
    %3630 = vrot.lane.b32.xlu0 %v3628, 32
    %v3631 = vpop.permute.xlu0 %3630
    %v3633 = vadd.f32 %v3623, %v3631
    %v3634 = vtanh.pop %v3633
    %3636 = vrot.lane.b32.xlu0 %v3634, 32
    %v3637 = vpop.permute.xlu0 %3636
    %v3639 = vmul.f32 %v3621, %v3637
    %3641 = vrot.lane.b32.xlu0 %v3639, 64
    %v3642 = vpop.permute.xlu0 %3641
    %3644 = vst.msk [vmem:[#allocation2 + $0x18] sm:$0x3] %vm306, %v3642
    %v3645 = vld [vmem:[#allocation3 + $0x48] sm:$0x3]
    %v3646 = vpack.c.bf16 %v3561, %v3561
    %3648 = vrot.lane.b32.xlu0 %v3646, 64
    %v3649 = vpop.permute.xlu0 %3648
    %v3651 = vsel %vm115, %v3649, 0
    %3653 = vmatprep.subr.bf16.mxu0 0
    %3654 = vmatpush1.bf16.msra.mxu0 0
    %3655 = vmatprep.subr.bf16.mxu0 0
    %3656 = vmatpush1.bf16.msra.mxu0 0
    %3657 = vmatprep.subr.bf16.mxu0 0
    %3658 = vmatpush1.bf16.msra.mxu0 0
    %3659 = vmatprep.subr.bf16.mxu0 0
    %3660 = vmatpush1.bf16.msra.mxu0 0
    %3661 = vmatprep.subr.bf16.mxu0 0
    %3662 = vmatpush1.bf16.msra.mxu0 0
    %3663 = vmatprep.subr.bf16.mxu0 0
    %3664 = vmatpush1.bf16.msra.mxu0 0
    %3665 = vmatprep.subr.bf16.mxu0 0
    %3666 = vmatpush1.bf16.msra.mxu0 %v3182
    %3667 = vmatprep.subr.bf16.mxu0 0
    %3668 = vmatpush1.bf16.msra.mxu0 %v3181
    %3669 = vmatprep.subr.bf16.mxu0 0
    %3670 = vmatpush2.bf16.msra.mxu0 0
    %3671 = vmatprep.subr.bf16.mxu0 0
    %3672 = vmatpush2.bf16.msra.mxu0 0
    %3673 = vmatprep.subr.bf16.mxu0 0
    %3674 = vmatpush2.bf16.msra.mxu0 0
    %3675 = vmatprep.subr.bf16.mxu0 0
    %3676 = vmatpush2.bf16.msra.mxu0 0
    %3677 = vmatprep.subr.bf16.mxu0 0
    %3678 = vmatpush2.bf16.msra.mxu0 0
    %3679 = vmatprep.subr.bf16.mxu0 0
    %3680 = vmatpush2.bf16.msra.mxu0 0
    %3681 = vmatprep.subr.bf16.mxu0 0
    %3682 = vmatpush2.bf16.msra.mxu0 0
    %3683 = vmatprep.subr.bf16.mxu0 0
    %3684 = vmatpush2.bf16.msra.mxu0 0
    %3685 = vmatprep.mubr.bf16.mxu0 0
    %3686 = vmatmul.mubr.bf16.gmra.mxu0 %v3651
    %v3687 = vpop.f32.mrf.mxu0
    %v3688 = vadd.f32 0.0, %v3687
    %v3689 = vpop.f32.mrf.mxu0
    %v3690 = vpop.f32.mrf.mxu0
    %v3691 = vpop.f32.mrf.mxu0
    %3692 = vdwg.mxu0
    %v3693 = vadd.f32 %v3645, %v3688
    %v3694 = vxor.u32 %v3693, 2147483648
    %v3695 = vmul.f32 %v3694, 1.442695
    %v3696 = vpow.pop %v3695
    %v3697 = vadd.f32 %v3696, 1.0
    %v3698 = vrcp.pop %v3697
    %v3699 = vmul.f32 1.0, %v3698
    %v3700 = vtanh.pop %v3693
    %v3701 = vmul.f32 %v3699, %v3555
    %3703 = vrot.lane.b32.xlu0 %v3700, 32
    %v3704 = vpop.permute.xlu0 %3703
    %v3706 = vmul.f32 %v3699, %v3704
    %3708 = vrot.lane.b32.xlu0 %v3706, 32
    %v3709 = vpop.permute.xlu0 %3708
    %v3711 = vadd.f32 %v3701, %v3709
    %v3712 = vtanh.pop %v3711
    %3714 = vrot.lane.b32.xlu0 %v3712, 32
    %v3715 = vpop.permute.xlu0 %3714
    %v3717 = vmul.f32 %v3699, %v3715
    %3719 = vrot.lane.b32.xlu0 %v3717, 96
    %v3720 = vpop.permute.xlu0 %3719
    %3722 = vst.msk [vmem:[#allocation2 + $0x20] sm:$0x3] %vm386, %v3720
    %v3723 = vld [vmem:[#allocation3 + $0x40] sm:$0x3]
    %v3724 = vpack.c.bf16 %v3639, %v3639
    %3726 = vrot.lane.b32.xlu0 %v3724, 64
    %v3727 = vpop.permute.xlu0 %3726
    %v3729 = vsel %vm115, %v3727, 0
    %3731 = vmatprep.subr.bf16.mxu0 0
    %3732 = vmatpush1.bf16.msra.mxu0 0
    %3733 = vmatprep.subr.bf16.mxu0 0
    %3734 = vmatpush1.bf16.msra.mxu0 0
    %3735 = vmatprep.subr.bf16.mxu0 0
    %3736 = vmatpush1.bf16.msra.mxu0 0
    %3737 = vmatprep.subr.bf16.mxu0 0
    %3738 = vmatpush1.bf16.msra.mxu0 0
    %3739 = vmatprep.subr.bf16.mxu0 0
    %3740 = vmatpush1.bf16.msra.mxu0 0
    %3741 = vmatprep.subr.bf16.mxu0 0
    %3742 = vmatpush1.bf16.msra.mxu0 0
    %3743 = vmatprep.subr.bf16.mxu0 0
    %3744 = vmatpush1.bf16.msra.mxu0 %v3103
    %3745 = vmatprep.subr.bf16.mxu0 0
    %3746 = vmatpush1.bf16.msra.mxu0 %v3102
    %3747 = vmatprep.subr.bf16.mxu0 0
    %3748 = vmatpush2.bf16.msra.mxu0 0
    %3749 = vmatprep.subr.bf16.mxu0 0
    %3750 = vmatpush2.bf16.msra.mxu0 0
    %3751 = vmatprep.subr.bf16.mxu0 0
    %3752 = vmatpush2.bf16.msra.mxu0 0
    %3753 = vmatprep.subr.bf16.mxu0 0
    %3754 = vmatpush2.bf16.msra.mxu0 0
    %3755 = vmatprep.subr.bf16.mxu0 0
    %3756 = vmatpush2.bf16.msra.mxu0 0
    %3757 = vmatprep.subr.bf16.mxu0 0
    %3758 = vmatpush2.bf16.msra.mxu0 0
    %3759 = vmatprep.subr.bf16.mxu0 0
    %3760 = vmatpush2.bf16.msra.mxu0 0
    %3761 = vmatprep.subr.bf16.mxu0 0
    %3762 = vmatpush2.bf16.msra.mxu0 0
    %3763 = vmatprep.mubr.bf16.mxu0 0
    %3764 = vmatmul.mubr.bf16.gmra.mxu0 %v3729
    %v3765 = vpop.f32.mrf.mxu0
    %v3766 = vadd.f32 0.0, %v3765
    %v3767 = vpop.f32.mrf.mxu0
    %v3768 = vpop.f32.mrf.mxu0
    %v3769 = vpop.f32.mrf.mxu0
    %3770 = vdwg.mxu0
    %v3771 = vadd.f32 %v3723, %v3766
    %v3772 = vxor.u32 %v3771, 2147483648
    %v3773 = vmul.f32 %v3772, 1.442695
    %v3774 = vpow.pop %v3773
    %v3775 = vadd.f32 %v3774, 1.0
    %v3776 = vrcp.pop %v3775
    %v3777 = vmul.f32 1.0, %v3776
    %v3778 = vtanh.pop %v3771
    %v3779 = vmul.f32 %v3777, %v3633
    %3781 = vrot.lane.b32.xlu0 %v3778, 32
    %v3782 = vpop.permute.xlu0 %3781
    %v3784 = vmul.f32 %v3777, %v3782
    %3786 = vrot.lane.b32.xlu0 %v3784, 32
    %v3787 = vpop.permute.xlu0 %3786
    %v3789 = vadd.f32 %v3779, %v3787
    %v3790 = vtanh.pop %v3789
    %3792 = vrot.lane.b32.xlu0 %v3790, 32
    %v3793 = vpop.permute.xlu0 %3792
    %v3795 = vmul.f32 %v3777, %v3793
    %3797 = vrot.lane.b32.xlu0 %v3795, 64
    %v3798 = vpop.permute.xlu0 %3797
    %3800 = vst.msk [vmem:[#allocation2 + $0x20] sm:$0x3] %vm306, %v3798
    %v3801 = vld [vmem:[#allocation3 + $0x38] sm:$0x3]
    %v3802 = vpack.c.bf16 %v3717, %v3717
    %3804 = vrot.lane.b32.xlu0 %v3802, 64
    %v3805 = vpop.permute.xlu0 %3804
    %v3807 = vsel %vm115, %v3805, 0
    %3809 = vmatprep.subr.bf16.mxu0 0
    %3810 = vmatpush1.bf16.msra.mxu0 0
    %3811 = vmatprep.subr.bf16.mxu0 0
    %3812 = vmatpush1.bf16.msra.mxu0 0
    %3813 = vmatprep.subr.bf16.mxu0 0
    %3814 = vmatpush1.bf16.msra.mxu0 0
    %3815 = vmatprep.subr.bf16.mxu0 0
    %3816 = vmatpush1.bf16.msra.mxu0 0
    %3817 = vmatprep.subr.bf16.mxu0 0
    %3818 = vmatpush1.bf16.msra.mxu0 0
    %3819 = vmatprep.subr.bf16.mxu0 0
    %3820 = vmatpush1.bf16.msra.mxu0 0
    %3821 = vmatprep.subr.bf16.mxu0 0
    %3822 = vmatpush1.bf16.msra.mxu0 %v3182
    %3823 = vmatprep.subr.bf16.mxu0 0
    %3824 = vmatpush1.bf16.msra.mxu0 %v3181
    %3825 = vmatprep.subr.bf16.mxu0 0
    %3826 = vmatpush2.bf16.msra.mxu0 0
    %3827 = vmatprep.subr.bf16.mxu0 0
    %3828 = vmatpush2.bf16.msra.mxu0 0
    %3829 = vmatprep.subr.bf16.mxu0 0
    %3830 = vmatpush2.bf16.msra.mxu0 0
    %3831 = vmatprep.subr.bf16.mxu0 0
    %3832 = vmatpush2.bf16.msra.mxu0 0
    %3833 = vmatprep.subr.bf16.mxu0 0
    %3834 = vmatpush2.bf16.msra.mxu0 0
    %3835 = vmatprep.subr.bf16.mxu0 0
    %3836 = vmatpush2.bf16.msra.mxu0 0
    %3837 = vmatprep.subr.bf16.mxu0 0
    %3838 = vmatpush2.bf16.msra.mxu0 0
    %3839 = vmatprep.subr.bf16.mxu0 0
    %3840 = vmatpush2.bf16.msra.mxu0 0
    %3841 = vmatprep.mubr.bf16.mxu0 0
    %3842 = vmatmul.mubr.bf16.gmra.mxu0 %v3807
    %v3843 = vpop.f32.mrf.mxu0
    %v3844 = vadd.f32 0.0, %v3843
    %v3845 = vpop.f32.mrf.mxu0
    %v3846 = vpop.f32.mrf.mxu0
    %v3847 = vpop.f32.mrf.mxu0
    %3848 = vdwg.mxu0
    %v3849 = vadd.f32 %v3801, %v3844
    %v3850 = vxor.u32 %v3849, 2147483648
    %v3851 = vmul.f32 %v3850, 1.442695
    %v3852 = vpow.pop %v3851
    %v3853 = vadd.f32 %v3852, 1.0
    %v3854 = vrcp.pop %v3853
    %v3855 = vmul.f32 1.0, %v3854
    %v3856 = vtanh.pop %v3849
    %v3857 = vmul.f32 %v3855, %v3711
    %3859 = vrot.lane.b32.xlu0 %v3856, 32
    %v3860 = vpop.permute.xlu0 %3859
    %v3862 = vmul.f32 %v3855, %v3860
    %3864 = vrot.lane.b32.xlu0 %v3862, 32
    %v3865 = vpop.permute.xlu0 %3864
    %v3867 = vadd.f32 %v3857, %v3865
    %v3868 = vtanh.pop %v3867
    %3870 = vrot.lane.b32.xlu0 %v3868, 32
    %v3871 = vpop.permute.xlu0 %3870
    %v3873 = vmul.f32 %v3855, %v3871
    %3875 = vrot.lane.b32.xlu0 %v3873, 96
    %v3876 = vpop.permute.xlu0 %3875
    %3878 = vst.msk [vmem:[#allocation2 + $0x18] sm:$0x3] %vm386, %v3876
    %v3879 = vld [vmem:[#allocation3 + $0x50] sm:$0x3]
    %v3880 = vpack.c.bf16 %v3795, %v3795
    %3882 = vrot.lane.b32.xlu0 %v3880, 64
    %v3883 = vpop.permute.xlu0 %3882
    %v3885 = vsel %vm115, %v3883, 0
    %3887 = vmatprep.subr.bf16.mxu0 0
    %3888 = vmatpush1.bf16.msra.mxu0 0
    %3889 = vmatprep.subr.bf16.mxu0 0
    %3890 = vmatpush1.bf16.msra.mxu0 0
    %3891 = vmatprep.subr.bf16.mxu0 0
    %3892 = vmatpush1.bf16.msra.mxu0 0
    %3893 = vmatprep.subr.bf16.mxu0 0
    %3894 = vmatpush1.bf16.msra.mxu0 0
    %3895 = vmatprep.subr.bf16.mxu0 0
    %3896 = vmatpush1.bf16.msra.mxu0 0
    %3897 = vmatprep.subr.bf16.mxu0 0
    %3898 = vmatpush1.bf16.msra.mxu0 0
    %3899 = vmatprep.subr.bf16.mxu0 0
    %3900 = vmatpush1.bf16.msra.mxu0 %v3103
    %3901 = vmatprep.subr.bf16.mxu0 0
    %3902 = vmatpush1.bf16.msra.mxu0 %v3102
    %3903 = vmatprep.subr.bf16.mxu0 0
    %3904 = vmatpush2.bf16.msra.mxu0 0
    %3905 = vmatprep.subr.bf16.mxu0 0
    %3906 = vmatpush2.bf16.msra.mxu0 0
    %3907 = vmatprep.subr.bf16.mxu0 0
    %3908 = vmatpush2.bf16.msra.mxu0 0
    %3909 = vmatprep.subr.bf16.mxu0 0
    %3910 = vmatpush2.bf16.msra.mxu0 0
    %3911 = vmatprep.subr.bf16.mxu0 0
    %3912 = vmatpush2.bf16.msra.mxu0 0
    %3913 = vmatprep.subr.bf16.mxu0 0
    %3914 = vmatpush2.bf16.msra.mxu0 0
    %3915 = vmatprep.subr.bf16.mxu0 0
    %3916 = vmatpush2.bf16.msra.mxu0 0
    %3917 = vmatprep.subr.bf16.mxu0 0
    %3918 = vmatpush2.bf16.msra.mxu0 0
    %3919 = vmatprep.mubr.bf16.mxu0 0
    %3920 = vmatmul.mubr.bf16.gmra.mxu0 %v3885
    %v3921 = vpop.f32.mrf.mxu0
    %v3922 = vadd.f32 0.0, %v3921
    %v3923 = vpop.f32.mrf.mxu0
    %v3924 = vpop.f32.mrf.mxu0
    %v3925 = vpop.f32.mrf.mxu0
    %3926 = vdwg.mxu0
    %v3927 = vadd.f32 %v3879, %v3922
    %v3928 = vxor.u32 %v3927, 2147483648
    %v3929 = vmul.f32 %v3928, 1.442695
    %v3930 = vpow.pop %v3929
    %v3931 = vadd.f32 %v3930, 1.0
    %v3932 = vrcp.pop %v3931
    %v3933 = vmul.f32 1.0, %v3932
    %v3934 = vtanh.pop %v3927
    %v3935 = vmul.f32 %v3933, %v3789
    %3937 = vrot.lane.b32.xlu0 %v3934, 32
    %v3938 = vpop.permute.xlu0 %3937
    %v3940 = vmul.f32 %v3933, %v3938
    %3942 = vrot.lane.b32.xlu0 %v3940, 32
    %v3943 = vpop.permute.xlu0 %3942
    %v3945 = vadd.f32 %v3935, %v3943
    %v3946 = vtanh.pop %v3945
    %3948 = vrot.lane.b32.xlu0 %v3946, 32
    %v3949 = vpop.permute.xlu0 %3948
    %v3951 = vmul.f32 %v3933, %v3949
    %3953 = vrot.lane.b32.xlu0 %v3951, 64
    %v3954 = vpop.permute.xlu0 %3953
    %3956 = vst.msk [vmem:[#allocation2 + $0x28] sm:$0x3] %vm306, %v3954
    %v3957 = vld [vmem:[#allocation3 + $0x28] sm:$0x3]
    %v3958 = vpack.c.bf16 %v3873, %v3873
    %3960 = vrot.lane.b32.xlu0 %v3958, 64
    %v3961 = vpop.permute.xlu0 %3960
    %v3963 = vsel %vm115, %v3961, 0
    %3965 = vmatprep.subr.bf16.mxu0 0
    %3966 = vmatpush1.bf16.msra.mxu0 0
    %3967 = vmatprep.subr.bf16.mxu0 0
    %3968 = vmatpush1.bf16.msra.mxu0 0
    %3969 = vmatprep.subr.bf16.mxu0 0
    %3970 = vmatpush1.bf16.msra.mxu0 0
    %3971 = vmatprep.subr.bf16.mxu0 0
    %3972 = vmatpush1.bf16.msra.mxu0 0
    %3973 = vmatprep.subr.bf16.mxu0 0
    %3974 = vmatpush1.bf16.msra.mxu0 0
    %3975 = vmatprep.subr.bf16.mxu0 0
    %3976 = vmatpush1.bf16.msra.mxu0 0
    %3977 = vmatprep.subr.bf16.mxu0 0
    %3978 = vmatpush1.bf16.msra.mxu0 %v3182
    %3979 = vmatprep.subr.bf16.mxu0 0
    %3980 = vmatpush1.bf16.msra.mxu0 %v3181
    %3981 = vmatprep.subr.bf16.mxu0 0
    %3982 = vmatpush2.bf16.msra.mxu0 0
    %3983 = vmatprep.subr.bf16.mxu0 0
    %3984 = vmatpush2.bf16.msra.mxu0 0
    %3985 = vmatprep.subr.bf16.mxu0 0
    %3986 = vmatpush2.bf16.msra.mxu0 0
    %3987 = vmatprep.subr.bf16.mxu0 0
    %3988 = vmatpush2.bf16.msra.mxu0 0
    %3989 = vmatprep.subr.bf16.mxu0 0
    %3990 = vmatpush2.bf16.msra.mxu0 0
    %3991 = vmatprep.subr.bf16.mxu0 0
    %3992 = vmatpush2.bf16.msra.mxu0 0
    %3993 = vmatprep.subr.bf16.mxu0 0
    %3994 = vmatpush2.bf16.msra.mxu0 0
    %3995 = vmatprep.subr.bf16.mxu0 0
    %3996 = vmatpush2.bf16.msra.mxu0 0
    %3997 = vmatprep.mubr.bf16.mxu0 0
    %3998 = vmatmul.mubr.bf16.gmra.mxu0 %v3963
    %v3999 = vpop.f32.mrf.mxu0
    %v4000 = vadd.f32 0.0, %v3999
    %v4001 = vpop.f32.mrf.mxu0
    %v4002 = vpop.f32.mrf.mxu0
    %v4003 = vpop.f32.mrf.mxu0
    %4004 = vdwg.mxu0
    %v4005 = vadd.f32 %v3957, %v4000
    %v4006 = vxor.u32 %v4005, 2147483648
    %v4007 = vmul.f32 %v4006, 1.442695
    %v4008 = vpow.pop %v4007
    %v4009 = vadd.f32 %v4008, 1.0
    %v4010 = vrcp.pop %v4009
    %v4011 = vmul.f32 1.0, %v4010
    %v4012 = vtanh.pop %v4005
    %v4013 = vmul.f32 %v4011, %v3867
    %4015 = vrot.lane.b32.xlu0 %v4012, 32
    %v4016 = vpop.permute.xlu0 %4015
    %v4018 = vmul.f32 %v4011, %v4016
    %4020 = vrot.lane.b32.xlu0 %v4018, 32
    %v4021 = vpop.permute.xlu0 %4020
    %v4023 = vadd.f32 %v4013, %v4021
    %v4024 = vtanh.pop %v4023
    %4026 = vrot.lane.b32.xlu0 %v4024, 32
    %v4027 = vpop.permute.xlu0 %4026
    %v4029 = vmul.f32 %v4011, %v4027
    %4031 = vrot.lane.b32.xlu0 %v4029, 96
    %v4032 = vpop.permute.xlu0 %4031
    %4034 = vst.msk [vmem:[#allocation2 + $0x10] sm:$0x3] %vm386, %v4032
    %v4035 = vld [vmem:[#allocation3 + $0x60] sm:$0x3]
    %v4036 = vpack.c.bf16 %v3951, %v3951
    %4038 = vrot.lane.b32.xlu0 %v4036, 64
    %v4039 = vpop.permute.xlu0 %4038
    %v4041 = vsel %vm115, %v4039, 0
    %4043 = vmatprep.subr.bf16.mxu0 0
    %4044 = vmatpush1.bf16.msra.mxu0 0
    %4045 = vmatprep.subr.bf16.mxu0 0
    %4046 = vmatpush1.bf16.msra.mxu0 0
    %4047 = vmatprep.subr.bf16.mxu0 0
    %4048 = vmatpush1.bf16.msra.mxu0 0
    %4049 = vmatprep.subr.bf16.mxu0 0
    %4050 = vmatpush1.bf16.msra.mxu0 0
    %4051 = vmatprep.subr.bf16.mxu0 0
    %4052 = vmatpush1.bf16.msra.mxu0 0
    %4053 = vmatprep.subr.bf16.mxu0 0
    %4054 = vmatpush1.bf16.msra.mxu0 0
    %4055 = vmatprep.subr.bf16.mxu0 0
    %4056 = vmatpush1.bf16.msra.mxu0 %v3103
    %4057 = vmatprep.subr.bf16.mxu0 0
    %4058 = vmatpush1.bf16.msra.mxu0 %v3102
    %4059 = vmatprep.subr.bf16.mxu0 0
    %4060 = vmatpush2.bf16.msra.mxu0 0
    %4061 = vmatprep.subr.bf16.mxu0 0
    %4062 = vmatpush2.bf16.msra.mxu0 0
    %4063 = vmatprep.subr.bf16.mxu0 0
    %4064 = vmatpush2.bf16.msra.mxu0 0
    %4065 = vmatprep.subr.bf16.mxu0 0
    %4066 = vmatpush2.bf16.msra.mxu0 0
    %4067 = vmatprep.subr.bf16.mxu0 0
    %4068 = vmatpush2.bf16.msra.mxu0 0
    %4069 = vmatprep.subr.bf16.mxu0 0
    %4070 = vmatpush2.bf16.msra.mxu0 0
    %4071 = vmatprep.subr.bf16.mxu0 0
    %4072 = vmatpush2.bf16.msra.mxu0 0
    %4073 = vmatprep.subr.bf16.mxu0 0
    %4074 = vmatpush2.bf16.msra.mxu0 0
    %4075 = vmatprep.mubr.bf16.mxu0 0
    %4076 = vmatmul.mubr.bf16.gmra.mxu0 %v4041
    %v4077 = vpop.f32.mrf.mxu0
    %v4078 = vadd.f32 0.0, %v4077
    %v4079 = vpop.f32.mrf.mxu0
    %v4080 = vpop.f32.mrf.mxu0
    %v4081 = vpop.f32.mrf.mxu0
    %4082 = vdwg.mxu0
    %v4083 = vadd.f32 %v4035, %v4078
    %v4084 = vxor.u32 %v4083, 2147483648
    %v4085 = vmul.f32 %v4084, 1.442695
    %v4086 = vpow.pop %v4085
    %v4087 = vadd.f32 %v4086, 1.0
    %v4088 = vrcp.pop %v4087
    %v4089 = vmul.f32 1.0, %v4088
    %v4090 = vtanh.pop %v4083
    %v4091 = vmul.f32 %v4089, %v3945
    %4093 = vrot.lane.b32.xlu0 %v4090, 32
    %v4094 = vpop.permute.xlu0 %4093
    %v4096 = vmul.f32 %v4089, %v4094
    %4098 = vrot.lane.b32.xlu0 %v4096, 32
    %v4099 = vpop.permute.xlu0 %4098
    %v4101 = vadd.f32 %v4091, %v4099
    %v4102 = vtanh.pop %v4101
    %4104 = vrot.lane.b32.xlu0 %v4102, 32
    %v4105 = vpop.permute.xlu0 %4104
    %v4107 = vmul.f32 %v4089, %v4105
    %4109 = vrot.lane.b32.xlu0 %v4107, 64
    %v4110 = vpop.permute.xlu0 %4109
    %4112 = vst.msk [vmem:[#allocation2 + $0x30] sm:$0x3] %vm306, %v4110
    %v4113 = vld [vmem:[#allocation3 + $0x18] sm:$0x3]
    %v4114 = vpack.c.bf16 %v4029, %v4029
    %4116 = vrot.lane.b32.xlu0 %v4114, 64
    %v4117 = vpop.permute.xlu0 %4116
    %v4119 = vsel %vm115, %v4117, 0
    %4121 = vmatprep.subr.bf16.mxu0 0
    %4122 = vmatpush1.bf16.msra.mxu0 0
    %4123 = vmatprep.subr.bf16.mxu0 0
    %4124 = vmatpush1.bf16.msra.mxu0 0
    %4125 = vmatprep.subr.bf16.mxu0 0
    %4126 = vmatpush1.bf16.msra.mxu0 0
    %4127 = vmatprep.subr.bf16.mxu0 0
    %4128 = vmatpush1.bf16.msra.mxu0 0
    %4129 = vmatprep.subr.bf16.mxu0 0
    %4130 = vmatpush1.bf16.msra.mxu0 0
    %4131 = vmatprep.subr.bf16.mxu0 0
    %4132 = vmatpush1.bf16.msra.mxu0 0
    %4133 = vmatprep.subr.bf16.mxu0 0
    %4134 = vmatpush1.bf16.msra.mxu0 %v3182
    %4135 = vmatprep.subr.bf16.mxu0 0
    %4136 = vmatpush1.bf16.msra.mxu0 %v3181
    %4137 = vmatprep.subr.bf16.mxu0 0
    %4138 = vmatpush2.bf16.msra.mxu0 0
    %4139 = vmatprep.subr.bf16.mxu0 0
    %4140 = vmatpush2.bf16.msra.mxu0 0
    %4141 = vmatprep.subr.bf16.mxu0 0
    %4142 = vmatpush2.bf16.msra.mxu0 0
    %4143 = vmatprep.subr.bf16.mxu0 0
    %4144 = vmatpush2.bf16.msra.mxu0 0
    %4145 = vmatprep.subr.bf16.mxu0 0
    %4146 = vmatpush2.bf16.msra.mxu0 0
    %4147 = vmatprep.subr.bf16.mxu0 0
    %4148 = vmatpush2.bf16.msra.mxu0 0
    %4149 = vmatprep.subr.bf16.mxu0 0
    %4150 = vmatpush2.bf16.msra.mxu0 0
    %4151 = vmatprep.subr.bf16.mxu0 0
    %4152 = vmatpush2.bf16.msra.mxu0 0
    %4153 = vmatprep.mubr.bf16.mxu0 0
    %4154 = vmatmul.mubr.bf16.gmra.mxu0 %v4119
    %v4155 = vpop.f32.mrf.mxu0
    %v4156 = vadd.f32 0.0, %v4155
    %v4157 = vpop.f32.mrf.mxu0
    %v4158 = vpop.f32.mrf.mxu0
    %v4159 = vpop.f32.mrf.mxu0
    %4160 = vdwg.mxu0
    %v4161 = vadd.f32 %v4113, %v4156
    %v4162 = vxor.u32 %v4161, 2147483648
    %v4163 = vmul.f32 %v4162, 1.442695
    %v4164 = vpow.pop %v4163
    %v4165 = vadd.f32 %v4164, 1.0
    %v4166 = vrcp.pop %v4165
    %v4167 = vmul.f32 1.0, %v4166
    %v4168 = vtanh.pop %v4161
    %v4169 = vmul.f32 %v4167, %v4023
    %4171 = vrot.lane.b32.xlu0 %v4168, 32
    %v4172 = vpop.permute.xlu0 %4171
    %v4174 = vmul.f32 %v4167, %v4172
    %4176 = vrot.lane.b32.xlu0 %v4174, 32
    %v4177 = vpop.permute.xlu0 %4176
    %v4179 = vadd.f32 %v4169, %v4177
    %v4180 = vtanh.pop %v4179
    %4182 = vrot.lane.b32.xlu0 %v4180, 32
    %v4183 = vpop.permute.xlu0 %4182
    %v4185 = vmul.f32 %v4167, %v4183
    %4187 = vrot.lane.b32.xlu0 %v4185, 96
    %v4188 = vpop.permute.xlu0 %4187
    %4190 = vst.msk [vmem:[#allocation2 + $0x8] sm:$0x3] %vm386, %v4188
    %v4191 = vld [vmem:[#allocation3 + $0x70] sm:$0x3]
    %v4192 = vpack.c.bf16 %v4107, %v4107
    %4194 = vrot.lane.b32.xlu0 %v4192, 64
    %v4195 = vpop.permute.xlu0 %4194
    %v4197 = vsel %vm115, %v4195, 0
    %4199 = vmatprep.subr.bf16.mxu0 0
    %4200 = vmatpush1.bf16.msra.mxu0 0
    %4201 = vmatprep.subr.bf16.mxu0 0
    %4202 = vmatpush1.bf16.msra.mxu0 0
    %4203 = vmatprep.subr.bf16.mxu0 0
    %4204 = vmatpush1.bf16.msra.mxu0 0
    %4205 = vmatprep.subr.bf16.mxu0 0
    %4206 = vmatpush1.bf16.msra.mxu0 0
    %4207 = vmatprep.subr.bf16.mxu0 0
    %4208 = vmatpush1.bf16.msra.mxu0 0
    %4209 = vmatprep.subr.bf16.mxu0 0
    %4210 = vmatpush1.bf16.msra.mxu0 0
    %4211 = vmatprep.subr.bf16.mxu0 0
    %4212 = vmatpush1.bf16.msra.mxu0 %v3103
    %4213 = vmatprep.subr.bf16.mxu0 0
    %4214 = vmatpush1.bf16.msra.mxu0 %v3102
    %4215 = vmatprep.subr.bf16.mxu0 0
    %4216 = vmatpush2.bf16.msra.mxu0 0
    %4217 = vmatprep.subr.bf16.mxu0 0
    %4218 = vmatpush2.bf16.msra.mxu0 0
    %4219 = vmatprep.subr.bf16.mxu0 0
    %4220 = vmatpush2.bf16.msra.mxu0 0
    %4221 = vmatprep.subr.bf16.mxu0 0
    %4222 = vmatpush2.bf16.msra.mxu0 0
    %4223 = vmatprep.subr.bf16.mxu0 0
    %4224 = vmatpush2.bf16.msra.mxu0 0
    %4225 = vmatprep.subr.bf16.mxu0 0
    %4226 = vmatpush2.bf16.msra.mxu0 0
    %4227 = vmatprep.subr.bf16.mxu0 0
    %4228 = vmatpush2.bf16.msra.mxu0 0
    %4229 = vmatprep.subr.bf16.mxu0 0
    %4230 = vmatpush2.bf16.msra.mxu0 0
    %4231 = vmatprep.mubr.bf16.mxu0 0
    %4232 = vmatmul.mubr.bf16.gmra.mxu0 %v4197
    %v4233 = vpop.f32.mrf.mxu0
    %v4234 = vadd.f32 0.0, %v4233
    %v4235 = vpop.f32.mrf.mxu0
    %v4236 = vpop.f32.mrf.mxu0
    %v4237 = vpop.f32.mrf.mxu0
    %4238 = vdwg.mxu0
    %v4239 = vadd.f32 %v4191, %v4234
    %v4240 = vxor.u32 %v4239, 2147483648
    %v4241 = vmul.f32 %v4240, 1.442695
    %v4242 = vpow.pop %v4241
    %v4243 = vadd.f32 %v4242, 1.0
    %v4244 = vrcp.pop %v4243
    %v4245 = vmul.f32 1.0, %v4244
    %v4246 = vtanh.pop %v4239
    %v4247 = vmul.f32 %v4245, %v4101
    %4249 = vrot.lane.b32.xlu0 %v4246, 32
    %v4250 = vpop.permute.xlu0 %4249
    %v4252 = vmul.f32 %v4245, %v4250
    %4254 = vrot.lane.b32.xlu0 %v4252, 32
    %v4255 = vpop.permute.xlu0 %4254
    %v4257 = vadd.f32 %v4247, %v4255
    %v4258 = vtanh.pop %v4257
    %4260 = vrot.lane.b32.xlu0 %v4258, 32
    %v4261 = vpop.permute.xlu0 %4260
    %v4263 = vmul.f32 %v4245, %v4261
    %4265 = vrot.lane.b32.xlu0 %v4263, 64
    %v4266 = vpop.permute.xlu0 %4265
    %4268 = vst.msk [vmem:[#allocation2 + $0x38] sm:$0x3] %vm306, %v4266
    %v4269 = vld [vmem:[#allocation3 + $0x8] sm:$0x3]
    %v4270 = vpack.c.bf16 %v4185, %v4185
    %4272 = vrot.lane.b32.xlu0 %v4270, 64
    %v4273 = vpop.permute.xlu0 %4272
    %v4275 = vsel %vm115, %v4273, 0
    %4277 = vmatprep.subr.bf16.mxu0 0
    %4278 = vmatpush1.bf16.msra.mxu0 0
    %4279 = vmatprep.subr.bf16.mxu0 0
    %4280 = vmatpush1.bf16.msra.mxu0 0
    %4281 = vmatprep.subr.bf16.mxu0 0
    %4282 = vmatpush1.bf16.msra.mxu0 0
    %4283 = vmatprep.subr.bf16.mxu0 0
    %4284 = vmatpush1.bf16.msra.mxu0 0
    %4285 = vmatprep.subr.bf16.mxu0 0
    %4286 = vmatpush1.bf16.msra.mxu0 0
    %4287 = vmatprep.subr.bf16.mxu0 0
    %4288 = vmatpush1.bf16.msra.mxu0 0
    %4289 = vmatprep.subr.bf16.mxu0 0
    %4290 = vmatpush1.bf16.msra.mxu0 %v3182
    %4291 = vmatprep.subr.bf16.mxu0 0
    %4292 = vmatpush1.bf16.msra.mxu0 %v3181
    %4293 = vmatprep.subr.bf16.mxu0 0
    %4294 = vmatpush2.bf16.msra.mxu0 0
    %4295 = vmatprep.subr.bf16.mxu0 0
    %4296 = vmatpush2.bf16.msra.mxu0 0
    %4297 = vmatprep.subr.bf16.mxu0 0
    %4298 = vmatpush2.bf16.msra.mxu0 0
    %4299 = vmatprep.subr.bf16.mxu0 0
    %4300 = vmatpush2.bf16.msra.mxu0 0
    %4301 = vmatprep.subr.bf16.mxu0 0
    %4302 = vmatpush2.bf16.msra.mxu0 0
    %4303 = vmatprep.subr.bf16.mxu0 0
    %4304 = vmatpush2.bf16.msra.mxu0 0
    %4305 = vmatprep.subr.bf16.mxu0 0
    %4306 = vmatpush2.bf16.msra.mxu0 0
    %4307 = vmatprep.subr.bf16.mxu0 0
    %4308 = vmatpush2.bf16.msra.mxu0 0
    %4309 = vmatprep.mubr.bf16.mxu0 0
    %4310 = vmatmul.mubr.bf16.gmra.mxu0 %v4275
    %v4311 = vpop.f32.mrf.mxu0
    %v4312 = vadd.f32 0.0, %v4311
    %v4313 = vpop.f32.mrf.mxu0
    %v4314 = vpop.f32.mrf.mxu0
    %v4315 = vpop.f32.mrf.mxu0
    %4316 = vdwg.mxu0
    %v4317 = vadd.f32 %v4269, %v4312
    %v4318 = vxor.u32 %v4317, 2147483648
    %v4319 = vmul.f32 %v4318, 1.442695
    %v4320 = vpow.pop %v4319
    %v4321 = vadd.f32 %v4320, 1.0
    %v4322 = vrcp.pop %v4321
    %v4323 = vmul.f32 1.0, %v4322
    %v4324 = vtanh.pop %v4317
    %v4325 = vmul.f32 %v4323, %v4179
    %4327 = vrot.lane.b32.xlu0 %v4324, 32
    %v4328 = vpop.permute.xlu0 %4327
    %v4330 = vmul.f32 %v4323, %v4328
    %4332 = vrot.lane.b32.xlu0 %v4330, 32
    %v4333 = vpop.permute.xlu0 %4332
    %v4335 = vadd.f32 %v4325, %v4333
    %v4336 = vtanh.pop %v4335
    %4338 = vrot.lane.b32.xlu0 %v4336, 32
    %v4339 = vpop.permute.xlu0 %4338
    %v4341 = vmul.f32 %v4323, %v4339
    %4343 = vrot.lane.b32.xlu0 %v4341, 96
    %v4344 = vpop.permute.xlu0 %4343
    %4346 = vst.msk [vmem:[#allocation2] sm:$0x3] %vm386, %v4344
    %v4347 = vld [vmem:[#allocation2] sm:$0xff]
    %v4348 = vld [vmem:[#allocation2 + $0x8] sm:$0xff]
    %v4349 = vld [vmem:[#allocation2 + $0x10] sm:$0xff]
    %v4350 = vld [vmem:[#allocation2 + $0x18] sm:$0xff]
    %v4351 = vld [vmem:[#allocation2 + $0x20] sm:$0xff]
    %v4352 = vld [vmem:[#allocation2 + $0x28] sm:$0xff]
    %v4353 = vld [vmem:[#allocation2 + $0x30] sm:$0xff]
    %v4354 = vld [vmem:[#allocation2 + $0x38] sm:$0xff]
    %v4355 = vpack.c.bf16 %v4348, %v4347
    %v4356 = vpack.c.bf16 %v4350, %v4349
    %v4357 = vpack.c.bf16 %v4352, %v4351
    %v4358 = vpack.c.bf16 %v4354, %v4353
    %s4359 = scalar_lea.vmem %s2, 128
    %v4360 = vld [vmem:[%s4359] sm:$0xff]
    %v4361 = vld [vmem:[%s4359 + $0x8] sm:$0xff]
    %v4362 = vld [vmem:[%s4359 + $0x10] sm:$0xff]
    %v4363 = vld [vmem:[%s4359 + $0x18] sm:$0xff]
    %v4364 = vld [vmem:[%s4359 + $0x20] sm:$0xff]
    %v4365 = vld [vmem:[%s4359 + $0x28] sm:$0xff]
    %v4366 = vld [vmem:[%s4359 + $0x30] sm:$0xff]
    %v4367 = vld [vmem:[%s4359 + $0x38] sm:$0xff]
    %s4368 = scalar_lea.vmem %s4, 6
    %v4369 = vld [vmem:[%s4368] sm:$0x3]
    %v4371 = vlaneseq
    %v4372 = vshrl.u32 %v4371, 7
    %v4373 = vsub.s32 0, %v4372
    %v4374 = vrot.slane %v4369, %v4373
    %v4375 = vlaneseq
    %v4376 = vshrl.u32 %v4375, 7
    %v4377 = vsub.s32 1, %v4376
    %v4378 = vrot.slane %v4369, %v4377
    %v4389 = vunpack.c.l.b16 %v4360
    %v4390 = vunpack.c.h.b16 %v4360
    %v4391 = vunpack.c.l.b16 %v4361
    %v4392 = vunpack.c.h.b16 %v4361
    %v4393 = vunpack.c.l.b16 %v4362
    %v4394 = vunpack.c.h.b16 %v4362
    %v4395 = vunpack.c.l.b16 %v4363
    %v4396 = vunpack.c.h.b16 %v4363
    %v4397 = vunpack.c.l.b16 %v4364
    %v4398 = vunpack.c.h.b16 %v4364
    %v4399 = vunpack.c.l.b16 %v4365
    %v4400 = vunpack.c.h.b16 %v4365
    %v4401 = vunpack.c.l.b16 %v4366
    %v4402 = vunpack.c.h.b16 %v4366
    %v4403 = vunpack.c.l.b16 %v4367
    %v4404 = vunpack.c.h.b16 %v4367
    %v4405 = vpack.c.b16 %v4391, %v4389
    %v4406 = vpack.c.b16 %v4392, %v4390
    %v4407 = vpack.c.b16 %v4395, %v4393
    %v4408 = vpack.c.b16 %v4396, %v4394
    %v4409 = vpack.c.b16 %v4399, %v4397
    %v4410 = vpack.c.b16 %v4400, %v4398
    %v4411 = vpack.c.b16 %v4403, %v4401
    %v4412 = vpack.c.b16 %v4404, %v4402
    %v4422 = vsel %vm42, %v4355, 0
    %v4425 = vsel %vm42, %v4356, 0
    %v4428 = vsel %vm42, %v4357, 0
    %v4431 = vsel %vm42, %v4358, 0
    %4433 = vmatprep.subr.bf16.mxu0 0
    %4434 = vmatpush1.bf16.msra.mxu0 0
    %4435 = vmatprep.subr.bf16.mxu0 0
    %4436 = vmatpush1.bf16.msra.mxu0 0
    %4437 = vmatprep.subr.bf16.mxu0 0
    %4438 = vmatpush1.bf16.msra.mxu0 0
    %4439 = vmatprep.subr.bf16.mxu0 0
    %4440 = vmatpush1.bf16.msra.mxu0 0
    %4441 = vmatprep.subr.bf16.mxu0 %v4412
    %4442 = vmatpush1.bf16.msra.mxu0 %v4411
    %4443 = vmatprep.subr.bf16.mxu0 %v4410
    %4444 = vmatpush1.bf16.msra.mxu0 %v4409
    %4445 = vmatprep.subr.bf16.mxu0 %v4408
    %4446 = vmatpush1.bf16.msra.mxu0 %v4407
    %4447 = vmatprep.subr.bf16.mxu0 %v4406
    %4448 = vmatpush1.bf16.msra.mxu0 %v4405
    %4449 = vmatprep.subr.bf16.mxu0 0
    %4450 = vmatpush2.bf16.msra.mxu0 0
    %4451 = vmatprep.subr.bf16.mxu0 0
    %4452 = vmatpush2.bf16.msra.mxu0 0
    %4453 = vmatprep.subr.bf16.mxu0 0
    %4454 = vmatpush2.bf16.msra.mxu0 0
    %4455 = vmatprep.subr.bf16.mxu0 0
    %4456 = vmatpush2.bf16.msra.mxu0 0
    %4457 = vmatprep.subr.bf16.mxu0 0
    %4458 = vmatpush2.bf16.msra.mxu0 0
    %4459 = vmatprep.subr.bf16.mxu0 0
    %4460 = vmatpush2.bf16.msra.mxu0 0
    %4461 = vmatprep.subr.bf16.mxu0 0
    %4462 = vmatpush2.bf16.msra.mxu0 0
    %4463 = vmatprep.subr.bf16.mxu0 0
    %4464 = vmatpush2.bf16.msra.mxu0 0
    %4465 = vmatprep.mubr.bf16.mxu0 0
    %4466 = vmatmul.mubr.bf16.gmra.mxu0 %v4422
    %v4467 = vpop.f32.mrf.mxu0
    %v4468 = vadd.f32 %v4374, %v4467
    %v4469 = vpop.f32.mrf.mxu0
    %v4470 = vadd.f32 %v4378, %v4469
    %v4471 = vpop.f32.mrf.mxu0
    %v4472 = vadd.f32 %v4374, %v4471
    %v4473 = vpop.f32.mrf.mxu0
    %v4474 = vadd.f32 %v4378, %v4473
    %4475 = vmatprep.mubr.bf16.mxu0 0
    %4476 = vmatmul.mubr.bf16.gmra.mxu0 %v4425
    %v4477 = vpop.f32.mrf.mxu0
    %v4478 = vadd.f32 %v4374, %v4477
    %v4479 = vpop.f32.mrf.mxu0
    %v4480 = vadd.f32 %v4378, %v4479
    %v4481 = vpop.f32.mrf.mxu0
    %v4482 = vadd.f32 %v4374, %v4481
    %v4483 = vpop.f32.mrf.mxu0
    %v4484 = vadd.f32 %v4378, %v4483
    %4485 = vmatprep.mubr.bf16.mxu0 0
    %4486 = vmatmul.mubr.bf16.gmra.mxu0 %v4428
    %v4487 = vpop.f32.mrf.mxu0
    %v4488 = vadd.f32 %v4374, %v4487
    %v4489 = vpop.f32.mrf.mxu0
    %v4490 = vadd.f32 %v4378, %v4489
    %v4491 = vpop.f32.mrf.mxu0
    %v4492 = vadd.f32 %v4374, %v4491
    %v4493 = vpop.f32.mrf.mxu0
    %v4494 = vadd.f32 %v4378, %v4493
    %4495 = vmatprep.mubr.bf16.mxu0 0
    %4496 = vmatmul.mubr.bf16.gmra.mxu0 %v4431
    %v4497 = vpop.f32.mrf.mxu0
    %v4498 = vadd.f32 %v4374, %v4497
    %v4499 = vpop.f32.mrf.mxu0
    %v4500 = vadd.f32 %v4378, %v4499
    %v4501 = vpop.f32.mrf.mxu0
    %v4502 = vadd.f32 %v4374, %v4501
    %v4503 = vpop.f32.mrf.mxu0
    %v4504 = vadd.f32 %v4378, %v4503
    %4505 = vdwg.mxu0
    %4506 = vst [vmem:[#allocation3] sm:$0xff] %v4468
    %4507 = vst [vmem:[#allocation3 + $0x8] sm:$0xff] %v4470
    %4508 = vst [vmem:[#allocation3 + $0x10] sm:$0xff] %v4472
    %4509 = vst [vmem:[#allocation3 + $0x18] sm:$0xff] %v4474
    %4510 = vst [vmem:[#allocation3 + $0x20] sm:$0xff] %v4478
    %4511 = vst [vmem:[#allocation3 + $0x28] sm:$0xff] %v4480
    %4512 = vst [vmem:[#allocation3 + $0x30] sm:$0xff] %v4482
    %4513 = vst [vmem:[#allocation3 + $0x38] sm:$0xff] %v4484
    %4514 = vst [vmem:[#allocation3 + $0x40] sm:$0xff] %v4488
    %4515 = vst [vmem:[#allocation3 + $0x48] sm:$0xff] %v4490
    %4516 = vst [vmem:[#allocation3 + $0x50] sm:$0xff] %v4492
    %4517 = vst [vmem:[#allocation3 + $0x58] sm:$0xff] %v4494
    %4518 = vst [vmem:[#allocation3 + $0x60] sm:$0xff] %v4498
    %4519 = vst [vmem:[#allocation3 + $0x68] sm:$0xff] %v4500
    %4520 = vst [vmem:[#allocation3 + $0x70] sm:$0xff] %v4502
    %4521 = vst [vmem:[#allocation3 + $0x78] sm:$0xff] %v4504
    %s4522 = scalar_lea.vmem [#allocation4], 96
    %v4523 = vld [vmem:[%s4522] sm:$0xff]
    %v4524 = vld [vmem:[%s4522 + $0x8] sm:$0xff]
    %v4525 = vld [vmem:[%s4522 + $0x10] sm:$0xff]
    %v4526 = vld [vmem:[%s4522 + $0x18] sm:$0xff]
    %v4527 = vld [vmem:[#allocation3] sm:$0x3]
    %v4532 = vunpack.c.l.b16 %v4523
    %v4533 = vunpack.c.l.b16 %v4524
    %v4534 = vunpack.c.l.b16 %v4525
    %v4535 = vunpack.c.l.b16 %v4526
    %v4536 = vpack.c.b16 %v4533, %v4532
    %v4537 = vpack.c.b16 %v4535, %v4534
    %4540 = vmatprep.subr.bf16.mxu0 0
    %4541 = vmatpush1.bf16.msra.mxu0 0
    %4542 = vmatprep.subr.bf16.mxu0 0
    %4543 = vmatpush1.bf16.msra.mxu0 0
    %4544 = vmatprep.subr.bf16.mxu0 0
    %4545 = vmatpush1.bf16.msra.mxu0 0
    %4546 = vmatprep.subr.bf16.mxu0 0
    %4547 = vmatpush1.bf16.msra.mxu0 0
    %4548 = vmatprep.subr.bf16.mxu0 0
    %4549 = vmatpush1.bf16.msra.mxu0 0
    %4550 = vmatprep.subr.bf16.mxu0 0
    %4551 = vmatpush1.bf16.msra.mxu0 0
    %4552 = vmatprep.subr.bf16.mxu0 0
    %4553 = vmatpush1.bf16.msra.mxu0 %v4537
    %4554 = vmatprep.subr.bf16.mxu0 0
    %4555 = vmatpush1.bf16.msra.mxu0 %v4536
    %4556 = vmatprep.subr.bf16.mxu0 0
    %4557 = vmatpush2.bf16.msra.mxu0 0
    %4558 = vmatprep.subr.bf16.mxu0 0
    %4559 = vmatpush2.bf16.msra.mxu0 0
    %4560 = vmatprep.subr.bf16.mxu0 0
    %4561 = vmatpush2.bf16.msra.mxu0 0
    %4562 = vmatprep.subr.bf16.mxu0 0
    %4563 = vmatpush2.bf16.msra.mxu0 0
    %4564 = vmatprep.subr.bf16.mxu0 0
    %4565 = vmatpush2.bf16.msra.mxu0 0
    %4566 = vmatprep.subr.bf16.mxu0 0
    %4567 = vmatpush2.bf16.msra.mxu0 0
    %4568 = vmatprep.subr.bf16.mxu0 0
    %4569 = vmatpush2.bf16.msra.mxu0 0
    %4570 = vmatprep.subr.bf16.mxu0 0
    %4571 = vmatpush2.bf16.msra.mxu0 0
    %4572 = vmatprep.mubr.bf16.mxu0 0
    %4573 = vmatmul.mubr.bf16.gmra.mxu0 %v235
    %v4574 = vpop.f32.mrf.mxu0
    %v4575 = vadd.f32 0.0, %v4574
    %v4576 = vpop.f32.mrf.mxu0
    %v4577 = vpop.f32.mrf.mxu0
    %v4578 = vpop.f32.mrf.mxu0
    %4579 = vdwg.mxu0
    %v4580 = vadd.f32 %v4527, %v4575
    %v4581 = vxor.u32 %v4580, 2147483648
    %v4582 = vmul.f32 %v4581, 1.442695
    %v4583 = vpow.pop %v4582
    %v4584 = vadd.f32 %v4583, 1.0
    %v4585 = vrcp.pop %v4584
    %v4586 = vmul.f32 1.0, %v4585
    %v4587 = vtanh.pop %v4580
    %v4588 = vmul.f32 %v4586, 0.0
    %4590 = vrot.lane.b32.xlu0 %v4587, 32
    %v4591 = vpop.permute.xlu0 %4590
    %v4593 = vmul.f32 %v4586, %v4591
    %4595 = vrot.lane.b32.xlu0 %v4593, 32
    %v4596 = vpop.permute.xlu0 %4595
    %v4598 = vadd.f32 %v4588, %v4596
    %v4599 = vtanh.pop %v4598
    %4601 = vrot.lane.b32.xlu0 %v4599, 32
    %v4602 = vpop.permute.xlu0 %4601
    %v4604 = vmul.f32 %v4586, %v4602
    %4606 = vrot.lane.b32.xlu0 %v4604, 64
    %v4607 = vpop.permute.xlu0 %4606
    %4609 = vst.msk [vmem:[#allocation2] sm:$0x3] %vm306, %v4607
    %v4610 = vld [vmem:[#allocation3 + $0x78] sm:$0x3]
    %v4611 = vunpack.c.h.b16 %v4523
    %v4612 = vunpack.c.h.b16 %v4524
    %v4613 = vunpack.c.h.b16 %v4525
    %v4614 = vunpack.c.h.b16 %v4526
    %v4615 = vpack.c.b16 %v4612, %v4611
    %v4616 = vpack.c.b16 %v4614, %v4613
    %4619 = vmatprep.subr.bf16.mxu0 0
    %4620 = vmatpush1.bf16.msra.mxu0 0
    %4621 = vmatprep.subr.bf16.mxu0 0
    %4622 = vmatpush1.bf16.msra.mxu0 0
    %4623 = vmatprep.subr.bf16.mxu0 0
    %4624 = vmatpush1.bf16.msra.mxu0 0
    %4625 = vmatprep.subr.bf16.mxu0 0
    %4626 = vmatpush1.bf16.msra.mxu0 0
    %4627 = vmatprep.subr.bf16.mxu0 0
    %4628 = vmatpush1.bf16.msra.mxu0 0
    %4629 = vmatprep.subr.bf16.mxu0 0
    %4630 = vmatpush1.bf16.msra.mxu0 0
    %4631 = vmatprep.subr.bf16.mxu0 0
    %4632 = vmatpush1.bf16.msra.mxu0 %v4616
    %4633 = vmatprep.subr.bf16.mxu0 0
    %4634 = vmatpush1.bf16.msra.mxu0 %v4615
    %4635 = vmatprep.subr.bf16.mxu0 0
    %4636 = vmatpush2.bf16.msra.mxu0 0
    %4637 = vmatprep.subr.bf16.mxu0 0
    %4638 = vmatpush2.bf16.msra.mxu0 0
    %4639 = vmatprep.subr.bf16.mxu0 0
    %4640 = vmatpush2.bf16.msra.mxu0 0
    %4641 = vmatprep.subr.bf16.mxu0 0
    %4642 = vmatpush2.bf16.msra.mxu0 0
    %4643 = vmatprep.subr.bf16.mxu0 0
    %4644 = vmatpush2.bf16.msra.mxu0 0
    %4645 = vmatprep.subr.bf16.mxu0 0
    %4646 = vmatpush2.bf16.msra.mxu0 0
    %4647 = vmatprep.subr.bf16.mxu0 0
    %4648 = vmatpush2.bf16.msra.mxu0 0
    %4649 = vmatprep.subr.bf16.mxu0 0
    %4650 = vmatpush2.bf16.msra.mxu0 0
    %4651 = vmatprep.mubr.bf16.mxu0 0
    %4652 = vmatmul.mubr.bf16.gmra.mxu0 %v235
    %v4653 = vpop.f32.mrf.mxu0
    %v4654 = vadd.f32 0.0, %v4653
    %v4655 = vpop.f32.mrf.mxu0
    %v4656 = vpop.f32.mrf.mxu0
    %v4657 = vpop.f32.mrf.mxu0
    %4658 = vdwg.mxu0
    %v4659 = vadd.f32 %v4610, %v4654
    %v4660 = vxor.u32 %v4659, 2147483648
    %v4661 = vmul.f32 %v4660, 1.442695
    %v4662 = vpow.pop %v4661
    %v4663 = vadd.f32 %v4662, 1.0
    %v4664 = vrcp.pop %v4663
    %v4665 = vmul.f32 1.0, %v4664
    %v4666 = vtanh.pop %v4659
    %v4667 = vmul.f32 %v4665, 0.0
    %4669 = vrot.lane.b32.xlu0 %v4666, 32
    %v4670 = vpop.permute.xlu0 %4669
    %v4672 = vmul.f32 %v4665, %v4670
    %4674 = vrot.lane.b32.xlu0 %v4672, 32
    %v4675 = vpop.permute.xlu0 %4674
    %v4677 = vadd.f32 %v4667, %v4675
    %v4678 = vtanh.pop %v4677
    %4680 = vrot.lane.b32.xlu0 %v4678, 32
    %v4681 = vpop.permute.xlu0 %4680
    %v4683 = vmul.f32 %v4665, %v4681
    %4685 = vrot.lane.b32.xlu0 %v4683, 96
    %v4686 = vpop.permute.xlu0 %4685
    %4688 = vst.msk [vmem:[#allocation2 + $0x38] sm:$0x3] %vm386, %v4686
    %v4689 = vld [vmem:[#allocation3 + $0x10] sm:$0x3]
    %v4690 = vpack.c.bf16 %v4604, %v4604
    %4692 = vrot.lane.b32.xlu0 %v4690, 64
    %v4693 = vpop.permute.xlu0 %4692
    %v4695 = vsel %vm115, %v4693, 0
    %4697 = vmatprep.subr.bf16.mxu0 0
    %4698 = vmatpush1.bf16.msra.mxu0 0
    %4699 = vmatprep.subr.bf16.mxu0 0
    %4700 = vmatpush1.bf16.msra.mxu0 0
    %4701 = vmatprep.subr.bf16.mxu0 0
    %4702 = vmatpush1.bf16.msra.mxu0 0
    %4703 = vmatprep.subr.bf16.mxu0 0
    %4704 = vmatpush1.bf16.msra.mxu0 0
    %4705 = vmatprep.subr.bf16.mxu0 0
    %4706 = vmatpush1.bf16.msra.mxu0 0
    %4707 = vmatprep.subr.bf16.mxu0 0
    %4708 = vmatpush1.bf16.msra.mxu0 0
    %4709 = vmatprep.subr.bf16.mxu0 0
    %4710 = vmatpush1.bf16.msra.mxu0 %v4537
    %4711 = vmatprep.subr.bf16.mxu0 0
    %4712 = vmatpush1.bf16.msra.mxu0 %v4536
    %4713 = vmatprep.subr.bf16.mxu0 0
    %4714 = vmatpush2.bf16.msra.mxu0 0
    %4715 = vmatprep.subr.bf16.mxu0 0
    %4716 = vmatpush2.bf16.msra.mxu0 0
    %4717 = vmatprep.subr.bf16.mxu0 0
    %4718 = vmatpush2.bf16.msra.mxu0 0
    %4719 = vmatprep.subr.bf16.mxu0 0
    %4720 = vmatpush2.bf16.msra.mxu0 0
    %4721 = vmatprep.subr.bf16.mxu0 0
    %4722 = vmatpush2.bf16.msra.mxu0 0
    %4723 = vmatprep.subr.bf16.mxu0 0
    %4724 = vmatpush2.bf16.msra.mxu0 0
    %4725 = vmatprep.subr.bf16.mxu0 0
    %4726 = vmatpush2.bf16.msra.mxu0 0
    %4727 = vmatprep.subr.bf16.mxu0 0
    %4728 = vmatpush2.bf16.msra.mxu0 0
    %4729 = vmatprep.mubr.bf16.mxu0 0
    %4730 = vmatmul.mubr.bf16.gmra.mxu0 %v4695
    %v4731 = vpop.f32.mrf.mxu0
    %v4732 = vadd.f32 0.0, %v4731
    %v4733 = vpop.f32.mrf.mxu0
    %v4734 = vpop.f32.mrf.mxu0
    %v4735 = vpop.f32.mrf.mxu0
    %4736 = vdwg.mxu0
    %v4737 = vadd.f32 %v4689, %v4732
    %v4738 = vxor.u32 %v4737, 2147483648
    %v4739 = vmul.f32 %v4738, 1.442695
    %v4740 = vpow.pop %v4739
    %v4741 = vadd.f32 %v4740, 1.0
    %v4742 = vrcp.pop %v4741
    %v4743 = vmul.f32 1.0, %v4742
    %v4744 = vtanh.pop %v4737
    %v4745 = vmul.f32 %v4743, %v4598
    %4747 = vrot.lane.b32.xlu0 %v4744, 32
    %v4748 = vpop.permute.xlu0 %4747
    %v4750 = vmul.f32 %v4743, %v4748
    %4752 = vrot.lane.b32.xlu0 %v4750, 32
    %v4753 = vpop.permute.xlu0 %4752
    %v4755 = vadd.f32 %v4745, %v4753
    %v4756 = vtanh.pop %v4755
    %4758 = vrot.lane.b32.xlu0 %v4756, 32
    %v4759 = vpop.permute.xlu0 %4758
    %v4761 = vmul.f32 %v4743, %v4759
    %4763 = vrot.lane.b32.xlu0 %v4761, 64
    %v4764 = vpop.permute.xlu0 %4763
    %4766 = vst.msk [vmem:[#allocation2 + $0x8] sm:$0x3] %vm306, %v4764
    %v4767 = vld [vmem:[#allocation3 + $0x68] sm:$0x3]
    %v4768 = vpack.c.bf16 %v4683, %v4683
    %4770 = vrot.lane.b32.xlu0 %v4768, 64
    %v4771 = vpop.permute.xlu0 %4770
    %v4773 = vsel %vm115, %v4771, 0
    %4775 = vmatprep.subr.bf16.mxu0 0
    %4776 = vmatpush1.bf16.msra.mxu0 0
    %4777 = vmatprep.subr.bf16.mxu0 0
    %4778 = vmatpush1.bf16.msra.mxu0 0
    %4779 = vmatprep.subr.bf16.mxu0 0
    %4780 = vmatpush1.bf16.msra.mxu0 0
    %4781 = vmatprep.subr.bf16.mxu0 0
    %4782 = vmatpush1.bf16.msra.mxu0 0
    %4783 = vmatprep.subr.bf16.mxu0 0
    %4784 = vmatpush1.bf16.msra.mxu0 0
    %4785 = vmatprep.subr.bf16.mxu0 0
    %4786 = vmatpush1.bf16.msra.mxu0 0
    %4787 = vmatprep.subr.bf16.mxu0 0
    %4788 = vmatpush1.bf16.msra.mxu0 %v4616
    %4789 = vmatprep.subr.bf16.mxu0 0
    %4790 = vmatpush1.bf16.msra.mxu0 %v4615
    %4791 = vmatprep.subr.bf16.mxu0 0
    %4792 = vmatpush2.bf16.msra.mxu0 0
    %4793 = vmatprep.subr.bf16.mxu0 0
    %4794 = vmatpush2.bf16.msra.mxu0 0
    %4795 = vmatprep.subr.bf16.mxu0 0
    %4796 = vmatpush2.bf16.msra.mxu0 0
    %4797 = vmatprep.subr.bf16.mxu0 0
    %4798 = vmatpush2.bf16.msra.mxu0 0
    %4799 = vmatprep.subr.bf16.mxu0 0
    %4800 = vmatpush2.bf16.msra.mxu0 0
    %4801 = vmatprep.subr.bf16.mxu0 0
    %4802 = vmatpush2.bf16.msra.mxu0 0
    %4803 = vmatprep.subr.bf16.mxu0 0
    %4804 = vmatpush2.bf16.msra.mxu0 0
    %4805 = vmatprep.subr.bf16.mxu0 0
    %4806 = vmatpush2.bf16.msra.mxu0 0
    %4807 = vmatprep.mubr.bf16.mxu0 0
    %4808 = vmatmul.mubr.bf16.gmra.mxu0 %v4773
    %v4809 = vpop.f32.mrf.mxu0
    %v4810 = vadd.f32 0.0, %v4809
    %v4811 = vpop.f32.mrf.mxu0
    %v4812 = vpop.f32.mrf.mxu0
    %v4813 = vpop.f32.mrf.mxu0
    %4814 = vdwg.mxu0
    %v4815 = vadd.f32 %v4767, %v4810
    %v4816 = vxor.u32 %v4815, 2147483648
    %v4817 = vmul.f32 %v4816, 1.442695
    %v4818 = vpow.pop %v4817
    %v4819 = vadd.f32 %v4818, 1.0
    %v4820 = vrcp.pop %v4819
    %v4821 = vmul.f32 1.0, %v4820
    %v4822 = vtanh.pop %v4815
    %v4823 = vmul.f32 %v4821, %v4677
    %4825 = vrot.lane.b32.xlu0 %v4822, 32
    %v4826 = vpop.permute.xlu0 %4825
    %v4828 = vmul.f32 %v4821, %v4826
    %4830 = vrot.lane.b32.xlu0 %v4828, 32
    %v4831 = vpop.permute.xlu0 %4830
    %v4833 = vadd.f32 %v4823, %v4831
    %v4834 = vtanh.pop %v4833
    %4836 = vrot.lane.b32.xlu0 %v4834, 32
    %v4837 = vpop.permute.xlu0 %4836
    %v4839 = vmul.f32 %v4821, %v4837
    %4841 = vrot.lane.b32.xlu0 %v4839, 96
    %v4842 = vpop.permute.xlu0 %4841
    %4844 = vst.msk [vmem:[#allocation2 + $0x30] sm:$0x3] %vm386, %v4842
    %v4845 = vld [vmem:[#allocation3 + $0x20] sm:$0x3]
    %v4846 = vpack.c.bf16 %v4761, %v4761
    %4848 = vrot.lane.b32.xlu0 %v4846, 64
    %v4849 = vpop.permute.xlu0 %4848
    %v4851 = vsel %vm115, %v4849, 0
    %4853 = vmatprep.subr.bf16.mxu0 0
    %4854 = vmatpush1.bf16.msra.mxu0 0
    %4855 = vmatprep.subr.bf16.mxu0 0
    %4856 = vmatpush1.bf16.msra.mxu0 0
    %4857 = vmatprep.subr.bf16.mxu0 0
    %4858 = vmatpush1.bf16.msra.mxu0 0
    %4859 = vmatprep.subr.bf16.mxu0 0
    %4860 = vmatpush1.bf16.msra.mxu0 0
    %4861 = vmatprep.subr.bf16.mxu0 0
    %4862 = vmatpush1.bf16.msra.mxu0 0
    %4863 = vmatprep.subr.bf16.mxu0 0
    %4864 = vmatpush1.bf16.msra.mxu0 0
    %4865 = vmatprep.subr.bf16.mxu0 0
    %4866 = vmatpush1.bf16.msra.mxu0 %v4537
    %4867 = vmatprep.subr.bf16.mxu0 0
    %4868 = vmatpush1.bf16.msra.mxu0 %v4536
    %4869 = vmatprep.subr.bf16.mxu0 0
    %4870 = vmatpush2.bf16.msra.mxu0 0
    %4871 = vmatprep.subr.bf16.mxu0 0
    %4872 = vmatpush2.bf16.msra.mxu0 0
    %4873 = vmatprep.subr.bf16.mxu0 0
    %4874 = vmatpush2.bf16.msra.mxu0 0
    %4875 = vmatprep.subr.bf16.mxu0 0
    %4876 = vmatpush2.bf16.msra.mxu0 0
    %4877 = vmatprep.subr.bf16.mxu0 0
    %4878 = vmatpush2.bf16.msra.mxu0 0
    %4879 = vmatprep.subr.bf16.mxu0 0
    %4880 = vmatpush2.bf16.msra.mxu0 0
    %4881 = vmatprep.subr.bf16.mxu0 0
    %4882 = vmatpush2.bf16.msra.mxu0 0
    %4883 = vmatprep.subr.bf16.mxu0 0
    %4884 = vmatpush2.bf16.msra.mxu0 0
    %4885 = vmatprep.mubr.bf16.mxu0 0
    %4886 = vmatmul.mubr.bf16.gmra.mxu0 %v4851
    %v4887 = vpop.f32.mrf.mxu0
    %v4888 = vadd.f32 0.0, %v4887
    %v4889 = vpop.f32.mrf.mxu0
    %v4890 = vpop.f32.mrf.mxu0
    %v4891 = vpop.f32.mrf.mxu0
    %4892 = vdwg.mxu0
    %v4893 = vadd.f32 %v4845, %v4888
    %v4894 = vxor.u32 %v4893, 2147483648
    %v4895 = vmul.f32 %v4894, 1.442695
    %v4896 = vpow.pop %v4895
    %v4897 = vadd.f32 %v4896, 1.0
    %v4898 = vrcp.pop %v4897
    %v4899 = vmul.f32 1.0, %v4898
    %v4900 = vtanh.pop %v4893
    %v4901 = vmul.f32 %v4899, %v4755
    %4903 = vrot.lane.b32.xlu0 %v4900, 32
    %v4904 = vpop.permute.xlu0 %4903
    %v4906 = vmul.f32 %v4899, %v4904
    %4908 = vrot.lane.b32.xlu0 %v4906, 32
    %v4909 = vpop.permute.xlu0 %4908
    %v4911 = vadd.f32 %v4901, %v4909
    %v4912 = vtanh.pop %v4911
    %4914 = vrot.lane.b32.xlu0 %v4912, 32
    %v4915 = vpop.permute.xlu0 %4914
    %v4917 = vmul.f32 %v4899, %v4915
    %4919 = vrot.lane.b32.xlu0 %v4917, 64
    %v4920 = vpop.permute.xlu0 %4919
    %4922 = vst.msk [vmem:[#allocation2 + $0x10] sm:$0x3] %vm306, %v4920
    %v4923 = vld [vmem:[#allocation3 + $0x58] sm:$0x3]
    %v4924 = vpack.c.bf16 %v4839, %v4839
    %4926 = vrot.lane.b32.xlu0 %v4924, 64
    %v4927 = vpop.permute.xlu0 %4926
    %v4929 = vsel %vm115, %v4927, 0
    %4931 = vmatprep.subr.bf16.mxu0 0
    %4932 = vmatpush1.bf16.msra.mxu0 0
    %4933 = vmatprep.subr.bf16.mxu0 0
    %4934 = vmatpush1.bf16.msra.mxu0 0
    %4935 = vmatprep.subr.bf16.mxu0 0
    %4936 = vmatpush1.bf16.msra.mxu0 0
    %4937 = vmatprep.subr.bf16.mxu0 0
    %4938 = vmatpush1.bf16.msra.mxu0 0
    %4939 = vmatprep.subr.bf16.mxu0 0
    %4940 = vmatpush1.bf16.msra.mxu0 0
    %4941 = vmatprep.subr.bf16.mxu0 0
    %4942 = vmatpush1.bf16.msra.mxu0 0
    %4943 = vmatprep.subr.bf16.mxu0 0
    %4944 = vmatpush1.bf16.msra.mxu0 %v4616
    %4945 = vmatprep.subr.bf16.mxu0 0
    %4946 = vmatpush1.bf16.msra.mxu0 %v4615
    %4947 = vmatprep.subr.bf16.mxu0 0
    %4948 = vmatpush2.bf16.msra.mxu0 0
    %4949 = vmatprep.subr.bf16.mxu0 0
    %4950 = vmatpush2.bf16.msra.mxu0 0
    %4951 = vmatprep.subr.bf16.mxu0 0
    %4952 = vmatpush2.bf16.msra.mxu0 0
    %4953 = vmatprep.subr.bf16.mxu0 0
    %4954 = vmatpush2.bf16.msra.mxu0 0
    %4955 = vmatprep.subr.bf16.mxu0 0
    %4956 = vmatpush2.bf16.msra.mxu0 0
    %4957 = vmatprep.subr.bf16.mxu0 0
    %4958 = vmatpush2.bf16.msra.mxu0 0
    %4959 = vmatprep.subr.bf16.mxu0 0
    %4960 = vmatpush2.bf16.msra.mxu0 0
    %4961 = vmatprep.subr.bf16.mxu0 0
    %4962 = vmatpush2.bf16.msra.mxu0 0
    %4963 = vmatprep.mubr.bf16.mxu0 0
    %4964 = vmatmul.mubr.bf16.gmra.mxu0 %v4929
    %v4965 = vpop.f32.mrf.mxu0
    %v4966 = vadd.f32 0.0, %v4965
    %v4967 = vpop.f32.mrf.mxu0
    %v4968 = vpop.f32.mrf.mxu0
    %v4969 = vpop.f32.mrf.mxu0
    %4970 = vdwg.mxu0
    %v4971 = vadd.f32 %v4923, %v4966
    %v4972 = vxor.u32 %v4971, 2147483648
    %v4973 = vmul.f32 %v4972, 1.442695
    %v4974 = vpow.pop %v4973
    %v4975 = vadd.f32 %v4974, 1.0
    %v4976 = vrcp.pop %v4975
    %v4977 = vmul.f32 1.0, %v4976
    %v4978 = vtanh.pop %v4971
    %v4979 = vmul.f32 %v4977, %v4833
    %4981 = vrot.lane.b32.xlu0 %v4978, 32
    %v4982 = vpop.permute.xlu0 %4981
    %v4984 = vmul.f32 %v4977, %v4982
    %4986 = vrot.lane.b32.xlu0 %v4984, 32
    %v4987 = vpop.permute.xlu0 %4986
    %v4989 = vadd.f32 %v4979, %v4987
    %v4990 = vtanh.pop %v4989
    %4992 = vrot.lane.b32.xlu0 %v4990, 32
    %v4993 = vpop.permute.xlu0 %4992
    %v4995 = vmul.f32 %v4977, %v4993
    %4997 = vrot.lane.b32.xlu0 %v4995, 96
    %v4998 = vpop.permute.xlu0 %4997
    %5000 = vst.msk [vmem:[#allocation2 + $0x28] sm:$0x3] %vm386, %v4998
    %v5001 = vld [vmem:[#allocation3 + $0x30] sm:$0x3]
    %v5002 = vpack.c.bf16 %v4917, %v4917
    %5004 = vrot.lane.b32.xlu0 %v5002, 64
    %v5005 = vpop.permute.xlu0 %5004
    %v5007 = vsel %vm115, %v5005, 0
    %5009 = vmatprep.subr.bf16.mxu0 0
    %5010 = vmatpush1.bf16.msra.mxu0 0
    %5011 = vmatprep.subr.bf16.mxu0 0
    %5012 = vmatpush1.bf16.msra.mxu0 0
    %5013 = vmatprep.subr.bf16.mxu0 0
    %5014 = vmatpush1.bf16.msra.mxu0 0
    %5015 = vmatprep.subr.bf16.mxu0 0
    %5016 = vmatpush1.bf16.msra.mxu0 0
    %5017 = vmatprep.subr.bf16.mxu0 0
    %5018 = vmatpush1.bf16.msra.mxu0 0
    %5019 = vmatprep.subr.bf16.mxu0 0
    %5020 = vmatpush1.bf16.msra.mxu0 0
    %5021 = vmatprep.subr.bf16.mxu0 0
    %5022 = vmatpush1.bf16.msra.mxu0 %v4537
    %5023 = vmatprep.subr.bf16.mxu0 0
    %5024 = vmatpush1.bf16.msra.mxu0 %v4536
    %5025 = vmatprep.subr.bf16.mxu0 0
    %5026 = vmatpush2.bf16.msra.mxu0 0
    %5027 = vmatprep.subr.bf16.mxu0 0
    %5028 = vmatpush2.bf16.msra.mxu0 0
    %5029 = vmatprep.subr.bf16.mxu0 0
    %5030 = vmatpush2.bf16.msra.mxu0 0
    %5031 = vmatprep.subr.bf16.mxu0 0
    %5032 = vmatpush2.bf16.msra.mxu0 0
    %5033 = vmatprep.subr.bf16.mxu0 0
    %5034 = vmatpush2.bf16.msra.mxu0 0
    %5035 = vmatprep.subr.bf16.mxu0 0
    %5036 = vmatpush2.bf16.msra.mxu0 0
    %5037 = vmatprep.subr.bf16.mxu0 0
    %5038 = vmatpush2.bf16.msra.mxu0 0
    %5039 = vmatprep.subr.bf16.mxu0 0
    %5040 = vmatpush2.bf16.msra.mxu0 0
    %5041 = vmatprep.mubr.bf16.mxu0 0
    %5042 = vmatmul.mubr.bf16.gmra.mxu0 %v5007
    %v5043 = vpop.f32.mrf.mxu0
    %v5044 = vadd.f32 0.0, %v5043
    %v5045 = vpop.f32.mrf.mxu0
    %v5046 = vpop.f32.mrf.mxu0
    %v5047 = vpop.f32.mrf.mxu0
    %5048 = vdwg.mxu0
    %v5049 = vadd.f32 %v5001, %v5044
    %v5050 = vxor.u32 %v5049, 2147483648
    %v5051 = vmul.f32 %v5050, 1.442695
    %v5052 = vpow.pop %v5051
    %v5053 = vadd.f32 %v5052, 1.0
    %v5054 = vrcp.pop %v5053
    %v5055 = vmul.f32 1.0, %v5054
    %v5056 = vtanh.pop %v5049
    %v5057 = vmul.f32 %v5055, %v4911
    %5059 = vrot.lane.b32.xlu0 %v5056, 32
    %v5060 = vpop.permute.xlu0 %5059
    %v5062 = vmul.f32 %v5055, %v5060
    %5064 = vrot.lane.b32.xlu0 %v5062, 32
    %v5065 = vpop.permute.xlu0 %5064
    %v5067 = vadd.f32 %v5057, %v5065
    %v5068 = vtanh.pop %v5067
    %5070 = vrot.lane.b32.xlu0 %v5068, 32
    %v5071 = vpop.permute.xlu0 %5070
    %v5073 = vmul.f32 %v5055, %v5071
    %5075 = vrot.lane.b32.xlu0 %v5073, 64
    %v5076 = vpop.permute.xlu0 %5075
    %5078 = vst.msk [vmem:[#allocation2 + $0x18] sm:$0x3] %vm306, %v5076
    %v5079 = vld [vmem:[#allocation3 + $0x48] sm:$0x3]
    %v5080 = vpack.c.bf16 %v4995, %v4995
    %5082 = vrot.lane.b32.xlu0 %v5080, 64
    %v5083 = vpop.permute.xlu0 %5082
    %v5085 = vsel %vm115, %v5083, 0
    %5087 = vmatprep.subr.bf16.mxu0 0
    %5088 = vmatpush1.bf16.msra.mxu0 0
    %5089 = vmatprep.subr.bf16.mxu0 0
    %5090 = vmatpush1.bf16.msra.mxu0 0
    %5091 = vmatprep.subr.bf16.mxu0 0
    %5092 = vmatpush1.bf16.msra.mxu0 0
    %5093 = vmatprep.subr.bf16.mxu0 0
    %5094 = vmatpush1.bf16.msra.mxu0 0
    %5095 = vmatprep.subr.bf16.mxu0 0
    %5096 = vmatpush1.bf16.msra.mxu0 0
    %5097 = vmatprep.subr.bf16.mxu0 0
    %5098 = vmatpush1.bf16.msra.mxu0 0
    %5099 = vmatprep.subr.bf16.mxu0 0
    %5100 = vmatpush1.bf16.msra.mxu0 %v4616
    %5101 = vmatprep.subr.bf16.mxu0 0
    %5102 = vmatpush1.bf16.msra.mxu0 %v4615
    %5103 = vmatprep.subr.bf16.mxu0 0
    %5104 = vmatpush2.bf16.msra.mxu0 0
    %5105 = vmatprep.subr.bf16.mxu0 0
    %5106 = vmatpush2.bf16.msra.mxu0 0
    %5107 = vmatprep.subr.bf16.mxu0 0
    %5108 = vmatpush2.bf16.msra.mxu0 0
    %5109 = vmatprep.subr.bf16.mxu0 0
    %5110 = vmatpush2.bf16.msra.mxu0 0
    %5111 = vmatprep.subr.bf16.mxu0 0
    %5112 = vmatpush2.bf16.msra.mxu0 0
    %5113 = vmatprep.subr.bf16.mxu0 0
    %5114 = vmatpush2.bf16.msra.mxu0 0
    %5115 = vmatprep.subr.bf16.mxu0 0
    %5116 = vmatpush2.bf16.msra.mxu0 0
    %5117 = vmatprep.subr.bf16.mxu0 0
    %5118 = vmatpush2.bf16.msra.mxu0 0
    %5119 = vmatprep.mubr.bf16.mxu0 0
    %5120 = vmatmul.mubr.bf16.gmra.mxu0 %v5085
    %v5121 = vpop.f32.mrf.mxu0
    %v5122 = vadd.f32 0.0, %v5121
    %v5123 = vpop.f32.mrf.mxu0
    %v5124 = vpop.f32.mrf.mxu0
    %v5125 = vpop.f32.mrf.mxu0
    %5126 = vdwg.mxu0
    %v5127 = vadd.f32 %v5079, %v5122
    %v5128 = vxor.u32 %v5127, 2147483648
    %v5129 = vmul.f32 %v5128, 1.442695
    %v5130 = vpow.pop %v5129
    %v5131 = vadd.f32 %v5130, 1.0
    %v5132 = vrcp.pop %v5131
    %v5133 = vmul.f32 1.0, %v5132
    %v5134 = vtanh.pop %v5127
    %v5135 = vmul.f32 %v5133, %v4989
    %5137 = vrot.lane.b32.xlu0 %v5134, 32
    %v5138 = vpop.permute.xlu0 %5137
    %v5140 = vmul.f32 %v5133, %v5138
    %5142 = vrot.lane.b32.xlu0 %v5140, 32
    %v5143 = vpop.permute.xlu0 %5142
    %v5145 = vadd.f32 %v5135, %v5143
    %v5146 = vtanh.pop %v5145
    %5148 = vrot.lane.b32.xlu0 %v5146, 32
    %v5149 = vpop.permute.xlu0 %5148
    %v5151 = vmul.f32 %v5133, %v5149
    %5153 = vrot.lane.b32.xlu0 %v5151, 96
    %v5154 = vpop.permute.xlu0 %5153
    %5156 = vst.msk [vmem:[#allocation2 + $0x20] sm:$0x3] %vm386, %v5154
    %v5157 = vld [vmem:[#allocation3 + $0x40] sm:$0x3]
    %v5158 = vpack.c.bf16 %v5073, %v5073
    %5160 = vrot.lane.b32.xlu0 %v5158, 64
    %v5161 = vpop.permute.xlu0 %5160
    %v5163 = vsel %vm115, %v5161, 0
    %5165 = vmatprep.subr.bf16.mxu0 0
    %5166 = vmatpush1.bf16.msra.mxu0 0
    %5167 = vmatprep.subr.bf16.mxu0 0
    %5168 = vmatpush1.bf16.msra.mxu0 0
    %5169 = vmatprep.subr.bf16.mxu0 0
    %5170 = vmatpush1.bf16.msra.mxu0 0
    %5171 = vmatprep.subr.bf16.mxu0 0
    %5172 = vmatpush1.bf16.msra.mxu0 0
    %5173 = vmatprep.subr.bf16.mxu0 0
    %5174 = vmatpush1.bf16.msra.mxu0 0
    %5175 = vmatprep.subr.bf16.mxu0 0
    %5176 = vmatpush1.bf16.msra.mxu0 0
    %5177 = vmatprep.subr.bf16.mxu0 0
    %5178 = vmatpush1.bf16.msra.mxu0 %v4537
    %5179 = vmatprep.subr.bf16.mxu0 0
    %5180 = vmatpush1.bf16.msra.mxu0 %v4536
    %5181 = vmatprep.subr.bf16.mxu0 0
    %5182 = vmatpush2.bf16.msra.mxu0 0
    %5183 = vmatprep.subr.bf16.mxu0 0
    %5184 = vmatpush2.bf16.msra.mxu0 0
    %5185 = vmatprep.subr.bf16.mxu0 0
    %5186 = vmatpush2.bf16.msra.mxu0 0
    %5187 = vmatprep.subr.bf16.mxu0 0
    %5188 = vmatpush2.bf16.msra.mxu0 0
    %5189 = vmatprep.subr.bf16.mxu0 0
    %5190 = vmatpush2.bf16.msra.mxu0 0
    %5191 = vmatprep.subr.bf16.mxu0 0
    %5192 = vmatpush2.bf16.msra.mxu0 0
    %5193 = vmatprep.subr.bf16.mxu0 0
    %5194 = vmatpush2.bf16.msra.mxu0 0
    %5195 = vmatprep.subr.bf16.mxu0 0
    %5196 = vmatpush2.bf16.msra.mxu0 0
    %5197 = vmatprep.mubr.bf16.mxu0 0
    %5198 = vmatmul.mubr.bf16.gmra.mxu0 %v5163
    %v5199 = vpop.f32.mrf.mxu0
    %v5200 = vadd.f32 0.0, %v5199
    %v5201 = vpop.f32.mrf.mxu0
    %v5202 = vpop.f32.mrf.mxu0
    %v5203 = vpop.f32.mrf.mxu0
    %5204 = vdwg.mxu0
    %v5205 = vadd.f32 %v5157, %v5200
    %v5206 = vxor.u32 %v5205, 2147483648
    %v5207 = vmul.f32 %v5206, 1.442695
    %v5208 = vpow.pop %v5207
    %v5209 = vadd.f32 %v5208, 1.0
    %v5210 = vrcp.pop %v5209
    %v5211 = vmul.f32 1.0, %v5210
    %v5212 = vtanh.pop %v5205
    %v5213 = vmul.f32 %v5211, %v5067
    %5215 = vrot.lane.b32.xlu0 %v5212, 32
    %v5216 = vpop.permute.xlu0 %5215
    %v5218 = vmul.f32 %v5211, %v5216
    %5220 = vrot.lane.b32.xlu0 %v5218, 32
    %v5221 = vpop.permute.xlu0 %5220
    %v5223 = vadd.f32 %v5213, %v5221
    %v5224 = vtanh.pop %v5223
    %5226 = vrot.lane.b32.xlu0 %v5224, 32
    %v5227 = vpop.permute.xlu0 %5226
    %v5229 = vmul.f32 %v5211, %v5227
    %5231 = vrot.lane.b32.xlu0 %v5229, 64
    %v5232 = vpop.permute.xlu0 %5231
    %5234 = vst.msk [vmem:[#allocation2 + $0x20] sm:$0x3] %vm306, %v5232
    %v5235 = vld [vmem:[#allocation3 + $0x38] sm:$0x3]
    %v5236 = vpack.c.bf16 %v5151, %v5151
    %5238 = vrot.lane.b32.xlu0 %v5236, 64
    %v5239 = vpop.permute.xlu0 %5238
    %v5241 = vsel %vm115, %v5239, 0
    %5243 = vmatprep.subr.bf16.mxu0 0
    %5244 = vmatpush1.bf16.msra.mxu0 0
    %5245 = vmatprep.subr.bf16.mxu0 0
    %5246 = vmatpush1.bf16.msra.mxu0 0
    %5247 = vmatprep.subr.bf16.mxu0 0
    %5248 = vmatpush1.bf16.msra.mxu0 0
    %5249 = vmatprep.subr.bf16.mxu0 0
    %5250 = vmatpush1.bf16.msra.mxu0 0
    %5251 = vmatprep.subr.bf16.mxu0 0
    %5252 = vmatpush1.bf16.msra.mxu0 0
    %5253 = vmatprep.subr.bf16.mxu0 0
    %5254 = vmatpush1.bf16.msra.mxu0 0
    %5255 = vmatprep.subr.bf16.mxu0 0
    %5256 = vmatpush1.bf16.msra.mxu0 %v4616
    %5257 = vmatprep.subr.bf16.mxu0 0
    %5258 = vmatpush1.bf16.msra.mxu0 %v4615
    %5259 = vmatprep.subr.bf16.mxu0 0
    %5260 = vmatpush2.bf16.msra.mxu0 0
    %5261 = vmatprep.subr.bf16.mxu0 0
    %5262 = vmatpush2.bf16.msra.mxu0 0
    %5263 = vmatprep.subr.bf16.mxu0 0
    %5264 = vmatpush2.bf16.msra.mxu0 0
    %5265 = vmatprep.subr.bf16.mxu0 0
    %5266 = vmatpush2.bf16.msra.mxu0 0
    %5267 = vmatprep.subr.bf16.mxu0 0
    %5268 = vmatpush2.bf16.msra.mxu0 0
    %5269 = vmatprep.subr.bf16.mxu0 0
    %5270 = vmatpush2.bf16.msra.mxu0 0
    %5271 = vmatprep.subr.bf16.mxu0 0
    %5272 = vmatpush2.bf16.msra.mxu0 0
    %5273 = vmatprep.subr.bf16.mxu0 0
    %5274 = vmatpush2.bf16.msra.mxu0 0
    %5275 = vmatprep.mubr.bf16.mxu0 0
    %5276 = vmatmul.mubr.bf16.gmra.mxu0 %v5241
    %v5277 = vpop.f32.mrf.mxu0
    %v5278 = vadd.f32 0.0, %v5277
    %v5279 = vpop.f32.mrf.mxu0
    %v5280 = vpop.f32.mrf.mxu0
    %v5281 = vpop.f32.mrf.mxu0
    %5282 = vdwg.mxu0
    %v5283 = vadd.f32 %v5235, %v5278
    %v5284 = vxor.u32 %v5283, 2147483648
    %v5285 = vmul.f32 %v5284, 1.442695
    %v5286 = vpow.pop %v5285
    %v5287 = vadd.f32 %v5286, 1.0
    %v5288 = vrcp.pop %v5287
    %v5289 = vmul.f32 1.0, %v5288
    %v5290 = vtanh.pop %v5283
    %v5291 = vmul.f32 %v5289, %v5145
    %5293 = vrot.lane.b32.xlu0 %v5290, 32
    %v5294 = vpop.permute.xlu0 %5293
    %v5296 = vmul.f32 %v5289, %v5294
    %5298 = vrot.lane.b32.xlu0 %v5296, 32
    %v5299 = vpop.permute.xlu0 %5298
    %v5301 = vadd.f32 %v5291, %v5299
    %v5302 = vtanh.pop %v5301
    %5304 = vrot.lane.b32.xlu0 %v5302, 32
    %v5305 = vpop.permute.xlu0 %5304
    %v5307 = vmul.f32 %v5289, %v5305
    %5309 = vrot.lane.b32.xlu0 %v5307, 96
    %v5310 = vpop.permute.xlu0 %5309
    %5312 = vst.msk [vmem:[#allocation2 + $0x18] sm:$0x3] %vm386, %v5310
    %v5313 = vld [vmem:[#allocation3 + $0x50] sm:$0x3]
    %v5314 = vpack.c.bf16 %v5229, %v5229
    %5316 = vrot.lane.b32.xlu0 %v5314, 64
    %v5317 = vpop.permute.xlu0 %5316
    %v5319 = vsel %vm115, %v5317, 0
    %5321 = vmatprep.subr.bf16.mxu0 0
    %5322 = vmatpush1.bf16.msra.mxu0 0
    %5323 = vmatprep.subr.bf16.mxu0 0
    %5324 = vmatpush1.bf16.msra.mxu0 0
    %5325 = vmatprep.subr.bf16.mxu0 0
    %5326 = vmatpush1.bf16.msra.mxu0 0
    %5327 = vmatprep.subr.bf16.mxu0 0
    %5328 = vmatpush1.bf16.msra.mxu0 0
    %5329 = vmatprep.subr.bf16.mxu0 0
    %5330 = vmatpush1.bf16.msra.mxu0 0
    %5331 = vmatprep.subr.bf16.mxu0 0
    %5332 = vmatpush1.bf16.msra.mxu0 0
    %5333 = vmatprep.subr.bf16.mxu0 0
    %5334 = vmatpush1.bf16.msra.mxu0 %v4537
    %5335 = vmatprep.subr.bf16.mxu0 0
    %5336 = vmatpush1.bf16.msra.mxu0 %v4536
    %5337 = vmatprep.subr.bf16.mxu0 0
    %5338 = vmatpush2.bf16.msra.mxu0 0
    %5339 = vmatprep.subr.bf16.mxu0 0
    %5340 = vmatpush2.bf16.msra.mxu0 0
    %5341 = vmatprep.subr.bf16.mxu0 0
    %5342 = vmatpush2.bf16.msra.mxu0 0
    %5343 = vmatprep.subr.bf16.mxu0 0
    %5344 = vmatpush2.bf16.msra.mxu0 0
    %5345 = vmatprep.subr.bf16.mxu0 0
    %5346 = vmatpush2.bf16.msra.mxu0 0
    %5347 = vmatprep.subr.bf16.mxu0 0
    %5348 = vmatpush2.bf16.msra.mxu0 0
    %5349 = vmatprep.subr.bf16.mxu0 0
    %5350 = vmatpush2.bf16.msra.mxu0 0
    %5351 = vmatprep.subr.bf16.mxu0 0
    %5352 = vmatpush2.bf16.msra.mxu0 0
    %5353 = vmatprep.mubr.bf16.mxu0 0
    %5354 = vmatmul.mubr.bf16.gmra.mxu0 %v5319
    %v5355 = vpop.f32.mrf.mxu0
    %v5356 = vadd.f32 0.0, %v5355
    %v5357 = vpop.f32.mrf.mxu0
    %v5358 = vpop.f32.mrf.mxu0
    %v5359 = vpop.f32.mrf.mxu0
    %5360 = vdwg.mxu0
    %v5361 = vadd.f32 %v5313, %v5356
    %v5362 = vxor.u32 %v5361, 2147483648
    %v5363 = vmul.f32 %v5362, 1.442695
    %v5364 = vpow.pop %v5363
    %v5365 = vadd.f32 %v5364, 1.0
    %v5366 = vrcp.pop %v5365
    %v5367 = vmul.f32 1.0, %v5366
    %v5368 = vtanh.pop %v5361
    %v5369 = vmul.f32 %v5367, %v5223
    %5371 = vrot.lane.b32.xlu0 %v5368, 32
    %v5372 = vpop.permute.xlu0 %5371
    %v5374 = vmul.f32 %v5367, %v5372
    %5376 = vrot.lane.b32.xlu0 %v5374, 32
    %v5377 = vpop.permute.xlu0 %5376
    %v5379 = vadd.f32 %v5369, %v5377
    %v5380 = vtanh.pop %v5379
    %5382 = vrot.lane.b32.xlu0 %v5380, 32
    %v5383 = vpop.permute.xlu0 %5382
    %v5385 = vmul.f32 %v5367, %v5383
    %5387 = vrot.lane.b32.xlu0 %v5385, 64
    %v5388 = vpop.permute.xlu0 %5387
    %5390 = vst.msk [vmem:[#allocation2 + $0x28] sm:$0x3] %vm306, %v5388
    %v5391 = vld [vmem:[#allocation3 + $0x28] sm:$0x3]
    %v5392 = vpack.c.bf16 %v5307, %v5307
    %5394 = vrot.lane.b32.xlu0 %v5392, 64
    %v5395 = vpop.permute.xlu0 %5394
    %v5397 = vsel %vm115, %v5395, 0
    %5399 = vmatprep.subr.bf16.mxu0 0
    %5400 = vmatpush1.bf16.msra.mxu0 0
    %5401 = vmatprep.subr.bf16.mxu0 0
    %5402 = vmatpush1.bf16.msra.mxu0 0
    %5403 = vmatprep.subr.bf16.mxu0 0
    %5404 = vmatpush1.bf16.msra.mxu0 0
    %5405 = vmatprep.subr.bf16.mxu0 0
    %5406 = vmatpush1.bf16.msra.mxu0 0
    %5407 = vmatprep.subr.bf16.mxu0 0
    %5408 = vmatpush1.bf16.msra.mxu0 0
    %5409 = vmatprep.subr.bf16.mxu0 0
    %5410 = vmatpush1.bf16.msra.mxu0 0
    %5411 = vmatprep.subr.bf16.mxu0 0
    %5412 = vmatpush1.bf16.msra.mxu0 %v4616
    %5413 = vmatprep.subr.bf16.mxu0 0
    %5414 = vmatpush1.bf16.msra.mxu0 %v4615
    %5415 = vmatprep.subr.bf16.mxu0 0
    %5416 = vmatpush2.bf16.msra.mxu0 0
    %5417 = vmatprep.subr.bf16.mxu0 0
    %5418 = vmatpush2.bf16.msra.mxu0 0
    %5419 = vmatprep.subr.bf16.mxu0 0
    %5420 = vmatpush2.bf16.msra.mxu0 0
    %5421 = vmatprep.subr.bf16.mxu0 0
    %5422 = vmatpush2.bf16.msra.mxu0 0
    %5423 = vmatprep.subr.bf16.mxu0 0
    %5424 = vmatpush2.bf16.msra.mxu0 0
    %5425 = vmatprep.subr.bf16.mxu0 0
    %5426 = vmatpush2.bf16.msra.mxu0 0
    %5427 = vmatprep.subr.bf16.mxu0 0
    %5428 = vmatpush2.bf16.msra.mxu0 0
    %5429 = vmatprep.subr.bf16.mxu0 0
    %5430 = vmatpush2.bf16.msra.mxu0 0
    %5431 = vmatprep.mubr.bf16.mxu0 0
    %5432 = vmatmul.mubr.bf16.gmra.mxu0 %v5397
    %v5433 = vpop.f32.mrf.mxu0
    %v5434 = vadd.f32 0.0, %v5433
    %v5435 = vpop.f32.mrf.mxu0
    %v5436 = vpop.f32.mrf.mxu0
    %v5437 = vpop.f32.mrf.mxu0
    %5438 = vdwg.mxu0
    %v5439 = vadd.f32 %v5391, %v5434
    %v5440 = vxor.u32 %v5439, 2147483648
    %v5441 = vmul.f32 %v5440, 1.442695
    %v5442 = vpow.pop %v5441
    %v5443 = vadd.f32 %v5442, 1.0
    %v5444 = vrcp.pop %v5443
    %v5445 = vmul.f32 1.0, %v5444
    %v5446 = vtanh.pop %v5439
    %v5447 = vmul.f32 %v5445, %v5301
    %5449 = vrot.lane.b32.xlu0 %v5446, 32
    %v5450 = vpop.permute.xlu0 %5449
    %v5452 = vmul.f32 %v5445, %v5450
    %5454 = vrot.lane.b32.xlu0 %v5452, 32
    %v5455 = vpop.permute.xlu0 %5454
    %v5457 = vadd.f32 %v5447, %v5455
    %v5458 = vtanh.pop %v5457
    %5460 = vrot.lane.b32.xlu0 %v5458, 32
    %v5461 = vpop.permute.xlu0 %5460
    %v5463 = vmul.f32 %v5445, %v5461
    %5465 = vrot.lane.b32.xlu0 %v5463, 96
    %v5466 = vpop.permute.xlu0 %5465
    %5468 = vst.msk [vmem:[#allocation2 + $0x10] sm:$0x3] %vm386, %v5466
    %v5469 = vld [vmem:[#allocation3 + $0x60] sm:$0x3]
    %v5470 = vpack.c.bf16 %v5385, %v5385
    %5472 = vrot.lane.b32.xlu0 %v5470, 64
    %v5473 = vpop.permute.xlu0 %5472
    %v5475 = vsel %vm115, %v5473, 0
    %5477 = vmatprep.subr.bf16.mxu0 0
    %5478 = vmatpush1.bf16.msra.mxu0 0
    %5479 = vmatprep.subr.bf16.mxu0 0
    %5480 = vmatpush1.bf16.msra.mxu0 0
    %5481 = vmatprep.subr.bf16.mxu0 0
    %5482 = vmatpush1.bf16.msra.mxu0 0
    %5483 = vmatprep.subr.bf16.mxu0 0
    %5484 = vmatpush1.bf16.msra.mxu0 0
    %5485 = vmatprep.subr.bf16.mxu0 0
    %5486 = vmatpush1.bf16.msra.mxu0 0
    %5487 = vmatprep.subr.bf16.mxu0 0
    %5488 = vmatpush1.bf16.msra.mxu0 0
    %5489 = vmatprep.subr.bf16.mxu0 0
    %5490 = vmatpush1.bf16.msra.mxu0 %v4537
    %5491 = vmatprep.subr.bf16.mxu0 0
    %5492 = vmatpush1.bf16.msra.mxu0 %v4536
    %5493 = vmatprep.subr.bf16.mxu0 0
    %5494 = vmatpush2.bf16.msra.mxu0 0
    %5495 = vmatprep.subr.bf16.mxu0 0
    %5496 = vmatpush2.bf16.msra.mxu0 0
    %5497 = vmatprep.subr.bf16.mxu0 0
    %5498 = vmatpush2.bf16.msra.mxu0 0
    %5499 = vmatprep.subr.bf16.mxu0 0
    %5500 = vmatpush2.bf16.msra.mxu0 0
    %5501 = vmatprep.subr.bf16.mxu0 0
    %5502 = vmatpush2.bf16.msra.mxu0 0
    %5503 = vmatprep.subr.bf16.mxu0 0
    %5504 = vmatpush2.bf16.msra.mxu0 0
    %5505 = vmatprep.subr.bf16.mxu0 0
    %5506 = vmatpush2.bf16.msra.mxu0 0
    %5507 = vmatprep.subr.bf16.mxu0 0
    %5508 = vmatpush2.bf16.msra.mxu0 0
    %5509 = vmatprep.mubr.bf16.mxu0 0
    %5510 = vmatmul.mubr.bf16.gmra.mxu0 %v5475
    %v5511 = vpop.f32.mrf.mxu0
    %v5512 = vadd.f32 0.0, %v5511
    %v5513 = vpop.f32.mrf.mxu0
    %v5514 = vpop.f32.mrf.mxu0
    %v5515 = vpop.f32.mrf.mxu0
    %5516 = vdwg.mxu0
    %v5517 = vadd.f32 %v5469, %v5512
    %v5518 = vxor.u32 %v5517, 2147483648
    %v5519 = vmul.f32 %v5518, 1.442695
    %v5520 = vpow.pop %v5519
    %v5521 = vadd.f32 %v5520, 1.0
    %v5522 = vrcp.pop %v5521
    %v5523 = vmul.f32 1.0, %v5522
    %v5524 = vtanh.pop %v5517
    %v5525 = vmul.f32 %v5523, %v5379
    %5527 = vrot.lane.b32.xlu0 %v5524, 32
    %v5528 = vpop.permute.xlu0 %5527
    %v5530 = vmul.f32 %v5523, %v5528
    %5532 = vrot.lane.b32.xlu0 %v5530, 32
    %v5533 = vpop.permute.xlu0 %5532
    %v5535 = vadd.f32 %v5525, %v5533
    %v5536 = vtanh.pop %v5535
    %5538 = vrot.lane.b32.xlu0 %v5536, 32
    %v5539 = vpop.permute.xlu0 %5538
    %v5541 = vmul.f32 %v5523, %v5539
    %5543 = vrot.lane.b32.xlu0 %v5541, 64
    %v5544 = vpop.permute.xlu0 %5543
    %5546 = vst.msk [vmem:[#allocation2 + $0x30] sm:$0x3] %vm306, %v5544
    %v5547 = vld [vmem:[#allocation3 + $0x18] sm:$0x3]
    %v5548 = vpack.c.bf16 %v5463, %v5463
    %5550 = vrot.lane.b32.xlu0 %v5548, 64
    %v5551 = vpop.permute.xlu0 %5550
    %v5553 = vsel %vm115, %v5551, 0
    %5555 = vmatprep.subr.bf16.mxu0 0
    %5556 = vmatpush1.bf16.msra.mxu0 0
    %5557 = vmatprep.subr.bf16.mxu0 0
    %5558 = vmatpush1.bf16.msra.mxu0 0
    %5559 = vmatprep.subr.bf16.mxu0 0
    %5560 = vmatpush1.bf16.msra.mxu0 0
    %5561 = vmatprep.subr.bf16.mxu0 0
    %5562 = vmatpush1.bf16.msra.mxu0 0
    %5563 = vmatprep.subr.bf16.mxu0 0
    %5564 = vmatpush1.bf16.msra.mxu0 0
    %5565 = vmatprep.subr.bf16.mxu0 0
    %5566 = vmatpush1.bf16.msra.mxu0 0
    %5567 = vmatprep.subr.bf16.mxu0 0
    %5568 = vmatpush1.bf16.msra.mxu0 %v4616
    %5569 = vmatprep.subr.bf16.mxu0 0
    %5570 = vmatpush1.bf16.msra.mxu0 %v4615
    %5571 = vmatprep.subr.bf16.mxu0 0
    %5572 = vmatpush2.bf16.msra.mxu0 0
    %5573 = vmatprep.subr.bf16.mxu0 0
    %5574 = vmatpush2.bf16.msra.mxu0 0
    %5575 = vmatprep.subr.bf16.mxu0 0
    %5576 = vmatpush2.bf16.msra.mxu0 0
    %5577 = vmatprep.subr.bf16.mxu0 0
    %5578 = vmatpush2.bf16.msra.mxu0 0
    %5579 = vmatprep.subr.bf16.mxu0 0
    %5580 = vmatpush2.bf16.msra.mxu0 0
    %5581 = vmatprep.subr.bf16.mxu0 0
    %5582 = vmatpush2.bf16.msra.mxu0 0
    %5583 = vmatprep.subr.bf16.mxu0 0
    %5584 = vmatpush2.bf16.msra.mxu0 0
    %5585 = vmatprep.subr.bf16.mxu0 0
    %5586 = vmatpush2.bf16.msra.mxu0 0
    %5587 = vmatprep.mubr.bf16.mxu0 0
    %5588 = vmatmul.mubr.bf16.gmra.mxu0 %v5553
    %v5589 = vpop.f32.mrf.mxu0
    %v5590 = vadd.f32 0.0, %v5589
    %v5591 = vpop.f32.mrf.mxu0
    %v5592 = vpop.f32.mrf.mxu0
    %v5593 = vpop.f32.mrf.mxu0
    %5594 = vdwg.mxu0
    %v5595 = vadd.f32 %v5547, %v5590
    %v5596 = vxor.u32 %v5595, 2147483648
    %v5597 = vmul.f32 %v5596, 1.442695
    %v5598 = vpow.pop %v5597
    %v5599 = vadd.f32 %v5598, 1.0
    %v5600 = vrcp.pop %v5599
    %v5601 = vmul.f32 1.0, %v5600
    %v5602 = vtanh.pop %v5595
    %v5603 = vmul.f32 %v5601, %v5457
    %5605 = vrot.lane.b32.xlu0 %v5602, 32
    %v5606 = vpop.permute.xlu0 %5605
    %v5608 = vmul.f32 %v5601, %v5606
    %5610 = vrot.lane.b32.xlu0 %v5608, 32
    %v5611 = vpop.permute.xlu0 %5610
    %v5613 = vadd.f32 %v5603, %v5611
    %v5614 = vtanh.pop %v5613
    %5616 = vrot.lane.b32.xlu0 %v5614, 32
    %v5617 = vpop.permute.xlu0 %5616
    %v5619 = vmul.f32 %v5601, %v5617
    %5621 = vrot.lane.b32.xlu0 %v5619, 96
    %v5622 = vpop.permute.xlu0 %5621
    %5624 = vst.msk [vmem:[#allocation2 + $0x8] sm:$0x3] %vm386, %v5622
    %v5625 = vld [vmem:[#allocation3 + $0x70] sm:$0x3]
    %v5626 = vpack.c.bf16 %v5541, %v5541
    %5628 = vrot.lane.b32.xlu0 %v5626, 64
    %v5629 = vpop.permute.xlu0 %5628
    %v5631 = vsel %vm115, %v5629, 0
    %5633 = vmatprep.subr.bf16.mxu0 0
    %5634 = vmatpush1.bf16.msra.mxu0 0
    %5635 = vmatprep.subr.bf16.mxu0 0
    %5636 = vmatpush1.bf16.msra.mxu0 0
    %5637 = vmatprep.subr.bf16.mxu0 0
    %5638 = vmatpush1.bf16.msra.mxu0 0
    %5639 = vmatprep.subr.bf16.mxu0 0
    %5640 = vmatpush1.bf16.msra.mxu0 0
    %5641 = vmatprep.subr.bf16.mxu0 0
    %5642 = vmatpush1.bf16.msra.mxu0 0
    %5643 = vmatprep.subr.bf16.mxu0 0
    %5644 = vmatpush1.bf16.msra.mxu0 0
    %5645 = vmatprep.subr.bf16.mxu0 0
    %5646 = vmatpush1.bf16.msra.mxu0 %v4537
    %5647 = vmatprep.subr.bf16.mxu0 0
    %5648 = vmatpush1.bf16.msra.mxu0 %v4536
    %5649 = vmatprep.subr.bf16.mxu0 0
    %5650 = vmatpush2.bf16.msra.mxu0 0
    %5651 = vmatprep.subr.bf16.mxu0 0
    %5652 = vmatpush2.bf16.msra.mxu0 0
    %5653 = vmatprep.subr.bf16.mxu0 0
    %5654 = vmatpush2.bf16.msra.mxu0 0
    %5655 = vmatprep.subr.bf16.mxu0 0
    %5656 = vmatpush2.bf16.msra.mxu0 0
    %5657 = vmatprep.subr.bf16.mxu0 0
    %5658 = vmatpush2.bf16.msra.mxu0 0
    %5659 = vmatprep.subr.bf16.mxu0 0
    %5660 = vmatpush2.bf16.msra.mxu0 0
    %5661 = vmatprep.subr.bf16.mxu0 0
    %5662 = vmatpush2.bf16.msra.mxu0 0
    %5663 = vmatprep.subr.bf16.mxu0 0
    %5664 = vmatpush2.bf16.msra.mxu0 0
    %5665 = vmatprep.mubr.bf16.mxu0 0
    %5666 = vmatmul.mubr.bf16.gmra.mxu0 %v5631
    %v5667 = vpop.f32.mrf.mxu0
    %v5668 = vadd.f32 0.0, %v5667
    %v5669 = vpop.f32.mrf.mxu0
    %v5670 = vpop.f32.mrf.mxu0
    %v5671 = vpop.f32.mrf.mxu0
    %5672 = vdwg.mxu0
    %v5673 = vadd.f32 %v5625, %v5668
    %v5674 = vxor.u32 %v5673, 2147483648
    %v5675 = vmul.f32 %v5674, 1.442695
    %v5676 = vpow.pop %v5675
    %v5677 = vadd.f32 %v5676, 1.0
    %v5678 = vrcp.pop %v5677
    %v5679 = vmul.f32 1.0, %v5678
    %v5680 = vtanh.pop %v5673
    %v5681 = vmul.f32 %v5679, %v5535
    %5683 = vrot.lane.b32.xlu0 %v5680, 32
    %v5684 = vpop.permute.xlu0 %5683
    %v5686 = vmul.f32 %v5679, %v5684
    %5688 = vrot.lane.b32.xlu0 %v5686, 32
    %v5689 = vpop.permute.xlu0 %5688
    %v5691 = vadd.f32 %v5681, %v5689
    %v5692 = vtanh.pop %v5691
    %5694 = vrot.lane.b32.xlu0 %v5692, 32
    %v5695 = vpop.permute.xlu0 %5694
    %v5697 = vmul.f32 %v5679, %v5695
    %5699 = vrot.lane.b32.xlu0 %v5697, 64
    %v5700 = vpop.permute.xlu0 %5699
    %5702 = vst.msk [vmem:[#allocation2 + $0x38] sm:$0x3] %vm306, %v5700
    %v5703 = vld [vmem:[#allocation3 + $0x8] sm:$0x3]
    %v5704 = vpack.c.bf16 %v5619, %v5619
    %5706 = vrot.lane.b32.xlu0 %v5704, 64
    %v5707 = vpop.permute.xlu0 %5706
    %v5709 = vsel %vm115, %v5707, 0
    %5711 = vmatprep.subr.bf16.mxu0 0
    %5712 = vmatpush1.bf16.msra.mxu0 0
    %5713 = vmatprep.subr.bf16.mxu0 0
    %5714 = vmatpush1.bf16.msra.mxu0 0
    %5715 = vmatprep.subr.bf16.mxu0 0
    %5716 = vmatpush1.bf16.msra.mxu0 0
    %5717 = vmatprep.subr.bf16.mxu0 0
    %5718 = vmatpush1.bf16.msra.mxu0 0
    %5719 = vmatprep.subr.bf16.mxu0 0
    %5720 = vmatpush1.bf16.msra.mxu0 0
    %5721 = vmatprep.subr.bf16.mxu0 0
    %5722 = vmatpush1.bf16.msra.mxu0 0
    %5723 = vmatprep.subr.bf16.mxu0 0
    %5724 = vmatpush1.bf16.msra.mxu0 %v4616
    %5725 = vmatprep.subr.bf16.mxu0 0
    %5726 = vmatpush1.bf16.msra.mxu0 %v4615
    %5727 = vmatprep.subr.bf16.mxu0 0
    %5728 = vmatpush2.bf16.msra.mxu0 0
    %5729 = vmatprep.subr.bf16.mxu0 0
    %5730 = vmatpush2.bf16.msra.mxu0 0
    %5731 = vmatprep.subr.bf16.mxu0 0
    %5732 = vmatpush2.bf16.msra.mxu0 0
    %5733 = vmatprep.subr.bf16.mxu0 0
    %5734 = vmatpush2.bf16.msra.mxu0 0
    %5735 = vmatprep.subr.bf16.mxu0 0
    %5736 = vmatpush2.bf16.msra.mxu0 0
    %5737 = vmatprep.subr.bf16.mxu0 0
    %5738 = vmatpush2.bf16.msra.mxu0 0
    %5739 = vmatprep.subr.bf16.mxu0 0
    %5740 = vmatpush2.bf16.msra.mxu0 0
    %5741 = vmatprep.subr.bf16.mxu0 0
    %5742 = vmatpush2.bf16.msra.mxu0 0
    %5743 = vmatprep.mubr.bf16.mxu0 0
    %5744 = vmatmul.mubr.bf16.gmra.mxu0 %v5709
    %v5745 = vpop.f32.mrf.mxu0
    %v5746 = vadd.f32 0.0, %v5745
    %v5747 = vpop.f32.mrf.mxu0
    %v5748 = vpop.f32.mrf.mxu0
    %v5749 = vpop.f32.mrf.mxu0
    %5750 = vdwg.mxu0
    %v5751 = vadd.f32 %v5703, %v5746
    %v5752 = vxor.u32 %v5751, 2147483648
    %v5753 = vmul.f32 %v5752, 1.442695
    %v5754 = vpow.pop %v5753
    %v5755 = vadd.f32 %v5754, 1.0
    %v5756 = vrcp.pop %v5755
    %v5757 = vmul.f32 1.0, %v5756
    %v5758 = vtanh.pop %v5751
    %v5759 = vmul.f32 %v5757, %v5613
    %5761 = vrot.lane.b32.xlu0 %v5758, 32
    %v5762 = vpop.permute.xlu0 %5761
    %v5764 = vmul.f32 %v5757, %v5762
    %5766 = vrot.lane.b32.xlu0 %v5764, 32
    %v5767 = vpop.permute.xlu0 %5766
    %v5769 = vadd.f32 %v5759, %v5767
    %v5770 = vtanh.pop %v5769
    %5772 = vrot.lane.b32.xlu0 %v5770, 32
    %v5773 = vpop.permute.xlu0 %5772
    %v5775 = vmul.f32 %v5757, %v5773
    %5777 = vrot.lane.b32.xlu0 %v5775, 96
    %v5778 = vpop.permute.xlu0 %5777
    %5780 = vst.msk [vmem:[#allocation2] sm:$0x3] %vm386, %v5778
    %v5781 = vld [vmem:[#allocation2 + $0x38] sm:$0x3]
    %v5782 = vpack.c.bf16 %v5781, %v5781
    %v5783 = vld [vmem:[%s5] sm:$0xf]
    %v5784 = vld [vmem:[%s5 + $0x4] sm:$0xf]
    %v5785 = vld [vmem:[%s5 + $0x8] sm:$0xf]
    %v5786 = vld [vmem:[%s5 + $0xc] sm:$0xf]
    %v5787 = vld [vmem:[%s5 + $0x10] sm:$0xf]
    %v5788 = vld [vmem:[%s5 + $0x14] sm:$0xf]
    %v5789 = vld [vmem:[%s5 + $0x18] sm:$0xf]
    %v5790 = vld [vmem:[%s5 + $0x1c] sm:$0xf]
    %v5791 = vld [vmem:[%s6] sm:$0x1]
    %v5793 = vlaneseq
    %v5794 = vshrl.u32 %v5793, 7
    %v5795 = vsub.s32 0, %v5794
    %v5796 = vrot.slane %v5791, %v5795
    %v5806 = vunpack.c.l.b16 %v5783
    %v5807 = vunpack.c.l.b16 %v5784
    %v5808 = vunpack.c.l.b16 %v5785
    %v5809 = vunpack.c.l.b16 %v5786
    %v5810 = vunpack.c.l.b16 %v5787
    %v5811 = vunpack.c.l.b16 %v5788
    %v5812 = vunpack.c.l.b16 %v5789
    %v5813 = vunpack.c.l.b16 %v5790
    %v5814 = vpack.c.b16 %v5807, %v5806
    %v5815 = vpack.c.b16 %v5809, %v5808
    %v5816 = vpack.c.b16 %v5811, %v5810
    %v5817 = vpack.c.b16 %v5813, %v5812
    %v5823 = vsel %vm42, %v5782, 0
    %5825 = vmatprep.subr.bf16.mxu0 0
    %5826 = vmatpush1.bf16.msra.mxu0 0
    %5827 = vmatprep.subr.bf16.mxu0 0
    %5828 = vmatpush1.bf16.msra.mxu0 0
    %5829 = vmatprep.subr.bf16.mxu0 0
    %5830 = vmatpush1.bf16.msra.mxu0 0
    %5831 = vmatprep.subr.bf16.mxu0 0
    %5832 = vmatpush1.bf16.msra.mxu0 0
    %5833 = vmatprep.subr.bf16.mxu0 0
    %5834 = vmatpush1.bf16.msra.mxu0 %v5817
    %5835 = vmatprep.subr.bf16.mxu0 0
    %5836 = vmatpush1.bf16.msra.mxu0 %v5816
    %5837 = vmatprep.subr.bf16.mxu0 0
    %5838 = vmatpush1.bf16.msra.mxu0 %v5815
    %5839 = vmatprep.subr.bf16.mxu0 0
    %5840 = vmatpush1.bf16.msra.mxu0 %v5814
    %5841 = vmatprep.subr.bf16.mxu0 0
    %5842 = vmatpush2.bf16.msra.mxu0 0
    %5843 = vmatprep.subr.bf16.mxu0 0
    %5844 = vmatpush2.bf16.msra.mxu0 0
    %5845 = vmatprep.subr.bf16.mxu0 0
    %5846 = vmatpush2.bf16.msra.mxu0 0
    %5847 = vmatprep.subr.bf16.mxu0 0
    %5848 = vmatpush2.bf16.msra.mxu0 0
    %5849 = vmatprep.subr.bf16.mxu0 0
    %5850 = vmatpush2.bf16.msra.mxu0 0
    %5851 = vmatprep.subr.bf16.mxu0 0
    %5852 = vmatpush2.bf16.msra.mxu0 0
    %5853 = vmatprep.subr.bf16.mxu0 0
    %5854 = vmatpush2.bf16.msra.mxu0 0
    %5855 = vmatprep.subr.bf16.mxu0 0
    %5856 = vmatpush2.bf16.msra.mxu0 0
    %5857 = vmatprep.mubr.bf16.mxu0 0
    %5858 = vmatmul.mubr.bf16.gmra.mxu0 %v5823
    %v5859 = vpop.f32.mrf.mxu0
    %v5860 = vadd.f32 %v5796, %v5859
    %v5861 = vpop.f32.mrf.mxu0
    %v5862 = vpop.f32.mrf.mxu0
    %v5863 = vpop.f32.mrf.mxu0
    %5864 = vdwg.mxu0
    %vm5865 = vcmask 25600
    %v5866 = vsel %vm5865, %v5860, -inf
    %5867 = vmax.xlane.f32.xlu0 %v5866
    %v5868 = vpop.xlane.xlu0 %5867
    %v5869 = vsub.f32 %v5860, %v5868
    %v5870 = vmul.f32 %v5869, 1.442695
    %v5871 = vpow.pop %v5870
    %v5872 = vsel %vm5865, %v5871, 0.0
    %5873 = vadd.xlane.f32.xlu0 %v5872
    %v5874 = vpop.xlane.xlu0 %5873
    %v5875 = vlog2.pop %v5874
    %v5876 = vmul.f32 %v5875, 0.6931472
    %v5877 = vsub.f32 %v5869, %v5876
    %5878 = vst.msk [vmem:[#allocation7] sm:$0x3] %vm5865, %v5877
    // Predicated region
    $region34: #{rnn_classifier_forward.1} parent=1 // pred_check
      _
    $region35: #{rnn_classifier_forward.1} parent=1 // pred_check_branch
      %5880 = sbr.rel (0) target = $region37
    $region36: #{rnn_classifier_forward.1} parent=1 // pred_region
      %s5882 = ssub.s32 32, 32
      %5883 = vsyncadd [#allocation6], %s5882
      %s5885 = sshll.u32 [#allocation7], 4
      %s5886 = int_to_ptr.vmem [resolvable:$true] %s5885
      %5888 = dma.vmem_to_hbm [thread:$0]  %s5886, 32, %s7, [#allocation6]
    $region37: #{rnn_classifier_forward.1} parent=1 // pred_fallthru
      _
    // Predicated region
    $region38: #{rnn_classifier_forward.1} parent=1 // pred_check
      _
    $region39: #{rnn_classifier_forward.1} parent=1 // pred_check_branch
      %5890 = sbr.rel (0) target = $region41
    $region40: #{rnn_classifier_forward.1} parent=1 // pred_region
      %5891 = dma.done [#allocation6], 32
    $region41: #{rnn_classifier_forward.1} parent=1 // pred_fallthru
      _
    %5892 = vsyncpa [#allocation5], 1
    %5893 = vsyncpa [#allocation6], 1

</llo_original>
